<compile_context>
chip_gen: v7x
topology: tpu7x:2x2x1
jax: 0.10.0
libtpu: 0.0.40
codegen_flags: <defaults>
</compile_context>

<pallas_src>
import functools

import numpy as np

import jax
import jax.numpy as jnp
from jax.experimental import pallas as pl
from jax.experimental.pallas import tpu as pltpu


# Branch order == output channel order of the PyTorch block:
#   ret = cat([x_vy, x_ux, x_xy, x_uv], dim=channel)
# Each entry = pair of spatial axes of (HV, WV, H, W) the 3x3 conv slides over.
_BRANCH_AXES = (
    (1, 3),   # vy: conv over (WV, W)
    (0, 2),   # ux: conv over (HV, H)
    (2, 3),   # xy: conv over (H,  W)
    (0, 1),   # uv: conv over (HV, WV)
)


def _round_up(v, m):
    return (v + m - 1) // m * m


def _tap_tables(dims, axes):
    """Static lane-shift offsets + 0/1 validity masks for a SAME 3^k conv over `axes`.

    The spatial space `dims` is row-major flattened to P positions; tap order is
    row-major over the per-axis shifts (-1, 0, +1), matching the weight layouts used
    below.  Returns (offsets: tuple[int], masks: float32[ntaps, P]).
    """
    dims = tuple(int(d) for d in dims)
    P = int(np.prod(dims))
    strides = [1] * len(dims)
    for ax in range(len(dims) - 2, -1, -1):
        strides[ax] = strides[ax + 1] * dims[ax + 1]
    coords = np.meshgrid(*[np.arange(d) for d in dims], indexing="ij")
    coords = [c.reshape(-1) for c in coords]
    offsets, masks = [], []
    for shifts in np.ndindex(*([3] * len(axes))):
        off = 0
        valid = np.ones(P, bool)
        for ax, s3 in zip(axes, shifts):
            s = s3 - 1
            off += s * strides[ax]
            c = coords[ax] + s
            valid &= (c >= 0) & (c < dims[ax])
        offsets.append(int(off))
        masks.append(valid)
    return tuple(offsets), np.stack(masks).astype(np.float32)


def _shift_flat(x, off):
    """result[:, p] = x[:, (p + off) mod P]  (wrapped lanes are masked by the caller)."""
    if off == 0:
        return x
    P = x.shape[-1]
    k = off % P
    return jnp.concatenate([x[:, k:], x[:, :k]], axis=-1)


# ---------------------------------------------------------------------------
# Kernels
# ---------------------------------------------------------------------------

def _pre_conv_kernel(tap_offsets, k_rows, x_ref, w_ref, ba_ref, mask_ref, o_ref, xi_s):
    """3x3x3 SAME conv over the flattened (D, H, W) space + bias + PReLU (one image).

    x_ref    : (1, Cin, P)   f32
    w_ref    : (Cout, Kpad)  bf16, column k = tap*Cin + ci, tap = dz*9 + dy*3 + dx
    ba_ref   : (2, Cout, 1)  f32, [0] = bias, [1] = PReLU slope
    mask_ref : (27, 1, P)    f32, 0/1 tap validity
    o_ref    : (1, Cout, P)  f32
    xi_s     : (Kpad, P)     bf16 scratch holding the tap-fused (im2col) MXU operand
    """
    x = x_ref[0].astype(jnp.bfloat16)             # single bf16 cast of the activation
    cin = x.shape[0]
    used = len(tap_offsets) * cin
    for t, off in enumerate(tap_offsets):
        if off == 0:                              # centre tap: always valid
            xi_s[t * cin:(t + 1) * cin, :] = x
        else:
            xs = _shift_flat(x, off)
            xi_s[t * cin:(t + 1) * cin, :] = jnp.where(
                mask_ref[t] > 0.5, xs, jnp.zeros_like(xs))
    if k_rows > used:                             # K-padding rows (their weights are 0)
        xi_s[used:, :] = jnp.zeros((k_rows - used, x.shape[-1]), jnp.bfloat16)
    acc = jnp.dot(w_ref[...], xi_s[...], preferred_element_type=jnp.float32)  # (Cout, P)
    acc = acc + ba_ref[0]                         # lane-broadcast, f32 epilogue
    acc = jnp.where(acc >= 0, acc, ba_ref[1] * acc)
    o_ref[0] = acc


def _mdf_block_kernel(tap_offsets, k_rows, x_ref, w_ref, ba_ref, mask_ref, o_ref, xi_s):
    """One branch of one MultiDimensionFusionBlock for one batch element.

    grid = (B, 4); pl.program_id(1) picks the branch in [vy, ux, xy, uv] order.

    x_ref    : (1, n, P)      f32  (P = HV*WV*H*W on the lane axis)
    w_ref    : (1, c, Kpad)   bf16 this branch's weights, column = tap*n + ci
    ba_ref   : (1, 2, c, 1)   f32  [0,0] = bias, [0,1] = PReLU slope
    mask_ref : (1, 9, 1, P)   f32  this branch's 0/1 tap validity
    o_ref    : (1, 1, c, P)   f32  this branch's c output channels
    xi_s     : (Kpad, P)      bf16 scratch holding the tap-fused (im2col) MXU operand
    """
    br = pl.program_id(1)
    x = x_ref[0].astype(jnp.bfloat16)             # single bf16 cast per grid step
    n, P = x.shape
    used = len(tap_offsets[0]) * n
    if k_rows > used:                             # K-padding rows (their weights are 0)
        xi_s[used:, :] = jnp.zeros((k_rows - used, P), jnp.bfloat16)

    for widx, offs in enumerate(tap_offsets):
        @pl.when(br == widx)
        def _(offs=offs):
            for t, off in enumerate(offs):
                if off == 0:                      # centre tap: always valid
                    xi_s[t * n:(t + 1) * n, :] = x
                else:
                    xs = _shift_flat(x, off)
                    xi_s[t * n:(t + 1) * n, :] = jnp.where(
                        mask_ref[0, t] > 0.5, xs, jnp.zeros_like(xs))
            acc = jnp.dot(w_ref[0], xi_s[...],
                          preferred_element_type=jnp.float32)      # (c, P), lane-dense
            acc = acc + ba_ref[0, 0]              # lane-broadcast, f32 epilogue
            acc = jnp.where(acc >= 0, acc, ba_ref[0, 1] * acc)
            o_ref[0, 0] = acc


# ---------------------------------------------------------------------------
# Pallas wrappers
# ---------------------------------------------------------------------------

def pre_conv3d_prelu(x, w_taps, b, alpha, dhw):
    """x: [B, Cin, P] f32 with P = D*H*W.  w_taps: [27, Cin, Cout].  b: [Cout].  alpha: [1]."""
    B, Cin, P = x.shape
    Cout = w_taps.shape[-1]
    assert int(np.prod(dhw)) == P
    k_rows = _round_up(27 * Cin, 16)
    # (27, Cin, Cout) -> (Cout, 27*Cin) with column = tap*Cin + ci, zero-padded in K.
    w_flat = jnp.transpose(w_taps, (2, 0, 1)).reshape(Cout, 27 * Cin)
    w_flat = jnp.pad(w_flat, ((0, 0), (0, k_rows - 27 * Cin))).astype(jnp.bfloat16)
    ba = jnp.stack([b, jnp.broadcast_to(alpha, (Cout,))]).astype(jnp.float32)[..., None]
    offsets, masks = _tap_tables(dhw, (0, 1, 2))
    masks = jnp.asarray(masks)[:, None, :]                             # (27, 1, P)
    kernel = functools.partial(_pre_conv_kernel, offsets, k_rows)
    return pl.pallas_call(
        kernel,
        out_shape=jax.ShapeDtypeStruct((B, Cout, P), jnp.float32),
        grid=(B,),
        in_specs=[
            pl.BlockSpec((1, Cin, P), lambda i: (i, 0, 0)),
            pl.BlockSpec((Cout, k_rows), lambda i: (0, 0)),
            pl.BlockSpec((2, Cout, 1), lambda i: (0, 0, 0)),
            pl.BlockSpec((27, 1, P), lambda i: (0, 0, 0)),
        ],
        out_specs=pl.BlockSpec((1, Cout, P), lambda i: (i, 0, 0)),
        scratch_shapes=[pltpu.VMEM((k_rows, P), jnp.bfloat16)],
        compiler_params=pltpu.CompilerParams(dimension_semantics=("parallel",)),
    )(x, w_flat, ba, masks)


def mdf_block_fused(x, bp, dims):
    """One fused MultiDimensionFusionBlock.  x: [B, n, P] f32, P = HV*WV*H*W."""
    B, n, P = x.shape
    c = n // 4
    assert int(np.prod(dims)) == P
    k_rows = _round_up(9 * n, 16)

    def flat_w(w):      # (9, n, c) -> (c, Kpad) with column = tap*n + ci
        w = jnp.transpose(w, (2, 0, 1)).reshape(c, 9 * n)
        return jnp.pad(w, ((0, 0), (0, k_rows - 9 * n)))

    # branch order [vy, ux, xy, uv] == output channel order of the PyTorch block
    w_all = jnp.stack([flat_w(bp["vy_w"]), flat_w(bp["ux_w"]),
                       flat_w(bp["xy_w"]), flat_w(bp["uv_w"])]).astype(jnp.bfloat16)
    b_all = jnp.stack([bp["vy_b"], bp["ux_b"], bp["xy_b"], bp["uv_b"]])     # (4, c)
    a_all = jnp.concatenate([bp["a2"], bp["a3"], bp["a0"], bp["a1"]])       # (4,)
    ba = jnp.stack([b_all, jnp.broadcast_to(a_all[:, None], (4, c))],
                   axis=1).astype(jnp.float32)[..., None]                   # (4, 2, c, 1)

    offs_all, mask_all = [], []
    for axes in _BRANCH_AXES:
        o, m = _tap_tables(dims, axes)
        offs_all.append(o)
        mask_all.append(m)
    masks = jnp.asarray(np.stack(mask_all))[:, :, None, :]                  # (4, 9, 1, P)

    kernel = functools.partial(_mdf_block_kernel, tuple(offs_all), k_rows)
    out = pl.pallas_call(
        kernel,
        out_shape=jax.ShapeDtypeStruct((B, 4, c, P), jnp.float32),
        grid=(B, 4),
        in_specs=[
            pl.BlockSpec((1, n, P), lambda b, r: (b, 0, 0)),   # resident across branches
            pl.BlockSpec((1, c, k_rows), lambda b, r: (r, 0, 0)),
            pl.BlockSpec((1, 2, c, 1), lambda b, r: (r, 0, 0, 0)),
            pl.BlockSpec((1, 9, 1, P), lambda b, r: (r, 0, 0, 0)),
        ],
        out_specs=pl.BlockSpec((1, 1, c, P), lambda b, r: (b, r, 0, 0)),
        scratch_shapes=[pltpu.VMEM((k_rows, P), jnp.bfloat16)],
        compiler_params=pltpu.CompilerParams(
            dimension_semantics=("parallel", "arbitrary")),
    )(x, w_all, ba, masks)
    return out.reshape(B, n, P)              # channel order [vy | ux | xy | uv]


def mdfa_forward(x_nchw, params):
    """x_nchw: [B, Cin, HV, WV, H, W] (PyTorch layout).  Returns [B, n, HV, WV, H, W]."""
    B, Cin, HV, WV, H, W = x_nchw.shape
    P = HV * WV * H * W
    x = x_nchw.reshape(B, Cin, P)                     # free row-major flatten
    y = pre_conv3d_prelu(x, params["pre_w"], params["pre_b"], params["pre_a"],
                         (HV * WV, H, W))
    for bp in params["blocks"]:
        y = mdf_block_fused(y, bp, (HV, WV, H, W))
    n = y.shape[1]
    return y.reshape(B, n, HV, WV, H, W)


# ---------------------------------------------------------------------------
# Pure-JAX reference (lax.conv) with identical glue / quantization points
# ---------------------------------------------------------------------------

def _conv2d_ref(x, w_taps, b, alpha):
    Cin, Cout = w_taps.shape[1], w_taps.shape[2]
    w = w_taps.reshape(3, 3, Cin, Cout).astype(jnp.bfloat16)
    y = jax.lax.conv_general_dilated(
        x.astype(jnp.bfloat16), w, (1, 1), "SAME",
        dimension_numbers=("NHWC", "HWIO", "NHWC"),
        preferred_element_type=jnp.float32)
    y = y + b
    return jnp.where(y >= 0, y, alpha[0] * y)


def _conv3d_ref(x, w_taps, b, alpha):
    Cin, Cout = w_taps.shape[1], w_taps.shape[2]
    w = w_taps.reshape(3, 3, 3, Cin, Cout).astype(jnp.bfloat16)
    y = jax.lax.conv_general_dilated(
        x.astype(jnp.bfloat16), w, (1, 1, 1), "SAME",
        dimension_numbers=("NDHWC", "DHWIO", "NDHWC"),
        preferred_element_type=jnp.float32)
    y = y + b
    return jnp.where(y >= 0, y, alpha[0] * y)


def _mdf_block_ref(x, bp):
    B, HV, WV, H, W, n = x.shape
    c = n // 4
    x_xy = _conv2d_ref(x.reshape(B * HV * WV, H, W, n), bp["xy_w"], bp["xy_b"], bp["a0"])
    x_xy = x_xy.reshape(B, HV, WV, H, W, c)
    x_uv_in = jnp.transpose(x, (0, 3, 4, 1, 2, 5)).reshape(B * H * W, HV, WV, n)
    x_uv = _conv2d_ref(x_uv_in, bp["uv_w"], bp["uv_b"], bp["a1"])
    x_uv = jnp.transpose(x_uv.reshape(B, H, W, HV, WV, c), (0, 3, 4, 1, 2, 5))
    x_vy_in = jnp.transpose(x, (0, 1, 3, 2, 4, 5)).reshape(B * HV * H, WV, W, n)
    x_vy = _conv2d_ref(x_vy_in, bp["vy_w"], bp["vy_b"], bp["a2"])
    x_vy = jnp.transpose(x_vy.reshape(B, HV, H, WV, W, c), (0, 1, 3, 2, 4, 5))
    x_ux_in = jnp.transpose(x, (0, 2, 4, 1, 3, 5)).reshape(B * WV * W, HV, H, n)
    x_ux = _conv2d_ref(x_ux_in, bp["ux_w"], bp["ux_b"], bp["a3"])
    x_ux = jnp.transpose(x_ux.reshape(B, WV, W, HV, H, c), (0, 3, 1, 4, 2, 5))
    return jnp.concatenate([x_vy, x_ux, x_xy, x_uv], axis=-1)


def mdfa_forward_ref(x_nchw, params):
    B, Cin, HV, WV, H, W = x_nchw.shape
    x = jnp.transpose(x_nchw, (0, 2, 3, 4, 5, 1))
    y = _conv3d_ref(x.reshape(B, HV * WV, H, W, Cin),
                    params["pre_w"], params["pre_b"], params["pre_a"])
    n = y.shape[-1]
    y = y.reshape(B, HV, WV, H, W, n)
    for bp in params["blocks"]:
        y = _mdf_block_ref(y, bp)
    return jnp.transpose(y, (0, 5, 1, 2, 3, 4))


# ---------------------------------------------------------------------------
# Parameter init (kaiming-uniform-like weights; biases / PReLU slopes are drawn
# small-random instead of the PyTorch zeros / 0.25 so the validation also exercises
# the bias-add and the per-branch PReLU pairing).
# ---------------------------------------------------------------------------

def _kaiming_uniform(key, shape, fan_in, a=0.25):
    gain = (2.0 / (1.0 + a * a)) ** 0.5
    bound = gain * (3.0 / fan_in) ** 0.5
    return jax.random.uniform(key, shape, jnp.float32, -bound, bound)


def init_params(key, in_channel, channel_num, block_num):
    n = channel_num
    c = n // 4
    keys = iter(jax.random.split(key, 3 + 12 * block_num))
    params = {
        "pre_w": _kaiming_uniform(next(keys), (27, in_channel, n), fan_in=in_channel * 27),
        "pre_b": 0.1 * jax.random.normal(next(keys), (n,), jnp.float32),
        "pre_a": jax.random.uniform(next(keys), (1,), jnp.float32, 0.1, 0.4),
        "blocks": [],
    }
    for _ in range(block_num):
        bp = {}
        for name in ("xy", "uv", "vy", "ux"):
            bp[f"{name}_w"] = _kaiming_uniform(next(keys), (9, n, c), fan_in=n * 9)
            bp[f"{name}_b"] = 0.1 * jax.random.normal(next(keys), (c,), jnp.float32)
        for i in range(4):
            bp[f"a{i}"] = jax.random.uniform(next(keys), (1,), jnp.float32, 0.1, 0.4)
        params["blocks"].append(bp)
    return params


# ---------------------------------------------------------------------------

if __name__ == "__main__":
    key = jax.random.PRNGKey(0)
    kx, kp = jax.random.split(key)

    # light-field tensor [B, C, HV, WV, H, W]
    B, Cin, HV, WV, H, W = 2, 4, 3, 3, 8, 8
    channel_num, block_num = 16, 2

    x = jax.random.normal(kx, (B, Cin, HV, WV, H, W), jnp.float32)
    params = init_params(kp, Cin, channel_num, block_num)

    out = jax.block_until_ready(jax.jit(mdfa_forward)(x, params))
    assert out.shape == (B, channel_num, HV, WV, H, W), out.shape

    # validate the fused Pallas path against a lax.conv reference that follows the
    # PyTorch forward exactly (same bf16 matmul operands, f32 accumulation).
    ref = jax.block_until_ready(jax.jit(mdfa_forward_ref)(x, params))
    max_err = float(jnp.max(jnp.abs(out - ref)))
    assert max_err < 2e-2, f"Pallas/reference mismatch: max abs err = {max_err}"

    print("KERNEL_OK")
</pallas_src>

<mosaic_0001>
module attributes {stable_mosaic.version = 11 : i64} {
  func.func @_pre_conv_kernel(%arg0: i32, %arg1: memref<1x4x576xf32, #tpu.memory_space<vmem>>, %arg2: memref<16x112xbf16, #tpu.memory_space<vmem>>, %arg3: memref<2x16x1xf32, #tpu.memory_space<vmem>>, %arg4: memref<27x1x576xf32, #tpu.memory_space<vmem>>, %arg5: memref<1x16x576xf32, #tpu.memory_space<vmem>>, %arg6: memref<112x576xbf16, #tpu.memory_space<vmem>>) attributes {dimension_semantics = [#tpu.dimension_semantics<parallel>], iteration_bounds = array<i64: 2>, scalar_prefetch = 0 : i64, scratch_operands = 1 : i64, tpu.core_type = #tpu.core_type<tc>, window_params = [{transform_indices = @transform_0, window_bounds = array<i64: 1, 4, 576>}, {pipeline_mode = #tpu.pipeline_mode<synchronous>, transform_indices = @transform_1, window_bounds = array<i64: 16, 112>}, {pipeline_mode = #tpu.pipeline_mode<synchronous>, transform_indices = @transform_2, window_bounds = array<i64: 2, 16, 1>}, {pipeline_mode = #tpu.pipeline_mode<synchronous>, transform_indices = @transform_3, window_bounds = array<i64: 27, 1, 576>}, {transform_indices = @transform_4, window_bounds = array<i64: 1, 16, 576>}]} {
    %c0 = arith.constant 0 : index
    %c0_0 = arith.constant 0 : index
    %c0_1 = arith.constant 0 : index
    %0 = vector.load %arg1[%c0, %c0_0, %c0_1] : memref<1x4x576xf32, #tpu.memory_space<vmem>>, vector<1x4x576xf32>
    %1 = vector.shape_cast %0 : vector<1x4x576xf32> to vector<4x576xf32>
    %2 = arith.truncf %1 : vector<4x576xf32> to vector<4x576xbf16>
    %3 = vector.extract_strided_slice %2 {offsets = [0, 503], sizes = [4, 73], strides = [1, 1]} : vector<4x576xbf16> to vector<4x73xbf16>
    %4 = vector.extract_strided_slice %2 {offsets = [0, 0], sizes = [4, 503], strides = [1, 1]} : vector<4x576xbf16> to vector<4x503xbf16>
    %5 = tpu.concatenate %3, %4 in 1 : vector<4x73xbf16>, vector<4x503xbf16> -> vector<4x576xbf16>
    %c0_2 = arith.constant 0 : index
    %c0_3 = arith.constant 0 : index
    %c0_4 = arith.constant 0 : index
    %6 = vector.load %arg4[%c0_2, %c0_3, %c0_4] : memref<27x1x576xf32, #tpu.memory_space<vmem>>, vector<1x1x576xf32>
    %7 = vector.shape_cast %6 : vector<1x1x576xf32> to vector<1x576xf32>
    %cst = arith.constant 5.000000e-01 : f32
    %8 = vector.broadcast %cst : f32 to vector<1x576xf32>
    %9 = arith.cmpf ogt, %7, %8 : vector<1x576xf32>
    %cst_5 = arith.constant 0.000000e+00 : bf16
    %10 = vector.broadcast %cst_5 : bf16 to vector<4x576xbf16>
    %11 = vector.shape_cast %9 : vector<1x576xi1> to vector<1x576xi1>
    %12 = vector.broadcast %11 : vector<1x576xi1> to vector<4x576xi1>
    %13 = arith.select %12, %5, %10 : vector<4x576xi1>, vector<4x576xbf16>
    %c0_6 = arith.constant 0 : index
    %c0_7 = arith.constant 0 : index
    %14 = vector.load %arg6[%c0_6, %c0_7] : memref<112x576xbf16, #tpu.memory_space<vmem>>, vector<4x576xbf16>
    tpu.vector_store %arg6[%c0_6, %c0_7], %13 {strides = array<i32>} : memref<112x576xbf16, #tpu.memory_space<vmem>>, vector<4x576xbf16>,
    %15 = vector.extract_strided_slice %2 {offsets = [0, 504], sizes = [4, 72], strides = [1, 1]} : vector<4x576xbf16> to vector<4x72xbf16>
    %16 = vector.extract_strided_slice %2 {offsets = [0, 0], sizes = [4, 504], strides = [1, 1]} : vector<4x576xbf16> to vector<4x504xbf16>
    %17 = tpu.concatenate %15, %16 in 1 : vector<4x72xbf16>, vector<4x504xbf16> -> vector<4x576xbf16>
    %c1 = arith.constant 1 : index
    %c0_8 = arith.constant 0 : index
    %c0_9 = arith.constant 0 : index
    %18 = vector.load %arg4[%c1, %c0_8, %c0_9] : memref<27x1x576xf32, #tpu.memory_space<vmem>>, vector<1x1x576xf32>
    %19 = vector.shape_cast %18 : vector<1x1x576xf32> to vector<1x576xf32>
    %cst_10 = arith.constant 5.000000e-01 : f32
    %20 = vector.broadcast %cst_10 : f32 to vector<1x576xf32>
    %21 = arith.cmpf ogt, %19, %20 : vector<1x576xf32>
    %cst_11 = arith.constant 0.000000e+00 : bf16
    %22 = vector.broadcast %cst_11 : bf16 to vector<4x576xbf16>
    %23 = vector.shape_cast %21 : vector<1x576xi1> to vector<1x576xi1>
    %24 = vector.broadcast %23 : vector<1x576xi1> to vector<4x576xi1>
    %25 = arith.select %24, %17, %22 : vector<4x576xi1>, vector<4x576xbf16>
    %c4 = arith.constant 4 : index
    %c0_12 = arith.constant 0 : index
    %26 = vector.load %arg6[%c4, %c0_12] : memref<112x576xbf16, #tpu.memory_space<vmem>>, vector<4x576xbf16>
    tpu.vector_store %arg6[%c4, %c0_12], %25 {strides = array<i32>} : memref<112x576xbf16, #tpu.memory_space<vmem>>, vector<4x576xbf16>,
    %27 = vector.extract_strided_slice %2 {offsets = [0, 505], sizes = [4, 71], strides = [1, 1]} : vector<4x576xbf16> to vector<4x71xbf16>
    %28 = vector.extract_strided_slice %2 {offsets = [0, 0], sizes = [4, 505], strides = [1, 1]} : vector<4x576xbf16> to vector<4x505xbf16>
    %29 = tpu.concatenate %27, %28 in 1 : vector<4x71xbf16>, vector<4x505xbf16> -> vector<4x576xbf16>
    %c2 = arith.constant 2 : index
    %c0_13 = arith.constant 0 : index
    %c0_14 = arith.constant 0 : index
    %30 = vector.load %arg4[%c2, %c0_13, %c0_14] : memref<27x1x576xf32, #tpu.memory_space<vmem>>, vector<1x1x576xf32>
    %31 = vector.shape_cast %30 : vector<1x1x576xf32> to vector<1x576xf32>
    %cst_15 = arith.constant 5.000000e-01 : f32
    %32 = vector.broadcast %cst_15 : f32 to vector<1x576xf32>
    %33 = arith.cmpf ogt, %31, %32 : vector<1x576xf32>
    %cst_16 = arith.constant 0.000000e+00 : bf16
    %34 = vector.broadcast %cst_16 : bf16 to vector<4x576xbf16>
    %35 = vector.shape_cast %33 : vector<1x576xi1> to vector<1x576xi1>
    %36 = vector.broadcast %35 : vector<1x576xi1> to vector<4x576xi1>
    %37 = arith.select %36, %29, %34 : vector<4x576xi1>, vector<4x576xbf16>
    %c8 = arith.constant 8 : index
    %c0_17 = arith.constant 0 : index
    %38 = vector.load %arg6[%c8, %c0_17] : memref<112x576xbf16, #tpu.memory_space<vmem>>, vector<4x576xbf16>
    tpu.vector_store %arg6[%c8, %c0_17], %37 {strides = array<i32>} : memref<112x576xbf16, #tpu.memory_space<vmem>>, vector<4x576xbf16>,
    %39 = vector.extract_strided_slice %2 {offsets = [0, 511], sizes = [4, 65], strides = [1, 1]} : vector<4x576xbf16> to vector<4x65xbf16>
    %40 = vector.extract_strided_slice %2 {offsets = [0, 0], sizes = [4, 511], strides = [1, 1]} : vector<4x576xbf16> to vector<4x511xbf16>
    %41 = tpu.concatenate %39, %40 in 1 : vector<4x65xbf16>, vector<4x511xbf16> -> vector<4x576xbf16>
    %c3 = arith.constant 3 : index
    %c0_18 = arith.constant 0 : index
    %c0_19 = arith.constant 0 : index
    %42 = vector.load %arg4[%c3, %c0_18, %c0_19] : memref<27x1x576xf32, #tpu.memory_space<vmem>>, vector<1x1x576xf32>
    %43 = vector.shape_cast %42 : vector<1x1x576xf32> to vector<1x576xf32>
    %cst_20 = arith.constant 5.000000e-01 : f32
    %44 = vector.broadcast %cst_20 : f32 to vector<1x576xf32>
    %45 = arith.cmpf ogt, %43, %44 : vector<1x576xf32>
    %cst_21 = arith.constant 0.000000e+00 : bf16
    %46 = vector.broadcast %cst_21 : bf16 to vector<4x576xbf16>
    %47 = vector.shape_cast %45 : vector<1x576xi1> to vector<1x576xi1>
    %48 = vector.broadcast %47 : vector<1x576xi1> to vector<4x576xi1>
    %49 = arith.select %48, %41, %46 : vector<4x576xi1>, vector<4x576xbf16>
    %c12 = arith.constant 12 : index
    %c0_22 = arith.constant 0 : index
    %50 = vector.load %arg6[%c12, %c0_22] : memref<112x576xbf16, #tpu.memory_space<vmem>>, vector<4x576xbf16>
    tpu.vector_store %arg6[%c12, %c0_22], %49 {strides = array<i32>} : memref<112x576xbf16, #tpu.memory_space<vmem>>, vector<4x576xbf16>,
    %51 = vector.extract_strided_slice %2 {offsets = [0, 512], sizes = [4, 64], strides = [1, 1]} : vector<4x576xbf16> to vector<4x64xbf16>
    %52 = vector.extract_strided_slice %2 {offsets = [0, 0], sizes = [4, 512], strides = [1, 1]} : vector<4x576xbf16> to vector<4x512xbf16>
    %53 = tpu.concatenate %51, %52 in 1 : vector<4x64xbf16>, vector<4x512xbf16> -> vector<4x576xbf16>
    %c4_23 = arith.constant 4 : index
    %c0_24 = arith.constant 0 : index
    %c0_25 = arith.constant 0 : index
    %54 = vector.load %arg4[%c4_23, %c0_24, %c0_25] : memref<27x1x576xf32, #tpu.memory_space<vmem>>, vector<1x1x576xf32>
    %55 = vector.shape_cast %54 : vector<1x1x576xf32> to vector<1x576xf32>
    %cst_26 = arith.constant 5.000000e-01 : f32
    %56 = vector.broadcast %cst_26 : f32 to vector<1x576xf32>
    %57 = arith.cmpf ogt, %55, %56 : vector<1x576xf32>
    %cst_27 = arith.constant 0.000000e+00 : bf16
    %58 = vector.broadcast %cst_27 : bf16 to vector<4x576xbf16>
    %59 = vector.shape_cast %57 : vector<1x576xi1> to vector<1x576xi1>
    %60 = vector.broadcast %59 : vector<1x576xi1> to vector<4x576xi1>
    %61 = arith.select %60, %53, %58 : vector<4x576xi1>, vector<4x576xbf16>
    %c16 = arith.constant 16 : index
    %c0_28 = arith.constant 0 : index
    %62 = vector.load %arg6[%c16, %c0_28] : memref<112x576xbf16, #tpu.memory_space<vmem>>, vector<4x576xbf16>
    tpu.vector_store %arg6[%c16, %c0_28], %61 {strides = array<i32>} : memref<112x576xbf16, #tpu.memory_space<vmem>>, vector<4x576xbf16>,
    %63 = vector.extract_strided_slice %2 {offsets = [0, 513], sizes = [4, 63], strides = [1, 1]} : vector<4x576xbf16> to vector<4x63xbf16>
    %64 = vector.extract_strided_slice %2 {offsets = [0, 0], sizes = [4, 513], strides = [1, 1]} : vector<4x576xbf16> to vector<4x513xbf16>
    %65 = tpu.concatenate %63, %64 in 1 : vector<4x63xbf16>, vector<4x513xbf16> -> vector<4x576xbf16>
    %c5 = arith.constant 5 : index
    %c0_29 = arith.constant 0 : index
    %c0_30 = arith.constant 0 : index
    %66 = vector.load %arg4[%c5, %c0_29, %c0_30] : memref<27x1x576xf32, #tpu.memory_space<vmem>>, vector<1x1x576xf32>
    %67 = vector.shape_cast %66 : vector<1x1x576xf32> to vector<1x576xf32>
    %cst_31 = arith.constant 5.000000e-01 : f32
    %68 = vector.broadcast %cst_31 : f32 to vector<1x576xf32>
    %69 = arith.cmpf ogt, %67, %68 : vector<1x576xf32>
    %cst_32 = arith.constant 0.000000e+00 : bf16
    %70 = vector.broadcast %cst_32 : bf16 to vector<4x576xbf16>
    %71 = vector.shape_cast %69 : vector<1x576xi1> to vector<1x576xi1>
    %72 = vector.broadcast %71 : vector<1x576xi1> to vector<4x576xi1>
    %73 = arith.select %72, %65, %70 : vector<4x576xi1>, vector<4x576xbf16>
    %c20 = arith.constant 20 : index
    %c0_33 = arith.constant 0 : index
    %74 = vector.load %arg6[%c20, %c0_33] : memref<112x576xbf16, #tpu.memory_space<vmem>>, vector<4x576xbf16>
    tpu.vector_store %arg6[%c20, %c0_33], %73 {strides = array<i32>} : memref<112x576xbf16, #tpu.memory_space<vmem>>, vector<4x576xbf16>,
    %75 = vector.extract_strided_slice %2 {offsets = [0, 519], sizes = [4, 57], strides = [1, 1]} : vector<4x576xbf16> to vector<4x57xbf16>
    %76 = vector.extract_strided_slice %2 {offsets = [0, 0], sizes = [4, 519], strides = [1, 1]} : vector<4x576xbf16> to vector<4x519xbf16>
    %77 = tpu.concatenate %75, %76 in 1 : vector<4x57xbf16>, vector<4x519xbf16> -> vector<4x576xbf16>
    %c6 = arith.constant 6 : index
    %c0_34 = arith.constant 0 : index
    %c0_35 = arith.constant 0 : index
    %78 = vector.load %arg4[%c6, %c0_34, %c0_35] : memref<27x1x576xf32, #tpu.memory_space<vmem>>, vector<1x1x576xf32>
    %79 = vector.shape_cast %78 : vector<1x1x576xf32> to vector<1x576xf32>
    %cst_36 = arith.constant 5.000000e-01 : f32
    %80 = vector.broadcast %cst_36 : f32 to vector<1x576xf32>
    %81 = arith.cmpf ogt, %79, %80 : vector<1x576xf32>
    %cst_37 = arith.constant 0.000000e+00 : bf16
    %82 = vector.broadcast %cst_37 : bf16 to vector<4x576xbf16>
    %83 = vector.shape_cast %81 : vector<1x576xi1> to vector<1x576xi1>
    %84 = vector.broadcast %83 : vector<1x576xi1> to vector<4x576xi1>
    %85 = arith.select %84, %77, %82 : vector<4x576xi1>, vector<4x576xbf16>
    %c24 = arith.constant 24 : index
    %c0_38 = arith.constant 0 : index
    %86 = vector.load %arg6[%c24, %c0_38] : memref<112x576xbf16, #tpu.memory_space<vmem>>, vector<4x576xbf16>
    tpu.vector_store %arg6[%c24, %c0_38], %85 {strides = array<i32>} : memref<112x576xbf16, #tpu.memory_space<vmem>>, vector<4x576xbf16>,
    %87 = vector.extract_strided_slice %2 {offsets = [0, 520], sizes = [4, 56], strides = [1, 1]} : vector<4x576xbf16> to vector<4x56xbf16>
    %88 = vector.extract_strided_slice %2 {offsets = [0, 0], sizes = [4, 520], strides = [1, 1]} : vector<4x576xbf16> to vector<4x520xbf16>
    %89 = tpu.concatenate %87, %88 in 1 : vector<4x56xbf16>, vector<4x520xbf16> -> vector<4x576xbf16>
    %c7 = arith.constant 7 : index
    %c0_39 = arith.constant 0 : index
    %c0_40 = arith.constant 0 : index
    %90 = vector.load %arg4[%c7, %c0_39, %c0_40] : memref<27x1x576xf32, #tpu.memory_space<vmem>>, vector<1x1x576xf32>
    %91 = vector.shape_cast %90 : vector<1x1x576xf32> to vector<1x576xf32>
    %cst_41 = arith.constant 5.000000e-01 : f32
    %92 = vector.broadcast %cst_41 : f32 to vector<1x576xf32>
    %93 = arith.cmpf ogt, %91, %92 : vector<1x576xf32>
    %cst_42 = arith.constant 0.000000e+00 : bf16
    %94 = vector.broadcast %cst_42 : bf16 to vector<4x576xbf16>
    %95 = vector.shape_cast %93 : vector<1x576xi1> to vector<1x576xi1>
    %96 = vector.broadcast %95 : vector<1x576xi1> to vector<4x576xi1>
    %97 = arith.select %96, %89, %94 : vector<4x576xi1>, vector<4x576xbf16>
    %c28 = arith.constant 28 : index
    %c0_43 = arith.constant 0 : index
    %98 = vector.load %arg6[%c28, %c0_43] : memref<112x576xbf16, #tpu.memory_space<vmem>>, vector<4x576xbf16>
    tpu.vector_store %arg6[%c28, %c0_43], %97 {strides = array<i32>} : memref<112x576xbf16, #tpu.memory_space<vmem>>, vector<4x576xbf16>,
    %99 = vector.extract_strided_slice %2 {offsets = [0, 521], sizes = [4, 55], strides = [1, 1]} : vector<4x576xbf16> to vector<4x55xbf16>
    %100 = vector.extract_strided_slice %2 {offsets = [0, 0], sizes = [4, 521], strides = [1, 1]} : vector<4x576xbf16> to vector<4x521xbf16>
    %101 = tpu.concatenate %99, %100 in 1 : vector<4x55xbf16>, vector<4x521xbf16> -> vector<4x576xbf16>
    %c8_44 = arith.constant 8 : index
    %c0_45 = arith.constant 0 : index
    %c0_46 = arith.constant 0 : index
    %102 = vector.load %arg4[%c8_44, %c0_45, %c0_46] : memref<27x1x576xf32, #tpu.memory_space<vmem>>, vector<1x1x576xf32>
    %103 = vector.shape_cast %102 : vector<1x1x576xf32> to vector<1x576xf32>
    %cst_47 = arith.constant 5.000000e-01 : f32
    %104 = vector.broadcast %cst_47 : f32 to vector<1x576xf32>
    %105 = arith.cmpf ogt, %103, %104 : vector<1x576xf32>
    %cst_48 = arith.constant 0.000000e+00 : bf16
    %106 = vector.broadcast %cst_48 : bf16 to vector<4x576xbf16>
    %107 = vector.shape_cast %105 : vector<1x576xi1> to vector<1x576xi1>
    %108 = vector.broadcast %107 : vector<1x576xi1> to vector<4x576xi1>
    %109 = arith.select %108, %101, %106 : vector<4x576xi1>, vector<4x576xbf16>
    %c32 = arith.constant 32 : index
    %c0_49 = arith.constant 0 : index
    %110 = vector.load %arg6[%c32, %c0_49] : memref<112x576xbf16, #tpu.memory_space<vmem>>, vector<4x576xbf16>
    tpu.vector_store %arg6[%c32, %c0_49], %109 {strides = array<i32>} : memref<112x576xbf16, #tpu.memory_space<vmem>>, vector<4x576xbf16>,
    %111 = vector.extract_strided_slice %2 {offsets = [0, 567], sizes = [4, 9], strides = [1, 1]} : vector<4x576xbf16> to vector<4x9xbf16>
    %112 = vector.extract_strided_slice %2 {offsets = [0, 0], sizes = [4, 567], strides = [1, 1]} : vector<4x576xbf16> to vector<4x567xbf16>
    %113 = tpu.concatenate %111, %112 in 1 : vector<4x9xbf16>, vector<4x567xbf16> -> vector<4x576xbf16>
    %c9 = arith.constant 9 : index
    %c0_50 = arith.constant 0 : index
    %c0_51 = arith.constant 0 : index
    %114 = vector.load %arg4[%c9, %c0_50, %c0_51] : memref<27x1x576xf32, #tpu.memory_space<vmem>>, vector<1x1x576xf32>
    %115 = vector.shape_cast %114 : vector<1x1x576xf32> to vector<1x576xf32>
    %cst_52 = arith.constant 5.000000e-01 : f32
    %116 = vector.broadcast %cst_52 : f32 to vector<1x576xf32>
    %117 = arith.cmpf ogt, %115, %116 : vector<1x576xf32>
    %cst_53 = arith.constant 0.000000e+00 : bf16
    %118 = vector.broadcast %cst_53 : bf16 to vector<4x576xbf16>
    %119 = vector.shape_cast %117 : vector<1x576xi1> to vector<1x576xi1>
    %120 = vector.broadcast %119 : vector<1x576xi1> to vector<4x576xi1>
    %121 = arith.select %120, %113, %118 : vector<4x576xi1>, vector<4x576xbf16>
    %c36 = arith.constant 36 : index
    %c0_54 = arith.constant 0 : index
    %122 = vector.load %arg6[%c36, %c0_54] : memref<112x576xbf16, #tpu.memory_space<vmem>>, vector<4x576xbf16>
    tpu.vector_store %arg6[%c36, %c0_54], %121 {strides = array<i32>} : memref<112x576xbf16, #tpu.memory_space<vmem>>, vector<4x576xbf16>,
    %123 = vector.extract_strided_slice %2 {offsets = [0, 568], sizes = [4, 8], strides = [1, 1]} : vector<4x576xbf16> to vector<4x8xbf16>
    %124 = vector.extract_strided_slice %2 {offsets = [0, 0], sizes = [4, 568], strides = [1, 1]} : vector<4x576xbf16> to vector<4x568xbf16>
    %125 = tpu.concatenate %123, %124 in 1 : vector<4x8xbf16>, vector<4x568xbf16> -> vector<4x576xbf16>
    %c10 = arith.constant 10 : index
    %c0_55 = arith.constant 0 : index
    %c0_56 = arith.constant 0 : index
    %126 = vector.load %arg4[%c10, %c0_55, %c0_56] : memref<27x1x576xf32, #tpu.memory_space<vmem>>, vector<1x1x576xf32>
    %127 = vector.shape_cast %126 : vector<1x1x576xf32> to vector<1x576xf32>
    %cst_57 = arith.constant 5.000000e-01 : f32
    %128 = vector.broadcast %cst_57 : f32 to vector<1x576xf32>
    %129 = arith.cmpf ogt, %127, %128 : vector<1x576xf32>
    %cst_58 = arith.constant 0.000000e+00 : bf16
    %130 = vector.broadcast %cst_58 : bf16 to vector<4x576xbf16>
    %131 = vector.shape_cast %129 : vector<1x576xi1> to vector<1x576xi1>
    %132 = vector.broadcast %131 : vector<1x576xi1> to vector<4x576xi1>
    %133 = arith.select %132, %125, %130 : vector<4x576xi1>, vector<4x576xbf16>
    %c40 = arith.constant 40 : index
    %c0_59 = arith.constant 0 : index
    %134 = vector.load %arg6[%c40, %c0_59] : memref<112x576xbf16, #tpu.memory_space<vmem>>, vector<4x576xbf16>
    tpu.vector_store %arg6[%c40, %c0_59], %133 {strides = array<i32>} : memref<112x576xbf16, #tpu.memory_space<vmem>>, vector<4x576xbf16>,
    %135 = vector.extract_strided_slice %2 {offsets = [0, 569], sizes = [4, 7], strides = [1, 1]} : vector<4x576xbf16> to vector<4x7xbf16>
    %136 = vector.extract_strided_slice %2 {offsets = [0, 0], sizes = [4, 569], strides = [1, 1]} : vector<4x576xbf16> to vector<4x569xbf16>
    %137 = tpu.concatenate %135, %136 in 1 : vector<4x7xbf16>, vector<4x569xbf16> -> vector<4x576xbf16>
    %c11 = arith.constant 11 : index
    %c0_60 = arith.constant 0 : index
    %c0_61 = arith.constant 0 : index
    %138 = vector.load %arg4[%c11, %c0_60, %c0_61] : memref<27x1x576xf32, #tpu.memory_space<vmem>>, vector<1x1x576xf32>
    %139 = vector.shape_cast %138 : vector<1x1x576xf32> to vector<1x576xf32>
    %cst_62 = arith.constant 5.000000e-01 : f32
    %140 = vector.broadcast %cst_62 : f32 to vector<1x576xf32>
    %141 = arith.cmpf ogt, %139, %140 : vector<1x576xf32>
    %cst_63 = arith.constant 0.000000e+00 : bf16
    %142 = vector.broadcast %cst_63 : bf16 to vector<4x576xbf16>
    %143 = vector.shape_cast %141 : vector<1x576xi1> to vector<1x576xi1>
    %144 = vector.broadcast %143 : vector<1x576xi1> to vector<4x576xi1>
    %145 = arith.select %144, %137, %142 : vector<4x576xi1>, vector<4x576xbf16>
    %c44 = arith.constant 44 : index
    %c0_64 = arith.constant 0 : index
    %146 = vector.load %arg6[%c44, %c0_64] : memref<112x576xbf16, #tpu.memory_space<vmem>>, vector<4x576xbf16>
    tpu.vector_store %arg6[%c44, %c0_64], %145 {strides = array<i32>} : memref<112x576xbf16, #tpu.memory_space<vmem>>, vector<4x576xbf16>,
    %147 = vector.extract_strided_slice %2 {offsets = [0, 575], sizes = [4, 1], strides = [1, 1]} : vector<4x576xbf16> to vector<4x1xbf16>
    %148 = vector.extract_strided_slice %2 {offsets = [0, 0], sizes = [4, 575], strides = [1, 1]} : vector<4x576xbf16> to vector<4x575xbf16>
    %149 = tpu.concatenate %147, %148 in 1 : vector<4x1xbf16>, vector<4x575xbf16> -> vector<4x576xbf16>
    %c12_65 = arith.constant 12 : index
    %c0_66 = arith.constant 0 : index
    %c0_67 = arith.constant 0 : index
    %150 = vector.load %arg4[%c12_65, %c0_66, %c0_67] : memref<27x1x576xf32, #tpu.memory_space<vmem>>, vector<1x1x576xf32>
    %151 = vector.shape_cast %150 : vector<1x1x576xf32> to vector<1x576xf32>
    %cst_68 = arith.constant 5.000000e-01 : f32
    %152 = vector.broadcast %cst_68 : f32 to vector<1x576xf32>
    %153 = arith.cmpf ogt, %151, %152 : vector<1x576xf32>
    %cst_69 = arith.constant 0.000000e+00 : bf16
    %154 = vector.broadcast %cst_69 : bf16 to vector<4x576xbf16>
    %155 = vector.shape_cast %153 : vector<1x576xi1> to vector<1x576xi1>
    %156 = vector.broadcast %155 : vector<1x576xi1> to vector<4x576xi1>
    %157 = arith.select %156, %149, %154 : vector<4x576xi1>, vector<4x576xbf16>
    %c48 = arith.constant 48 : index
    %c0_70 = arith.constant 0 : index
    %158 = vector.load %arg6[%c48, %c0_70] : memref<112x576xbf16, #tpu.memory_space<vmem>>, vector<4x576xbf16>
    tpu.vector_store %arg6[%c48, %c0_70], %157 {strides = array<i32>} : memref<112x576xbf16, #tpu.memory_space<vmem>>, vector<4x576xbf16>,
    %c52 = arith.constant 52 : index
    %c0_71 = arith.constant 0 : index
    %159 = vector.load %arg6[%c52, %c0_71] : memref<112x576xbf16, #tpu.memory_space<vmem>>, vector<4x576xbf16>
    tpu.vector_store %arg6[%c52, %c0_71], %2 {strides = array<i32>} : memref<112x576xbf16, #tpu.memory_space<vmem>>, vector<4x576xbf16>,
    %160 = vector.extract_strided_slice %2 {offsets = [0, 1], sizes = [4, 575], strides = [1, 1]} : vector<4x576xbf16> to vector<4x575xbf16>
    %161 = vector.extract_strided_slice %2 {offsets = [0, 0], sizes = [4, 1], strides = [1, 1]} : vector<4x576xbf16> to vector<4x1xbf16>
    %162 = tpu.concatenate %160, %161 in 1 : vector<4x575xbf16>, vector<4x1xbf16> -> vector<4x576xbf16>
    %c14 = arith.constant 14 : index
    %c0_72 = arith.constant 0 : index
    %c0_73 = arith.constant 0 : index
    %163 = vector.load %arg4[%c14, %c0_72, %c0_73] : memref<27x1x576xf32, #tpu.memory_space<vmem>>, vector<1x1x576xf32>
    %164 = vector.shape_cast %163 : vector<1x1x576xf32> to vector<1x576xf32>
    %cst_74 = arith.constant 5.000000e-01 : f32
    %165 = vector.broadcast %cst_74 : f32 to vector<1x576xf32>
    %166 = arith.cmpf ogt, %164, %165 : vector<1x576xf32>
    %cst_75 = arith.constant 0.000000e+00 : bf16
    %167 = vector.broadcast %cst_75 : bf16 to vector<4x576xbf16>
    %168 = vector.shape_cast %166 : vector<1x576xi1> to vector<1x576xi1>
    %169 = vector.broadcast %168 : vector<1x576xi1> to vector<4x576xi1>
    %170 = arith.select %169, %162, %167 : vector<4x576xi1>, vector<4x576xbf16>
    %c56 = arith.constant 56 : index
    %c0_76 = arith.constant 0 : index
    %171 = vector.load %arg6[%c56, %c0_76] : memref<112x576xbf16, #tpu.memory_space<vmem>>, vector<4x576xbf16>
    tpu.vector_store %arg6[%c56, %c0_76], %170 {strides = array<i32>} : memref<112x576xbf16, #tpu.memory_space<vmem>>, vector<4x576xbf16>,
    %172 = vector.extract_strided_slice %2 {offsets = [0, 7], sizes = [4, 569], strides = [1, 1]} : vector<4x576xbf16> to vector<4x569xbf16>
    %173 = vector.extract_strided_slice %2 {offsets = [0, 0], sizes = [4, 7], strides = [1, 1]} : vector<4x576xbf16> to vector<4x7xbf16>
    %174 = tpu.concatenate %172, %173 in 1 : vector<4x569xbf16>, vector<4x7xbf16> -> vector<4x576xbf16>
    %c15 = arith.constant 15 : index
    %c0_77 = arith.constant 0 : index
    %c0_78 = arith.constant 0 : index
    %175 = vector.load %arg4[%c15, %c0_77, %c0_78] : memref<27x1x576xf32, #tpu.memory_space<vmem>>, vector<1x1x576xf32>
    %176 = vector.shape_cast %175 : vector<1x1x576xf32> to vector<1x576xf32>
    %cst_79 = arith.constant 5.000000e-01 : f32
    %177 = vector.broadcast %cst_79 : f32 to vector<1x576xf32>
    %178 = arith.cmpf ogt, %176, %177 : vector<1x576xf32>
    %cst_80 = arith.constant 0.000000e+00 : bf16
    %179 = vector.broadcast %cst_80 : bf16 to vector<4x576xbf16>
    %180 = vector.shape_cast %178 : vector<1x576xi1> to vector<1x576xi1>
    %181 = vector.broadcast %180 : vector<1x576xi1> to vector<4x576xi1>
    %182 = arith.select %181, %174, %179 : vector<4x576xi1>, vector<4x576xbf16>
    %c60 = arith.constant 60 : index
    %c0_81 = arith.constant 0 : index
    %183 = vector.load %arg6[%c60, %c0_81] : memref<112x576xbf16, #tpu.memory_space<vmem>>, vector<4x576xbf16>
    tpu.vector_store %arg6[%c60, %c0_81], %182 {strides = array<i32>} : memref<112x576xbf16, #tpu.memory_space<vmem>>, vector<4x576xbf16>,
    %184 = vector.extract_strided_slice %2 {offsets = [0, 8], sizes = [4, 568], strides = [1, 1]} : vector<4x576xbf16> to vector<4x568xbf16>
    %185 = vector.extract_strided_slice %2 {offsets = [0, 0], sizes = [4, 8], strides = [1, 1]} : vector<4x576xbf16> to vector<4x8xbf16>
    %186 = tpu.concatenate %184, %185 in 1 : vector<4x568xbf16>, vector<4x8xbf16> -> vector<4x576xbf16>
    %c16_82 = arith.constant 16 : index
    %c0_83 = arith.constant 0 : index
    %c0_84 = arith.constant 0 : index
    %187 = vector.load %arg4[%c16_82, %c0_83, %c0_84] : memref<27x1x576xf32, #tpu.memory_space<vmem>>, vector<1x1x576xf32>
    %188 = vector.shape_cast %187 : vector<1x1x576xf32> to vector<1x576xf32>
    %cst_85 = arith.constant 5.000000e-01 : f32
    %189 = vector.broadcast %cst_85 : f32 to vector<1x576xf32>
    %190 = arith.cmpf ogt, %188, %189 : vector<1x576xf32>
    %cst_86 = arith.constant 0.000000e+00 : bf16
    %191 = vector.broadcast %cst_86 : bf16 to vector<4x576xbf16>
    %192 = vector.shape_cast %190 : vector<1x576xi1> to vector<1x576xi1>
    %193 = vector.broadcast %192 : vector<1x576xi1> to vector<4x576xi1>
    %194 = arith.select %193, %186, %191 : vector<4x576xi1>, vector<4x576xbf16>
    %c64 = arith.constant 64 : index
    %c0_87 = arith.constant 0 : index
    %195 = vector.load %arg6[%c64, %c0_87] : memref<112x576xbf16, #tpu.memory_space<vmem>>, vector<4x576xbf16>
    tpu.vector_store %arg6[%c64, %c0_87], %194 {strides = array<i32>} : memref<112x576xbf16, #tpu.memory_space<vmem>>, vector<4x576xbf16>,
    %196 = vector.extract_strided_slice %2 {offsets = [0, 9], sizes = [4, 567], strides = [1, 1]} : vector<4x576xbf16> to vector<4x567xbf16>
    %197 = vector.extract_strided_slice %2 {offsets = [0, 0], sizes = [4, 9], strides = [1, 1]} : vector<4x576xbf16> to vector<4x9xbf16>
    %198 = tpu.concatenate %196, %197 in 1 : vector<4x567xbf16>, vector<4x9xbf16> -> vector<4x576xbf16>
    %c17 = arith.constant 17 : index
    %c0_88 = arith.constant 0 : index
    %c0_89 = arith.constant 0 : index
    %199 = vector.load %arg4[%c17, %c0_88, %c0_89] : memref<27x1x576xf32, #tpu.memory_space<vmem>>, vector<1x1x576xf32>
    %200 = vector.shape_cast %199 : vector<1x1x576xf32> to vector<1x576xf32>
    %cst_90 = arith.constant 5.000000e-01 : f32
    %201 = vector.broadcast %cst_90 : f32 to vector<1x576xf32>
    %202 = arith.cmpf ogt, %200, %201 : vector<1x576xf32>
    %cst_91 = arith.constant 0.000000e+00 : bf16
    %203 = vector.broadcast %cst_91 : bf16 to vector<4x576xbf16>
    %204 = vector.shape_cast %202 : vector<1x576xi1> to vector<1x576xi1>
    %205 = vector.broadcast %204 : vector<1x576xi1> to vector<4x576xi1>
    %206 = arith.select %205, %198, %203 : vector<4x576xi1>, vector<4x576xbf16>
    %c68 = arith.constant 68 : index
    %c0_92 = arith.constant 0 : index
    %207 = vector.load %arg6[%c68, %c0_92] : memref<112x576xbf16, #tpu.memory_space<vmem>>, vector<4x576xbf16>
    tpu.vector_store %arg6[%c68, %c0_92], %206 {strides = array<i32>} : memref<112x576xbf16, #tpu.memory_space<vmem>>, vector<4x576xbf16>,
    %208 = vector.extract_strided_slice %2 {offsets = [0, 55], sizes = [4, 521], strides = [1, 1]} : vector<4x576xbf16> to vector<4x521xbf16>
    %209 = vector.extract_strided_slice %2 {offsets = [0, 0], sizes = [4, 55], strides = [1, 1]} : vector<4x576xbf16> to vector<4x55xbf16>
    %210 = tpu.concatenate %208, %209 in 1 : vector<4x521xbf16>, vector<4x55xbf16> -> vector<4x576xbf16>
    %c18 = arith.constant 18 : index
    %c0_93 = arith.constant 0 : index
    %c0_94 = arith.constant 0 : index
    %211 = vector.load %arg4[%c18, %c0_93, %c0_94] : memref<27x1x576xf32, #tpu.memory_space<vmem>>, vector<1x1x576xf32>
    %212 = vector.shape_cast %211 : vector<1x1x576xf32> to vector<1x576xf32>
    %cst_95 = arith.constant 5.000000e-01 : f32
    %213 = vector.broadcast %cst_95 : f32 to vector<1x576xf32>
    %214 = arith.cmpf ogt, %212, %213 : vector<1x576xf32>
    %cst_96 = arith.constant 0.000000e+00 : bf16
    %215 = vector.broadcast %cst_96 : bf16 to vector<4x576xbf16>
    %216 = vector.shape_cast %214 : vector<1x576xi1> to vector<1x576xi1>
    %217 = vector.broadcast %216 : vector<1x576xi1> to vector<4x576xi1>
    %218 = arith.select %217, %210, %215 : vector<4x576xi1>, vector<4x576xbf16>
    %c72 = arith.constant 72 : index
    %c0_97 = arith.constant 0 : index
    %219 = vector.load %arg6[%c72, %c0_97] : memref<112x576xbf16, #tpu.memory_space<vmem>>, vector<4x576xbf16>
    tpu.vector_store %arg6[%c72, %c0_97], %218 {strides = array<i32>} : memref<112x576xbf16, #tpu.memory_space<vmem>>, vector<4x576xbf16>,
    %220 = vector.extract_strided_slice %2 {offsets = [0, 56], sizes = [4, 520], strides = [1, 1]} : vector<4x576xbf16> to vector<4x520xbf16>
    %221 = vector.extract_strided_slice %2 {offsets = [0, 0], sizes = [4, 56], strides = [1, 1]} : vector<4x576xbf16> to vector<4x56xbf16>
    %222 = tpu.concatenate %220, %221 in 1 : vector<4x520xbf16>, vector<4x56xbf16> -> vector<4x576xbf16>
    %c19 = arith.constant 19 : index
    %c0_98 = arith.constant 0 : index
    %c0_99 = arith.constant 0 : index
    %223 = vector.load %arg4[%c19, %c0_98, %c0_99] : memref<27x1x576xf32, #tpu.memory_space<vmem>>, vector<1x1x576xf32>
    %224 = vector.shape_cast %223 : vector<1x1x576xf32> to vector<1x576xf32>
    %cst_100 = arith.constant 5.000000e-01 : f32
    %225 = vector.broadcast %cst_100 : f32 to vector<1x576xf32>
    %226 = arith.cmpf ogt, %224, %225 : vector<1x576xf32>
    %cst_101 = arith.constant 0.000000e+00 : bf16
    %227 = vector.broadcast %cst_101 : bf16 to vector<4x576xbf16>
    %228 = vector.shape_cast %226 : vector<1x576xi1> to vector<1x576xi1>
    %229 = vector.broadcast %228 : vector<1x576xi1> to vector<4x576xi1>
    %230 = arith.select %229, %222, %227 : vector<4x576xi1>, vector<4x576xbf16>
    %c76 = arith.constant 76 : index
    %c0_102 = arith.constant 0 : index
    %231 = vector.load %arg6[%c76, %c0_102] : memref<112x576xbf16, #tpu.memory_space<vmem>>, vector<4x576xbf16>
    tpu.vector_store %arg6[%c76, %c0_102], %230 {strides = array<i32>} : memref<112x576xbf16, #tpu.memory_space<vmem>>, vector<4x576xbf16>,
    %232 = vector.extract_strided_slice %2 {offsets = [0, 57], sizes = [4, 519], strides = [1, 1]} : vector<4x576xbf16> to vector<4x519xbf16>
    %233 = vector.extract_strided_slice %2 {offsets = [0, 0], sizes = [4, 57], strides = [1, 1]} : vector<4x576xbf16> to vector<4x57xbf16>
    %234 = tpu.concatenate %232, %233 in 1 : vector<4x519xbf16>, vector<4x57xbf16> -> vector<4x576xbf16>
    %c20_103 = arith.constant 20 : index
    %c0_104 = arith.constant 0 : index
    %c0_105 = arith.constant 0 : index
    %235 = vector.load %arg4[%c20_103, %c0_104, %c0_105] : memref<27x1x576xf32, #tpu.memory_space<vmem>>, vector<1x1x576xf32>
    %236 = vector.shape_cast %235 : vector<1x1x576xf32> to vector<1x576xf32>
    %cst_106 = arith.constant 5.000000e-01 : f32
    %237 = vector.broadcast %cst_106 : f32 to vector<1x576xf32>
    %238 = arith.cmpf ogt, %236, %237 : vector<1x576xf32>
    %cst_107 = arith.constant 0.000000e+00 : bf16
    %239 = vector.broadcast %cst_107 : bf16 to vector<4x576xbf16>
    %240 = vector.shape_cast %238 : vector<1x576xi1> to vector<1x576xi1>
    %241 = vector.broadcast %240 : vector<1x576xi1> to vector<4x576xi1>
    %242 = arith.select %241, %234, %239 : vector<4x576xi1>, vector<4x576xbf16>
    %c80 = arith.constant 80 : index
    %c0_108 = arith.constant 0 : index
    %243 = vector.load %arg6[%c80, %c0_108] : memref<112x576xbf16, #tpu.memory_space<vmem>>, vector<4x576xbf16>
    tpu.vector_store %arg6[%c80, %c0_108], %242 {strides = array<i32>} : memref<112x576xbf16, #tpu.memory_space<vmem>>, vector<4x576xbf16>,
    %244 = vector.extract_strided_slice %2 {offsets = [0, 63], sizes = [4, 513], strides = [1, 1]} : vector<4x576xbf16> to vector<4x513xbf16>
    %245 = vector.extract_strided_slice %2 {offsets = [0, 0], sizes = [4, 63], strides = [1, 1]} : vector<4x576xbf16> to vector<4x63xbf16>
    %246 = tpu.concatenate %244, %245 in 1 : vector<4x513xbf16>, vector<4x63xbf16> -> vector<4x576xbf16>
    %c21 = arith.constant 21 : index
    %c0_109 = arith.constant 0 : index
    %c0_110 = arith.constant 0 : index
    %247 = vector.load %arg4[%c21, %c0_109, %c0_110] : memref<27x1x576xf32, #tpu.memory_space<vmem>>, vector<1x1x576xf32>
    %248 = vector.shape_cast %247 : vector<1x1x576xf32> to vector<1x576xf32>
    %cst_111 = arith.constant 5.000000e-01 : f32
    %249 = vector.broadcast %cst_111 : f32 to vector<1x576xf32>
    %250 = arith.cmpf ogt, %248, %249 : vector<1x576xf32>
    %cst_112 = arith.constant 0.000000e+00 : bf16
    %251 = vector.broadcast %cst_112 : bf16 to vector<4x576xbf16>
    %252 = vector.shape_cast %250 : vector<1x576xi1> to vector<1x576xi1>
    %253 = vector.broadcast %252 : vector<1x576xi1> to vector<4x576xi1>
    %254 = arith.select %253, %246, %251 : vector<4x576xi1>, vector<4x576xbf16>
    %c84 = arith.constant 84 : index
    %c0_113 = arith.constant 0 : index
    %255 = vector.load %arg6[%c84, %c0_113] : memref<112x576xbf16, #tpu.memory_space<vmem>>, vector<4x576xbf16>
    tpu.vector_store %arg6[%c84, %c0_113], %254 {strides = array<i32>} : memref<112x576xbf16, #tpu.memory_space<vmem>>, vector<4x576xbf16>,
    %256 = vector.extract_strided_slice %2 {offsets = [0, 64], sizes = [4, 512], strides = [1, 1]} : vector<4x576xbf16> to vector<4x512xbf16>
    %257 = vector.extract_strided_slice %2 {offsets = [0, 0], sizes = [4, 64], strides = [1, 1]} : vector<4x576xbf16> to vector<4x64xbf16>
    %258 = tpu.concatenate %256, %257 in 1 : vector<4x512xbf16>, vector<4x64xbf16> -> vector<4x576xbf16>
    %c22 = arith.constant 22 : index
    %c0_114 = arith.constant 0 : index
    %c0_115 = arith.constant 0 : index
    %259 = vector.load %arg4[%c22, %c0_114, %c0_115] : memref<27x1x576xf32, #tpu.memory_space<vmem>>, vector<1x1x576xf32>
    %260 = vector.shape_cast %259 : vector<1x1x576xf32> to vector<1x576xf32>
    %cst_116 = arith.constant 5.000000e-01 : f32
    %261 = vector.broadcast %cst_116 : f32 to vector<1x576xf32>
    %262 = arith.cmpf ogt, %260, %261 : vector<1x576xf32>
    %cst_117 = arith.constant 0.000000e+00 : bf16
    %263 = vector.broadcast %cst_117 : bf16 to vector<4x576xbf16>
    %264 = vector.shape_cast %262 : vector<1x576xi1> to vector<1x576xi1>
    %265 = vector.broadcast %264 : vector<1x576xi1> to vector<4x576xi1>
    %266 = arith.select %265, %258, %263 : vector<4x576xi1>, vector<4x576xbf16>
    %c88 = arith.constant 88 : index
    %c0_118 = arith.constant 0 : index
    %267 = vector.load %arg6[%c88, %c0_118] : memref<112x576xbf16, #tpu.memory_space<vmem>>, vector<4x576xbf16>
    tpu.vector_store %arg6[%c88, %c0_118], %266 {strides = array<i32>} : memref<112x576xbf16, #tpu.memory_space<vmem>>, vector<4x576xbf16>,
    %268 = vector.extract_strided_slice %2 {offsets = [0, 65], sizes = [4, 511], strides = [1, 1]} : vector<4x576xbf16> to vector<4x511xbf16>
    %269 = vector.extract_strided_slice %2 {offsets = [0, 0], sizes = [4, 65], strides = [1, 1]} : vector<4x576xbf16> to vector<4x65xbf16>
    %270 = tpu.concatenate %268, %269 in 1 : vector<4x511xbf16>, vector<4x65xbf16> -> vector<4x576xbf16>
    %c23 = arith.constant 23 : index
    %c0_119 = arith.constant 0 : index
    %c0_120 = arith.constant 0 : index
    %271 = vector.load %arg4[%c23, %c0_119, %c0_120] : memref<27x1x576xf32, #tpu.memory_space<vmem>>, vector<1x1x576xf32>
    %272 = vector.shape_cast %271 : vector<1x1x576xf32> to vector<1x576xf32>
    %cst_121 = arith.constant 5.000000e-01 : f32
    %273 = vector.broadcast %cst_121 : f32 to vector<1x576xf32>
    %274 = arith.cmpf ogt, %272, %273 : vector<1x576xf32>
    %cst_122 = arith.constant 0.000000e+00 : bf16
    %275 = vector.broadcast %cst_122 : bf16 to vector<4x576xbf16>
    %276 = vector.shape_cast %274 : vector<1x576xi1> to vector<1x576xi1>
    %277 = vector.broadcast %276 : vector<1x576xi1> to vector<4x576xi1>
    %278 = arith.select %277, %270, %275 : vector<4x576xi1>, vector<4x576xbf16>
    %c92 = arith.constant 92 : index
    %c0_123 = arith.constant 0 : index
    %279 = vector.load %arg6[%c92, %c0_123] : memref<112x576xbf16, #tpu.memory_space<vmem>>, vector<4x576xbf16>
    tpu.vector_store %arg6[%c92, %c0_123], %278 {strides = array<i32>} : memref<112x576xbf16, #tpu.memory_space<vmem>>, vector<4x576xbf16>,
    %280 = vector.extract_strided_slice %2 {offsets = [0, 71], sizes = [4, 505], strides = [1, 1]} : vector<4x576xbf16> to vector<4x505xbf16>
    %281 = vector.extract_strided_slice %2 {offsets = [0, 0], sizes = [4, 71], strides = [1, 1]} : vector<4x576xbf16> to vector<4x71xbf16>
    %282 = tpu.concatenate %280, %281 in 1 : vector<4x505xbf16>, vector<4x71xbf16> -> vector<4x576xbf16>
    %c24_124 = arith.constant 24 : index
    %c0_125 = arith.constant 0 : index
    %c0_126 = arith.constant 0 : index
    %283 = vector.load %arg4[%c24_124, %c0_125, %c0_126] : memref<27x1x576xf32, #tpu.memory_space<vmem>>, vector<1x1x576xf32>
    %284 = vector.shape_cast %283 : vector<1x1x576xf32> to vector<1x576xf32>
    %cst_127 = arith.constant 5.000000e-01 : f32
    %285 = vector.broadcast %cst_127 : f32 to vector<1x576xf32>
    %286 = arith.cmpf ogt, %284, %285 : vector<1x576xf32>
    %cst_128 = arith.constant 0.000000e+00 : bf16
    %287 = vector.broadcast %cst_128 : bf16 to vector<4x576xbf16>
    %288 = vector.shape_cast %286 : vector<1x576xi1> to vector<1x576xi1>
    %289 = vector.broadcast %288 : vector<1x576xi1> to vector<4x576xi1>
    %290 = arith.select %289, %282, %287 : vector<4x576xi1>, vector<4x576xbf16>
    %c96 = arith.constant 96 : index
    %c0_129 = arith.constant 0 : index
    %291 = vector.load %arg6[%c96, %c0_129] : memref<112x576xbf16, #tpu.memory_space<vmem>>, vector<4x576xbf16>
    tpu.vector_store %arg6[%c96, %c0_129], %290 {strides = array<i32>} : memref<112x576xbf16, #tpu.memory_space<vmem>>, vector<4x576xbf16>,
    %292 = vector.extract_strided_slice %2 {offsets = [0, 72], sizes = [4, 504], strides = [1, 1]} : vector<4x576xbf16> to vector<4x504xbf16>
    %293 = vector.extract_strided_slice %2 {offsets = [0, 0], sizes = [4, 72], strides = [1, 1]} : vector<4x576xbf16> to vector<4x72xbf16>
    %294 = tpu.concatenate %292, %293 in 1 : vector<4x504xbf16>, vector<4x72xbf16> -> vector<4x576xbf16>
    %c25 = arith.constant 25 : index
    %c0_130 = arith.constant 0 : index
    %c0_131 = arith.constant 0 : index
    %295 = vector.load %arg4[%c25, %c0_130, %c0_131] : memref<27x1x576xf32, #tpu.memory_space<vmem>>, vector<1x1x576xf32>
    %296 = vector.shape_cast %295 : vector<1x1x576xf32> to vector<1x576xf32>
    %cst_132 = arith.constant 5.000000e-01 : f32
    %297 = vector.broadcast %cst_132 : f32 to vector<1x576xf32>
    %298 = arith.cmpf ogt, %296, %297 : vector<1x576xf32>
    %cst_133 = arith.constant 0.000000e+00 : bf16
    %299 = vector.broadcast %cst_133 : bf16 to vector<4x576xbf16>
    %300 = vector.shape_cast %298 : vector<1x576xi1> to vector<1x576xi1>
    %301 = vector.broadcast %300 : vector<1x576xi1> to vector<4x576xi1>
    %302 = arith.select %301, %294, %299 : vector<4x576xi1>, vector<4x576xbf16>
    %c100 = arith.constant 100 : index
    %c0_134 = arith.constant 0 : index
    %303 = vector.load %arg6[%c100, %c0_134] : memref<112x576xbf16, #tpu.memory_space<vmem>>, vector<4x576xbf16>
    tpu.vector_store %arg6[%c100, %c0_134], %302 {strides = array<i32>} : memref<112x576xbf16, #tpu.memory_space<vmem>>, vector<4x576xbf16>,
    %304 = vector.extract_strided_slice %2 {offsets = [0, 73], sizes = [4, 503], strides = [1, 1]} : vector<4x576xbf16> to vector<4x503xbf16>
    %305 = vector.extract_strided_slice %2 {offsets = [0, 0], sizes = [4, 73], strides = [1, 1]} : vector<4x576xbf16> to vector<4x73xbf16>
    %306 = tpu.concatenate %304, %305 in 1 : vector<4x503xbf16>, vector<4x73xbf16> -> vector<4x576xbf16>
    %c26 = arith.constant 26 : index
    %c0_135 = arith.constant 0 : index
    %c0_136 = arith.constant 0 : index
    %307 = vector.load %arg4[%c26, %c0_135, %c0_136] : memref<27x1x576xf32, #tpu.memory_space<vmem>>, vector<1x1x576xf32>
    %308 = vector.shape_cast %307 : vector<1x1x576xf32> to vector<1x576xf32>
    %cst_137 = arith.constant 5.000000e-01 : f32
    %309 = vector.broadcast %cst_137 : f32 to vector<1x576xf32>
    %310 = arith.cmpf ogt, %308, %309 : vector<1x576xf32>
    %cst_138 = arith.constant 0.000000e+00 : bf16
    %311 = vector.broadcast %cst_138 : bf16 to vector<4x576xbf16>
    %312 = vector.shape_cast %310 : vector<1x576xi1> to vector<1x576xi1>
    %313 = vector.broadcast %312 : vector<1x576xi1> to vector<4x576xi1>
    %314 = arith.select %313, %306, %311 : vector<4x576xi1>, vector<4x576xbf16>
    %c104 = arith.constant 104 : index
    %c0_139 = arith.constant 0 : index
    %315 = vector.load %arg6[%c104, %c0_139] : memref<112x576xbf16, #tpu.memory_space<vmem>>, vector<4x576xbf16>
    tpu.vector_store %arg6[%c104, %c0_139], %314 {strides = array<i32>} : memref<112x576xbf16, #tpu.memory_space<vmem>>, vector<4x576xbf16>,
    %cst_140 = arith.constant 0.000000e+00 : bf16
    %316 = vector.broadcast %cst_140 : bf16 to vector<4x576xbf16>
    %c108 = arith.constant 108 : index
    %c0_141 = arith.constant 0 : index
    %317 = vector.load %arg6[%c108, %c0_141] : memref<112x576xbf16, #tpu.memory_space<vmem>>, vector<4x576xbf16>
    tpu.vector_store %arg6[%c108, %c0_141], %316 {strides = array<i32>} : memref<112x576xbf16, #tpu.memory_space<vmem>>, vector<4x576xbf16>,
    %c0_142 = arith.constant 0 : index
    %c0_143 = arith.constant 0 : index
    %318 = vector.load %arg2[%c0_142, %c0_143] : memref<16x112xbf16, #tpu.memory_space<vmem>>, vector<16x112xbf16>
    %c0_144 = arith.constant 0 : index
    %c0_145 = arith.constant 0 : index
    %319 = vector.load %arg6[%c0_144, %c0_145] : memref<112x576xbf16, #tpu.memory_space<vmem>>, vector<112x576xbf16>
    %cst_146 = arith.constant dense<0.000000e+00> : vector<16x576xf32>
    %320 = tpu.matmul %318, %319, %cst_146 {dimension_numbers = #tpu.dot_dimension_numbers<[1], [0], [0], [1], [0, 0, 1, 1], [], []>} : vector<16x112xbf16>, vector<112x576xbf16>, vector<16x576xf32> -> vector<16x576xf32>
    %c0_147 = arith.constant 0 : index
    %c0_148 = arith.constant 0 : index
    %c0_149 = arith.constant 0 : index
    %321 = vector.load %arg3[%c0_147, %c0_148, %c0_149] : memref<2x16x1xf32, #tpu.memory_space<vmem>>, vector<1x16x1xf32>
    %322 = vector.shape_cast %321 : vector<1x16x1xf32> to vector<16x1xf32>
    %323 = vector.broadcast %322 : vector<16x1xf32> to vector<16x576xf32>
    %324 = arith.addf %320, %323 : vector<16x576xf32>
    %cst_150 = arith.constant 0.000000e+00 : f32
    %325 = vector.broadcast %cst_150 : f32 to vector<16x576xf32>
    %326 = arith.cmpf oge, %324, %325 : vector<16x576xf32>
    %c1_151 = arith.constant 1 : index
    %c0_152 = arith.constant 0 : index
    %c0_153 = arith.constant 0 : index
    %327 = vector.load %arg3[%c1_151, %c0_152, %c0_153] : memref<2x16x1xf32, #tpu.memory_space<vmem>>, vector<1x16x1xf32>
    %328 = vector.shape_cast %327 : vector<1x16x1xf32> to vector<16x1xf32>
    %329 = vector.broadcast %328 : vector<16x1xf32> to vector<16x576xf32>
    %330 = arith.mulf %329, %324 : vector<16x576xf32>
    %331 = arith.select %326, %324, %330 : vector<16x576xi1>, vector<16x576xf32>
    %c0_154 = arith.constant 0 : index
    %c0_155 = arith.constant 0 : index
    %c0_156 = arith.constant 0 : index
    %332 = vector.load %arg5[%c0_154, %c0_155, %c0_156] : memref<1x16x576xf32, #tpu.memory_space<vmem>>, vector<1x16x576xf32>
    %333 = vector.shape_cast %332 : vector<1x16x576xf32> to vector<16x576xf32>
    %334 = vector.shape_cast %331 : vector<16x576xf32> to vector<1x16x576xf32>
    tpu.vector_store %arg5[%c0_154, %c0_155, %c0_156], %334 {strides = array<i32>} : memref<1x16x576xf32, #tpu.memory_space<vmem>>, vector<1x16x576xf32>,
    return
  }
  func.func @transform_0(%arg0: i32) -> (i32, i32, i32) {
    %c0_i32 = arith.constant 0 : i32
    %c0_i32_0 = arith.constant 0 : i32
    %c0_i32_1 = arith.constant 0 : i32
    return %arg0, %c0_i32, %c0_i32_0 : i32, i32, i32
  }
  func.func @transform_1(%arg0: i32) -> (i32, i32) {
    %c0_i32 = arith.constant 0 : i32
    %c0_i32_0 = arith.constant 0 : i32
    %c0_i32_1 = arith.constant 0 : i32
    return %c0_i32, %c0_i32_0 : i32, i32
  }
  func.func @transform_2(%arg0: i32) -> (i32, i32, i32) {
    %c0_i32 = arith.constant 0 : i32
    %c0_i32_0 = arith.constant 0 : i32
    %c0_i32_1 = arith.constant 0 : i32
    %c0_i32_2 = arith.constant 0 : i32
    return %c0_i32, %c0_i32_0, %c0_i32_1 : i32, i32, i32
  }
  func.func @transform_3(%arg0: i32) -> (i32, i32, i32) {
    %c0_i32 = arith.constant 0 : i32
    %c0_i32_0 = arith.constant 0 : i32
    %c0_i32_1 = arith.constant 0 : i32
    %c0_i32_2 = arith.constant 0 : i32
    return %c0_i32, %c0_i32_0, %c0_i32_1 : i32, i32, i32
  }
  func.func @transform_4(%arg0: i32) -> (i32, i32, i32) {
    %c0_i32 = arith.constant 0 : i32
    %c0_i32_0 = arith.constant 0 : i32
    %c0_i32_1 = arith.constant 0 : i32
    return %arg0, %c0_i32, %c0_i32_0 : i32, i32, i32
  }
}

module attributes {stable_mosaic.version = 11 : i64} {
  func.func @_mdf_block_kernel(%arg0: i32, %arg1: i32, %arg2: memref<1x16x576xf32, #tpu.memory_space<vmem>>, %arg3: memref<1x4x144xbf16, #tpu.memory_space<vmem>>, %arg4: memref<1x2x4x1xf32, #tpu.memory_space<vmem>>, %arg5: memref<1x9x1x576xf32, #tpu.memory_space<vmem>>, %arg6: memref<1x1x4x576xf32, #tpu.memory_space<vmem>>, %arg7: memref<144x576xbf16, #tpu.memory_space<vmem>>) attributes {dimension_semantics = [#tpu.dimension_semantics<parallel>, #tpu.dimension_semantics<arbitrary>], iteration_bounds = array<i64: 2, 4>, scalar_prefetch = 0 : i64, scratch_operands = 1 : i64, tpu.core_type = #tpu.core_type<tc>, window_params = [{transform_indices = @transform_0, window_bounds = array<i64: 1, 16, 576>}, {transform_indices = @transform_1, window_bounds = array<i64: 1, 4, 144>}, {transform_indices = @transform_2, window_bounds = array<i64: 1, 2, 4, 1>}, {transform_indices = @transform_3, window_bounds = array<i64: 1, 9, 1, 576>}, {transform_indices = @transform_4, window_bounds = array<i64: 1, 1, 4, 576>}]} {
    %c0 = arith.constant 0 : index
    %c0_0 = arith.constant 0 : index
    %c0_1 = arith.constant 0 : index
    %0 = vector.load %arg2[%c0, %c0_0, %c0_1] : memref<1x16x576xf32, #tpu.memory_space<vmem>>, vector<1x16x576xf32>
    %1 = vector.shape_cast %0 : vector<1x16x576xf32> to vector<16x576xf32>
    %2 = arith.truncf %1 : vector<16x576xf32> to vector<16x576xbf16>
    %c0_i32 = arith.constant 0 : i32
    %3 = arith.cmpi eq, %arg1, %c0_i32 : i32
    %4 = arith.extui %3 : i1 to i32
    %c0_i32_2 = arith.constant 0 : i32
    %5 = arith.cmpi ne, %4, %c0_i32_2 : i32
    scf.if %5 {
      %15 = vector.extract_strided_slice %2 {offsets = [0, 511], sizes = [16, 65], strides = [1, 1]} : vector<16x576xbf16> to vector<16x65xbf16>
      %16 = vector.extract_strided_slice %2 {offsets = [0, 0], sizes = [16, 511], strides = [1, 1]} : vector<16x576xbf16> to vector<16x511xbf16>
      %17 = tpu.concatenate %15, %16 in 1 : vector<16x65xbf16>, vector<16x511xbf16> -> vector<16x576xbf16>
      %c0_6 = arith.constant 0 : index
      %c0_7 = arith.constant 0 : index
      %c0_8 = arith.constant 0 : index
      %c0_9 = arith.constant 0 : index
      %18 = vector.load %arg5[%c0_6, %c0_7, %c0_8, %c0_9] : memref<1x9x1x576xf32, #tpu.memory_space<vmem>>, vector<1x1x1x576xf32>
      %19 = vector.shape_cast %18 : vector<1x1x1x576xf32> to vector<1x576xf32>
      %cst = arith.constant 5.000000e-01 : f32
      %20 = vector.broadcast %cst : f32 to vector<1x576xf32>
      %21 = arith.cmpf ogt, %19, %20 : vector<1x576xf32>
      %cst_10 = arith.constant 0.000000e+00 : bf16
      %22 = vector.broadcast %cst_10 : bf16 to vector<16x576xbf16>
      %23 = vector.shape_cast %21 : vector<1x576xi1> to vector<1x576xi1>
      %24 = vector.broadcast %23 : vector<1x576xi1> to vector<16x576xi1>
      %25 = arith.select %24, %17, %22 : vector<16x576xi1>, vector<16x576xbf16>
      %c0_11 = arith.constant 0 : index
      %c0_12 = arith.constant 0 : index
      %26 = vector.load %arg7[%c0_11, %c0_12] : memref<144x576xbf16, #tpu.memory_space<vmem>>, vector<16x576xbf16>
      tpu.vector_store %arg7[%c0_11, %c0_12], %25 {strides = array<i32>} : memref<144x576xbf16, #tpu.memory_space<vmem>>, vector<16x576xbf16>,
      %27 = vector.extract_strided_slice %2 {offsets = [0, 512], sizes = [16, 64], strides = [1, 1]} : vector<16x576xbf16> to vector<16x64xbf16>
      %28 = vector.extract_strided_slice %2 {offsets = [0, 0], sizes = [16, 512], strides = [1, 1]} : vector<16x576xbf16> to vector<16x512xbf16>
      %29 = tpu.concatenate %27, %28 in 1 : vector<16x64xbf16>, vector<16x512xbf16> -> vector<16x576xbf16>
      %c0_13 = arith.constant 0 : index
      %c1 = arith.constant 1 : index
      %c0_14 = arith.constant 0 : index
      %c0_15 = arith.constant 0 : index
      %30 = vector.load %arg5[%c0_13, %c1, %c0_14, %c0_15] : memref<1x9x1x576xf32, #tpu.memory_space<vmem>>, vector<1x1x1x576xf32>
      %31 = vector.shape_cast %30 : vector<1x1x1x576xf32> to vector<1x576xf32>
      %cst_16 = arith.constant 5.000000e-01 : f32
      %32 = vector.broadcast %cst_16 : f32 to vector<1x576xf32>
      %33 = arith.cmpf ogt, %31, %32 : vector<1x576xf32>
      %cst_17 = arith.constant 0.000000e+00 : bf16
      %34 = vector.broadcast %cst_17 : bf16 to vector<16x576xbf16>
      %35 = vector.shape_cast %33 : vector<1x576xi1> to vector<1x576xi1>
      %36 = vector.broadcast %35 : vector<1x576xi1> to vector<16x576xi1>
      %37 = arith.select %36, %29, %34 : vector<16x576xi1>, vector<16x576xbf16>
      %c16 = arith.constant 16 : index
      %c0_18 = arith.constant 0 : index
      %38 = vector.load %arg7[%c16, %c0_18] : memref<144x576xbf16, #tpu.memory_space<vmem>>, vector<16x576xbf16>
      tpu.vector_store %arg7[%c16, %c0_18], %37 {strides = array<i32>} : memref<144x576xbf16, #tpu.memory_space<vmem>>, vector<16x576xbf16>,
      %39 = vector.extract_strided_slice %2 {offsets = [0, 513], sizes = [16, 63], strides = [1, 1]} : vector<16x576xbf16> to vector<16x63xbf16>
      %40 = vector.extract_strided_slice %2 {offsets = [0, 0], sizes = [16, 513], strides = [1, 1]} : vector<16x576xbf16> to vector<16x513xbf16>
      %41 = tpu.concatenate %39, %40 in 1 : vector<16x63xbf16>, vector<16x513xbf16> -> vector<16x576xbf16>
      %c0_19 = arith.constant 0 : index
      %c2 = arith.constant 2 : index
      %c0_20 = arith.constant 0 : index
      %c0_21 = arith.constant 0 : index
      %42 = vector.load %arg5[%c0_19, %c2, %c0_20, %c0_21] : memref<1x9x1x576xf32, #tpu.memory_space<vmem>>, vector<1x1x1x576xf32>
      %43 = vector.shape_cast %42 : vector<1x1x1x576xf32> to vector<1x576xf32>
      %cst_22 = arith.constant 5.000000e-01 : f32
      %44 = vector.broadcast %cst_22 : f32 to vector<1x576xf32>
      %45 = arith.cmpf ogt, %43, %44 : vector<1x576xf32>
      %cst_23 = arith.constant 0.000000e+00 : bf16
      %46 = vector.broadcast %cst_23 : bf16 to vector<16x576xbf16>
      %47 = vector.shape_cast %45 : vector<1x576xi1> to vector<1x576xi1>
      %48 = vector.broadcast %47 : vector<1x576xi1> to vector<16x576xi1>
      %49 = arith.select %48, %41, %46 : vector<16x576xi1>, vector<16x576xbf16>
      %c32 = arith.constant 32 : index
      %c0_24 = arith.constant 0 : index
      %50 = vector.load %arg7[%c32, %c0_24] : memref<144x576xbf16, #tpu.memory_space<vmem>>, vector<16x576xbf16>
      tpu.vector_store %arg7[%c32, %c0_24], %49 {strides = array<i32>} : memref<144x576xbf16, #tpu.memory_space<vmem>>, vector<16x576xbf16>,
      %51 = vector.extract_strided_slice %2 {offsets = [0, 575], sizes = [16, 1], strides = [1, 1]} : vector<16x576xbf16> to vector<16x1xbf16>
      %52 = vector.extract_strided_slice %2 {offsets = [0, 0], sizes = [16, 575], strides = [1, 1]} : vector<16x576xbf16> to vector<16x575xbf16>
      %53 = tpu.concatenate %51, %52 in 1 : vector<16x1xbf16>, vector<16x575xbf16> -> vector<16x576xbf16>
      %c0_25 = arith.constant 0 : index
      %c3 = arith.constant 3 : index
      %c0_26 = arith.constant 0 : index
      %c0_27 = arith.constant 0 : index
      %54 = vector.load %arg5[%c0_25, %c3, %c0_26, %c0_27] : memref<1x9x1x576xf32, #tpu.memory_space<vmem>>, vector<1x1x1x576xf32>
      %55 = vector.shape_cast %54 : vector<1x1x1x576xf32> to vector<1x576xf32>
      %cst_28 = arith.constant 5.000000e-01 : f32
      %56 = vector.broadcast %cst_28 : f32 to vector<1x576xf32>
      %57 = arith.cmpf ogt, %55, %56 : vector<1x576xf32>
      %cst_29 = arith.constant 0.000000e+00 : bf16
      %58 = vector.broadcast %cst_29 : bf16 to vector<16x576xbf16>
      %59 = vector.shape_cast %57 : vector<1x576xi1> to vector<1x576xi1>
      %60 = vector.broadcast %59 : vector<1x576xi1> to vector<16x576xi1>
      %61 = arith.select %60, %53, %58 : vector<16x576xi1>, vector<16x576xbf16>
      %c48 = arith.constant 48 : index
      %c0_30 = arith.constant 0 : index
      %62 = vector.load %arg7[%c48, %c0_30] : memref<144x576xbf16, #tpu.memory_space<vmem>>, vector<16x576xbf16>
      tpu.vector_store %arg7[%c48, %c0_30], %61 {strides = array<i32>} : memref<144x576xbf16, #tpu.memory_space<vmem>>, vector<16x576xbf16>,
      %c64 = arith.constant 64 : index
      %c0_31 = arith.constant 0 : index
      %63 = vector.load %arg7[%c64, %c0_31] : memref<144x576xbf16, #tpu.memory_space<vmem>>, vector<16x576xbf16>
      tpu.vector_store %arg7[%c64, %c0_31], %2 {strides = array<i32>} : memref<144x576xbf16, #tpu.memory_space<vmem>>, vector<16x576xbf16>,
      %64 = vector.extract_strided_slice %2 {offsets = [0, 1], sizes = [16, 575], strides = [1, 1]} : vector<16x576xbf16> to vector<16x575xbf16>
      %65 = vector.extract_strided_slice %2 {offsets = [0, 0], sizes = [16, 1], strides = [1, 1]} : vector<16x576xbf16> to vector<16x1xbf16>
      %66 = tpu.concatenate %64, %65 in 1 : vector<16x575xbf16>, vector<16x1xbf16> -> vector<16x576xbf16>
      %c0_32 = arith.constant 0 : index
      %c5 = arith.constant 5 : index
      %c0_33 = arith.constant 0 : index
      %c0_34 = arith.constant 0 : index
      %67 = vector.load %arg5[%c0_32, %c5, %c0_33, %c0_34] : memref<1x9x1x576xf32, #tpu.memory_space<vmem>>, vector<1x1x1x576xf32>
      %68 = vector.shape_cast %67 : vector<1x1x1x576xf32> to vector<1x576xf32>
      %cst_35 = arith.constant 5.000000e-01 : f32
      %69 = vector.broadcast %cst_35 : f32 to vector<1x576xf32>
      %70 = arith.cmpf ogt, %68, %69 : vector<1x576xf32>
      %cst_36 = arith.constant 0.000000e+00 : bf16
      %71 = vector.broadcast %cst_36 : bf16 to vector<16x576xbf16>
      %72 = vector.shape_cast %70 : vector<1x576xi1> to vector<1x576xi1>
      %73 = vector.broadcast %72 : vector<1x576xi1> to vector<16x576xi1>
      %74 = arith.select %73, %66, %71 : vector<16x576xi1>, vector<16x576xbf16>
      %c80 = arith.constant 80 : index
      %c0_37 = arith.constant 0 : index
      %75 = vector.load %arg7[%c80, %c0_37] : memref<144x576xbf16, #tpu.memory_space<vmem>>, vector<16x576xbf16>
      tpu.vector_store %arg7[%c80, %c0_37], %74 {strides = array<i32>} : memref<144x576xbf16, #tpu.memory_space<vmem>>, vector<16x576xbf16>,
      %76 = vector.extract_strided_slice %2 {offsets = [0, 63], sizes = [16, 513], strides = [1, 1]} : vector<16x576xbf16> to vector<16x513xbf16>
      %77 = vector.extract_strided_slice %2 {offsets = [0, 0], sizes = [16, 63], strides = [1, 1]} : vector<16x576xbf16> to vector<16x63xbf16>
      %78 = tpu.concatenate %76, %77 in 1 : vector<16x513xbf16>, vector<16x63xbf16> -> vector<16x576xbf16>
      %c0_38 = arith.constant 0 : index
      %c6 = arith.constant 6 : index
      %c0_39 = arith.constant 0 : index
      %c0_40 = arith.constant 0 : index
      %79 = vector.load %arg5[%c0_38, %c6, %c0_39, %c0_40] : memref<1x9x1x576xf32, #tpu.memory_space<vmem>>, vector<1x1x1x576xf32>
      %80 = vector.shape_cast %79 : vector<1x1x1x576xf32> to vector<1x576xf32>
      %cst_41 = arith.constant 5.000000e-01 : f32
      %81 = vector.broadcast %cst_41 : f32 to vector<1x576xf32>
      %82 = arith.cmpf ogt, %80, %81 : vector<1x576xf32>
      %cst_42 = arith.constant 0.000000e+00 : bf16
      %83 = vector.broadcast %cst_42 : bf16 to vector<16x576xbf16>
      %84 = vector.shape_cast %82 : vector<1x576xi1> to vector<1x576xi1>
      %85 = vector.broadcast %84 : vector<1x576xi1> to vector<16x576xi1>
      %86 = arith.select %85, %78, %83 : vector<16x576xi1>, vector<16x576xbf16>
      %c96 = arith.constant 96 : index
      %c0_43 = arith.constant 0 : index
      %87 = vector.load %arg7[%c96, %c0_43] : memref<144x576xbf16, #tpu.memory_space<vmem>>, vector<16x576xbf16>
      tpu.vector_store %arg7[%c96, %c0_43], %86 {strides = array<i32>} : memref<144x576xbf16, #tpu.memory_space<vmem>>, vector<16x576xbf16>,
      %88 = vector.extract_strided_slice %2 {offsets = [0, 64], sizes = [16, 512], strides = [1, 1]} : vector<16x576xbf16> to vector<16x512xbf16>
      %89 = vector.extract_strided_slice %2 {offsets = [0, 0], sizes = [16, 64], strides = [1, 1]} : vector<16x576xbf16> to vector<16x64xbf16>
      %90 = tpu.concatenate %88, %89 in 1 : vector<16x512xbf16>, vector<16x64xbf16> -> vector<16x576xbf16>
      %c0_44 = arith.constant 0 : index
      %c7 = arith.constant 7 : index
      %c0_45 = arith.constant 0 : index
      %c0_46 = arith.constant 0 : index
      %91 = vector.load %arg5[%c0_44, %c7, %c0_45, %c0_46] : memref<1x9x1x576xf32, #tpu.memory_space<vmem>>, vector<1x1x1x576xf32>
      %92 = vector.shape_cast %91 : vector<1x1x1x576xf32> to vector<1x576xf32>
      %cst_47 = arith.constant 5.000000e-01 : f32
      %93 = vector.broadcast %cst_47 : f32 to vector<1x576xf32>
      %94 = arith.cmpf ogt, %92, %93 : vector<1x576xf32>
      %cst_48 = arith.constant 0.000000e+00 : bf16
      %95 = vector.broadcast %cst_48 : bf16 to vector<16x576xbf16>
      %96 = vector.shape_cast %94 : vector<1x576xi1> to vector<1x576xi1>
      %97 = vector.broadcast %96 : vector<1x576xi1> to vector<16x576xi1>
      %98 = arith.select %97, %90, %95 : vector<16x576xi1>, vector<16x576xbf16>
      %c112 = arith.constant 112 : index
      %c0_49 = arith.constant 0 : index
      %99 = vector.load %arg7[%c112, %c0_49] : memref<144x576xbf16, #tpu.memory_space<vmem>>, vector<16x576xbf16>
      tpu.vector_store %arg7[%c112, %c0_49], %98 {strides = array<i32>} : memref<144x576xbf16, #tpu.memory_space<vmem>>, vector<16x576xbf16>,
      %100 = vector.extract_strided_slice %2 {offsets = [0, 65], sizes = [16, 511], strides = [1, 1]} : vector<16x576xbf16> to vector<16x511xbf16>
      %101 = vector.extract_strided_slice %2 {offsets = [0, 0], sizes = [16, 65], strides = [1, 1]} : vector<16x576xbf16> to vector<16x65xbf16>
      %102 = tpu.concatenate %100, %101 in 1 : vector<16x511xbf16>, vector<16x65xbf16> -> vector<16x576xbf16>
      %c0_50 = arith.constant 0 : index
      %c8 = arith.constant 8 : index
      %c0_51 = arith.constant 0 : index
      %c0_52 = arith.constant 0 : index
      %103 = vector.load %arg5[%c0_50, %c8, %c0_51, %c0_52] : memref<1x9x1x576xf32, #tpu.memory_space<vmem>>, vector<1x1x1x576xf32>
      %104 = vector.shape_cast %103 : vector<1x1x1x576xf32> to vector<1x576xf32>
      %cst_53 = arith.constant 5.000000e-01 : f32
      %105 = vector.broadcast %cst_53 : f32 to vector<1x576xf32>
      %106 = arith.cmpf ogt, %104, %105 : vector<1x576xf32>
      %cst_54 = arith.constant 0.000000e+00 : bf16
      %107 = vector.broadcast %cst_54 : bf16 to vector<16x576xbf16>
      %108 = vector.shape_cast %106 : vector<1x576xi1> to vector<1x576xi1>
      %109 = vector.broadcast %108 : vector<1x576xi1> to vector<16x576xi1>
      %110 = arith.select %109, %102, %107 : vector<16x576xi1>, vector<16x576xbf16>
      %c128 = arith.constant 128 : index
      %c0_55 = arith.constant 0 : index
      %111 = vector.load %arg7[%c128, %c0_55] : memref<144x576xbf16, #tpu.memory_space<vmem>>, vector<16x576xbf16>
      tpu.vector_store %arg7[%c128, %c0_55], %110 {strides = array<i32>} : memref<144x576xbf16, #tpu.memory_space<vmem>>, vector<16x576xbf16>,
      %c0_56 = arith.constant 0 : index
      %c0_57 = arith.constant 0 : index
      %c0_58 = arith.constant 0 : index
      %112 = vector.load %arg3[%c0_56, %c0_57, %c0_58] : memref<1x4x144xbf16, #tpu.memory_space<vmem>>, vector<1x4x144xbf16>
      %113 = vector.shape_cast %112 : vector<1x4x144xbf16> to vector<4x144xbf16>
      %c0_59 = arith.constant 0 : index
      %c0_60 = arith.constant 0 : index
      %114 = vector.load %arg7[%c0_59, %c0_60] : memref<144x576xbf16, #tpu.memory_space<vmem>>, vector<144x576xbf16>
      %cst_61 = arith.constant dense<0.000000e+00> : vector<4x576xf32>
      %115 = tpu.matmul %113, %114, %cst_61 {dimension_numbers = #tpu.dot_dimension_numbers<[1], [0], [0], [1], [0, 0, 1, 1], [], []>} : vector<4x144xbf16>, vector<144x576xbf16>, vector<4x576xf32> -> vector<4x576xf32>
      %c0_62 = arith.constant 0 : index
      %c0_63 = arith.constant 0 : index
      %c0_64 = arith.constant 0 : index
      %c0_65 = arith.constant 0 : index
      %116 = vector.load %arg4[%c0_62, %c0_63, %c0_64, %c0_65] : memref<1x2x4x1xf32, #tpu.memory_space<vmem>>, vector<1x1x4x1xf32>
      %117 = vector.shape_cast %116 : vector<1x1x4x1xf32> to vector<4x1xf32>
      %118 = vector.broadcast %117 : vector<4x1xf32> to vector<4x576xf32>
      %119 = arith.addf %115, %118 : vector<4x576xf32>
      %cst_66 = arith.constant 0.000000e+00 : f32
      %120 = vector.broadcast %cst_66 : f32 to vector<4x576xf32>
      %121 = arith.cmpf oge, %119, %120 : vector<4x576xf32>
      %c0_67 = arith.constant 0 : index
      %c1_68 = arith.constant 1 : index
      %c0_69 = arith.constant 0 : index
      %c0_70 = arith.constant 0 : index
      %122 = vector.load %arg4[%c0_67, %c1_68, %c0_69, %c0_70] : memref<1x2x4x1xf32, #tpu.memory_space<vmem>>, vector<1x1x4x1xf32>
      %123 = vector.shape_cast %122 : vector<1x1x4x1xf32> to vector<4x1xf32>
      %124 = vector.broadcast %123 : vector<4x1xf32> to vector<4x576xf32>
      %125 = arith.mulf %124, %119 : vector<4x576xf32>
      %126 = arith.select %121, %119, %125 : vector<4x576xi1>, vector<4x576xf32>
      %c0_71 = arith.constant 0 : index
      %c0_72 = arith.constant 0 : index
      %c0_73 = arith.constant 0 : index
      %c0_74 = arith.constant 0 : index
      %127 = vector.load %arg6[%c0_71, %c0_72, %c0_73, %c0_74] : memref<1x1x4x576xf32, #tpu.memory_space<vmem>>, vector<1x1x4x576xf32>
      %128 = vector.shape_cast %127 : vector<1x1x4x576xf32> to vector<4x576xf32>
      %129 = vector.shape_cast %126 : vector<4x576xf32> to vector<1x1x4x576xf32>
      tpu.vector_store %arg6[%c0_71, %c0_72, %c0_73, %c0_74], %129 {strides = array<i32>} : memref<1x1x4x576xf32, #tpu.memory_space<vmem>>, vector<1x1x4x576xf32>,
    } else {
    }
    %c1_i32 = arith.constant 1 : i32
    %6 = arith.cmpi eq, %arg1, %c1_i32 : i32
    %7 = arith.extui %6 : i1 to i32
    %c0_i32_3 = arith.constant 0 : i32
    %8 = arith.cmpi ne, %7, %c0_i32_3 : i32
    scf.if %8 {
      %15 = vector.extract_strided_slice %2 {offsets = [0, 376], sizes = [16, 200], strides = [1, 1]} : vector<16x576xbf16> to vector<16x200xbf16>
      %16 = vector.extract_strided_slice %2 {offsets = [0, 0], sizes = [16, 376], strides = [1, 1]} : vector<16x576xbf16> to vector<16x376xbf16>
      %17 = tpu.concatenate %15, %16 in 1 : vector<16x200xbf16>, vector<16x376xbf16> -> vector<16x576xbf16>
      %c0_6 = arith.constant 0 : index
      %c0_7 = arith.constant 0 : index
      %c0_8 = arith.constant 0 : index
      %c0_9 = arith.constant 0 : index
      %18 = vector.load %arg5[%c0_6, %c0_7, %c0_8, %c0_9] : memref<1x9x1x576xf32, #tpu.memory_space<vmem>>, vector<1x1x1x576xf32>
      %19 = vector.shape_cast %18 : vector<1x1x1x576xf32> to vector<1x576xf32>
      %cst = arith.constant 5.000000e-01 : f32
      %20 = vector.broadcast %cst : f32 to vector<1x576xf32>
      %21 = arith.cmpf ogt, %19, %20 : vector<1x576xf32>
      %cst_10 = arith.constant 0.000000e+00 : bf16
      %22 = vector.broadcast %cst_10 : bf16 to vector<16x576xbf16>
      %23 = vector.shape_cast %21 : vector<1x576xi1> to vector<1x576xi1>
      %24 = vector.broadcast %23 : vector<1x576xi1> to vector<16x576xi1>
      %25 = arith.select %24, %17, %22 : vector<16x576xi1>, vector<16x576xbf16>
      %c0_11 = arith.constant 0 : index
      %c0_12 = arith.constant 0 : index
      %26 = vector.load %arg7[%c0_11, %c0_12] : memref<144x576xbf16, #tpu.memory_space<vmem>>, vector<16x576xbf16>
      tpu.vector_store %arg7[%c0_11, %c0_12], %25 {strides = array<i32>} : memref<144x576xbf16, #tpu.memory_space<vmem>>, vector<16x576xbf16>,
      %27 = vector.extract_strided_slice %2 {offsets = [0, 384], sizes = [16, 192], strides = [1, 1]} : vector<16x576xbf16> to vector<16x192xbf16>
      %28 = vector.extract_strided_slice %2 {offsets = [0, 0], sizes = [16, 384], strides = [1, 1]} : vector<16x576xbf16> to vector<16x384xbf16>
      %29 = tpu.concatenate %27, %28 in 1 : vector<16x192xbf16>, vector<16x384xbf16> -> vector<16x576xbf16>
      %c0_13 = arith.constant 0 : index
      %c1 = arith.constant 1 : index
      %c0_14 = arith.constant 0 : index
      %c0_15 = arith.constant 0 : index
      %30 = vector.load %arg5[%c0_13, %c1, %c0_14, %c0_15] : memref<1x9x1x576xf32, #tpu.memory_space<vmem>>, vector<1x1x1x576xf32>
      %31 = vector.shape_cast %30 : vector<1x1x1x576xf32> to vector<1x576xf32>
      %cst_16 = arith.constant 5.000000e-01 : f32
      %32 = vector.broadcast %cst_16 : f32 to vector<1x576xf32>
      %33 = arith.cmpf ogt, %31, %32 : vector<1x576xf32>
      %cst_17 = arith.constant 0.000000e+00 : bf16
      %34 = vector.broadcast %cst_17 : bf16 to vector<16x576xbf16>
      %35 = vector.shape_cast %33 : vector<1x576xi1> to vector<1x576xi1>
      %36 = vector.broadcast %35 : vector<1x576xi1> to vector<16x576xi1>
      %37 = arith.select %36, %29, %34 : vector<16x576xi1>, vector<16x576xbf16>
      %c16 = arith.constant 16 : index
      %c0_18 = arith.constant 0 : index
      %38 = vector.load %arg7[%c16, %c0_18] : memref<144x576xbf16, #tpu.memory_space<vmem>>, vector<16x576xbf16>
      tpu.vector_store %arg7[%c16, %c0_18], %37 {strides = array<i32>} : memref<144x576xbf16, #tpu.memory_space<vmem>>, vector<16x576xbf16>,
      %39 = vector.extract_strided_slice %2 {offsets = [0, 392], sizes = [16, 184], strides = [1, 1]} : vector<16x576xbf16> to vector<16x184xbf16>
      %40 = vector.extract_strided_slice %2 {offsets = [0, 0], sizes = [16, 392], strides = [1, 1]} : vector<16x576xbf16> to vector<16x392xbf16>
      %41 = tpu.concatenate %39, %40 in 1 : vector<16x184xbf16>, vector<16x392xbf16> -> vector<16x576xbf16>
      %c0_19 = arith.constant 0 : index
      %c2 = arith.constant 2 : index
      %c0_20 = arith.constant 0 : index
      %c0_21 = arith.constant 0 : index
      %42 = vector.load %arg5[%c0_19, %c2, %c0_20, %c0_21] : memref<1x9x1x576xf32, #tpu.memory_space<vmem>>, vector<1x1x1x576xf32>
      %43 = vector.shape_cast %42 : vector<1x1x1x576xf32> to vector<1x576xf32>
      %cst_22 = arith.constant 5.000000e-01 : f32
      %44 = vector.broadcast %cst_22 : f32 to vector<1x576xf32>
      %45 = arith.cmpf ogt, %43, %44 : vector<1x576xf32>
      %cst_23 = arith.constant 0.000000e+00 : bf16
      %46 = vector.broadcast %cst_23 : bf16 to vector<16x576xbf16>
      %47 = vector.shape_cast %45 : vector<1x576xi1> to vector<1x576xi1>
      %48 = vector.broadcast %47 : vector<1x576xi1> to vector<16x576xi1>
      %49 = arith.select %48, %41, %46 : vector<16x576xi1>, vector<16x576xbf16>
      %c32 = arith.constant 32 : index
      %c0_24 = arith.constant 0 : index
      %50 = vector.load %arg7[%c32, %c0_24] : memref<144x576xbf16, #tpu.memory_space<vmem>>, vector<16x576xbf16>
      tpu.vector_store %arg7[%c32, %c0_24], %49 {strides = array<i32>} : memref<144x576xbf16, #tpu.memory_space<vmem>>, vector<16x576xbf16>,
      %51 = vector.extract_strided_slice %2 {offsets = [0, 568], sizes = [16, 8], strides = [1, 1]} : vector<16x576xbf16> to vector<16x8xbf16>
      %52 = vector.extract_strided_slice %2 {offsets = [0, 0], sizes = [16, 568], strides = [1, 1]} : vector<16x576xbf16> to vector<16x568xbf16>
      %53 = tpu.concatenate %51, %52 in 1 : vector<16x8xbf16>, vector<16x568xbf16> -> vector<16x576xbf16>
      %c0_25 = arith.constant 0 : index
      %c3 = arith.constant 3 : index
      %c0_26 = arith.constant 0 : index
      %c0_27 = arith.constant 0 : index
      %54 = vector.load %arg5[%c0_25, %c3, %c0_26, %c0_27] : memref<1x9x1x576xf32, #tpu.memory_space<vmem>>, vector<1x1x1x576xf32>
      %55 = vector.shape_cast %54 : vector<1x1x1x576xf32> to vector<1x576xf32>
      %cst_28 = arith.constant 5.000000e-01 : f32
      %56 = vector.broadcast %cst_28 : f32 to vector<1x576xf32>
      %57 = arith.cmpf ogt, %55, %56 : vector<1x576xf32>
      %cst_29 = arith.constant 0.000000e+00 : bf16
      %58 = vector.broadcast %cst_29 : bf16 to vector<16x576xbf16>
      %59 = vector.shape_cast %57 : vector<1x576xi1> to vector<1x576xi1>
      %60 = vector.broadcast %59 : vector<1x576xi1> to vector<16x576xi1>
      %61 = arith.select %60, %53, %58 : vector<16x576xi1>, vector<16x576xbf16>
      %c48 = arith.constant 48 : index
      %c0_30 = arith.constant 0 : index
      %62 = vector.load %arg7[%c48, %c0_30] : memref<144x576xbf16, #tpu.memory_space<vmem>>, vector<16x576xbf16>
      tpu.vector_store %arg7[%c48, %c0_30], %61 {strides = array<i32>} : memref<144x576xbf16, #tpu.memory_space<vmem>>, vector<16x576xbf16>,
      %c64 = arith.constant 64 : index
      %c0_31 = arith.constant 0 : index
      %63 = vector.load %arg7[%c64, %c0_31] : memref<144x576xbf16, #tpu.memory_space<vmem>>, vector<16x576xbf16>
      tpu.vector_store %arg7[%c64, %c0_31], %2 {strides = array<i32>} : memref<144x576xbf16, #tpu.memory_space<vmem>>, vector<16x576xbf16>,
      %64 = vector.extract_strided_slice %2 {offsets = [0, 8], sizes = [16, 568], strides = [1, 1]} : vector<16x576xbf16> to vector<16x568xbf16>
      %65 = vector.extract_strided_slice %2 {offsets = [0, 0], sizes = [16, 8], strides = [1, 1]} : vector<16x576xbf16> to vector<16x8xbf16>
      %66 = tpu.concatenate %64, %65 in 1 : vector<16x568xbf16>, vector<16x8xbf16> -> vector<16x576xbf16>
      %c0_32 = arith.constant 0 : index
      %c5 = arith.constant 5 : index
      %c0_33 = arith.constant 0 : index
      %c0_34 = arith.constant 0 : index
      %67 = vector.load %arg5[%c0_32, %c5, %c0_33, %c0_34] : memref<1x9x1x576xf32, #tpu.memory_space<vmem>>, vector<1x1x1x576xf32>
      %68 = vector.shape_cast %67 : vector<1x1x1x576xf32> to vector<1x576xf32>
      %cst_35 = arith.constant 5.000000e-01 : f32
      %69 = vector.broadcast %cst_35 : f32 to vector<1x576xf32>
      %70 = arith.cmpf ogt, %68, %69 : vector<1x576xf32>
      %cst_36 = arith.constant 0.000000e+00 : bf16
      %71 = vector.broadcast %cst_36 : bf16 to vector<16x576xbf16>
      %72 = vector.shape_cast %70 : vector<1x576xi1> to vector<1x576xi1>
      %73 = vector.broadcast %72 : vector<1x576xi1> to vector<16x576xi1>
      %74 = arith.select %73, %66, %71 : vector<16x576xi1>, vector<16x576xbf16>
      %c80 = arith.constant 80 : index
      %c0_37 = arith.constant 0 : index
      %75 = vector.load %arg7[%c80, %c0_37] : memref<144x576xbf16, #tpu.memory_space<vmem>>, vector<16x576xbf16>
      tpu.vector_store %arg7[%c80, %c0_37], %74 {strides = array<i32>} : memref<144x576xbf16, #tpu.memory_space<vmem>>, vector<16x576xbf16>,
      %76 = vector.extract_strided_slice %2 {offsets = [0, 184], sizes = [16, 392], strides = [1, 1]} : vector<16x576xbf16> to vector<16x392xbf16>
      %77 = vector.extract_strided_slice %2 {offsets = [0, 0], sizes = [16, 184], strides = [1, 1]} : vector<16x576xbf16> to vector<16x184xbf16>
      %78 = tpu.concatenate %76, %77 in 1 : vector<16x392xbf16>, vector<16x184xbf16> -> vector<16x576xbf16>
      %c0_38 = arith.constant 0 : index
      %c6 = arith.constant 6 : index
      %c0_39 = arith.constant 0 : index
      %c0_40 = arith.constant 0 : index
      %79 = vector.load %arg5[%c0_38, %c6, %c0_39, %c0_40] : memref<1x9x1x576xf32, #tpu.memory_space<vmem>>, vector<1x1x1x576xf32>
      %80 = vector.shape_cast %79 : vector<1x1x1x576xf32> to vector<1x576xf32>
      %cst_41 = arith.constant 5.000000e-01 : f32
      %81 = vector.broadcast %cst_41 : f32 to vector<1x576xf32>
      %82 = arith.cmpf ogt, %80, %81 : vector<1x576xf32>
      %cst_42 = arith.constant 0.000000e+00 : bf16
      %83 = vector.broadcast %cst_42 : bf16 to vector<16x576xbf16>
      %84 = vector.shape_cast %82 : vector<1x576xi1> to vector<1x576xi1>
      %85 = vector.broadcast %84 : vector<1x576xi1> to vector<16x576xi1>
      %86 = arith.select %85, %78, %83 : vector<16x576xi1>, vector<16x576xbf16>
      %c96 = arith.constant 96 : index
      %c0_43 = arith.constant 0 : index
      %87 = vector.load %arg7[%c96, %c0_43] : memref<144x576xbf16, #tpu.memory_space<vmem>>, vector<16x576xbf16>
      tpu.vector_store %arg7[%c96, %c0_43], %86 {strides = array<i32>} : memref<144x576xbf16, #tpu.memory_space<vmem>>, vector<16x576xbf16>,
      %88 = vector.extract_strided_slice %2 {offsets = [0, 192], sizes = [16, 384], strides = [1, 1]} : vector<16x576xbf16> to vector<16x384xbf16>
      %89 = vector.extract_strided_slice %2 {offsets = [0, 0], sizes = [16, 192], strides = [1, 1]} : vector<16x576xbf16> to vector<16x192xbf16>
      %90 = tpu.concatenate %88, %89 in 1 : vector<16x384xbf16>, vector<16x192xbf16> -> vector<16x576xbf16>
      %c0_44 = arith.constant 0 : index
      %c7 = arith.constant 7 : index
      %c0_45 = arith.constant 0 : index
      %c0_46 = arith.constant 0 : index
      %91 = vector.load %arg5[%c0_44, %c7, %c0_45, %c0_46] : memref<1x9x1x576xf32, #tpu.memory_space<vmem>>, vector<1x1x1x576xf32>
      %92 = vector.shape_cast %91 : vector<1x1x1x576xf32> to vector<1x576xf32>
      %cst_47 = arith.constant 5.000000e-01 : f32
      %93 = vector.broadcast %cst_47 : f32 to vector<1x576xf32>
      %94 = arith.cmpf ogt, %92, %93 : vector<1x576xf32>
      %cst_48 = arith.constant 0.000000e+00 : bf16
      %95 = vector.broadcast %cst_48 : bf16 to vector<16x576xbf16>
      %96 = vector.shape_cast %94 : vector<1x576xi1> to vector<1x576xi1>
      %97 = vector.broadcast %96 : vector<1x576xi1> to vector<16x576xi1>
      %98 = arith.select %97, %90, %95 : vector<16x576xi1>, vector<16x576xbf16>
      %c112 = arith.constant 112 : index
      %c0_49 = arith.constant 0 : index
      %99 = vector.load %arg7[%c112, %c0_49] : memref<144x576xbf16, #tpu.memory_space<vmem>>, vector<16x576xbf16>
      tpu.vector_store %arg7[%c112, %c0_49], %98 {strides = array<i32>} : memref<144x576xbf16, #tpu.memory_space<vmem>>, vector<16x576xbf16>,
      %100 = vector.extract_strided_slice %2 {offsets = [0, 200], sizes = [16, 376], strides = [1, 1]} : vector<16x576xbf16> to vector<16x376xbf16>
      %101 = vector.extract_strided_slice %2 {offsets = [0, 0], sizes = [16, 200], strides = [1, 1]} : vector<16x576xbf16> to vector<16x200xbf16>
      %102 = tpu.concatenate %100, %101 in 1 : vector<16x376xbf16>, vector<16x200xbf16> -> vector<16x576xbf16>
      %c0_50 = arith.constant 0 : index
      %c8 = arith.constant 8 : index
      %c0_51 = arith.constant 0 : index
      %c0_52 = arith.constant 0 : index
      %103 = vector.load %arg5[%c0_50, %c8, %c0_51, %c0_52] : memref<1x9x1x576xf32, #tpu.memory_space<vmem>>, vector<1x1x1x576xf32>
      %104 = vector.shape_cast %103 : vector<1x1x1x576xf32> to vector<1x576xf32>
      %cst_53 = arith.constant 5.000000e-01 : f32
      %105 = vector.broadcast %cst_53 : f32 to vector<1x576xf32>
      %106 = arith.cmpf ogt, %104, %105 : vector<1x576xf32>
      %cst_54 = arith.constant 0.000000e+00 : bf16
      %107 = vector.broadcast %cst_54 : bf16 to vector<16x576xbf16>
      %108 = vector.shape_cast %106 : vector<1x576xi1> to vector<1x576xi1>
      %109 = vector.broadcast %108 : vector<1x576xi1> to vector<16x576xi1>
      %110 = arith.select %109, %102, %107 : vector<16x576xi1>, vector<16x576xbf16>
      %c128 = arith.constant 128 : index
      %c0_55 = arith.constant 0 : index
      %111 = vector.load %arg7[%c128, %c0_55] : memref<144x576xbf16, #tpu.memory_space<vmem>>, vector<16x576xbf16>
      tpu.vector_store %arg7[%c128, %c0_55], %110 {strides = array<i32>} : memref<144x576xbf16, #tpu.memory_space<vmem>>, vector<16x576xbf16>,
      %c0_56 = arith.constant 0 : index
      %c0_57 = arith.constant 0 : index
      %c0_58 = arith.constant 0 : index
      %112 = vector.load %arg3[%c0_56, %c0_57, %c0_58] : memref<1x4x144xbf16, #tpu.memory_space<vmem>>, vector<1x4x144xbf16>
      %113 = vector.shape_cast %112 : vector<1x4x144xbf16> to vector<4x144xbf16>
      %c0_59 = arith.constant 0 : index
      %c0_60 = arith.constant 0 : index
      %114 = vector.load %arg7[%c0_59, %c0_60] : memref<144x576xbf16, #tpu.memory_space<vmem>>, vector<144x576xbf16>
      %cst_61 = arith.constant dense<0.000000e+00> : vector<4x576xf32>
      %115 = tpu.matmul %113, %114, %cst_61 {dimension_numbers = #tpu.dot_dimension_numbers<[1], [0], [0], [1], [0, 0, 1, 1], [], []>} : vector<4x144xbf16>, vector<144x576xbf16>, vector<4x576xf32> -> vector<4x576xf32>
      %c0_62 = arith.constant 0 : index
      %c0_63 = arith.constant 0 : index
      %c0_64 = arith.constant 0 : index
      %c0_65 = arith.constant 0 : index
      %116 = vector.load %arg4[%c0_62, %c0_63, %c0_64, %c0_65] : memref<1x2x4x1xf32, #tpu.memory_space<vmem>>, vector<1x1x4x1xf32>
      %117 = vector.shape_cast %116 : vector<1x1x4x1xf32> to vector<4x1xf32>
      %118 = vector.broadcast %117 : vector<4x1xf32> to vector<4x576xf32>
      %119 = arith.addf %115, %118 : vector<4x576xf32>
      %cst_66 = arith.constant 0.000000e+00 : f32
      %120 = vector.broadcast %cst_66 : f32 to vector<4x576xf32>
      %121 = arith.cmpf oge, %119, %120 : vector<4x576xf32>
      %c0_67 = arith.constant 0 : index
      %c1_68 = arith.constant 1 : index
      %c0_69 = arith.constant 0 : index
      %c0_70 = arith.constant 0 : index
      %122 = vector.load %arg4[%c0_67, %c1_68, %c0_69, %c0_70] : memref<1x2x4x1xf32, #tpu.memory_space<vmem>>, vector<1x1x4x1xf32>
      %123 = vector.shape_cast %122 : vector<1x1x4x1xf32> to vector<4x1xf32>
      %124 = vector.broadcast %123 : vector<4x1xf32> to vector<4x576xf32>
      %125 = arith.mulf %124, %119 : vector<4x576xf32>
      %126 = arith.select %121, %119, %125 : vector<4x576xi1>, vector<4x576xf32>
      %c0_71 = arith.constant 0 : index
      %c0_72 = arith.constant 0 : index
      %c0_73 = arith.constant 0 : index
      %c0_74 = arith.constant 0 : index
      %127 = vector.load %arg6[%c0_71, %c0_72, %c0_73, %c0_74] : memref<1x1x4x576xf32, #tpu.memory_space<vmem>>, vector<1x1x4x576xf32>
      %128 = vector.shape_cast %127 : vector<1x1x4x576xf32> to vector<4x576xf32>
      %129 = vector.shape_cast %126 : vector<4x576xf32> to vector<1x1x4x576xf32>
      tpu.vector_store %arg6[%c0_71, %c0_72, %c0_73, %c0_74], %129 {strides = array<i32>} : memref<1x1x4x576xf32, #tpu.memory_space<vmem>>, vector<1x1x4x576xf32>,
    } else {
    }
    %c2_i32 = arith.constant 2 : i32
    %9 = arith.cmpi eq, %arg1, %c2_i32 : i32
    %10 = arith.extui %9 : i1 to i32
    %c0_i32_4 = arith.constant 0 : i32
    %11 = arith.cmpi ne, %10, %c0_i32_4 : i32
    scf.if %11 {
      %15 = vector.extract_strided_slice %2 {offsets = [0, 567], sizes = [16, 9], strides = [1, 1]} : vector<16x576xbf16> to vector<16x9xbf16>
      %16 = vector.extract_strided_slice %2 {offsets = [0, 0], sizes = [16, 567], strides = [1, 1]} : vector<16x576xbf16> to vector<16x567xbf16>
      %17 = tpu.concatenate %15, %16 in 1 : vector<16x9xbf16>, vector<16x567xbf16> -> vector<16x576xbf16>
      %c0_6 = arith.constant 0 : index
      %c0_7 = arith.constant 0 : index
      %c0_8 = arith.constant 0 : index
      %c0_9 = arith.constant 0 : index
      %18 = vector.load %arg5[%c0_6, %c0_7, %c0_8, %c0_9] : memref<1x9x1x576xf32, #tpu.memory_space<vmem>>, vector<1x1x1x576xf32>
      %19 = vector.shape_cast %18 : vector<1x1x1x576xf32> to vector<1x576xf32>
      %cst = arith.constant 5.000000e-01 : f32
      %20 = vector.broadcast %cst : f32 to vector<1x576xf32>
      %21 = arith.cmpf ogt, %19, %20 : vector<1x576xf32>
      %cst_10 = arith.constant 0.000000e+00 : bf16
      %22 = vector.broadcast %cst_10 : bf16 to vector<16x576xbf16>
      %23 = vector.shape_cast %21 : vector<1x576xi1> to vector<1x576xi1>
      %24 = vector.broadcast %23 : vector<1x576xi1> to vector<16x576xi1>
      %25 = arith.select %24, %17, %22 : vector<16x576xi1>, vector<16x576xbf16>
      %c0_11 = arith.constant 0 : index
      %c0_12 = arith.constant 0 : index
      %26 = vector.load %arg7[%c0_11, %c0_12] : memref<144x576xbf16, #tpu.memory_space<vmem>>, vector<16x576xbf16>
      tpu.vector_store %arg7[%c0_11, %c0_12], %25 {strides = array<i32>} : memref<144x576xbf16, #tpu.memory_space<vmem>>, vector<16x576xbf16>,
      %27 = vector.extract_strided_slice %2 {offsets = [0, 568], sizes = [16, 8], strides = [1, 1]} : vector<16x576xbf16> to vector<16x8xbf16>
      %28 = vector.extract_strided_slice %2 {offsets = [0, 0], sizes = [16, 568], strides = [1, 1]} : vector<16x576xbf16> to vector<16x568xbf16>
      %29 = tpu.concatenate %27, %28 in 1 : vector<16x8xbf16>, vector<16x568xbf16> -> vector<16x576xbf16>
      %c0_13 = arith.constant 0 : index
      %c1 = arith.constant 1 : index
      %c0_14 = arith.constant 0 : index
      %c0_15 = arith.constant 0 : index
      %30 = vector.load %arg5[%c0_13, %c1, %c0_14, %c0_15] : memref<1x9x1x576xf32, #tpu.memory_space<vmem>>, vector<1x1x1x576xf32>
      %31 = vector.shape_cast %30 : vector<1x1x1x576xf32> to vector<1x576xf32>
      %cst_16 = arith.constant 5.000000e-01 : f32
      %32 = vector.broadcast %cst_16 : f32 to vector<1x576xf32>
      %33 = arith.cmpf ogt, %31, %32 : vector<1x576xf32>
      %cst_17 = arith.constant 0.000000e+00 : bf16
      %34 = vector.broadcast %cst_17 : bf16 to vector<16x576xbf16>
      %35 = vector.shape_cast %33 : vector<1x576xi1> to vector<1x576xi1>
      %36 = vector.broadcast %35 : vector<1x576xi1> to vector<16x576xi1>
      %37 = arith.select %36, %29, %34 : vector<16x576xi1>, vector<16x576xbf16>
      %c16 = arith.constant 16 : index
      %c0_18 = arith.constant 0 : index
      %38 = vector.load %arg7[%c16, %c0_18] : memref<144x576xbf16, #tpu.memory_space<vmem>>, vector<16x576xbf16>
      tpu.vector_store %arg7[%c16, %c0_18], %37 {strides = array<i32>} : memref<144x576xbf16, #tpu.memory_space<vmem>>, vector<16x576xbf16>,
      %39 = vector.extract_strided_slice %2 {offsets = [0, 569], sizes = [16, 7], strides = [1, 1]} : vector<16x576xbf16> to vector<16x7xbf16>
      %40 = vector.extract_strided_slice %2 {offsets = [0, 0], sizes = [16, 569], strides = [1, 1]} : vector<16x576xbf16> to vector<16x569xbf16>
      %41 = tpu.concatenate %39, %40 in 1 : vector<16x7xbf16>, vector<16x569xbf16> -> vector<16x576xbf16>
      %c0_19 = arith.constant 0 : index
      %c2 = arith.constant 2 : index
      %c0_20 = arith.constant 0 : index
      %c0_21 = arith.constant 0 : index
      %42 = vector.load %arg5[%c0_19, %c2, %c0_20, %c0_21] : memref<1x9x1x576xf32, #tpu.memory_space<vmem>>, vector<1x1x1x576xf32>
      %43 = vector.shape_cast %42 : vector<1x1x1x576xf32> to vector<1x576xf32>
      %cst_22 = arith.constant 5.000000e-01 : f32
      %44 = vector.broadcast %cst_22 : f32 to vector<1x576xf32>
      %45 = arith.cmpf ogt, %43, %44 : vector<1x576xf32>
      %cst_23 = arith.constant 0.000000e+00 : bf16
      %46 = vector.broadcast %cst_23 : bf16 to vector<16x576xbf16>
      %47 = vector.shape_cast %45 : vector<1x576xi1> to vector<1x576xi1>
      %48 = vector.broadcast %47 : vector<1x576xi1> to vector<16x576xi1>
      %49 = arith.select %48, %41, %46 : vector<16x576xi1>, vector<16x576xbf16>
      %c32 = arith.constant 32 : index
      %c0_24 = arith.constant 0 : index
      %50 = vector.load %arg7[%c32, %c0_24] : memref<144x576xbf16, #tpu.memory_space<vmem>>, vector<16x576xbf16>
      tpu.vector_store %arg7[%c32, %c0_24], %49 {strides = array<i32>} : memref<144x576xbf16, #tpu.memory_space<vmem>>, vector<16x576xbf16>,
      %51 = vector.extract_strided_slice %2 {offsets = [0, 575], sizes = [16, 1], strides = [1, 1]} : vector<16x576xbf16> to vector<16x1xbf16>
      %52 = vector.extract_strided_slice %2 {offsets = [0, 0], sizes = [16, 575], strides = [1, 1]} : vector<16x576xbf16> to vector<16x575xbf16>
      %53 = tpu.concatenate %51, %52 in 1 : vector<16x1xbf16>, vector<16x575xbf16> -> vector<16x576xbf16>
      %c0_25 = arith.constant 0 : index
      %c3 = arith.constant 3 : index
      %c0_26 = arith.constant 0 : index
      %c0_27 = arith.constant 0 : index
      %54 = vector.load %arg5[%c0_25, %c3, %c0_26, %c0_27] : memref<1x9x1x576xf32, #tpu.memory_space<vmem>>, vector<1x1x1x576xf32>
      %55 = vector.shape_cast %54 : vector<1x1x1x576xf32> to vector<1x576xf32>
      %cst_28 = arith.constant 5.000000e-01 : f32
      %56 = vector.broadcast %cst_28 : f32 to vector<1x576xf32>
      %57 = arith.cmpf ogt, %55, %56 : vector<1x576xf32>
      %cst_29 = arith.constant 0.000000e+00 : bf16
      %58 = vector.broadcast %cst_29 : bf16 to vector<16x576xbf16>
      %59 = vector.shape_cast %57 : vector<1x576xi1> to vector<1x576xi1>
      %60 = vector.broadcast %59 : vector<1x576xi1> to vector<16x576xi1>
      %61 = arith.select %60, %53, %58 : vector<16x576xi1>, vector<16x576xbf16>
      %c48 = arith.constant 48 : index
      %c0_30 = arith.constant 0 : index
      %62 = vector.load %arg7[%c48, %c0_30] : memref<144x576xbf16, #tpu.memory_space<vmem>>, vector<16x576xbf16>
      tpu.vector_store %arg7[%c48, %c0_30], %61 {strides = array<i32>} : memref<144x576xbf16, #tpu.memory_space<vmem>>, vector<16x576xbf16>,
      %c64 = arith.constant 64 : index
      %c0_31 = arith.constant 0 : index
      %63 = vector.load %arg7[%c64, %c0_31] : memref<144x576xbf16, #tpu.memory_space<vmem>>, vector<16x576xbf16>
      tpu.vector_store %arg7[%c64, %c0_31], %2 {strides = array<i32>} : memref<144x576xbf16, #tpu.memory_space<vmem>>, vector<16x576xbf16>,
      %64 = vector.extract_strided_slice %2 {offsets = [0, 1], sizes = [16, 575], strides = [1, 1]} : vector<16x576xbf16> to vector<16x575xbf16>
      %65 = vector.extract_strided_slice %2 {offsets = [0, 0], sizes = [16, 1], strides = [1, 1]} : vector<16x576xbf16> to vector<16x1xbf16>
      %66 = tpu.concatenate %64, %65 in 1 : vector<16x575xbf16>, vector<16x1xbf16> -> vector<16x576xbf16>
      %c0_32 = arith.constant 0 : index
      %c5 = arith.constant 5 : index
      %c0_33 = arith.constant 0 : index
      %c0_34 = arith.constant 0 : index
      %67 = vector.load %arg5[%c0_32, %c5, %c0_33, %c0_34] : memref<1x9x1x576xf32, #tpu.memory_space<vmem>>, vector<1x1x1x576xf32>
      %68 = vector.shape_cast %67 : vector<1x1x1x576xf32> to vector<1x576xf32>
      %cst_35 = arith.constant 5.000000e-01 : f32
      %69 = vector.broadcast %cst_35 : f32 to vector<1x576xf32>
      %70 = arith.cmpf ogt, %68, %69 : vector<1x576xf32>
      %cst_36 = arith.constant 0.000000e+00 : bf16
      %71 = vector.broadcast %cst_36 : bf16 to vector<16x576xbf16>
      %72 = vector.shape_cast %70 : vector<1x576xi1> to vector<1x576xi1>
      %73 = vector.broadcast %72 : vector<1x576xi1> to vector<16x576xi1>
      %74 = arith.select %73, %66, %71 : vector<16x576xi1>, vector<16x576xbf16>
      %c80 = arith.constant 80 : index
      %c0_37 = arith.constant 0 : index
      %75 = vector.load %arg7[%c80, %c0_37] : memref<144x576xbf16, #tpu.memory_space<vmem>>, vector<16x576xbf16>
      tpu.vector_store %arg7[%c80, %c0_37], %74 {strides = array<i32>} : memref<144x576xbf16, #tpu.memory_space<vmem>>, vector<16x576xbf16>,
      %76 = vector.extract_strided_slice %2 {offsets = [0, 7], sizes = [16, 569], strides = [1, 1]} : vector<16x576xbf16> to vector<16x569xbf16>
      %77 = vector.extract_strided_slice %2 {offsets = [0, 0], sizes = [16, 7], strides = [1, 1]} : vector<16x576xbf16> to vector<16x7xbf16>
      %78 = tpu.concatenate %76, %77 in 1 : vector<16x569xbf16>, vector<16x7xbf16> -> vector<16x576xbf16>
      %c0_38 = arith.constant 0 : index
      %c6 = arith.constant 6 : index
      %c0_39 = arith.constant 0 : index
      %c0_40 = arith.constant 0 : index
      %79 = vector.load %arg5[%c0_38, %c6, %c0_39, %c0_40] : memref<1x9x1x576xf32, #tpu.memory_space<vmem>>, vector<1x1x1x576xf32>
      %80 = vector.shape_cast %79 : vector<1x1x1x576xf32> to vector<1x576xf32>
      %cst_41 = arith.constant 5.000000e-01 : f32
      %81 = vector.broadcast %cst_41 : f32 to vector<1x576xf32>
      %82 = arith.cmpf ogt, %80, %81 : vector<1x576xf32>
      %cst_42 = arith.constant 0.000000e+00 : bf16
      %83 = vector.broadcast %cst_42 : bf16 to vector<16x576xbf16>
      %84 = vector.shape_cast %82 : vector<1x576xi1> to vector<1x576xi1>
      %85 = vector.broadcast %84 : vector<1x576xi1> to vector<16x576xi1>
      %86 = arith.select %85, %78, %83 : vector<16x576xi1>, vector<16x576xbf16>
      %c96 = arith.constant 96 : index
      %c0_43 = arith.constant 0 : index
      %87 = vector.load %arg7[%c96, %c0_43] : memref<144x576xbf16, #tpu.memory_space<vmem>>, vector<16x576xbf16>
      tpu.vector_store %arg7[%c96, %c0_43], %86 {strides = array<i32>} : memref<144x576xbf16, #tpu.memory_space<vmem>>, vector<16x576xbf16>,
      %88 = vector.extract_strided_slice %2 {offsets = [0, 8], sizes = [16, 568], strides = [1, 1]} : vector<16x576xbf16> to vector<16x568xbf16>
      %89 = vector.extract_strided_slice %2 {offsets = [0, 0], sizes = [16, 8], strides = [1, 1]} : vector<16x576xbf16> to vector<16x8xbf16>
      %90 = tpu.concatenate %88, %89 in 1 : vector<16x568xbf16>, vector<16x8xbf16> -> vector<16x576xbf16>
      %c0_44 = arith.constant 0 : index
      %c7 = arith.constant 7 : index
      %c0_45 = arith.constant 0 : index
      %c0_46 = arith.constant 0 : index
      %91 = vector.load %arg5[%c0_44, %c7, %c0_45, %c0_46] : memref<1x9x1x576xf32, #tpu.memory_space<vmem>>, vector<1x1x1x576xf32>
      %92 = vector.shape_cast %91 : vector<1x1x1x576xf32> to vector<1x576xf32>
      %cst_47 = arith.constant 5.000000e-01 : f32
      %93 = vector.broadcast %cst_47 : f32 to vector<1x576xf32>
      %94 = arith.cmpf ogt, %92, %93 : vector<1x576xf32>
      %cst_48 = arith.constant 0.000000e+00 : bf16
      %95 = vector.broadcast %cst_48 : bf16 to vector<16x576xbf16>
      %96 = vector.shape_cast %94 : vector<1x576xi1> to vector<1x576xi1>
      %97 = vector.broadcast %96 : vector<1x576xi1> to vector<16x576xi1>
      %98 = arith.select %97, %90, %95 : vector<16x576xi1>, vector<16x576xbf16>
      %c112 = arith.constant 112 : index
      %c0_49 = arith.constant 0 : index
      %99 = vector.load %arg7[%c112, %c0_49] : memref<144x576xbf16, #tpu.memory_space<vmem>>, vector<16x576xbf16>
      tpu.vector_store %arg7[%c112, %c0_49], %98 {strides = array<i32>} : memref<144x576xbf16, #tpu.memory_space<vmem>>, vector<16x576xbf16>,
      %100 = vector.extract_strided_slice %2 {offsets = [0, 9], sizes = [16, 567], strides = [1, 1]} : vector<16x576xbf16> to vector<16x567xbf16>
      %101 = vector.extract_strided_slice %2 {offsets = [0, 0], sizes = [16, 9], strides = [1, 1]} : vector<16x576xbf16> to vector<16x9xbf16>
      %102 = tpu.concatenate %100, %101 in 1 : vector<16x567xbf16>, vector<16x9xbf16> -> vector<16x576xbf16>
      %c0_50 = arith.constant 0 : index
      %c8 = arith.constant 8 : index
      %c0_51 = arith.constant 0 : index
      %c0_52 = arith.constant 0 : index
      %103 = vector.load %arg5[%c0_50, %c8, %c0_51, %c0_52] : memref<1x9x1x576xf32, #tpu.memory_space<vmem>>, vector<1x1x1x576xf32>
      %104 = vector.shape_cast %103 : vector<1x1x1x576xf32> to vector<1x576xf32>
      %cst_53 = arith.constant 5.000000e-01 : f32
      %105 = vector.broadcast %cst_53 : f32 to vector<1x576xf32>
      %106 = arith.cmpf ogt, %104, %105 : vector<1x576xf32>
      %cst_54 = arith.constant 0.000000e+00 : bf16
      %107 = vector.broadcast %cst_54 : bf16 to vector<16x576xbf16>
      %108 = vector.shape_cast %106 : vector<1x576xi1> to vector<1x576xi1>
      %109 = vector.broadcast %108 : vector<1x576xi1> to vector<16x576xi1>
      %110 = arith.select %109, %102, %107 : vector<16x576xi1>, vector<16x576xbf16>
      %c128 = arith.constant 128 : index
      %c0_55 = arith.constant 0 : index
      %111 = vector.load %arg7[%c128, %c0_55] : memref<144x576xbf16, #tpu.memory_space<vmem>>, vector<16x576xbf16>
      tpu.vector_store %arg7[%c128, %c0_55], %110 {strides = array<i32>} : memref<144x576xbf16, #tpu.memory_space<vmem>>, vector<16x576xbf16>,
      %c0_56 = arith.constant 0 : index
      %c0_57 = arith.constant 0 : index
      %c0_58 = arith.constant 0 : index
      %112 = vector.load %arg3[%c0_56, %c0_57, %c0_58] : memref<1x4x144xbf16, #tpu.memory_space<vmem>>, vector<1x4x144xbf16>
      %113 = vector.shape_cast %112 : vector<1x4x144xbf16> to vector<4x144xbf16>
      %c0_59 = arith.constant 0 : index
      %c0_60 = arith.constant 0 : index
      %114 = vector.load %arg7[%c0_59, %c0_60] : memref<144x576xbf16, #tpu.memory_space<vmem>>, vector<144x576xbf16>
      %cst_61 = arith.constant dense<0.000000e+00> : vector<4x576xf32>
      %115 = tpu.matmul %113, %114, %cst_61 {dimension_numbers = #tpu.dot_dimension_numbers<[1], [0], [0], [1], [0, 0, 1, 1], [], []>} : vector<4x144xbf16>, vector<144x576xbf16>, vector<4x576xf32> -> vector<4x576xf32>
      %c0_62 = arith.constant 0 : index
      %c0_63 = arith.constant 0 : index
      %c0_64 = arith.constant 0 : index
      %c0_65 = arith.constant 0 : index
      %116 = vector.load %arg4[%c0_62, %c0_63, %c0_64, %c0_65] : memref<1x2x4x1xf32, #tpu.memory_space<vmem>>, vector<1x1x4x1xf32>
      %117 = vector.shape_cast %116 : vector<1x1x4x1xf32> to vector<4x1xf32>
      %118 = vector.broadcast %117 : vector<4x1xf32> to vector<4x576xf32>
      %119 = arith.addf %115, %118 : vector<4x576xf32>
      %cst_66 = arith.constant 0.000000e+00 : f32
      %120 = vector.broadcast %cst_66 : f32 to vector<4x576xf32>
      %121 = arith.cmpf oge, %119, %120 : vector<4x576xf32>
      %c0_67 = arith.constant 0 : index
      %c1_68 = arith.constant 1 : index
      %c0_69 = arith.constant 0 : index
      %c0_70 = arith.constant 0 : index
      %122 = vector.load %arg4[%c0_67, %c1_68, %c0_69, %c0_70] : memref<1x2x4x1xf32, #tpu.memory_space<vmem>>, vector<1x1x4x1xf32>
      %123 = vector.shape_cast %122 : vector<1x1x4x1xf32> to vector<4x1xf32>
      %124 = vector.broadcast %123 : vector<4x1xf32> to vector<4x576xf32>
      %125 = arith.mulf %124, %119 : vector<4x576xf32>
      %126 = arith.select %121, %119, %125 : vector<4x576xi1>, vector<4x576xf32>
      %c0_71 = arith.constant 0 : index
      %c0_72 = arith.constant 0 : index
      %c0_73 = arith.constant 0 : index
      %c0_74 = arith.constant 0 : index
      %127 = vector.load %arg6[%c0_71, %c0_72, %c0_73, %c0_74] : memref<1x1x4x576xf32, #tpu.memory_space<vmem>>, vector<1x1x4x576xf32>
      %128 = vector.shape_cast %127 : vector<1x1x4x576xf32> to vector<4x576xf32>
      %129 = vector.shape_cast %126 : vector<4x576xf32> to vector<1x1x4x576xf32>
      tpu.vector_store %arg6[%c0_71, %c0_72, %c0_73, %c0_74], %129 {strides = array<i32>} : memref<1x1x4x576xf32, #tpu.memory_space<vmem>>, vector<1x1x4x576xf32>,
    } else {
    }
    %c3_i32 = arith.constant 3 : i32
    %12 = arith.cmpi eq, %arg1, %c3_i32 : i32
    %13 = arith.extui %12 : i1 to i32
    %c0_i32_5 = arith.constant 0 : i32
    %14 = arith.cmpi ne, %13, %c0_i32_5 : i32
    scf.if %14 {
      %15 = vector.extract_strided_slice %2 {offsets = [0, 320], sizes = [16, 256], strides = [1, 1]} : vector<16x576xbf16> to vector<16x256xbf16>
      %16 = vector.extract_strided_slice %2 {offsets = [0, 0], sizes = [16, 320], strides = [1, 1]} : vector<16x576xbf16> to vector<16x320xbf16>
      %17 = tpu.concatenate %15, %16 in 1 : vector<16x256xbf16>, vector<16x320xbf16> -> vector<16x576xbf16>
      %c0_6 = arith.constant 0 : index
      %c0_7 = arith.constant 0 : index
      %c0_8 = arith.constant 0 : index
      %c0_9 = arith.constant 0 : index
      %18 = vector.load %arg5[%c0_6, %c0_7, %c0_8, %c0_9] : memref<1x9x1x576xf32, #tpu.memory_space<vmem>>, vector<1x1x1x576xf32>
      %19 = vector.shape_cast %18 : vector<1x1x1x576xf32> to vector<1x576xf32>
      %cst = arith.constant 5.000000e-01 : f32
      %20 = vector.broadcast %cst : f32 to vector<1x576xf32>
      %21 = arith.cmpf ogt, %19, %20 : vector<1x576xf32>
      %cst_10 = arith.constant 0.000000e+00 : bf16
      %22 = vector.broadcast %cst_10 : bf16 to vector<16x576xbf16>
      %23 = vector.shape_cast %21 : vector<1x576xi1> to vector<1x576xi1>
      %24 = vector.broadcast %23 : vector<1x576xi1> to vector<16x576xi1>
      %25 = arith.select %24, %17, %22 : vector<16x576xi1>, vector<16x576xbf16>
      %c0_11 = arith.constant 0 : index
      %c0_12 = arith.constant 0 : index
      %26 = vector.load %arg7[%c0_11, %c0_12] : memref<144x576xbf16, #tpu.memory_space<vmem>>, vector<16x576xbf16>
      tpu.vector_store %arg7[%c0_11, %c0_12], %25 {strides = array<i32>} : memref<144x576xbf16, #tpu.memory_space<vmem>>, vector<16x576xbf16>,
      %27 = vector.extract_strided_slice %2 {offsets = [0, 384], sizes = [16, 192], strides = [1, 1]} : vector<16x576xbf16> to vector<16x192xbf16>
      %28 = vector.extract_strided_slice %2 {offsets = [0, 0], sizes = [16, 384], strides = [1, 1]} : vector<16x576xbf16> to vector<16x384xbf16>
      %29 = tpu.concatenate %27, %28 in 1 : vector<16x192xbf16>, vector<16x384xbf16> -> vector<16x576xbf16>
      %c0_13 = arith.constant 0 : index
      %c1 = arith.constant 1 : index
      %c0_14 = arith.constant 0 : index
      %c0_15 = arith.constant 0 : index
      %30 = vector.load %arg5[%c0_13, %c1, %c0_14, %c0_15] : memref<1x9x1x576xf32, #tpu.memory_space<vmem>>, vector<1x1x1x576xf32>
      %31 = vector.shape_cast %30 : vector<1x1x1x576xf32> to vector<1x576xf32>
      %cst_16 = arith.constant 5.000000e-01 : f32
      %32 = vector.broadcast %cst_16 : f32 to vector<1x576xf32>
      %33 = arith.cmpf ogt, %31, %32 : vector<1x576xf32>
      %cst_17 = arith.constant 0.000000e+00 : bf16
      %34 = vector.broadcast %cst_17 : bf16 to vector<16x576xbf16>
      %35 = vector.shape_cast %33 : vector<1x576xi1> to vector<1x576xi1>
      %36 = vector.broadcast %35 : vector<1x576xi1> to vector<16x576xi1>
      %37 = arith.select %36, %29, %34 : vector<16x576xi1>, vector<16x576xbf16>
      %c16 = arith.constant 16 : index
      %c0_18 = arith.constant 0 : index
      %38 = vector.load %arg7[%c16, %c0_18] : memref<144x576xbf16, #tpu.memory_space<vmem>>, vector<16x576xbf16>
      tpu.vector_store %arg7[%c16, %c0_18], %37 {strides = array<i32>} : memref<144x576xbf16, #tpu.memory_space<vmem>>, vector<16x576xbf16>,
      %39 = vector.extract_strided_slice %2 {offsets = [0, 448], sizes = [16, 128], strides = [1, 1]} : vector<16x576xbf16> to vector<16x128xbf16>
      %40 = vector.extract_strided_slice %2 {offsets = [0, 0], sizes = [16, 448], strides = [1, 1]} : vector<16x576xbf16> to vector<16x448xbf16>
      %41 = tpu.concatenate %39, %40 in 1 : vector<16x128xbf16>, vector<16x448xbf16> -> vector<16x576xbf16>
      %c0_19 = arith.constant 0 : index
      %c2 = arith.constant 2 : index
      %c0_20 = arith.constant 0 : index
      %c0_21 = arith.constant 0 : index
      %42 = vector.load %arg5[%c0_19, %c2, %c0_20, %c0_21] : memref<1x9x1x576xf32, #tpu.memory_space<vmem>>, vector<1x1x1x576xf32>
      %43 = vector.shape_cast %42 : vector<1x1x1x576xf32> to vector<1x576xf32>
      %cst_22 = arith.constant 5.000000e-01 : f32
      %44 = vector.broadcast %cst_22 : f32 to vector<1x576xf32>
      %45 = arith.cmpf ogt, %43, %44 : vector<1x576xf32>
      %cst_23 = arith.constant 0.000000e+00 : bf16
      %46 = vector.broadcast %cst_23 : bf16 to vector<16x576xbf16>
      %47 = vector.shape_cast %45 : vector<1x576xi1> to vector<1x576xi1>
      %48 = vector.broadcast %47 : vector<1x576xi1> to vector<16x576xi1>
      %49 = arith.select %48, %41, %46 : vector<16x576xi1>, vector<16x576xbf16>
      %c32 = arith.constant 32 : index
      %c0_24 = arith.constant 0 : index
      %50 = vector.load %arg7[%c32, %c0_24] : memref<144x576xbf16, #tpu.memory_space<vmem>>, vector<16x576xbf16>
      tpu.vector_store %arg7[%c32, %c0_24], %49 {strides = array<i32>} : memref<144x576xbf16, #tpu.memory_space<vmem>>, vector<16x576xbf16>,
      %51 = vector.extract_strided_slice %2 {offsets = [0, 512], sizes = [16, 64], strides = [1, 1]} : vector<16x576xbf16> to vector<16x64xbf16>
      %52 = vector.extract_strided_slice %2 {offsets = [0, 0], sizes = [16, 512], strides = [1, 1]} : vector<16x576xbf16> to vector<16x512xbf16>
      %53 = tpu.concatenate %51, %52 in 1 : vector<16x64xbf16>, vector<16x512xbf16> -> vector<16x576xbf16>
      %c0_25 = arith.constant 0 : index
      %c3 = arith.constant 3 : index
      %c0_26 = arith.constant 0 : index
      %c0_27 = arith.constant 0 : index
      %54 = vector.load %arg5[%c0_25, %c3, %c0_26, %c0_27] : memref<1x9x1x576xf32, #tpu.memory_space<vmem>>, vector<1x1x1x576xf32>
      %55 = vector.shape_cast %54 : vector<1x1x1x576xf32> to vector<1x576xf32>
      %cst_28 = arith.constant 5.000000e-01 : f32
      %56 = vector.broadcast %cst_28 : f32 to vector<1x576xf32>
      %57 = arith.cmpf ogt, %55, %56 : vector<1x576xf32>
      %cst_29 = arith.constant 0.000000e+00 : bf16
      %58 = vector.broadcast %cst_29 : bf16 to vector<16x576xbf16>
      %59 = vector.shape_cast %57 : vector<1x576xi1> to vector<1x576xi1>
      %60 = vector.broadcast %59 : vector<1x576xi1> to vector<16x576xi1>
      %61 = arith.select %60, %53, %58 : vector<16x576xi1>, vector<16x576xbf16>
      %c48 = arith.constant 48 : index
      %c0_30 = arith.constant 0 : index
      %62 = vector.load %arg7[%c48, %c0_30] : memref<144x576xbf16, #tpu.memory_space<vmem>>, vector<16x576xbf16>
      tpu.vector_store %arg7[%c48, %c0_30], %61 {strides = array<i32>} : memref<144x576xbf16, #tpu.memory_space<vmem>>, vector<16x576xbf16>,
      %c64 = arith.constant 64 : index
      %c0_31 = arith.constant 0 : index
      %63 = vector.load %arg7[%c64, %c0_31] : memref<144x576xbf16, #tpu.memory_space<vmem>>, vector<16x576xbf16>
      tpu.vector_store %arg7[%c64, %c0_31], %2 {strides = array<i32>} : memref<144x576xbf16, #tpu.memory_space<vmem>>, vector<16x576xbf16>,
      %64 = vector.extract_strided_slice %2 {offsets = [0, 64], sizes = [16, 512], strides = [1, 1]} : vector<16x576xbf16> to vector<16x512xbf16>
      %65 = vector.extract_strided_slice %2 {offsets = [0, 0], sizes = [16, 64], strides = [1, 1]} : vector<16x576xbf16> to vector<16x64xbf16>
      %66 = tpu.concatenate %64, %65 in 1 : vector<16x512xbf16>, vector<16x64xbf16> -> vector<16x576xbf16>
      %c0_32 = arith.constant 0 : index
      %c5 = arith.constant 5 : index
      %c0_33 = arith.constant 0 : index
      %c0_34 = arith.constant 0 : index
      %67 = vector.load %arg5[%c0_32, %c5, %c0_33, %c0_34] : memref<1x9x1x576xf32, #tpu.memory_space<vmem>>, vector<1x1x1x576xf32>
      %68 = vector.shape_cast %67 : vector<1x1x1x576xf32> to vector<1x576xf32>
      %cst_35 = arith.constant 5.000000e-01 : f32
      %69 = vector.broadcast %cst_35 : f32 to vector<1x576xf32>
      %70 = arith.cmpf ogt, %68, %69 : vector<1x576xf32>
      %cst_36 = arith.constant 0.000000e+00 : bf16
      %71 = vector.broadcast %cst_36 : bf16 to vector<16x576xbf16>
      %72 = vector.shape_cast %70 : vector<1x576xi1> to vector<1x576xi1>
      %73 = vector.broadcast %72 : vector<1x576xi1> to vector<16x576xi1>
      %74 = arith.select %73, %66, %71 : vector<16x576xi1>, vector<16x576xbf16>
      %c80 = arith.constant 80 : index
      %c0_37 = arith.constant 0 : index
      %75 = vector.load %arg7[%c80, %c0_37] : memref<144x576xbf16, #tpu.memory_space<vmem>>, vector<16x576xbf16>
      tpu.vector_store %arg7[%c80, %c0_37], %74 {strides = array<i32>} : memref<144x576xbf16, #tpu.memory_space<vmem>>, vector<16x576xbf16>,
      %76 = vector.extract_strided_slice %2 {offsets = [0, 128], sizes = [16, 448], strides = [1, 1]} : vector<16x576xbf16> to vector<16x448xbf16>
      %77 = vector.extract_strided_slice %2 {offsets = [0, 0], sizes = [16, 128], strides = [1, 1]} : vector<16x576xbf16> to vector<16x128xbf16>
      %78 = tpu.concatenate %76, %77 in 1 : vector<16x448xbf16>, vector<16x128xbf16> -> vector<16x576xbf16>
      %c0_38 = arith.constant 0 : index
      %c6 = arith.constant 6 : index
      %c0_39 = arith.constant 0 : index
      %c0_40 = arith.constant 0 : index
      %79 = vector.load %arg5[%c0_38, %c6, %c0_39, %c0_40] : memref<1x9x1x576xf32, #tpu.memory_space<vmem>>, vector<1x1x1x576xf32>
      %80 = vector.shape_cast %79 : vector<1x1x1x576xf32> to vector<1x576xf32>
      %cst_41 = arith.constant 5.000000e-01 : f32
      %81 = vector.broadcast %cst_41 : f32 to vector<1x576xf32>
      %82 = arith.cmpf ogt, %80, %81 : vector<1x576xf32>
      %cst_42 = arith.constant 0.000000e+00 : bf16
      %83 = vector.broadcast %cst_42 : bf16 to vector<16x576xbf16>
      %84 = vector.shape_cast %82 : vector<1x576xi1> to vector<1x576xi1>
      %85 = vector.broadcast %84 : vector<1x576xi1> to vector<16x576xi1>
      %86 = arith.select %85, %78, %83 : vector<16x576xi1>, vector<16x576xbf16>
      %c96 = arith.constant 96 : index
      %c0_43 = arith.constant 0 : index
      %87 = vector.load %arg7[%c96, %c0_43] : memref<144x576xbf16, #tpu.memory_space<vmem>>, vector<16x576xbf16>
      tpu.vector_store %arg7[%c96, %c0_43], %86 {strides = array<i32>} : memref<144x576xbf16, #tpu.memory_space<vmem>>, vector<16x576xbf16>,
      %88 = vector.extract_strided_slice %2 {offsets = [0, 192], sizes = [16, 384], strides = [1, 1]} : vector<16x576xbf16> to vector<16x384xbf16>
      %89 = vector.extract_strided_slice %2 {offsets = [0, 0], sizes = [16, 192], strides = [1, 1]} : vector<16x576xbf16> to vector<16x192xbf16>
      %90 = tpu.concatenate %88, %89 in 1 : vector<16x384xbf16>, vector<16x192xbf16> -> vector<16x576xbf16>
      %c0_44 = arith.constant 0 : index
      %c7 = arith.constant 7 : index
      %c0_45 = arith.constant 0 : index
      %c0_46 = arith.constant 0 : index
      %91 = vector.load %arg5[%c0_44, %c7, %c0_45, %c0_46] : memref<1x9x1x576xf32, #tpu.memory_space<vmem>>, vector<1x1x1x576xf32>
      %92 = vector.shape_cast %91 : vector<1x1x1x576xf32> to vector<1x576xf32>
      %cst_47 = arith.constant 5.000000e-01 : f32
      %93 = vector.broadcast %cst_47 : f32 to vector<1x576xf32>
      %94 = arith.cmpf ogt, %92, %93 : vector<1x576xf32>
      %cst_48 = arith.constant 0.000000e+00 : bf16
      %95 = vector.broadcast %cst_48 : bf16 to vector<16x576xbf16>
      %96 = vector.shape_cast %94 : vector<1x576xi1> to vector<1x576xi1>
      %97 = vector.broadcast %96 : vector<1x576xi1> to vector<16x576xi1>
      %98 = arith.select %97, %90, %95 : vector<16x576xi1>, vector<16x576xbf16>
      %c112 = arith.constant 112 : index
      %c0_49 = arith.constant 0 : index
      %99 = vector.load %arg7[%c112, %c0_49] : memref<144x576xbf16, #tpu.memory_space<vmem>>, vector<16x576xbf16>
      tpu.vector_store %arg7[%c112, %c0_49], %98 {strides = array<i32>} : memref<144x576xbf16, #tpu.memory_space<vmem>>, vector<16x576xbf16>,
      %100 = vector.extract_strided_slice %2 {offsets = [0, 256], sizes = [16, 320], strides = [1, 1]} : vector<16x576xbf16> to vector<16x320xbf16>
      %101 = vector.extract_strided_slice %2 {offsets = [0, 0], sizes = [16, 256], strides = [1, 1]} : vector<16x576xbf16> to vector<16x256xbf16>
      %102 = tpu.concatenate %100, %101 in 1 : vector<16x320xbf16>, vector<16x256xbf16> -> vector<16x576xbf16>
      %c0_50 = arith.constant 0 : index
      %c8 = arith.constant 8 : index
      %c0_51 = arith.constant 0 : index
      %c0_52 = arith.constant 0 : index
      %103 = vector.load %arg5[%c0_50, %c8, %c0_51, %c0_52] : memref<1x9x1x576xf32, #tpu.memory_space<vmem>>, vector<1x1x1x576xf32>
      %104 = vector.shape_cast %103 : vector<1x1x1x576xf32> to vector<1x576xf32>
      %cst_53 = arith.constant 5.000000e-01 : f32
      %105 = vector.broadcast %cst_53 : f32 to vector<1x576xf32>
      %106 = arith.cmpf ogt, %104, %105 : vector<1x576xf32>
      %cst_54 = arith.constant 0.000000e+00 : bf16
      %107 = vector.broadcast %cst_54 : bf16 to vector<16x576xbf16>
      %108 = vector.shape_cast %106 : vector<1x576xi1> to vector<1x576xi1>
      %109 = vector.broadcast %108 : vector<1x576xi1> to vector<16x576xi1>
      %110 = arith.select %109, %102, %107 : vector<16x576xi1>, vector<16x576xbf16>
      %c128 = arith.constant 128 : index
      %c0_55 = arith.constant 0 : index
      %111 = vector.load %arg7[%c128, %c0_55] : memref<144x576xbf16, #tpu.memory_space<vmem>>, vector<16x576xbf16>
      tpu.vector_store %arg7[%c128, %c0_55], %110 {strides = array<i32>} : memref<144x576xbf16, #tpu.memory_space<vmem>>, vector<16x576xbf16>,
      %c0_56 = arith.constant 0 : index
      %c0_57 = arith.constant 0 : index
      %c0_58 = arith.constant 0 : index
      %112 = vector.load %arg3[%c0_56, %c0_57, %c0_58] : memref<1x4x144xbf16, #tpu.memory_space<vmem>>, vector<1x4x144xbf16>
      %113 = vector.shape_cast %112 : vector<1x4x144xbf16> to vector<4x144xbf16>
      %c0_59 = arith.constant 0 : index
      %c0_60 = arith.constant 0 : index
      %114 = vector.load %arg7[%c0_59, %c0_60] : memref<144x576xbf16, #tpu.memory_space<vmem>>, vector<144x576xbf16>
      %cst_61 = arith.constant dense<0.000000e+00> : vector<4x576xf32>
      %115 = tpu.matmul %113, %114, %cst_61 {dimension_numbers = #tpu.dot_dimension_numbers<[1], [0], [0], [1], [0, 0, 1, 1], [], []>} : vector<4x144xbf16>, vector<144x576xbf16>, vector<4x576xf32> -> vector<4x576xf32>
      %c0_62 = arith.constant 0 : index
      %c0_63 = arith.constant 0 : index
      %c0_64 = arith.constant 0 : index
      %c0_65 = arith.constant 0 : index
      %116 = vector.load %arg4[%c0_62, %c0_63, %c0_64, %c0_65] : memref<1x2x4x1xf32, #tpu.memory_space<vmem>>, vector<1x1x4x1xf32>
      %117 = vector.shape_cast %116 : vector<1x1x4x1xf32> to vector<4x1xf32>
      %118 = vector.broadcast %117 : vector<4x1xf32> to vector<4x576xf32>
      %119 = arith.addf %115, %118 : vector<4x576xf32>
      %cst_66 = arith.constant 0.000000e+00 : f32
      %120 = vector.broadcast %cst_66 : f32 to vector<4x576xf32>
      %121 = arith.cmpf oge, %119, %120 : vector<4x576xf32>
      %c0_67 = arith.constant 0 : index
      %c1_68 = arith.constant 1 : index
      %c0_69 = arith.constant 0 : index
      %c0_70 = arith.constant 0 : index
      %122 = vector.load %arg4[%c0_67, %c1_68, %c0_69, %c0_70] : memref<1x2x4x1xf32, #tpu.memory_space<vmem>>, vector<1x1x4x1xf32>
      %123 = vector.shape_cast %122 : vector<1x1x4x1xf32> to vector<4x1xf32>
      %124 = vector.broadcast %123 : vector<4x1xf32> to vector<4x576xf32>
      %125 = arith.mulf %124, %119 : vector<4x576xf32>
      %126 = arith.select %121, %119, %125 : vector<4x576xi1>, vector<4x576xf32>
      %c0_71 = arith.constant 0 : index
      %c0_72 = arith.constant 0 : index
      %c0_73 = arith.constant 0 : index
      %c0_74 = arith.constant 0 : index
      %127 = vector.load %arg6[%c0_71, %c0_72, %c0_73, %c0_74] : memref<1x1x4x576xf32, #tpu.memory_space<vmem>>, vector<1x1x4x576xf32>
      %128 = vector.shape_cast %127 : vector<1x1x4x576xf32> to vector<4x576xf32>
      %129 = vector.shape_cast %126 : vector<4x576xf32> to vector<1x1x4x576xf32>
      tpu.vector_store %arg6[%c0_71, %c0_72, %c0_73, %c0_74], %129 {strides = array<i32>} : memref<1x1x4x576xf32, #tpu.memory_space<vmem>>, vector<1x1x4x576xf32>,
    } else {
    }
    return
  }
  func.func @transform_0(%arg0: i32, %arg1: i32) -> (i32, i32, i32) {
    %c0_i32 = arith.constant 0 : i32
    %c0_i32_0 = arith.constant 0 : i32
    %c0_i32_1 = arith.constant 0 : i32
    return %arg0, %c0_i32, %c0_i32_0 : i32, i32, i32
  }
  func.func @transform_1(%arg0: i32, %arg1: i32) -> (i32, i32, i32) {
    %c0_i32 = arith.constant 0 : i32
    %c0_i32_0 = arith.constant 0 : i32
    %c0_i32_1 = arith.constant 0 : i32
    return %arg1, %c0_i32, %c0_i32_0 : i32, i32, i32
  }
  func.func @transform_2(%arg0: i32, %arg1: i32) -> (i32, i32, i32, i32) {
    %c0_i32 = arith.constant 0 : i32
    %c0_i32_0 = arith.constant 0 : i32
    %c0_i32_1 = arith.constant 0 : i32
    %c0_i32_2 = arith.constant 0 : i32
    return %arg1, %c0_i32, %c0_i32_0, %c0_i32_1 : i32, i32, i32, i32
  }
  func.func @transform_3(%arg0: i32, %arg1: i32) -> (i32, i32, i32, i32) {
    %c0_i32 = arith.constant 0 : i32
    %c0_i32_0 = arith.constant 0 : i32
    %c0_i32_1 = arith.constant 0 : i32
    %c0_i32_2 = arith.constant 0 : i32
    return %arg1, %c0_i32, %c0_i32_0, %c0_i32_1 : i32, i32, i32, i32
  }
  func.func @transform_4(%arg0: i32, %arg1: i32) -> (i32, i32, i32, i32) {
    %c0_i32 = arith.constant 0 : i32
    %c0_i32_0 = arith.constant 0 : i32
    %c0_i32_1 = arith.constant 0 : i32
    return %arg0, %arg1, %c0_i32, %c0_i32_0 : i32, i32, i32, i32
  }
}

</mosaic_0001>

<llo_original>
// kernel: mdfa_forward.3
$region0: #{mdfa_forward.3}
  #allocation0 [shape = 'u32[]', space=smem, size = 0x4, offset = 0x4, fixed_abs, tag = 'smem constant byte address 0x4 - core index']
  #allocation1 [shape = 'u32[144,128]{1,0:T(1,128)}', space=vmem, size = 0x12000, scoped, tag = 'internal scratch']
  #allocation2 [shape = 'bf16[112,576]{1,0:T(16,128)(2,1)}', space=vmem, size = 0x23000, scoped, tag = 'scratch operand']
  %s0 = inlined_call_operand.vmem [shape: f32[2,4,576], index: 0, kind: input, shape index: {}]
  %s1 = inlined_call_operand.vmem [shape: bf16[16,112], index: 1, kind: input, shape index: {}]
  %s2 = inlined_call_operand.vmem [shape: f32[2,16,1], index: 2, kind: input, shape index: {}]
  %s3 = inlined_call_operand.vmem [shape: f32[27,1,576], index: 3, kind: input, shape index: {}]
  %s4 = inlined_call_operand.vmem [shape: f32[2,16,576], index: 4, kind: output, shape index: {}]
  %s5 = sld [smem:[#allocation0]]
  $region49: #{mdfa_forward.3} parent=0
    _
  %s7 = ssub.s32 1, %s5
  %s8 = scalar_select 0, %s7, %s5
  loop: start=0, step=1, limit=4
  $region2: #{mdfa_forward.3} parent=0 // loop_pre_header
    _
  $region3: #{mdfa_forward.3} parent=0 // loop_header
    %s10 = sphi 0, %s14
    %p11 = scmp.ge.s32.totalorder %s10, 4
    %s20 = sphi 0, %s22
    %s23 = sphi 0, %s20
    %s24 = sphi 0, %s23
    %s40 = sphi 0, %s24
    %s44 = sphi 0, %s44
    %s46 = sphi 0, %s44
    %s47 = sphi 0, %s46
    %s61 = sphi 0, %s47
    %s65 = sphi 0, %s65
    %s67 = sphi 0, %s65
    %s68 = sphi 0, %s67
    %s82 = sphi 0, %s68
    %s86 = sphi 0, %s86
    %s88 = sphi 0, %s86
    %s89 = sphi 0, %s88
    %s103 = sphi 0, %s89
    %s109 = sphi 0, %s111
    %s112 = sphi 0, %s109
    %s113 = sphi 0, %s112
    %s129 = sphi 0, %s113
  $region4: #{mdfa_forward.3} parent=0 // loop_header_branch
    %13 = sbr.rel (%p11) target = $region8
  $region5: #{mdfa_forward.3} parent=0 // loop_body
    %s15 = ssub.s32 %s10, 1
    %s16 = ssub.s32 %s10, 2
    %s17 = sadd.s32 %s10, 1
    %s18 = ssub.s32 %s10, %s17
    %p19 = scmp.eq.s32.totalorder %s18, 0
    %s21 = sadd.s32 %s20, 1
    %s22 = scalar_select %p19, %s20, %s21
    %p25 = pneg %p19
    %p26 = scmp.eq.s32.totalorder %s10, 1
    %p27 = por %p25, %p26
    %p28 = scmp.ne.s32.totalorder %s20, %s23
    %p29 = scmp.eq.s32.totalorder %s10, 0
    %p30 = por %p28, %p29
    %p31 = scmp.ne.s32.totalorder %s20, %s23
    %p32 = scmp.eq.s32.totalorder %s15, 1
    %p33 = por %p31, %p32
    %p34 = scmp.ne.s32.totalorder %s23, %s24
    %p35 = scmp.eq.s32.totalorder %s15, 0
    %p36 = por %p34, %p35
    %p37 = scmp.ne.s32.totalorder %s23, %s24
    %p38 = scmp.eq.s32.totalorder %s16, 1
    %p39 = por %p37, %p38
    %p41 = scmp.ne.s32.totalorder %s24, %s40
    %p42 = scmp.eq.s32.totalorder %s16, 0
    %p43 = por %p41, %p42
    %s45 = sadd.s32 %s44, 1
    %p48 = scmp.eq.s32.totalorder %s10, 1
    %p49 = scmp.ne.s32.totalorder %s44, %s46
    %p50 = scmp.eq.s32.totalorder %s10, 0
    %p51 = por %p49, %p50
    %p52 = scmp.ne.s32.totalorder %s44, %s46
    %p53 = scmp.eq.s32.totalorder %s15, 1
    %p54 = por %p52, %p53
    %p55 = scmp.ne.s32.totalorder %s46, %s47
    %p56 = scmp.eq.s32.totalorder %s15, 0
    %p57 = por %p55, %p56
    %p58 = scmp.ne.s32.totalorder %s46, %s47
    %p59 = scmp.eq.s32.totalorder %s16, 1
    %p60 = por %p58, %p59
    %p62 = scmp.ne.s32.totalorder %s47, %s61
    %p63 = scmp.eq.s32.totalorder %s16, 0
    %p64 = por %p62, %p63
    %s66 = sadd.s32 %s65, 1
    %p69 = scmp.eq.s32.totalorder %s10, 1
    %p70 = scmp.ne.s32.totalorder %s65, %s67
    %p71 = scmp.eq.s32.totalorder %s10, 0
    %p72 = por %p70, %p71
    %p73 = scmp.ne.s32.totalorder %s65, %s67
    %p74 = scmp.eq.s32.totalorder %s15, 1
    %p75 = por %p73, %p74
    %p76 = scmp.ne.s32.totalorder %s67, %s68
    %p77 = scmp.eq.s32.totalorder %s15, 0
    %p78 = por %p76, %p77
    %p79 = scmp.ne.s32.totalorder %s67, %s68
    %p80 = scmp.eq.s32.totalorder %s16, 1
    %p81 = por %p79, %p80
    %p83 = scmp.ne.s32.totalorder %s68, %s82
    %p84 = scmp.eq.s32.totalorder %s16, 0
    %p85 = por %p83, %p84
    %s87 = sadd.s32 %s86, 1
    %p90 = scmp.eq.s32.totalorder %s10, 1
    %p91 = scmp.ne.s32.totalorder %s86, %s88
    %p92 = scmp.eq.s32.totalorder %s10, 0
    %p93 = por %p91, %p92
    %p94 = scmp.ne.s32.totalorder %s86, %s88
    %p95 = scmp.eq.s32.totalorder %s15, 1
    %p96 = por %p94, %p95
    %p97 = scmp.ne.s32.totalorder %s88, %s89
    %p98 = scmp.eq.s32.totalorder %s15, 0
    %p99 = por %p97, %p98
    %p100 = scmp.ne.s32.totalorder %s88, %s89
    %p101 = scmp.eq.s32.totalorder %s16, 1
    %p102 = por %p100, %p101
    %p104 = scmp.ne.s32.totalorder %s89, %s103
    %p105 = scmp.eq.s32.totalorder %s16, 0
    %p106 = por %p104, %p105
    %s107 = ssub.s32 %s10, %s17
    %p108 = scmp.eq.s32.totalorder %s107, 0
    %s110 = sadd.s32 %s109, 1
    %s111 = scalar_select %p108, %s109, %s110
    %p114 = pneg %p108
    %p115 = scmp.eq.s32.totalorder %s10, 1
    %p116 = por %p114, %p115
    %p117 = scmp.ne.s32.totalorder %s109, %s112
    %p118 = scmp.eq.s32.totalorder %s10, 0
    %p119 = por %p117, %p118
    %p120 = scmp.ne.s32.totalorder %s109, %s112
    %p121 = scmp.eq.s32.totalorder %s15, 1
    %p122 = por %p120, %p121
    %p123 = scmp.ne.s32.totalorder %s112, %s113
    %p124 = scmp.eq.s32.totalorder %s15, 0
    %p125 = por %p123, %p124
    %p126 = scmp.ne.s32.totalorder %s112, %s113
    %p127 = scmp.eq.s32.totalorder %s16, 1
    %p128 = por %p126, %p127
    %p130 = scmp.ne.s32.totalorder %s113, %s129
    %p131 = scmp.eq.s32.totalorder %s16, 0
    %p132 = por %p130, %p131
    %p133 = scmp.le.s32.totalorder 1, %s10
    %p134 = scmp.lt.s32.totalorder %s10, 3
    %p135 = pnand %p133, %p134
    %p136 = pneg %p135
    // Predicated region
    $region9: #{mdfa_forward.3} parent=5 // pred_check
      _
    $region10: #{mdfa_forward.3} parent=5 // pred_check_branch
      %138 = sbr.rel (%p135) target = $region12
    $region11: #{mdfa_forward.3} parent=5 // pred_region
      %s139 = ssub.s32 %s10, 1
      // Predicated region
      $region13: #{mdfa_forward.3} parent=11 // pred_check
        %p140 = pneg %p57
      $region14: #{mdfa_forward.3} parent=11 // pred_check_branch
        %142 = sbr.rel (%p140) target = $region16
      $region15: #{mdfa_forward.3} parent=11 // pred_region
        _
      $region16: #{mdfa_forward.3} parent=11 // pred_fallthru
        _
      // Predicated region
      $region17: #{mdfa_forward.3} parent=11 // pred_check
        %p143 = pneg %p78
      $region18: #{mdfa_forward.3} parent=11 // pred_check_branch
        %145 = sbr.rel (%p143) target = $region20
      $region19: #{mdfa_forward.3} parent=11 // pred_region
        _
      $region20: #{mdfa_forward.3} parent=11 // pred_fallthru
        _
      // Predicated region
      $region21: #{mdfa_forward.3} parent=11 // pred_check
        %p146 = pneg %p99
      $region22: #{mdfa_forward.3} parent=11 // pred_check_branch
        %148 = sbr.rel (%p146) target = $region24
      $region23: #{mdfa_forward.3} parent=11 // pred_region
        _
      $region24: #{mdfa_forward.3} parent=11 // pred_fallthru
        _
    $region12: #{mdfa_forward.3} parent=5 // pred_fallthru
      _
    %p149 = scmp.lt.s32.totalorder %s10, 2
    // Predicated region
    $region25: #{mdfa_forward.3} parent=5 // pred_check
      %p150 = pneg %p149
    $region26: #{mdfa_forward.3} parent=5 // pred_check_branch
      %152 = sbr.rel (%p150) target = $region28
    $region27: #{mdfa_forward.3} parent=5 // pred_region
      // Predicated region
      $region29: #{mdfa_forward.3} parent=27 // pred_check
        %p153 = pneg %p30
      $region30: #{mdfa_forward.3} parent=27 // pred_check_branch
        %155 = sbr.rel (%p153) target = $region32
      $region31: #{mdfa_forward.3} parent=27 // pred_region
        %p156 = scmp.lt.s32.totalorder %s10, 1
        %s157 = scalar_select %p156, %s10, 1
        %s158 = smul.addr %s157, 5
        %s159 = smul.addr %s158, 4
        %s160 = scalar_lea.vmem %s0, %s159
      $region32: #{mdfa_forward.3} parent=27 // pred_fallthru
        _
    $region28: #{mdfa_forward.3} parent=5 // pred_fallthru
      _
    %p161 = scmp.le.s32.totalorder 1, %s10
    %p162 = scmp.lt.s32.totalorder %s10, 3
    %p163 = pnand %p161, %p162
    %p164 = pneg %p163
    // Predicated region
    $region33: #{mdfa_forward.3} parent=5 // pred_check
      _
    $region34: #{mdfa_forward.3} parent=5 // pred_check_branch
      %166 = sbr.rel (%p163) target = $region36
    $region35: #{mdfa_forward.3} parent=5 // pred_region
      %s167 = ssub.s32 %s10, 1
      %p168 = scmp.lt.s32.totalorder %s15, 1
      %s169 = scalar_select %p168, %s15, 1
      %s170 = smul.addr %s169, 5
      %s171 = smul.addr %s170, 4
      %s172 = scalar_lea.vmem %s0, %s171
      %p173 = pneg %p36
      %p174 = pneg %p33
      %p175 = pneg %p57
      %p176 = pneg %p54
      %p177 = pneg %p78
      %p178 = pneg %p75
      %p179 = pneg %p99
      %p180 = pneg %p96
      %p181 = pneg %p125
      %p182 = pneg %p122
      %p183 = scmp.lt.s32.totalorder %s15, 1
      %s184 = scalar_select %p183, %s15, 1
      %s185 = smul.addr %s184, 10
      %s186 = smul.addr %s185, 8
      %s187 = scalar_lea.vmem %s4, %s186
      %p188 = scmp.lt.s32.totalorder %s15, 1
      %s189 = scalar_select %p188, %s15, 1
      %s190 = smul.addr %s189, 5
      %s191 = smul.addr %s190, 4
      %s192 = scalar_lea.vmem %s0, %s191
      %p193 = scmp.lt.s32.totalorder %s15, 1
      %s194 = scalar_select %p193, %s15, 1
      %s195 = smul.addr %s194, 10
      %s196 = smul.addr %s195, 8
      %s197 = scalar_lea.vmem %s4, %s196
      %v201 = vld [vmem:[%s192] sm:$0xff]
      %v202 = vld [vmem:[%s192 + $0x8] sm:$0xff]
      %v203 = vld [vmem:[%s192 + $0x10] sm:$0xf]
      %v206 = vcombine.high %v201, %v201
      %v207 = vcombine.high %v202, %v202
      %v210 = vpack.c.bf16 %v201, %v201
      %v211 = vpack.c.bf16 %v206, %v206
      %v212 = vpack.c.bf16 %v202, %v202
      %v213 = vpack.c.bf16 %v207, %v207
      %v214 = vpack.c.bf16 %v203, %v203
      %217 = vrot.lane.b32.xlu0 %v213, 9
      %v218 = vpop.permute.xlu0 %217
      %219 = vrot.lane.b32.xlu0 %v214, 9
      %v220 = vpop.permute.xlu0 %219
      %vm221 = vcmask 72704
      %v222 = vsel %vm221, %v218, %v220
      %226 = vrot.lane.b32.xlu0 %v210, 73
      %v227 = vpop.permute.xlu0 %226
      %228 = vrot.lane.b32.xlu0 %v211, 73
      %v229 = vpop.permute.xlu0 %228
      %230 = vrot.lane.b32.xlu0 %v212, 73
      %v231 = vpop.permute.xlu0 %230
      %232 = vrot.lane.b32.xlu0 %v213, 73
      %v233 = vpop.permute.xlu0 %232
      %vm234 = vcmask 596992
      %v235 = vsel %vm234, %v227, %v229
      %v236 = vsel %vm234, %v229, %v231
      %v237 = vsel %vm234, %v231, %v233
      %vm242 = vcmask 596992
      %v245 = vsel %vm242, %v222, %v227
      %v247 = vld [vmem:[%s3] sm:$0x1f]
      %vm248 = vcmp.gt.f32.partialorder %v247, 0.5
      %v249 = vsel %vm248, 1, 0
      %v250 = vlaneseq
      %v251 = vshrl.u32 %v250, 7
      %v252 = vsub.s32 0, %v251
      %v253 = vrot.slane %v249, %v252
      %v254 = vlaneseq
      %v255 = vshrl.u32 %v254, 7
      %v256 = vsub.s32 1, %v255
      %v257 = vrot.slane %v249, %v256
      %v258 = vlaneseq
      %v259 = vshrl.u32 %v258, 7
      %v260 = vsub.s32 2, %v259
      %v261 = vrot.slane %v249, %v260
      %v262 = vlaneseq
      %v263 = vshrl.u32 %v262, 7
      %v264 = vsub.s32 3, %v263
      %v265 = vrot.slane %v249, %v264
      %v266 = vlaneseq
      %v267 = vshrl.u32 %v266, 7
      %v268 = vsub.s32 4, %v267
      %v269 = vrot.slane %v249, %v268
      %vm270 = vcmp.eq.s32.totalorder %v253, 1
      %vm271 = vcmp.eq.s32.totalorder %v257, 1
      %vm272 = vcmp.eq.s32.totalorder %v261, 1
      %vm273 = vcmp.eq.s32.totalorder %v265, 1
      %vm274 = vcmp.eq.s32.totalorder %v269, 1
      %vm275 = vmpackc.low %vm271, %vm270
      %vm276 = vmpackc.low %vm273, %vm272
      %vm277 = vmpackc.low %vm274, %vm274
      %v278 = vsel %vm275, 65537, 0
      %v279 = vsel %vm276, 65537, 0
      %v280 = vsel %vm277, 65537, 0
      %v281 = vlaneseq
      %v282 = vshrl.u32 %v281, 7
      %v283 = vsub.s32 0, %v282
      %v284 = vrot.slane %v278, %v283
      %v285 = vlaneseq
      %v286 = vshrl.u32 %v285, 7
      %v287 = vsub.s32 4, %v286
      %v288 = vrot.slane %v278, %v287
      %v289 = vlaneseq
      %v290 = vshrl.u32 %v289, 7
      %v291 = vsub.s32 0, %v290
      %v292 = vrot.slane %v279, %v291
      %v293 = vlaneseq
      %v294 = vshrl.u32 %v293, 7
      %v295 = vsub.s32 4, %v294
      %v296 = vrot.slane %v279, %v295
      %v297 = vlaneseq
      %v298 = vshrl.u32 %v297, 7
      %v299 = vsub.s32 0, %v298
      %v300 = vrot.slane %v280, %v299
      %vm301 = vcmp.ne.s16.totalorder %v284, 0
      %vm302 = vcmp.ne.s16.totalorder %v288, 0
      %vm303 = vcmp.ne.s16.totalorder %v292, 0
      %vm304 = vcmp.ne.s16.totalorder %v296, 0
      %vm305 = vcmp.ne.s16.totalorder %v300, 0
      %v306 = vsel %vm301, %v245, 0
      %v307 = vsel %vm302, %v235, 0
      %v308 = vsel %vm303, %v236, 0
      %v309 = vsel %vm304, %v237, 0
      %v310 = vsel %vm305, %v233, 0
      %311 = vst [vmem:[#allocation2] sm:$0x3] %v306
      %312 = vst [vmem:[#allocation2 + $0x8] sm:$0x3] %v307
      %313 = vst [vmem:[#allocation2 + $0x10] sm:$0x3] %v308
      %314 = vst [vmem:[#allocation2 + $0x18] sm:$0x3] %v309
      %vm315 = vcmask 517120
      %316 = vst.msk [vmem:[#allocation2 + $0x20] sm:$0x3] %vm315, %v310
      %317 = vrot.lane.b32.xlu0 %v213, 8
      %v318 = vpop.permute.xlu0 %317
      %319 = vrot.lane.b32.xlu0 %v214, 8
      %v320 = vpop.permute.xlu0 %319
      %vm321 = vcmask 64512
      %v322 = vsel %vm321, %v318, %v320
      %323 = vrot.lane.b32.xlu0 %v210, 72
      %v324 = vpop.permute.xlu0 %323
      %325 = vrot.lane.b32.xlu0 %v211, 72
      %v326 = vpop.permute.xlu0 %325
      %327 = vrot.lane.b32.xlu0 %v212, 72
      %v328 = vpop.permute.xlu0 %327
      %329 = vrot.lane.b32.xlu0 %v213, 72
      %v330 = vpop.permute.xlu0 %329
      %vm331 = vcmask 588800
      %v332 = vsel %vm331, %v324, %v326
      %v333 = vsel %vm331, %v326, %v328
      %v334 = vsel %vm331, %v328, %v330
      %vm339 = vcmask 588800
      %v342 = vsel %vm339, %v322, %v324
      %s344 = scalar_lea.vmem %s3, 5
      %v345 = vld [vmem:[%s344] sm:$0x1f]
      %vm346 = vcmp.gt.f32.partialorder %v345, 0.5
      %v347 = vsel %vm346, 1, 0
      %v348 = vlaneseq
      %v349 = vshrl.u32 %v348, 7
      %v350 = vsub.s32 0, %v349
      %v351 = vrot.slane %v347, %v350
      %v352 = vlaneseq
      %v353 = vshrl.u32 %v352, 7
      %v354 = vsub.s32 1, %v353
      %v355 = vrot.slane %v347, %v354
      %v356 = vlaneseq
      %v357 = vshrl.u32 %v356, 7
      %v358 = vsub.s32 2, %v357
      %v359 = vrot.slane %v347, %v358
      %v360 = vlaneseq
      %v361 = vshrl.u32 %v360, 7
      %v362 = vsub.s32 3, %v361
      %v363 = vrot.slane %v347, %v362
      %v364 = vlaneseq
      %v365 = vshrl.u32 %v364, 7
      %v366 = vsub.s32 4, %v365
      %v367 = vrot.slane %v347, %v366
      %vm368 = vcmp.eq.s32.totalorder %v351, 1
      %vm369 = vcmp.eq.s32.totalorder %v355, 1
      %vm370 = vcmp.eq.s32.totalorder %v359, 1
      %vm371 = vcmp.eq.s32.totalorder %v363, 1
      %vm372 = vcmp.eq.s32.totalorder %v367, 1
      %vm373 = vmpackc.low %vm369, %vm368
      %vm374 = vmpackc.low %vm371, %vm370
      %vm375 = vmpackc.low %vm372, %vm372
      %v376 = vsel %vm373, 65537, 0
      %v377 = vsel %vm374, 65537, 0
      %v378 = vsel %vm375, 65537, 0
      %v379 = vlaneseq
      %v380 = vshrl.u32 %v379, 7
      %v381 = vsub.s32 0, %v380
      %v382 = vrot.slane %v376, %v381
      %v383 = vlaneseq
      %v384 = vshrl.u32 %v383, 7
      %v385 = vsub.s32 4, %v384
      %v386 = vrot.slane %v376, %v385
      %v387 = vlaneseq
      %v388 = vshrl.u32 %v387, 7
      %v389 = vsub.s32 0, %v388
      %v390 = vrot.slane %v377, %v389
      %v391 = vlaneseq
      %v392 = vshrl.u32 %v391, 7
      %v393 = vsub.s32 4, %v392
      %v394 = vrot.slane %v377, %v393
      %v395 = vlaneseq
      %v396 = vshrl.u32 %v395, 7
      %v397 = vsub.s32 0, %v396
      %v398 = vrot.slane %v378, %v397
      %vm399 = vcmp.ne.s16.totalorder %v382, 0
      %vm400 = vcmp.ne.s16.totalorder %v386, 0
      %vm401 = vcmp.ne.s16.totalorder %v390, 0
      %vm402 = vcmp.ne.s16.totalorder %v394, 0
      %vm403 = vcmp.ne.s16.totalorder %v398, 0
      %v404 = vsel %vm399, %v342, 0
      %v405 = vsel %vm400, %v332, 0
      %v406 = vsel %vm401, %v333, 0
      %v407 = vsel %vm402, %v334, 0
      %v408 = vsel %vm403, %v330, 0
      %v414 = vrot.slane %v404, 6
      %v415 = vrot.slane %v405, 6
      %v416 = vrot.slane %v406, 6
      %v417 = vrot.slane %v407, 6
      %v418 = vrot.slane %v408, 6
      %424 = vst [vmem:[#allocation2] sm:$0xc] %v414
      %425 = vst [vmem:[#allocation2 + $0x8] sm:$0xc] %v415
      %426 = vst [vmem:[#allocation2 + $0x10] sm:$0xc] %v416
      %427 = vst [vmem:[#allocation2 + $0x18] sm:$0xc] %v417
      %vm428 = vcmask 519170
      %429 = vst.msk [vmem:[#allocation2 + $0x20] sm:$0xc] %vm428, %v418
      %430 = vrot.lane.b32.xlu0 %v213, 7
      %v431 = vpop.permute.xlu0 %430
      %432 = vrot.lane.b32.xlu0 %v214, 7
      %v433 = vpop.permute.xlu0 %432
      %vm434 = vcmask 56320
      %v435 = vsel %vm434, %v431, %v433
      %436 = vrot.lane.b32.xlu0 %v210, 71
      %v437 = vpop.permute.xlu0 %436
      %438 = vrot.lane.b32.xlu0 %v211, 71
      %v439 = vpop.permute.xlu0 %438
      %440 = vrot.lane.b32.xlu0 %v212, 71
      %v441 = vpop.permute.xlu0 %440
      %442 = vrot.lane.b32.xlu0 %v213, 71
      %v443 = vpop.permute.xlu0 %442
      %vm444 = vcmask 580608
      %v445 = vsel %vm444, %v437, %v439
      %v446 = vsel %vm444, %v439, %v441
      %v447 = vsel %vm444, %v441, %v443
      %vm452 = vcmask 580608
      %v455 = vsel %vm452, %v435, %v437
      %s457 = scalar_lea.vmem %s3, 10
      %v458 = vld [vmem:[%s457] sm:$0x1f]
      %vm459 = vcmp.gt.f32.partialorder %v458, 0.5
      %v460 = vsel %vm459, 1, 0
      %v461 = vlaneseq
      %v462 = vshrl.u32 %v461, 7
      %v463 = vsub.s32 0, %v462
      %v464 = vrot.slane %v460, %v463
      %v465 = vlaneseq
      %v466 = vshrl.u32 %v465, 7
      %v467 = vsub.s32 1, %v466
      %v468 = vrot.slane %v460, %v467
      %v469 = vlaneseq
      %v470 = vshrl.u32 %v469, 7
      %v471 = vsub.s32 2, %v470
      %v472 = vrot.slane %v460, %v471
      %v473 = vlaneseq
      %v474 = vshrl.u32 %v473, 7
      %v475 = vsub.s32 3, %v474
      %v476 = vrot.slane %v460, %v475
      %v477 = vlaneseq
      %v478 = vshrl.u32 %v477, 7
      %v479 = vsub.s32 4, %v478
      %v480 = vrot.slane %v460, %v479
      %vm481 = vcmp.eq.s32.totalorder %v464, 1
      %vm482 = vcmp.eq.s32.totalorder %v468, 1
      %vm483 = vcmp.eq.s32.totalorder %v472, 1
      %vm484 = vcmp.eq.s32.totalorder %v476, 1
      %vm485 = vcmp.eq.s32.totalorder %v480, 1
      %vm486 = vmpackc.low %vm482, %vm481
      %vm487 = vmpackc.low %vm484, %vm483
      %vm488 = vmpackc.low %vm485, %vm485
      %v489 = vsel %vm486, 65537, 0
      %v490 = vsel %vm487, 65537, 0
      %v491 = vsel %vm488, 65537, 0
      %v492 = vlaneseq
      %v493 = vshrl.u32 %v492, 7
      %v494 = vsub.s32 0, %v493
      %v495 = vrot.slane %v489, %v494
      %v496 = vlaneseq
      %v497 = vshrl.u32 %v496, 7
      %v498 = vsub.s32 4, %v497
      %v499 = vrot.slane %v489, %v498
      %v500 = vlaneseq
      %v501 = vshrl.u32 %v500, 7
      %v502 = vsub.s32 0, %v501
      %v503 = vrot.slane %v490, %v502
      %v504 = vlaneseq
      %v505 = vshrl.u32 %v504, 7
      %v506 = vsub.s32 4, %v505
      %v507 = vrot.slane %v490, %v506
      %v508 = vlaneseq
      %v509 = vshrl.u32 %v508, 7
      %v510 = vsub.s32 0, %v509
      %v511 = vrot.slane %v491, %v510
      %vm512 = vcmp.ne.s16.totalorder %v495, 0
      %vm513 = vcmp.ne.s16.totalorder %v499, 0
      %vm514 = vcmp.ne.s16.totalorder %v503, 0
      %vm515 = vcmp.ne.s16.totalorder %v507, 0
      %vm516 = vcmp.ne.s16.totalorder %v511, 0
      %v517 = vsel %vm512, %v455, 0
      %v518 = vsel %vm513, %v445, 0
      %v519 = vsel %vm514, %v446, 0
      %v520 = vsel %vm515, %v447, 0
      %v521 = vsel %vm516, %v443, 0
      %v527 = vrot.slane %v517, 4
      %v528 = vrot.slane %v518, 4
      %v529 = vrot.slane %v519, 4
      %v530 = vrot.slane %v520, 4
      %v531 = vrot.slane %v521, 4
      %537 = vst [vmem:[#allocation2] sm:$0x30] %v527
      %538 = vst [vmem:[#allocation2 + $0x8] sm:$0x30] %v528
      %539 = vst [vmem:[#allocation2 + $0x10] sm:$0x30] %v529
      %540 = vst [vmem:[#allocation2 + $0x18] sm:$0x30] %v530
      %vm541 = vcmask 521220
      %542 = vst.msk [vmem:[#allocation2 + $0x20] sm:$0x30] %vm541, %v531
      %543 = vrot.lane.b32.xlu0 %v213, 1
      %v544 = vpop.permute.xlu0 %543
      %545 = vrot.lane.b32.xlu0 %v214, 1
      %v546 = vpop.permute.xlu0 %545
      %vm547 = vcmask 7168
      %v548 = vsel %vm547, %v544, %v546
      %549 = vrot.lane.b32.xlu0 %v210, 65
      %v550 = vpop.permute.xlu0 %549
      %551 = vrot.lane.b32.xlu0 %v211, 65
      %v552 = vpop.permute.xlu0 %551
      %553 = vrot.lane.b32.xlu0 %v212, 65
      %v554 = vpop.permute.xlu0 %553
      %555 = vrot.lane.b32.xlu0 %v213, 65
      %v556 = vpop.permute.xlu0 %555
      %vm557 = vcmask 531456
      %v558 = vsel %vm557, %v550, %v552
      %v559 = vsel %vm557, %v552, %v554
      %v560 = vsel %vm557, %v554, %v556
      %vm565 = vcmask 531456
      %v568 = vsel %vm565, %v548, %v550
      %s570 = scalar_lea.vmem %s3, 15
      %v571 = vld [vmem:[%s570] sm:$0x1f]
      %vm572 = vcmp.gt.f32.partialorder %v571, 0.5
      %v573 = vsel %vm572, 1, 0
      %v574 = vlaneseq
      %v575 = vshrl.u32 %v574, 7
      %v576 = vsub.s32 0, %v575
      %v577 = vrot.slane %v573, %v576
      %v578 = vlaneseq
      %v579 = vshrl.u32 %v578, 7
      %v580 = vsub.s32 1, %v579
      %v581 = vrot.slane %v573, %v580
      %v582 = vlaneseq
      %v583 = vshrl.u32 %v582, 7
      %v584 = vsub.s32 2, %v583
      %v585 = vrot.slane %v573, %v584
      %v586 = vlaneseq
      %v587 = vshrl.u32 %v586, 7
      %v588 = vsub.s32 3, %v587
      %v589 = vrot.slane %v573, %v588
      %v590 = vlaneseq
      %v591 = vshrl.u32 %v590, 7
      %v592 = vsub.s32 4, %v591
      %v593 = vrot.slane %v573, %v592
      %vm594 = vcmp.eq.s32.totalorder %v577, 1
      %vm595 = vcmp.eq.s32.totalorder %v581, 1
      %vm596 = vcmp.eq.s32.totalorder %v585, 1
      %vm597 = vcmp.eq.s32.totalorder %v589, 1
      %vm598 = vcmp.eq.s32.totalorder %v593, 1
      %vm599 = vmpackc.low %vm595, %vm594
      %vm600 = vmpackc.low %vm597, %vm596
      %vm601 = vmpackc.low %vm598, %vm598
      %v602 = vsel %vm599, 65537, 0
      %v603 = vsel %vm600, 65537, 0
      %v604 = vsel %vm601, 65537, 0
      %v605 = vlaneseq
      %v606 = vshrl.u32 %v605, 7
      %v607 = vsub.s32 0, %v606
      %v608 = vrot.slane %v602, %v607
      %v609 = vlaneseq
      %v610 = vshrl.u32 %v609, 7
      %v611 = vsub.s32 4, %v610
      %v612 = vrot.slane %v602, %v611
      %v613 = vlaneseq
      %v614 = vshrl.u32 %v613, 7
      %v615 = vsub.s32 0, %v614
      %v616 = vrot.slane %v603, %v615
      %v617 = vlaneseq
      %v618 = vshrl.u32 %v617, 7
      %v619 = vsub.s32 4, %v618
      %v620 = vrot.slane %v603, %v619
      %v621 = vlaneseq
      %v622 = vshrl.u32 %v621, 7
      %v623 = vsub.s32 0, %v622
      %v624 = vrot.slane %v604, %v623
      %vm625 = vcmp.ne.s16.totalorder %v608, 0
      %vm626 = vcmp.ne.s16.totalorder %v612, 0
      %vm627 = vcmp.ne.s16.totalorder %v616, 0
      %vm628 = vcmp.ne.s16.totalorder %v620, 0
      %vm629 = vcmp.ne.s16.totalorder %v624, 0
      %v630 = vsel %vm625, %v568, 0
      %v631 = vsel %vm626, %v558, 0
      %v632 = vsel %vm627, %v559, 0
      %v633 = vsel %vm628, %v560, 0
      %v634 = vsel %vm629, %v556, 0
      %v640 = vrot.slane %v630, 2
      %v641 = vrot.slane %v631, 2
      %v642 = vrot.slane %v632, 2
      %v643 = vrot.slane %v633, 2
      %v644 = vrot.slane %v634, 2
      %650 = vst [vmem:[#allocation2] sm:$0xc0] %v640
      %651 = vst [vmem:[#allocation2 + $0x8] sm:$0xc0] %v641
      %652 = vst [vmem:[#allocation2 + $0x10] sm:$0xc0] %v642
      %653 = vst [vmem:[#allocation2 + $0x18] sm:$0xc0] %v643
      %vm654 = vcmask 523270
      %655 = vst.msk [vmem:[#allocation2 + $0x20] sm:$0xc0] %vm654, %v644
      %656 = vrot.lane.b32.xlu0 %v210, 64
      %v657 = vpop.permute.xlu0 %656
      %658 = vrot.lane.b32.xlu0 %v211, 64
      %v659 = vpop.permute.xlu0 %658
      %660 = vrot.lane.b32.xlu0 %v212, 64
      %v661 = vpop.permute.xlu0 %660
      %662 = vrot.lane.b32.xlu0 %v213, 64
      %v663 = vpop.permute.xlu0 %662
      %vm664 = vcmask 523264
      %v665 = vsel %vm664, %v657, %v659
      %v666 = vsel %vm664, %v659, %v661
      %v667 = vsel %vm664, %v661, %v663
      %vm672 = vcmask 523264
      %v675 = vsel %vm672, %v214, %v657
      %s677 = scalar_lea.vmem %s3, 20
      %v678 = vld [vmem:[%s677] sm:$0x1f]
      %vm679 = vcmp.gt.f32.partialorder %v678, 0.5
      %v680 = vsel %vm679, 1, 0
      %v681 = vlaneseq
      %v682 = vshrl.u32 %v681, 7
      %v683 = vsub.s32 0, %v682
      %v684 = vrot.slane %v680, %v683
      %v685 = vlaneseq
      %v686 = vshrl.u32 %v685, 7
      %v687 = vsub.s32 1, %v686
      %v688 = vrot.slane %v680, %v687
      %v689 = vlaneseq
      %v690 = vshrl.u32 %v689, 7
      %v691 = vsub.s32 2, %v690
      %v692 = vrot.slane %v680, %v691
      %v693 = vlaneseq
      %v694 = vshrl.u32 %v693, 7
      %v695 = vsub.s32 3, %v694
      %v696 = vrot.slane %v680, %v695
      %v697 = vlaneseq
      %v698 = vshrl.u32 %v697, 7
      %v699 = vsub.s32 4, %v698
      %v700 = vrot.slane %v680, %v699
      %vm701 = vcmp.eq.s32.totalorder %v684, 1
      %vm702 = vcmp.eq.s32.totalorder %v688, 1
      %vm703 = vcmp.eq.s32.totalorder %v692, 1
      %vm704 = vcmp.eq.s32.totalorder %v696, 1
      %vm705 = vcmp.eq.s32.totalorder %v700, 1
      %vm706 = vmpackc.low %vm702, %vm701
      %vm707 = vmpackc.low %vm704, %vm703
      %vm708 = vmpackc.low %vm705, %vm705
      %v709 = vsel %vm706, 65537, 0
      %v710 = vsel %vm707, 65537, 0
      %v711 = vsel %vm708, 65537, 0
      %v712 = vlaneseq
      %v713 = vshrl.u32 %v712, 7
      %v714 = vsub.s32 0, %v713
      %v715 = vrot.slane %v709, %v714
      %v716 = vlaneseq
      %v717 = vshrl.u32 %v716, 7
      %v718 = vsub.s32 4, %v717
      %v719 = vrot.slane %v709, %v718
      %v720 = vlaneseq
      %v721 = vshrl.u32 %v720, 7
      %v722 = vsub.s32 0, %v721
      %v723 = vrot.slane %v710, %v722
      %v724 = vlaneseq
      %v725 = vshrl.u32 %v724, 7
      %v726 = vsub.s32 4, %v725
      %v727 = vrot.slane %v710, %v726
      %v728 = vlaneseq
      %v729 = vshrl.u32 %v728, 7
      %v730 = vsub.s32 0, %v729
      %v731 = vrot.slane %v711, %v730
      %vm732 = vcmp.ne.s16.totalorder %v715, 0
      %vm733 = vcmp.ne.s16.totalorder %v719, 0
      %vm734 = vcmp.ne.s16.totalorder %v723, 0
      %vm735 = vcmp.ne.s16.totalorder %v727, 0
      %vm736 = vcmp.ne.s16.totalorder %v731, 0
      %v737 = vsel %vm732, %v675, 0
      %v738 = vsel %vm733, %v665, 0
      %v739 = vsel %vm734, %v666, 0
      %v740 = vsel %vm735, %v667, 0
      %v741 = vsel %vm736, %v663, 0
      %742 = vst [vmem:[#allocation2 + $0x28] sm:$0x3] %v737
      %743 = vst [vmem:[#allocation2 + $0x30] sm:$0x3] %v738
      %744 = vst [vmem:[#allocation2 + $0x38] sm:$0x3] %v739
      %745 = vst [vmem:[#allocation2 + $0x40] sm:$0x3] %v740
      %746 = vst.msk [vmem:[#allocation2 + $0x48] sm:$0x3] %vm315, %v741
      %747 = vrot.lane.b32.xlu0 %v214, 127
      %v748 = vpop.permute.xlu0 %747
      %749 = vrot.lane.b32.xlu0 %v210, 63
      %v750 = vpop.permute.xlu0 %749
      %751 = vrot.lane.b32.xlu0 %v211, 63
      %v752 = vpop.permute.xlu0 %751
      %753 = vrot.lane.b32.xlu0 %v212, 63
      %v754 = vpop.permute.xlu0 %753
      %755 = vrot.lane.b32.xlu0 %v213, 63
      %v756 = vpop.permute.xlu0 %755
      %757 = vrot.lane.b32.xlu0 %v214, 63
      %v758 = vpop.permute.xlu0 %757
      %vm759 = vcmask 515072
      %v760 = vsel %vm759, %v750, %v752
      %v761 = vsel %vm759, %v752, %v754
      %v762 = vsel %vm759, %v754, %v756
      %v763 = vsel %vm759, %v756, %v758
      %vm768 = vcmask 515072
      %v771 = vsel %vm768, %v748, %v750
      %s773 = scalar_lea.vmem %s3, 25
      %v774 = vld [vmem:[%s773] sm:$0x1f]
      %vm775 = vcmp.gt.f32.partialorder %v774, 0.5
      %v776 = vsel %vm775, 1, 0
      %v777 = vlaneseq
      %v778 = vshrl.u32 %v777, 7
      %v779 = vsub.s32 0, %v778
      %v780 = vrot.slane %v776, %v779
      %v781 = vlaneseq
      %v782 = vshrl.u32 %v781, 7
      %v783 = vsub.s32 1, %v782
      %v784 = vrot.slane %v776, %v783
      %v785 = vlaneseq
      %v786 = vshrl.u32 %v785, 7
      %v787 = vsub.s32 2, %v786
      %v788 = vrot.slane %v776, %v787
      %v789 = vlaneseq
      %v790 = vshrl.u32 %v789, 7
      %v791 = vsub.s32 3, %v790
      %v792 = vrot.slane %v776, %v791
      %v793 = vlaneseq
      %v794 = vshrl.u32 %v793, 7
      %v795 = vsub.s32 4, %v794
      %v796 = vrot.slane %v776, %v795
      %vm797 = vcmp.eq.s32.totalorder %v780, 1
      %vm798 = vcmp.eq.s32.totalorder %v784, 1
      %vm799 = vcmp.eq.s32.totalorder %v788, 1
      %vm800 = vcmp.eq.s32.totalorder %v792, 1
      %vm801 = vcmp.eq.s32.totalorder %v796, 1
      %vm802 = vmpackc.low %vm798, %vm797
      %vm803 = vmpackc.low %vm800, %vm799
      %vm804 = vmpackc.low %vm801, %vm801
      %v805 = vsel %vm802, 65537, 0
      %v806 = vsel %vm803, 65537, 0
      %v807 = vsel %vm804, 65537, 0
      %v808 = vlaneseq
      %v809 = vshrl.u32 %v808, 7
      %v810 = vsub.s32 0, %v809
      %v811 = vrot.slane %v805, %v810
      %v812 = vlaneseq
      %v813 = vshrl.u32 %v812, 7
      %v814 = vsub.s32 4, %v813
      %v815 = vrot.slane %v805, %v814
      %v816 = vlaneseq
      %v817 = vshrl.u32 %v816, 7
      %v818 = vsub.s32 0, %v817
      %v819 = vrot.slane %v806, %v818
      %v820 = vlaneseq
      %v821 = vshrl.u32 %v820, 7
      %v822 = vsub.s32 4, %v821
      %v823 = vrot.slane %v806, %v822
      %v824 = vlaneseq
      %v825 = vshrl.u32 %v824, 7
      %v826 = vsub.s32 0, %v825
      %v827 = vrot.slane %v807, %v826
      %vm828 = vcmp.ne.s16.totalorder %v811, 0
      %vm829 = vcmp.ne.s16.totalorder %v815, 0
      %vm830 = vcmp.ne.s16.totalorder %v819, 0
      %vm831 = vcmp.ne.s16.totalorder %v823, 0
      %vm832 = vcmp.ne.s16.totalorder %v827, 0
      %v833 = vsel %vm828, %v771, 0
      %v834 = vsel %vm829, %v760, 0
      %v835 = vsel %vm830, %v761, 0
      %v836 = vsel %vm831, %v762, 0
      %v837 = vsel %vm832, %v763, 0
      %v843 = vrot.slane %v833, 6
      %v844 = vrot.slane %v834, 6
      %v845 = vrot.slane %v835, 6
      %v846 = vrot.slane %v836, 6
      %v847 = vrot.slane %v837, 6
      %853 = vst [vmem:[#allocation2 + $0x28] sm:$0xc] %v843
      %854 = vst [vmem:[#allocation2 + $0x30] sm:$0xc] %v844
      %855 = vst [vmem:[#allocation2 + $0x38] sm:$0xc] %v845
      %856 = vst [vmem:[#allocation2 + $0x40] sm:$0xc] %v846
      %857 = vst.msk [vmem:[#allocation2 + $0x48] sm:$0xc] %vm428, %v847
      %858 = vrot.lane.b32.xlu0 %v214, 121
      %v859 = vpop.permute.xlu0 %858
      %860 = vrot.lane.b32.xlu0 %v210, 57
      %v861 = vpop.permute.xlu0 %860
      %862 = vrot.lane.b32.xlu0 %v211, 57
      %v863 = vpop.permute.xlu0 %862
      %864 = vrot.lane.b32.xlu0 %v212, 57
      %v865 = vpop.permute.xlu0 %864
      %866 = vrot.lane.b32.xlu0 %v213, 57
      %v867 = vpop.permute.xlu0 %866
      %868 = vrot.lane.b32.xlu0 %v214, 57
      %v869 = vpop.permute.xlu0 %868
      %vm870 = vcmask 465920
      %v871 = vsel %vm870, %v861, %v863
      %v872 = vsel %vm870, %v863, %v865
      %v873 = vsel %vm870, %v865, %v867
      %v874 = vsel %vm870, %v867, %v869
      %vm879 = vcmask 465920
      %v882 = vsel %vm879, %v859, %v861
      %s884 = scalar_lea.vmem %s3, 30
      %v885 = vld [vmem:[%s884] sm:$0x1f]
      %vm886 = vcmp.gt.f32.partialorder %v885, 0.5
      %v887 = vsel %vm886, 1, 0
      %v888 = vlaneseq
      %v889 = vshrl.u32 %v888, 7
      %v890 = vsub.s32 0, %v889
      %v891 = vrot.slane %v887, %v890
      %v892 = vlaneseq
      %v893 = vshrl.u32 %v892, 7
      %v894 = vsub.s32 1, %v893
      %v895 = vrot.slane %v887, %v894
      %v896 = vlaneseq
      %v897 = vshrl.u32 %v896, 7
      %v898 = vsub.s32 2, %v897
      %v899 = vrot.slane %v887, %v898
      %v900 = vlaneseq
      %v901 = vshrl.u32 %v900, 7
      %v902 = vsub.s32 3, %v901
      %v903 = vrot.slane %v887, %v902
      %v904 = vlaneseq
      %v905 = vshrl.u32 %v904, 7
      %v906 = vsub.s32 4, %v905
      %v907 = vrot.slane %v887, %v906
      %vm908 = vcmp.eq.s32.totalorder %v891, 1
      %vm909 = vcmp.eq.s32.totalorder %v895, 1
      %vm910 = vcmp.eq.s32.totalorder %v899, 1
      %vm911 = vcmp.eq.s32.totalorder %v903, 1
      %vm912 = vcmp.eq.s32.totalorder %v907, 1
      %vm913 = vmpackc.low %vm909, %vm908
      %vm914 = vmpackc.low %vm911, %vm910
      %vm915 = vmpackc.low %vm912, %vm912
      %v916 = vsel %vm913, 65537, 0
      %v917 = vsel %vm914, 65537, 0
      %v918 = vsel %vm915, 65537, 0
      %v919 = vlaneseq
      %v920 = vshrl.u32 %v919, 7
      %v921 = vsub.s32 0, %v920
      %v922 = vrot.slane %v916, %v921
      %v923 = vlaneseq
      %v924 = vshrl.u32 %v923, 7
      %v925 = vsub.s32 4, %v924
      %v926 = vrot.slane %v916, %v925
      %v927 = vlaneseq
      %v928 = vshrl.u32 %v927, 7
      %v929 = vsub.s32 0, %v928
      %v930 = vrot.slane %v917, %v929
      %v931 = vlaneseq
      %v932 = vshrl.u32 %v931, 7
      %v933 = vsub.s32 4, %v932
      %v934 = vrot.slane %v917, %v933
      %v935 = vlaneseq
      %v936 = vshrl.u32 %v935, 7
      %v937 = vsub.s32 0, %v936
      %v938 = vrot.slane %v918, %v937
      %vm939 = vcmp.ne.s16.totalorder %v922, 0
      %vm940 = vcmp.ne.s16.totalorder %v926, 0
      %vm941 = vcmp.ne.s16.totalorder %v930, 0
      %vm942 = vcmp.ne.s16.totalorder %v934, 0
      %vm943 = vcmp.ne.s16.totalorder %v938, 0
      %v944 = vsel %vm939, %v882, 0
      %v945 = vsel %vm940, %v871, 0
      %v946 = vsel %vm941, %v872, 0
      %v947 = vsel %vm942, %v873, 0
      %v948 = vsel %vm943, %v874, 0
      %v954 = vrot.slane %v944, 4
      %v955 = vrot.slane %v945, 4
      %v956 = vrot.slane %v946, 4
      %v957 = vrot.slane %v947, 4
      %v958 = vrot.slane %v948, 4
      %964 = vst [vmem:[#allocation2 + $0x28] sm:$0x30] %v954
      %965 = vst [vmem:[#allocation2 + $0x30] sm:$0x30] %v955
      %966 = vst [vmem:[#allocation2 + $0x38] sm:$0x30] %v956
      %967 = vst [vmem:[#allocation2 + $0x40] sm:$0x30] %v957
      %968 = vst.msk [vmem:[#allocation2 + $0x48] sm:$0x30] %vm541, %v958
      %969 = vrot.lane.b32.xlu0 %v214, 120
      %v970 = vpop.permute.xlu0 %969
      %971 = vrot.lane.b32.xlu0 %v210, 56
      %v972 = vpop.permute.xlu0 %971
      %973 = vrot.lane.b32.xlu0 %v211, 56
      %v974 = vpop.permute.xlu0 %973
      %975 = vrot.lane.b32.xlu0 %v212, 56
      %v976 = vpop.permute.xlu0 %975
      %977 = vrot.lane.b32.xlu0 %v213, 56
      %v978 = vpop.permute.xlu0 %977
      %979 = vrot.lane.b32.xlu0 %v214, 56
      %v980 = vpop.permute.xlu0 %979
      %vm981 = vcmask 457728
      %v982 = vsel %vm981, %v972, %v974
      %v983 = vsel %vm981, %v974, %v976
      %v984 = vsel %vm981, %v976, %v978
      %v985 = vsel %vm981, %v978, %v980
      %vm990 = vcmask 457728
      %v993 = vsel %vm990, %v970, %v972
      %s995 = scalar_lea.vmem %s3, 35
      %v996 = vld [vmem:[%s995] sm:$0x1f]
      %vm997 = vcmp.gt.f32.partialorder %v996, 0.5
      %v998 = vsel %vm997, 1, 0
      %v999 = vlaneseq
      %v1000 = vshrl.u32 %v999, 7
      %v1001 = vsub.s32 0, %v1000
      %v1002 = vrot.slane %v998, %v1001
      %v1003 = vlaneseq
      %v1004 = vshrl.u32 %v1003, 7
      %v1005 = vsub.s32 1, %v1004
      %v1006 = vrot.slane %v998, %v1005
      %v1007 = vlaneseq
      %v1008 = vshrl.u32 %v1007, 7
      %v1009 = vsub.s32 2, %v1008
      %v1010 = vrot.slane %v998, %v1009
      %v1011 = vlaneseq
      %v1012 = vshrl.u32 %v1011, 7
      %v1013 = vsub.s32 3, %v1012
      %v1014 = vrot.slane %v998, %v1013
      %v1015 = vlaneseq
      %v1016 = vshrl.u32 %v1015, 7
      %v1017 = vsub.s32 4, %v1016
      %v1018 = vrot.slane %v998, %v1017
      %vm1019 = vcmp.eq.s32.totalorder %v1002, 1
      %vm1020 = vcmp.eq.s32.totalorder %v1006, 1
      %vm1021 = vcmp.eq.s32.totalorder %v1010, 1
      %vm1022 = vcmp.eq.s32.totalorder %v1014, 1
      %vm1023 = vcmp.eq.s32.totalorder %v1018, 1
      %vm1024 = vmpackc.low %vm1020, %vm1019
      %vm1025 = vmpackc.low %vm1022, %vm1021
      %vm1026 = vmpackc.low %vm1023, %vm1023
      %v1027 = vsel %vm1024, 65537, 0
      %v1028 = vsel %vm1025, 65537, 0
      %v1029 = vsel %vm1026, 65537, 0
      %v1030 = vlaneseq
      %v1031 = vshrl.u32 %v1030, 7
      %v1032 = vsub.s32 0, %v1031
      %v1033 = vrot.slane %v1027, %v1032
      %v1034 = vlaneseq
      %v1035 = vshrl.u32 %v1034, 7
      %v1036 = vsub.s32 4, %v1035
      %v1037 = vrot.slane %v1027, %v1036
      %v1038 = vlaneseq
      %v1039 = vshrl.u32 %v1038, 7
      %v1040 = vsub.s32 0, %v1039
      %v1041 = vrot.slane %v1028, %v1040
      %v1042 = vlaneseq
      %v1043 = vshrl.u32 %v1042, 7
      %v1044 = vsub.s32 4, %v1043
      %v1045 = vrot.slane %v1028, %v1044
      %v1046 = vlaneseq
      %v1047 = vshrl.u32 %v1046, 7
      %v1048 = vsub.s32 0, %v1047
      %v1049 = vrot.slane %v1029, %v1048
      %vm1050 = vcmp.ne.s16.totalorder %v1033, 0
      %vm1051 = vcmp.ne.s16.totalorder %v1037, 0
      %vm1052 = vcmp.ne.s16.totalorder %v1041, 0
      %vm1053 = vcmp.ne.s16.totalorder %v1045, 0
      %vm1054 = vcmp.ne.s16.totalorder %v1049, 0
      %v1055 = vsel %vm1050, %v993, 0
      %v1056 = vsel %vm1051, %v982, 0
      %v1057 = vsel %vm1052, %v983, 0
      %v1058 = vsel %vm1053, %v984, 0
      %v1059 = vsel %vm1054, %v985, 0
      %v1065 = vrot.slane %v1055, 2
      %v1066 = vrot.slane %v1056, 2
      %v1067 = vrot.slane %v1057, 2
      %v1068 = vrot.slane %v1058, 2
      %v1069 = vrot.slane %v1059, 2
      %1075 = vst [vmem:[#allocation2 + $0x28] sm:$0xc0] %v1065
      %1076 = vst [vmem:[#allocation2 + $0x30] sm:$0xc0] %v1066
      %1077 = vst [vmem:[#allocation2 + $0x38] sm:$0xc0] %v1067
      %1078 = vst [vmem:[#allocation2 + $0x40] sm:$0xc0] %v1068
      %1079 = vst.msk [vmem:[#allocation2 + $0x48] sm:$0xc0] %vm654, %v1069
      %1080 = vrot.lane.b32.xlu0 %v214, 119
      %v1081 = vpop.permute.xlu0 %1080
      %1082 = vrot.lane.b32.xlu0 %v210, 55
      %v1083 = vpop.permute.xlu0 %1082
      %1084 = vrot.lane.b32.xlu0 %v211, 55
      %v1085 = vpop.permute.xlu0 %1084
      %1086 = vrot.lane.b32.xlu0 %v212, 55
      %v1087 = vpop.permute.xlu0 %1086
      %1088 = vrot.lane.b32.xlu0 %v213, 55
      %v1089 = vpop.permute.xlu0 %1088
      %1090 = vrot.lane.b32.xlu0 %v214, 55
      %v1091 = vpop.permute.xlu0 %1090
      %vm1092 = vcmask 449536
      %v1093 = vsel %vm1092, %v1083, %v1085
      %v1094 = vsel %vm1092, %v1085, %v1087
      %v1095 = vsel %vm1092, %v1087, %v1089
      %v1096 = vsel %vm1092, %v1089, %v1091
      %vm1101 = vcmask 449536
      %v1104 = vsel %vm1101, %v1081, %v1083
      %s1106 = scalar_lea.vmem %s3, 40
      %v1107 = vld [vmem:[%s1106] sm:$0x1f]
      %vm1108 = vcmp.gt.f32.partialorder %v1107, 0.5
      %v1109 = vsel %vm1108, 1, 0
      %v1110 = vlaneseq
      %v1111 = vshrl.u32 %v1110, 7
      %v1112 = vsub.s32 0, %v1111
      %v1113 = vrot.slane %v1109, %v1112
      %v1114 = vlaneseq
      %v1115 = vshrl.u32 %v1114, 7
      %v1116 = vsub.s32 1, %v1115
      %v1117 = vrot.slane %v1109, %v1116
      %v1118 = vlaneseq
      %v1119 = vshrl.u32 %v1118, 7
      %v1120 = vsub.s32 2, %v1119
      %v1121 = vrot.slane %v1109, %v1120
      %v1122 = vlaneseq
      %v1123 = vshrl.u32 %v1122, 7
      %v1124 = vsub.s32 3, %v1123
      %v1125 = vrot.slane %v1109, %v1124
      %v1126 = vlaneseq
      %v1127 = vshrl.u32 %v1126, 7
      %v1128 = vsub.s32 4, %v1127
      %v1129 = vrot.slane %v1109, %v1128
      %vm1130 = vcmp.eq.s32.totalorder %v1113, 1
      %vm1131 = vcmp.eq.s32.totalorder %v1117, 1
      %vm1132 = vcmp.eq.s32.totalorder %v1121, 1
      %vm1133 = vcmp.eq.s32.totalorder %v1125, 1
      %vm1134 = vcmp.eq.s32.totalorder %v1129, 1
      %vm1135 = vmpackc.low %vm1131, %vm1130
      %vm1136 = vmpackc.low %vm1133, %vm1132
      %vm1137 = vmpackc.low %vm1134, %vm1134
      %v1138 = vsel %vm1135, 65537, 0
      %v1139 = vsel %vm1136, 65537, 0
      %v1140 = vsel %vm1137, 65537, 0
      %v1141 = vlaneseq
      %v1142 = vshrl.u32 %v1141, 7
      %v1143 = vsub.s32 0, %v1142
      %v1144 = vrot.slane %v1138, %v1143
      %v1145 = vlaneseq
      %v1146 = vshrl.u32 %v1145, 7
      %v1147 = vsub.s32 4, %v1146
      %v1148 = vrot.slane %v1138, %v1147
      %v1149 = vlaneseq
      %v1150 = vshrl.u32 %v1149, 7
      %v1151 = vsub.s32 0, %v1150
      %v1152 = vrot.slane %v1139, %v1151
      %v1153 = vlaneseq
      %v1154 = vshrl.u32 %v1153, 7
      %v1155 = vsub.s32 4, %v1154
      %v1156 = vrot.slane %v1139, %v1155
      %v1157 = vlaneseq
      %v1158 = vshrl.u32 %v1157, 7
      %v1159 = vsub.s32 0, %v1158
      %v1160 = vrot.slane %v1140, %v1159
      %vm1161 = vcmp.ne.s16.totalorder %v1144, 0
      %vm1162 = vcmp.ne.s16.totalorder %v1148, 0
      %vm1163 = vcmp.ne.s16.totalorder %v1152, 0
      %vm1164 = vcmp.ne.s16.totalorder %v1156, 0
      %vm1165 = vcmp.ne.s16.totalorder %v1160, 0
      %v1166 = vsel %vm1161, %v1104, 0
      %v1167 = vsel %vm1162, %v1093, 0
      %v1168 = vsel %vm1163, %v1094, 0
      %v1169 = vsel %vm1164, %v1095, 0
      %v1170 = vsel %vm1165, %v1096, 0
      %1171 = vst [vmem:[#allocation2 + $0x50] sm:$0x3] %v1166
      %1172 = vst [vmem:[#allocation2 + $0x58] sm:$0x3] %v1167
      %1173 = vst [vmem:[#allocation2 + $0x60] sm:$0x3] %v1168
      %1174 = vst [vmem:[#allocation2 + $0x68] sm:$0x3] %v1169
      %1175 = vst.msk [vmem:[#allocation2 + $0x70] sm:$0x3] %vm315, %v1170
      %1176 = vrot.lane.b32.xlu0 %v214, 73
      %v1177 = vpop.permute.xlu0 %1176
      %1178 = vrot.lane.b32.xlu0 %v210, 9
      %v1179 = vpop.permute.xlu0 %1178
      %1180 = vrot.lane.b32.xlu0 %v211, 9
      %v1181 = vpop.permute.xlu0 %1180
      %1182 = vrot.lane.b32.xlu0 %v212, 9
      %v1183 = vpop.permute.xlu0 %1182
      %v1184 = vsel %vm221, %v1179, %v1181
      %v1185 = vsel %vm221, %v1181, %v1183
      %v1186 = vsel %vm221, %v1183, %v218
      %vm1191 = vcmask 72704
      %v1194 = vsel %vm1191, %v1177, %v1179
      %s1196 = scalar_lea.vmem %s3, 45
      %v1197 = vld [vmem:[%s1196] sm:$0x1f]
      %vm1198 = vcmp.gt.f32.partialorder %v1197, 0.5
      %v1199 = vsel %vm1198, 1, 0
      %v1200 = vlaneseq
      %v1201 = vshrl.u32 %v1200, 7
      %v1202 = vsub.s32 0, %v1201
      %v1203 = vrot.slane %v1199, %v1202
      %v1204 = vlaneseq
      %v1205 = vshrl.u32 %v1204, 7
      %v1206 = vsub.s32 1, %v1205
      %v1207 = vrot.slane %v1199, %v1206
      %v1208 = vlaneseq
      %v1209 = vshrl.u32 %v1208, 7
      %v1210 = vsub.s32 2, %v1209
      %v1211 = vrot.slane %v1199, %v1210
      %v1212 = vlaneseq
      %v1213 = vshrl.u32 %v1212, 7
      %v1214 = vsub.s32 3, %v1213
      %v1215 = vrot.slane %v1199, %v1214
      %v1216 = vlaneseq
      %v1217 = vshrl.u32 %v1216, 7
      %v1218 = vsub.s32 4, %v1217
      %v1219 = vrot.slane %v1199, %v1218
      %vm1220 = vcmp.eq.s32.totalorder %v1203, 1
      %vm1221 = vcmp.eq.s32.totalorder %v1207, 1
      %vm1222 = vcmp.eq.s32.totalorder %v1211, 1
      %vm1223 = vcmp.eq.s32.totalorder %v1215, 1
      %vm1224 = vcmp.eq.s32.totalorder %v1219, 1
      %vm1225 = vmpackc.low %vm1221, %vm1220
      %vm1226 = vmpackc.low %vm1223, %vm1222
      %vm1227 = vmpackc.low %vm1224, %vm1224
      %v1228 = vsel %vm1225, 65537, 0
      %v1229 = vsel %vm1226, 65537, 0
      %v1230 = vsel %vm1227, 65537, 0
      %v1231 = vlaneseq
      %v1232 = vshrl.u32 %v1231, 7
      %v1233 = vsub.s32 0, %v1232
      %v1234 = vrot.slane %v1228, %v1233
      %v1235 = vlaneseq
      %v1236 = vshrl.u32 %v1235, 7
      %v1237 = vsub.s32 4, %v1236
      %v1238 = vrot.slane %v1228, %v1237
      %v1239 = vlaneseq
      %v1240 = vshrl.u32 %v1239, 7
      %v1241 = vsub.s32 0, %v1240
      %v1242 = vrot.slane %v1229, %v1241
      %v1243 = vlaneseq
      %v1244 = vshrl.u32 %v1243, 7
      %v1245 = vsub.s32 4, %v1244
      %v1246 = vrot.slane %v1229, %v1245
      %v1247 = vlaneseq
      %v1248 = vshrl.u32 %v1247, 7
      %v1249 = vsub.s32 0, %v1248
      %v1250 = vrot.slane %v1230, %v1249
      %vm1251 = vcmp.ne.s16.totalorder %v1234, 0
      %vm1252 = vcmp.ne.s16.totalorder %v1238, 0
      %vm1253 = vcmp.ne.s16.totalorder %v1242, 0
      %vm1254 = vcmp.ne.s16.totalorder %v1246, 0
      %vm1255 = vcmp.ne.s16.totalorder %v1250, 0
      %v1256 = vsel %vm1251, %v1194, 0
      %v1257 = vsel %vm1252, %v1184, 0
      %v1258 = vsel %vm1253, %v1185, 0
      %v1259 = vsel %vm1254, %v1186, 0
      %v1260 = vsel %vm1255, %v222, 0
      %v1266 = vrot.slane %v1256, 6
      %v1267 = vrot.slane %v1257, 6
      %v1268 = vrot.slane %v1258, 6
      %v1269 = vrot.slane %v1259, 6
      %v1270 = vrot.slane %v1260, 6
      %1276 = vst [vmem:[#allocation2 + $0x50] sm:$0xc] %v1266
      %1277 = vst [vmem:[#allocation2 + $0x58] sm:$0xc] %v1267
      %1278 = vst [vmem:[#allocation2 + $0x60] sm:$0xc] %v1268
      %1279 = vst [vmem:[#allocation2 + $0x68] sm:$0xc] %v1269
      %1280 = vst.msk [vmem:[#allocation2 + $0x70] sm:$0xc] %vm428, %v1270
      %1281 = vrot.lane.b32.xlu0 %v214, 72
      %v1282 = vpop.permute.xlu0 %1281
      %1283 = vrot.lane.b32.xlu0 %v210, 8
      %v1284 = vpop.permute.xlu0 %1283
      %1285 = vrot.lane.b32.xlu0 %v211, 8
      %v1286 = vpop.permute.xlu0 %1285
      %1287 = vrot.lane.b32.xlu0 %v212, 8
      %v1288 = vpop.permute.xlu0 %1287
      %v1289 = vsel %vm321, %v1284, %v1286
      %v1290 = vsel %vm321, %v1286, %v1288
      %v1291 = vsel %vm321, %v1288, %v318
      %vm1296 = vcmask 64512
      %v1299 = vsel %vm1296, %v1282, %v1284
      %s1301 = scalar_lea.vmem %s3, 50
      %v1302 = vld [vmem:[%s1301] sm:$0x1f]
      %vm1303 = vcmp.gt.f32.partialorder %v1302, 0.5
      %v1304 = vsel %vm1303, 1, 0
      %v1305 = vlaneseq
      %v1306 = vshrl.u32 %v1305, 7
      %v1307 = vsub.s32 0, %v1306
      %v1308 = vrot.slane %v1304, %v1307
      %v1309 = vlaneseq
      %v1310 = vshrl.u32 %v1309, 7
      %v1311 = vsub.s32 1, %v1310
      %v1312 = vrot.slane %v1304, %v1311
      %v1313 = vlaneseq
      %v1314 = vshrl.u32 %v1313, 7
      %v1315 = vsub.s32 2, %v1314
      %v1316 = vrot.slane %v1304, %v1315
      %v1317 = vlaneseq
      %v1318 = vshrl.u32 %v1317, 7
      %v1319 = vsub.s32 3, %v1318
      %v1320 = vrot.slane %v1304, %v1319
      %v1321 = vlaneseq
      %v1322 = vshrl.u32 %v1321, 7
      %v1323 = vsub.s32 4, %v1322
      %v1324 = vrot.slane %v1304, %v1323
      %vm1325 = vcmp.eq.s32.totalorder %v1308, 1
      %vm1326 = vcmp.eq.s32.totalorder %v1312, 1
      %vm1327 = vcmp.eq.s32.totalorder %v1316, 1
      %vm1328 = vcmp.eq.s32.totalorder %v1320, 1
      %vm1329 = vcmp.eq.s32.totalorder %v1324, 1
      %vm1330 = vmpackc.low %vm1326, %vm1325
      %vm1331 = vmpackc.low %vm1328, %vm1327
      %vm1332 = vmpackc.low %vm1329, %vm1329
      %v1333 = vsel %vm1330, 65537, 0
      %v1334 = vsel %vm1331, 65537, 0
      %v1335 = vsel %vm1332, 65537, 0
      %v1336 = vlaneseq
      %v1337 = vshrl.u32 %v1336, 7
      %v1338 = vsub.s32 0, %v1337
      %v1339 = vrot.slane %v1333, %v1338
      %v1340 = vlaneseq
      %v1341 = vshrl.u32 %v1340, 7
      %v1342 = vsub.s32 4, %v1341
      %v1343 = vrot.slane %v1333, %v1342
      %v1344 = vlaneseq
      %v1345 = vshrl.u32 %v1344, 7
      %v1346 = vsub.s32 0, %v1345
      %v1347 = vrot.slane %v1334, %v1346
      %v1348 = vlaneseq
      %v1349 = vshrl.u32 %v1348, 7
      %v1350 = vsub.s32 4, %v1349
      %v1351 = vrot.slane %v1334, %v1350
      %v1352 = vlaneseq
      %v1353 = vshrl.u32 %v1352, 7
      %v1354 = vsub.s32 0, %v1353
      %v1355 = vrot.slane %v1335, %v1354
      %vm1356 = vcmp.ne.s16.totalorder %v1339, 0
      %vm1357 = vcmp.ne.s16.totalorder %v1343, 0
      %vm1358 = vcmp.ne.s16.totalorder %v1347, 0
      %vm1359 = vcmp.ne.s16.totalorder %v1351, 0
      %vm1360 = vcmp.ne.s16.totalorder %v1355, 0
      %v1361 = vsel %vm1356, %v1299, 0
      %v1362 = vsel %vm1357, %v1289, 0
      %v1363 = vsel %vm1358, %v1290, 0
      %v1364 = vsel %vm1359, %v1291, 0
      %v1365 = vsel %vm1360, %v322, 0
      %v1371 = vrot.slane %v1361, 4
      %v1372 = vrot.slane %v1362, 4
      %v1373 = vrot.slane %v1363, 4
      %v1374 = vrot.slane %v1364, 4
      %v1375 = vrot.slane %v1365, 4
      %1381 = vst [vmem:[#allocation2 + $0x50] sm:$0x30] %v1371
      %1382 = vst [vmem:[#allocation2 + $0x58] sm:$0x30] %v1372
      %1383 = vst [vmem:[#allocation2 + $0x60] sm:$0x30] %v1373
      %1384 = vst [vmem:[#allocation2 + $0x68] sm:$0x30] %v1374
      %1385 = vst.msk [vmem:[#allocation2 + $0x70] sm:$0x30] %vm541, %v1375
      %1386 = vrot.lane.b32.xlu0 %v214, 71
      %v1387 = vpop.permute.xlu0 %1386
      %1388 = vrot.lane.b32.xlu0 %v210, 7
      %v1389 = vpop.permute.xlu0 %1388
      %1390 = vrot.lane.b32.xlu0 %v211, 7
      %v1391 = vpop.permute.xlu0 %1390
      %1392 = vrot.lane.b32.xlu0 %v212, 7
      %v1393 = vpop.permute.xlu0 %1392
      %v1394 = vsel %vm434, %v1389, %v1391
      %v1395 = vsel %vm434, %v1391, %v1393
      %v1396 = vsel %vm434, %v1393, %v431
      %vm1401 = vcmask 56320
      %v1404 = vsel %vm1401, %v1387, %v1389
      %s1406 = scalar_lea.vmem %s3, 55
      %v1407 = vld [vmem:[%s1406] sm:$0x1f]
      %vm1408 = vcmp.gt.f32.partialorder %v1407, 0.5
      %v1409 = vsel %vm1408, 1, 0
      %v1410 = vlaneseq
      %v1411 = vshrl.u32 %v1410, 7
      %v1412 = vsub.s32 0, %v1411
      %v1413 = vrot.slane %v1409, %v1412
      %v1414 = vlaneseq
      %v1415 = vshrl.u32 %v1414, 7
      %v1416 = vsub.s32 1, %v1415
      %v1417 = vrot.slane %v1409, %v1416
      %v1418 = vlaneseq
      %v1419 = vshrl.u32 %v1418, 7
      %v1420 = vsub.s32 2, %v1419
      %v1421 = vrot.slane %v1409, %v1420
      %v1422 = vlaneseq
      %v1423 = vshrl.u32 %v1422, 7
      %v1424 = vsub.s32 3, %v1423
      %v1425 = vrot.slane %v1409, %v1424
      %v1426 = vlaneseq
      %v1427 = vshrl.u32 %v1426, 7
      %v1428 = vsub.s32 4, %v1427
      %v1429 = vrot.slane %v1409, %v1428
      %vm1430 = vcmp.eq.s32.totalorder %v1413, 1
      %vm1431 = vcmp.eq.s32.totalorder %v1417, 1
      %vm1432 = vcmp.eq.s32.totalorder %v1421, 1
      %vm1433 = vcmp.eq.s32.totalorder %v1425, 1
      %vm1434 = vcmp.eq.s32.totalorder %v1429, 1
      %vm1435 = vmpackc.low %vm1431, %vm1430
      %vm1436 = vmpackc.low %vm1433, %vm1432
      %vm1437 = vmpackc.low %vm1434, %vm1434
      %v1438 = vsel %vm1435, 65537, 0
      %v1439 = vsel %vm1436, 65537, 0
      %v1440 = vsel %vm1437, 65537, 0
      %v1441 = vlaneseq
      %v1442 = vshrl.u32 %v1441, 7
      %v1443 = vsub.s32 0, %v1442
      %v1444 = vrot.slane %v1438, %v1443
      %v1445 = vlaneseq
      %v1446 = vshrl.u32 %v1445, 7
      %v1447 = vsub.s32 4, %v1446
      %v1448 = vrot.slane %v1438, %v1447
      %v1449 = vlaneseq
      %v1450 = vshrl.u32 %v1449, 7
      %v1451 = vsub.s32 0, %v1450
      %v1452 = vrot.slane %v1439, %v1451
      %v1453 = vlaneseq
      %v1454 = vshrl.u32 %v1453, 7
      %v1455 = vsub.s32 4, %v1454
      %v1456 = vrot.slane %v1439, %v1455
      %v1457 = vlaneseq
      %v1458 = vshrl.u32 %v1457, 7
      %v1459 = vsub.s32 0, %v1458
      %v1460 = vrot.slane %v1440, %v1459
      %vm1461 = vcmp.ne.s16.totalorder %v1444, 0
      %vm1462 = vcmp.ne.s16.totalorder %v1448, 0
      %vm1463 = vcmp.ne.s16.totalorder %v1452, 0
      %vm1464 = vcmp.ne.s16.totalorder %v1456, 0
      %vm1465 = vcmp.ne.s16.totalorder %v1460, 0
      %v1466 = vsel %vm1461, %v1404, 0
      %v1467 = vsel %vm1462, %v1394, 0
      %v1468 = vsel %vm1463, %v1395, 0
      %v1469 = vsel %vm1464, %v1396, 0
      %v1470 = vsel %vm1465, %v435, 0
      %v1476 = vrot.slane %v1466, 2
      %v1477 = vrot.slane %v1467, 2
      %v1478 = vrot.slane %v1468, 2
      %v1479 = vrot.slane %v1469, 2
      %v1480 = vrot.slane %v1470, 2
      %1486 = vst [vmem:[#allocation2 + $0x50] sm:$0xc0] %v1476
      %1487 = vst [vmem:[#allocation2 + $0x58] sm:$0xc0] %v1477
      %1488 = vst [vmem:[#allocation2 + $0x60] sm:$0xc0] %v1478
      %1489 = vst [vmem:[#allocation2 + $0x68] sm:$0xc0] %v1479
      %1490 = vst.msk [vmem:[#allocation2 + $0x70] sm:$0xc0] %vm654, %v1480
      %1491 = vrot.lane.b32.xlu0 %v214, 65
      %v1492 = vpop.permute.xlu0 %1491
      %1493 = vrot.lane.b32.xlu0 %v210, 1
      %v1494 = vpop.permute.xlu0 %1493
      %1495 = vrot.lane.b32.xlu0 %v211, 1
      %v1496 = vpop.permute.xlu0 %1495
      %1497 = vrot.lane.b32.xlu0 %v212, 1
      %v1498 = vpop.permute.xlu0 %1497
      %v1499 = vsel %vm547, %v1494, %v1496
      %v1500 = vsel %vm547, %v1496, %v1498
      %v1501 = vsel %vm547, %v1498, %v544
      %vm1506 = vcmask 7168
      %v1509 = vsel %vm1506, %v1492, %v1494
      %s1511 = scalar_lea.vmem %s3, 60
      %v1512 = vld [vmem:[%s1511] sm:$0x1f]
      %vm1513 = vcmp.gt.f32.partialorder %v1512, 0.5
      %v1514 = vsel %vm1513, 1, 0
      %v1515 = vlaneseq
      %v1516 = vshrl.u32 %v1515, 7
      %v1517 = vsub.s32 0, %v1516
      %v1518 = vrot.slane %v1514, %v1517
      %v1519 = vlaneseq
      %v1520 = vshrl.u32 %v1519, 7
      %v1521 = vsub.s32 1, %v1520
      %v1522 = vrot.slane %v1514, %v1521
      %v1523 = vlaneseq
      %v1524 = vshrl.u32 %v1523, 7
      %v1525 = vsub.s32 2, %v1524
      %v1526 = vrot.slane %v1514, %v1525
      %v1527 = vlaneseq
      %v1528 = vshrl.u32 %v1527, 7
      %v1529 = vsub.s32 3, %v1528
      %v1530 = vrot.slane %v1514, %v1529
      %v1531 = vlaneseq
      %v1532 = vshrl.u32 %v1531, 7
      %v1533 = vsub.s32 4, %v1532
      %v1534 = vrot.slane %v1514, %v1533
      %vm1535 = vcmp.eq.s32.totalorder %v1518, 1
      %vm1536 = vcmp.eq.s32.totalorder %v1522, 1
      %vm1537 = vcmp.eq.s32.totalorder %v1526, 1
      %vm1538 = vcmp.eq.s32.totalorder %v1530, 1
      %vm1539 = vcmp.eq.s32.totalorder %v1534, 1
      %vm1540 = vmpackc.low %vm1536, %vm1535
      %vm1541 = vmpackc.low %vm1538, %vm1537
      %vm1542 = vmpackc.low %vm1539, %vm1539
      %v1543 = vsel %vm1540, 65537, 0
      %v1544 = vsel %vm1541, 65537, 0
      %v1545 = vsel %vm1542, 65537, 0
      %v1546 = vlaneseq
      %v1547 = vshrl.u32 %v1546, 7
      %v1548 = vsub.s32 0, %v1547
      %v1549 = vrot.slane %v1543, %v1548
      %v1550 = vlaneseq
      %v1551 = vshrl.u32 %v1550, 7
      %v1552 = vsub.s32 4, %v1551
      %v1553 = vrot.slane %v1543, %v1552
      %v1554 = vlaneseq
      %v1555 = vshrl.u32 %v1554, 7
      %v1556 = vsub.s32 0, %v1555
      %v1557 = vrot.slane %v1544, %v1556
      %v1558 = vlaneseq
      %v1559 = vshrl.u32 %v1558, 7
      %v1560 = vsub.s32 4, %v1559
      %v1561 = vrot.slane %v1544, %v1560
      %v1562 = vlaneseq
      %v1563 = vshrl.u32 %v1562, 7
      %v1564 = vsub.s32 0, %v1563
      %v1565 = vrot.slane %v1545, %v1564
      %vm1566 = vcmp.ne.s16.totalorder %v1549, 0
      %vm1567 = vcmp.ne.s16.totalorder %v1553, 0
      %vm1568 = vcmp.ne.s16.totalorder %v1557, 0
      %vm1569 = vcmp.ne.s16.totalorder %v1561, 0
      %vm1570 = vcmp.ne.s16.totalorder %v1565, 0
      %v1571 = vsel %vm1566, %v1509, 0
      %v1572 = vsel %vm1567, %v1499, 0
      %v1573 = vsel %vm1568, %v1500, 0
      %v1574 = vsel %vm1569, %v1501, 0
      %v1575 = vsel %vm1570, %v548, 0
      %1576 = vst [vmem:[#allocation2 + $0x78] sm:$0x3] %v1571
      %1577 = vst [vmem:[#allocation2 + $0x80] sm:$0x3] %v1572
      %1578 = vst [vmem:[#allocation2 + $0x88] sm:$0x3] %v1573
      %1579 = vst [vmem:[#allocation2 + $0x90] sm:$0x3] %v1574
      %1580 = vst.msk [vmem:[#allocation2 + $0x98] sm:$0x3] %vm315, %v1575
      %v1581 = vrot.slane %v210, 6
      %v1582 = vrot.slane %v211, 6
      %v1583 = vrot.slane %v212, 6
      %v1584 = vrot.slane %v213, 6
      %v1585 = vrot.slane %v214, 6
      %1591 = vst [vmem:[#allocation2 + $0x78] sm:$0xc] %v1581
      %1592 = vst [vmem:[#allocation2 + $0x80] sm:$0xc] %v1582
      %1593 = vst [vmem:[#allocation2 + $0x88] sm:$0xc] %v1583
      %1594 = vst [vmem:[#allocation2 + $0x90] sm:$0xc] %v1584
      %1595 = vst.msk [vmem:[#allocation2 + $0x98] sm:$0xc] %vm428, %v1585
      %1596 = vrot.lane.b32.xlu0 %v210, 127
      %v1597 = vpop.permute.xlu0 %1596
      %1598 = vrot.lane.b32.xlu0 %v211, 127
      %v1599 = vpop.permute.xlu0 %1598
      %1600 = vrot.lane.b32.xlu0 %v212, 127
      %v1601 = vpop.permute.xlu0 %1600
      %1602 = vrot.lane.b32.xlu0 %v213, 127
      %v1603 = vpop.permute.xlu0 %1602
      %vm1604 = vcmask 1039360
      %v1605 = vsel %vm1604, %v1597, %v1599
      %v1606 = vsel %vm1604, %v1599, %v1601
      %v1607 = vsel %vm1604, %v1601, %v1603
      %v1608 = vsel %vm1604, %v1603, %v748
      %s1613 = scalar_lea.vmem %s3, 70
      %v1614 = vld [vmem:[%s1613] sm:$0x1f]
      %vm1615 = vcmp.gt.f32.partialorder %v1614, 0.5
      %v1616 = vsel %vm1615, 1, 0
      %v1617 = vlaneseq
      %v1618 = vshrl.u32 %v1617, 7
      %v1619 = vsub.s32 0, %v1618
      %v1620 = vrot.slane %v1616, %v1619
      %v1621 = vlaneseq
      %v1622 = vshrl.u32 %v1621, 7
      %v1623 = vsub.s32 1, %v1622
      %v1624 = vrot.slane %v1616, %v1623
      %v1625 = vlaneseq
      %v1626 = vshrl.u32 %v1625, 7
      %v1627 = vsub.s32 2, %v1626
      %v1628 = vrot.slane %v1616, %v1627
      %v1629 = vlaneseq
      %v1630 = vshrl.u32 %v1629, 7
      %v1631 = vsub.s32 3, %v1630
      %v1632 = vrot.slane %v1616, %v1631
      %v1633 = vlaneseq
      %v1634 = vshrl.u32 %v1633, 7
      %v1635 = vsub.s32 4, %v1634
      %v1636 = vrot.slane %v1616, %v1635
      %vm1637 = vcmp.eq.s32.totalorder %v1620, 1
      %vm1638 = vcmp.eq.s32.totalorder %v1624, 1
      %vm1639 = vcmp.eq.s32.totalorder %v1628, 1
      %vm1640 = vcmp.eq.s32.totalorder %v1632, 1
      %vm1641 = vcmp.eq.s32.totalorder %v1636, 1
      %vm1642 = vmpackc.low %vm1638, %vm1637
      %vm1643 = vmpackc.low %vm1640, %vm1639
      %vm1644 = vmpackc.low %vm1641, %vm1641
      %v1645 = vsel %vm1642, 65537, 0
      %v1646 = vsel %vm1643, 65537, 0
      %v1647 = vsel %vm1644, 65537, 0
      %v1648 = vlaneseq
      %v1649 = vshrl.u32 %v1648, 7
      %v1650 = vsub.s32 0, %v1649
      %v1651 = vrot.slane %v1645, %v1650
      %v1652 = vlaneseq
      %v1653 = vshrl.u32 %v1652, 7
      %v1654 = vsub.s32 4, %v1653
      %v1655 = vrot.slane %v1645, %v1654
      %v1656 = vlaneseq
      %v1657 = vshrl.u32 %v1656, 7
      %v1658 = vsub.s32 0, %v1657
      %v1659 = vrot.slane %v1646, %v1658
      %v1660 = vlaneseq
      %v1661 = vshrl.u32 %v1660, 7
      %v1662 = vsub.s32 4, %v1661
      %v1663 = vrot.slane %v1646, %v1662
      %v1664 = vlaneseq
      %v1665 = vshrl.u32 %v1664, 7
      %v1666 = vsub.s32 0, %v1665
      %v1667 = vrot.slane %v1647, %v1666
      %vm1668 = vcmp.ne.s16.totalorder %v1651, 0
      %vm1669 = vcmp.ne.s16.totalorder %v1655, 0
      %vm1670 = vcmp.ne.s16.totalorder %v1659, 0
      %vm1671 = vcmp.ne.s16.totalorder %v1663, 0
      %vm1672 = vcmp.ne.s16.totalorder %v1667, 0
      %v1673 = vsel %vm1668, %v1605, 0
      %v1674 = vsel %vm1669, %v1606, 0
      %v1675 = vsel %vm1670, %v1607, 0
      %v1676 = vsel %vm1671, %v1608, 0
      %v1677 = vsel %vm1672, %v771, 0
      %v1683 = vrot.slane %v1673, 4
      %v1684 = vrot.slane %v1674, 4
      %v1685 = vrot.slane %v1675, 4
      %v1686 = vrot.slane %v1676, 4
      %v1687 = vrot.slane %v1677, 4
      %1693 = vst [vmem:[#allocation2 + $0x78] sm:$0x30] %v1683
      %1694 = vst [vmem:[#allocation2 + $0x80] sm:$0x30] %v1684
      %1695 = vst [vmem:[#allocation2 + $0x88] sm:$0x30] %v1685
      %1696 = vst [vmem:[#allocation2 + $0x90] sm:$0x30] %v1686
      %1697 = vst.msk [vmem:[#allocation2 + $0x98] sm:$0x30] %vm541, %v1687
      %1698 = vrot.lane.b32.xlu0 %v210, 121
      %v1699 = vpop.permute.xlu0 %1698
      %1700 = vrot.lane.b32.xlu0 %v211, 121
      %v1701 = vpop.permute.xlu0 %1700
      %1702 = vrot.lane.b32.xlu0 %v212, 121
      %v1703 = vpop.permute.xlu0 %1702
      %1704 = vrot.lane.b32.xlu0 %v213, 121
      %v1705 = vpop.permute.xlu0 %1704
      %vm1706 = vcmask 990208
      %v1707 = vsel %vm1706, %v1699, %v1701
      %v1708 = vsel %vm1706, %v1701, %v1703
      %v1709 = vsel %vm1706, %v1703, %v1705
      %v1710 = vsel %vm1706, %v1705, %v859
      %s1715 = scalar_lea.vmem %s3, 75
      %v1716 = vld [vmem:[%s1715] sm:$0x1f]
      %vm1717 = vcmp.gt.f32.partialorder %v1716, 0.5
      %v1718 = vsel %vm1717, 1, 0
      %v1719 = vlaneseq
      %v1720 = vshrl.u32 %v1719, 7
      %v1721 = vsub.s32 0, %v1720
      %v1722 = vrot.slane %v1718, %v1721
      %v1723 = vlaneseq
      %v1724 = vshrl.u32 %v1723, 7
      %v1725 = vsub.s32 1, %v1724
      %v1726 = vrot.slane %v1718, %v1725
      %v1727 = vlaneseq
      %v1728 = vshrl.u32 %v1727, 7
      %v1729 = vsub.s32 2, %v1728
      %v1730 = vrot.slane %v1718, %v1729
      %v1731 = vlaneseq
      %v1732 = vshrl.u32 %v1731, 7
      %v1733 = vsub.s32 3, %v1732
      %v1734 = vrot.slane %v1718, %v1733
      %v1735 = vlaneseq
      %v1736 = vshrl.u32 %v1735, 7
      %v1737 = vsub.s32 4, %v1736
      %v1738 = vrot.slane %v1718, %v1737
      %vm1739 = vcmp.eq.s32.totalorder %v1722, 1
      %vm1740 = vcmp.eq.s32.totalorder %v1726, 1
      %vm1741 = vcmp.eq.s32.totalorder %v1730, 1
      %vm1742 = vcmp.eq.s32.totalorder %v1734, 1
      %vm1743 = vcmp.eq.s32.totalorder %v1738, 1
      %vm1744 = vmpackc.low %vm1740, %vm1739
      %vm1745 = vmpackc.low %vm1742, %vm1741
      %vm1746 = vmpackc.low %vm1743, %vm1743
      %v1747 = vsel %vm1744, 65537, 0
      %v1748 = vsel %vm1745, 65537, 0
      %v1749 = vsel %vm1746, 65537, 0
      %v1750 = vlaneseq
      %v1751 = vshrl.u32 %v1750, 7
      %v1752 = vsub.s32 0, %v1751
      %v1753 = vrot.slane %v1747, %v1752
      %v1754 = vlaneseq
      %v1755 = vshrl.u32 %v1754, 7
      %v1756 = vsub.s32 4, %v1755
      %v1757 = vrot.slane %v1747, %v1756
      %v1758 = vlaneseq
      %v1759 = vshrl.u32 %v1758, 7
      %v1760 = vsub.s32 0, %v1759
      %v1761 = vrot.slane %v1748, %v1760
      %v1762 = vlaneseq
      %v1763 = vshrl.u32 %v1762, 7
      %v1764 = vsub.s32 4, %v1763
      %v1765 = vrot.slane %v1748, %v1764
      %v1766 = vlaneseq
      %v1767 = vshrl.u32 %v1766, 7
      %v1768 = vsub.s32 0, %v1767
      %v1769 = vrot.slane %v1749, %v1768
      %vm1770 = vcmp.ne.s16.totalorder %v1753, 0
      %vm1771 = vcmp.ne.s16.totalorder %v1757, 0
      %vm1772 = vcmp.ne.s16.totalorder %v1761, 0
      %vm1773 = vcmp.ne.s16.totalorder %v1765, 0
      %vm1774 = vcmp.ne.s16.totalorder %v1769, 0
      %v1775 = vsel %vm1770, %v1707, 0
      %v1776 = vsel %vm1771, %v1708, 0
      %v1777 = vsel %vm1772, %v1709, 0
      %v1778 = vsel %vm1773, %v1710, 0
      %v1779 = vsel %vm1774, %v882, 0
      %v1785 = vrot.slane %v1775, 2
      %v1786 = vrot.slane %v1776, 2
      %v1787 = vrot.slane %v1777, 2
      %v1788 = vrot.slane %v1778, 2
      %v1789 = vrot.slane %v1779, 2
      %1795 = vst [vmem:[#allocation2 + $0x78] sm:$0xc0] %v1785
      %1796 = vst [vmem:[#allocation2 + $0x80] sm:$0xc0] %v1786
      %1797 = vst [vmem:[#allocation2 + $0x88] sm:$0xc0] %v1787
      %1798 = vst [vmem:[#allocation2 + $0x90] sm:$0xc0] %v1788
      %1799 = vst.msk [vmem:[#allocation2 + $0x98] sm:$0xc0] %vm654, %v1789
      %1800 = vrot.lane.b32.xlu0 %v210, 120
      %v1801 = vpop.permute.xlu0 %1800
      %1802 = vrot.lane.b32.xlu0 %v211, 120
      %v1803 = vpop.permute.xlu0 %1802
      %1804 = vrot.lane.b32.xlu0 %v212, 120
      %v1805 = vpop.permute.xlu0 %1804
      %1806 = vrot.lane.b32.xlu0 %v213, 120
      %v1807 = vpop.permute.xlu0 %1806
      %vm1808 = vcmask 982016
      %v1809 = vsel %vm1808, %v1801, %v1803
      %v1810 = vsel %vm1808, %v1803, %v1805
      %v1811 = vsel %vm1808, %v1805, %v1807
      %v1812 = vsel %vm1808, %v1807, %v970
      %s1817 = scalar_lea.vmem %s3, 80
      %v1818 = vld [vmem:[%s1817] sm:$0x1f]
      %vm1819 = vcmp.gt.f32.partialorder %v1818, 0.5
      %v1820 = vsel %vm1819, 1, 0
      %v1821 = vlaneseq
      %v1822 = vshrl.u32 %v1821, 7
      %v1823 = vsub.s32 0, %v1822
      %v1824 = vrot.slane %v1820, %v1823
      %v1825 = vlaneseq
      %v1826 = vshrl.u32 %v1825, 7
      %v1827 = vsub.s32 1, %v1826
      %v1828 = vrot.slane %v1820, %v1827
      %v1829 = vlaneseq
      %v1830 = vshrl.u32 %v1829, 7
      %v1831 = vsub.s32 2, %v1830
      %v1832 = vrot.slane %v1820, %v1831
      %v1833 = vlaneseq
      %v1834 = vshrl.u32 %v1833, 7
      %v1835 = vsub.s32 3, %v1834
      %v1836 = vrot.slane %v1820, %v1835
      %v1837 = vlaneseq
      %v1838 = vshrl.u32 %v1837, 7
      %v1839 = vsub.s32 4, %v1838
      %v1840 = vrot.slane %v1820, %v1839
      %vm1841 = vcmp.eq.s32.totalorder %v1824, 1
      %vm1842 = vcmp.eq.s32.totalorder %v1828, 1
      %vm1843 = vcmp.eq.s32.totalorder %v1832, 1
      %vm1844 = vcmp.eq.s32.totalorder %v1836, 1
      %vm1845 = vcmp.eq.s32.totalorder %v1840, 1
      %vm1846 = vmpackc.low %vm1842, %vm1841
      %vm1847 = vmpackc.low %vm1844, %vm1843
      %vm1848 = vmpackc.low %vm1845, %vm1845
      %v1849 = vsel %vm1846, 65537, 0
      %v1850 = vsel %vm1847, 65537, 0
      %v1851 = vsel %vm1848, 65537, 0
      %v1852 = vlaneseq
      %v1853 = vshrl.u32 %v1852, 7
      %v1854 = vsub.s32 0, %v1853
      %v1855 = vrot.slane %v1849, %v1854
      %v1856 = vlaneseq
      %v1857 = vshrl.u32 %v1856, 7
      %v1858 = vsub.s32 4, %v1857
      %v1859 = vrot.slane %v1849, %v1858
      %v1860 = vlaneseq
      %v1861 = vshrl.u32 %v1860, 7
      %v1862 = vsub.s32 0, %v1861
      %v1863 = vrot.slane %v1850, %v1862
      %v1864 = vlaneseq
      %v1865 = vshrl.u32 %v1864, 7
      %v1866 = vsub.s32 4, %v1865
      %v1867 = vrot.slane %v1850, %v1866
      %v1868 = vlaneseq
      %v1869 = vshrl.u32 %v1868, 7
      %v1870 = vsub.s32 0, %v1869
      %v1871 = vrot.slane %v1851, %v1870
      %vm1872 = vcmp.ne.s16.totalorder %v1855, 0
      %vm1873 = vcmp.ne.s16.totalorder %v1859, 0
      %vm1874 = vcmp.ne.s16.totalorder %v1863, 0
      %vm1875 = vcmp.ne.s16.totalorder %v1867, 0
      %vm1876 = vcmp.ne.s16.totalorder %v1871, 0
      %v1877 = vsel %vm1872, %v1809, 0
      %v1878 = vsel %vm1873, %v1810, 0
      %v1879 = vsel %vm1874, %v1811, 0
      %v1880 = vsel %vm1875, %v1812, 0
      %v1881 = vsel %vm1876, %v993, 0
      %1882 = vst [vmem:[#allocation2 + $0xa0] sm:$0x3] %v1877
      %1883 = vst [vmem:[#allocation2 + $0xa8] sm:$0x3] %v1878
      %1884 = vst [vmem:[#allocation2 + $0xb0] sm:$0x3] %v1879
      %1885 = vst [vmem:[#allocation2 + $0xb8] sm:$0x3] %v1880
      %1886 = vst.msk [vmem:[#allocation2 + $0xc0] sm:$0x3] %vm315, %v1881
      %1887 = vrot.lane.b32.xlu0 %v210, 119
      %v1888 = vpop.permute.xlu0 %1887
      %1889 = vrot.lane.b32.xlu0 %v211, 119
      %v1890 = vpop.permute.xlu0 %1889
      %1891 = vrot.lane.b32.xlu0 %v212, 119
      %v1892 = vpop.permute.xlu0 %1891
      %1893 = vrot.lane.b32.xlu0 %v213, 119
      %v1894 = vpop.permute.xlu0 %1893
      %vm1895 = vcmask 973824
      %v1896 = vsel %vm1895, %v1888, %v1890
      %v1897 = vsel %vm1895, %v1890, %v1892
      %v1898 = vsel %vm1895, %v1892, %v1894
      %v1899 = vsel %vm1895, %v1894, %v1081
      %s1904 = scalar_lea.vmem %s3, 85
      %v1905 = vld [vmem:[%s1904] sm:$0x1f]
      %vm1906 = vcmp.gt.f32.partialorder %v1905, 0.5
      %v1907 = vsel %vm1906, 1, 0
      %v1908 = vlaneseq
      %v1909 = vshrl.u32 %v1908, 7
      %v1910 = vsub.s32 0, %v1909
      %v1911 = vrot.slane %v1907, %v1910
      %v1912 = vlaneseq
      %v1913 = vshrl.u32 %v1912, 7
      %v1914 = vsub.s32 1, %v1913
      %v1915 = vrot.slane %v1907, %v1914
      %v1916 = vlaneseq
      %v1917 = vshrl.u32 %v1916, 7
      %v1918 = vsub.s32 2, %v1917
      %v1919 = vrot.slane %v1907, %v1918
      %v1920 = vlaneseq
      %v1921 = vshrl.u32 %v1920, 7
      %v1922 = vsub.s32 3, %v1921
      %v1923 = vrot.slane %v1907, %v1922
      %v1924 = vlaneseq
      %v1925 = vshrl.u32 %v1924, 7
      %v1926 = vsub.s32 4, %v1925
      %v1927 = vrot.slane %v1907, %v1926
      %vm1928 = vcmp.eq.s32.totalorder %v1911, 1
      %vm1929 = vcmp.eq.s32.totalorder %v1915, 1
      %vm1930 = vcmp.eq.s32.totalorder %v1919, 1
      %vm1931 = vcmp.eq.s32.totalorder %v1923, 1
      %vm1932 = vcmp.eq.s32.totalorder %v1927, 1
      %vm1933 = vmpackc.low %vm1929, %vm1928
      %vm1934 = vmpackc.low %vm1931, %vm1930
      %vm1935 = vmpackc.low %vm1932, %vm1932
      %v1936 = vsel %vm1933, 65537, 0
      %v1937 = vsel %vm1934, 65537, 0
      %v1938 = vsel %vm1935, 65537, 0
      %v1939 = vlaneseq
      %v1940 = vshrl.u32 %v1939, 7
      %v1941 = vsub.s32 0, %v1940
      %v1942 = vrot.slane %v1936, %v1941
      %v1943 = vlaneseq
      %v1944 = vshrl.u32 %v1943, 7
      %v1945 = vsub.s32 4, %v1944
      %v1946 = vrot.slane %v1936, %v1945
      %v1947 = vlaneseq
      %v1948 = vshrl.u32 %v1947, 7
      %v1949 = vsub.s32 0, %v1948
      %v1950 = vrot.slane %v1937, %v1949
      %v1951 = vlaneseq
      %v1952 = vshrl.u32 %v1951, 7
      %v1953 = vsub.s32 4, %v1952
      %v1954 = vrot.slane %v1937, %v1953
      %v1955 = vlaneseq
      %v1956 = vshrl.u32 %v1955, 7
      %v1957 = vsub.s32 0, %v1956
      %v1958 = vrot.slane %v1938, %v1957
      %vm1959 = vcmp.ne.s16.totalorder %v1942, 0
      %vm1960 = vcmp.ne.s16.totalorder %v1946, 0
      %vm1961 = vcmp.ne.s16.totalorder %v1950, 0
      %vm1962 = vcmp.ne.s16.totalorder %v1954, 0
      %vm1963 = vcmp.ne.s16.totalorder %v1958, 0
      %v1964 = vsel %vm1959, %v1896, 0
      %v1965 = vsel %vm1960, %v1897, 0
      %v1966 = vsel %vm1961, %v1898, 0
      %v1967 = vsel %vm1962, %v1899, 0
      %v1968 = vsel %vm1963, %v1104, 0
      %v1974 = vrot.slane %v1964, 6
      %v1975 = vrot.slane %v1965, 6
      %v1976 = vrot.slane %v1966, 6
      %v1977 = vrot.slane %v1967, 6
      %v1978 = vrot.slane %v1968, 6
      %1984 = vst [vmem:[#allocation2 + $0xa0] sm:$0xc] %v1974
      %1985 = vst [vmem:[#allocation2 + $0xa8] sm:$0xc] %v1975
      %1986 = vst [vmem:[#allocation2 + $0xb0] sm:$0xc] %v1976
      %1987 = vst [vmem:[#allocation2 + $0xb8] sm:$0xc] %v1977
      %1988 = vst.msk [vmem:[#allocation2 + $0xc0] sm:$0xc] %vm428, %v1978
      %v1989 = vsel %vm234, %v233, %v1177
      %s1991 = scalar_lea.vmem %s3, 90
      %v1992 = vld [vmem:[%s1991] sm:$0x1f]
      %vm1993 = vcmp.gt.f32.partialorder %v1992, 0.5
      %v1994 = vsel %vm1993, 1, 0
      %v1995 = vlaneseq
      %v1996 = vshrl.u32 %v1995, 7
      %v1997 = vsub.s32 0, %v1996
      %v1998 = vrot.slane %v1994, %v1997
      %v1999 = vlaneseq
      %v2000 = vshrl.u32 %v1999, 7
      %v2001 = vsub.s32 1, %v2000
      %v2002 = vrot.slane %v1994, %v2001
      %v2003 = vlaneseq
      %v2004 = vshrl.u32 %v2003, 7
      %v2005 = vsub.s32 2, %v2004
      %v2006 = vrot.slane %v1994, %v2005
      %v2007 = vlaneseq
      %v2008 = vshrl.u32 %v2007, 7
      %v2009 = vsub.s32 3, %v2008
      %v2010 = vrot.slane %v1994, %v2009
      %v2011 = vlaneseq
      %v2012 = vshrl.u32 %v2011, 7
      %v2013 = vsub.s32 4, %v2012
      %v2014 = vrot.slane %v1994, %v2013
      %vm2015 = vcmp.eq.s32.totalorder %v1998, 1
      %vm2016 = vcmp.eq.s32.totalorder %v2002, 1
      %vm2017 = vcmp.eq.s32.totalorder %v2006, 1
      %vm2018 = vcmp.eq.s32.totalorder %v2010, 1
      %vm2019 = vcmp.eq.s32.totalorder %v2014, 1
      %vm2020 = vmpackc.low %vm2016, %vm2015
      %vm2021 = vmpackc.low %vm2018, %vm2017
      %vm2022 = vmpackc.low %vm2019, %vm2019
      %v2023 = vsel %vm2020, 65537, 0
      %v2024 = vsel %vm2021, 65537, 0
      %v2025 = vsel %vm2022, 65537, 0
      %v2026 = vlaneseq
      %v2027 = vshrl.u32 %v2026, 7
      %v2028 = vsub.s32 0, %v2027
      %v2029 = vrot.slane %v2023, %v2028
      %v2030 = vlaneseq
      %v2031 = vshrl.u32 %v2030, 7
      %v2032 = vsub.s32 4, %v2031
      %v2033 = vrot.slane %v2023, %v2032
      %v2034 = vlaneseq
      %v2035 = vshrl.u32 %v2034, 7
      %v2036 = vsub.s32 0, %v2035
      %v2037 = vrot.slane %v2024, %v2036
      %v2038 = vlaneseq
      %v2039 = vshrl.u32 %v2038, 7
      %v2040 = vsub.s32 4, %v2039
      %v2041 = vrot.slane %v2024, %v2040
      %v2042 = vlaneseq
      %v2043 = vshrl.u32 %v2042, 7
      %v2044 = vsub.s32 0, %v2043
      %v2045 = vrot.slane %v2025, %v2044
      %vm2046 = vcmp.ne.s16.totalorder %v2029, 0
      %vm2047 = vcmp.ne.s16.totalorder %v2033, 0
      %vm2048 = vcmp.ne.s16.totalorder %v2037, 0
      %vm2049 = vcmp.ne.s16.totalorder %v2041, 0
      %vm2050 = vcmp.ne.s16.totalorder %v2045, 0
      %v2051 = vsel %vm2046, %v235, 0
      %v2052 = vsel %vm2047, %v236, 0
      %v2053 = vsel %vm2048, %v237, 0
      %v2054 = vsel %vm2049, %v1989, 0
      %v2055 = vsel %vm2050, %v1194, 0
      %v2061 = vrot.slane %v2051, 4
      %v2062 = vrot.slane %v2052, 4
      %v2063 = vrot.slane %v2053, 4
      %v2064 = vrot.slane %v2054, 4
      %v2065 = vrot.slane %v2055, 4
      %2071 = vst [vmem:[#allocation2 + $0xa0] sm:$0x30] %v2061
      %2072 = vst [vmem:[#allocation2 + $0xa8] sm:$0x30] %v2062
      %2073 = vst [vmem:[#allocation2 + $0xb0] sm:$0x30] %v2063
      %2074 = vst [vmem:[#allocation2 + $0xb8] sm:$0x30] %v2064
      %2075 = vst.msk [vmem:[#allocation2 + $0xc0] sm:$0x30] %vm541, %v2065
      %v2076 = vsel %vm331, %v330, %v1282
      %s2078 = scalar_lea.vmem %s3, 95
      %v2079 = vld [vmem:[%s2078] sm:$0x1f]
      %vm2080 = vcmp.gt.f32.partialorder %v2079, 0.5
      %v2081 = vsel %vm2080, 1, 0
      %v2082 = vlaneseq
      %v2083 = vshrl.u32 %v2082, 7
      %v2084 = vsub.s32 0, %v2083
      %v2085 = vrot.slane %v2081, %v2084
      %v2086 = vlaneseq
      %v2087 = vshrl.u32 %v2086, 7
      %v2088 = vsub.s32 1, %v2087
      %v2089 = vrot.slane %v2081, %v2088
      %v2090 = vlaneseq
      %v2091 = vshrl.u32 %v2090, 7
      %v2092 = vsub.s32 2, %v2091
      %v2093 = vrot.slane %v2081, %v2092
      %v2094 = vlaneseq
      %v2095 = vshrl.u32 %v2094, 7
      %v2096 = vsub.s32 3, %v2095
      %v2097 = vrot.slane %v2081, %v2096
      %v2098 = vlaneseq
      %v2099 = vshrl.u32 %v2098, 7
      %v2100 = vsub.s32 4, %v2099
      %v2101 = vrot.slane %v2081, %v2100
      %vm2102 = vcmp.eq.s32.totalorder %v2085, 1
      %vm2103 = vcmp.eq.s32.totalorder %v2089, 1
      %vm2104 = vcmp.eq.s32.totalorder %v2093, 1
      %vm2105 = vcmp.eq.s32.totalorder %v2097, 1
      %vm2106 = vcmp.eq.s32.totalorder %v2101, 1
      %vm2107 = vmpackc.low %vm2103, %vm2102
      %vm2108 = vmpackc.low %vm2105, %vm2104
      %vm2109 = vmpackc.low %vm2106, %vm2106
      %v2110 = vsel %vm2107, 65537, 0
      %v2111 = vsel %vm2108, 65537, 0
      %v2112 = vsel %vm2109, 65537, 0
      %v2113 = vlaneseq
      %v2114 = vshrl.u32 %v2113, 7
      %v2115 = vsub.s32 0, %v2114
      %v2116 = vrot.slane %v2110, %v2115
      %v2117 = vlaneseq
      %v2118 = vshrl.u32 %v2117, 7
      %v2119 = vsub.s32 4, %v2118
      %v2120 = vrot.slane %v2110, %v2119
      %v2121 = vlaneseq
      %v2122 = vshrl.u32 %v2121, 7
      %v2123 = vsub.s32 0, %v2122
      %v2124 = vrot.slane %v2111, %v2123
      %v2125 = vlaneseq
      %v2126 = vshrl.u32 %v2125, 7
      %v2127 = vsub.s32 4, %v2126
      %v2128 = vrot.slane %v2111, %v2127
      %v2129 = vlaneseq
      %v2130 = vshrl.u32 %v2129, 7
      %v2131 = vsub.s32 0, %v2130
      %v2132 = vrot.slane %v2112, %v2131
      %vm2133 = vcmp.ne.s16.totalorder %v2116, 0
      %vm2134 = vcmp.ne.s16.totalorder %v2120, 0
      %vm2135 = vcmp.ne.s16.totalorder %v2124, 0
      %vm2136 = vcmp.ne.s16.totalorder %v2128, 0
      %vm2137 = vcmp.ne.s16.totalorder %v2132, 0
      %v2138 = vsel %vm2133, %v332, 0
      %v2139 = vsel %vm2134, %v333, 0
      %v2140 = vsel %vm2135, %v334, 0
      %v2141 = vsel %vm2136, %v2076, 0
      %v2142 = vsel %vm2137, %v1299, 0
      %v2148 = vrot.slane %v2138, 2
      %v2149 = vrot.slane %v2139, 2
      %v2150 = vrot.slane %v2140, 2
      %v2151 = vrot.slane %v2141, 2
      %v2152 = vrot.slane %v2142, 2
      %2158 = vst [vmem:[#allocation2 + $0xa0] sm:$0xc0] %v2148
      %2159 = vst [vmem:[#allocation2 + $0xa8] sm:$0xc0] %v2149
      %2160 = vst [vmem:[#allocation2 + $0xb0] sm:$0xc0] %v2150
      %2161 = vst [vmem:[#allocation2 + $0xb8] sm:$0xc0] %v2151
      %2162 = vst.msk [vmem:[#allocation2 + $0xc0] sm:$0xc0] %vm654, %v2152
      %v2163 = vsel %vm444, %v443, %v1387
      %s2165 = scalar_lea.vmem %s3, 100
      %v2166 = vld [vmem:[%s2165] sm:$0x1f]
      %vm2167 = vcmp.gt.f32.partialorder %v2166, 0.5
      %v2168 = vsel %vm2167, 1, 0
      %v2169 = vlaneseq
      %v2170 = vshrl.u32 %v2169, 7
      %v2171 = vsub.s32 0, %v2170
      %v2172 = vrot.slane %v2168, %v2171
      %v2173 = vlaneseq
      %v2174 = vshrl.u32 %v2173, 7
      %v2175 = vsub.s32 1, %v2174
      %v2176 = vrot.slane %v2168, %v2175
      %v2177 = vlaneseq
      %v2178 = vshrl.u32 %v2177, 7
      %v2179 = vsub.s32 2, %v2178
      %v2180 = vrot.slane %v2168, %v2179
      %v2181 = vlaneseq
      %v2182 = vshrl.u32 %v2181, 7
      %v2183 = vsub.s32 3, %v2182
      %v2184 = vrot.slane %v2168, %v2183
      %v2185 = vlaneseq
      %v2186 = vshrl.u32 %v2185, 7
      %v2187 = vsub.s32 4, %v2186
      %v2188 = vrot.slane %v2168, %v2187
      %vm2189 = vcmp.eq.s32.totalorder %v2172, 1
      %vm2190 = vcmp.eq.s32.totalorder %v2176, 1
      %vm2191 = vcmp.eq.s32.totalorder %v2180, 1
      %vm2192 = vcmp.eq.s32.totalorder %v2184, 1
      %vm2193 = vcmp.eq.s32.totalorder %v2188, 1
      %vm2194 = vmpackc.low %vm2190, %vm2189
      %vm2195 = vmpackc.low %vm2192, %vm2191
      %vm2196 = vmpackc.low %vm2193, %vm2193
      %v2197 = vsel %vm2194, 65537, 0
      %v2198 = vsel %vm2195, 65537, 0
      %v2199 = vsel %vm2196, 65537, 0
      %v2200 = vlaneseq
      %v2201 = vshrl.u32 %v2200, 7
      %v2202 = vsub.s32 0, %v2201
      %v2203 = vrot.slane %v2197, %v2202
      %v2204 = vlaneseq
      %v2205 = vshrl.u32 %v2204, 7
      %v2206 = vsub.s32 4, %v2205
      %v2207 = vrot.slane %v2197, %v2206
      %v2208 = vlaneseq
      %v2209 = vshrl.u32 %v2208, 7
      %v2210 = vsub.s32 0, %v2209
      %v2211 = vrot.slane %v2198, %v2210
      %v2212 = vlaneseq
      %v2213 = vshrl.u32 %v2212, 7
      %v2214 = vsub.s32 4, %v2213
      %v2215 = vrot.slane %v2198, %v2214
      %v2216 = vlaneseq
      %v2217 = vshrl.u32 %v2216, 7
      %v2218 = vsub.s32 0, %v2217
      %v2219 = vrot.slane %v2199, %v2218
      %vm2220 = vcmp.ne.s16.totalorder %v2203, 0
      %vm2221 = vcmp.ne.s16.totalorder %v2207, 0
      %vm2222 = vcmp.ne.s16.totalorder %v2211, 0
      %vm2223 = vcmp.ne.s16.totalorder %v2215, 0
      %vm2224 = vcmp.ne.s16.totalorder %v2219, 0
      %v2225 = vsel %vm2220, %v445, 0
      %v2226 = vsel %vm2221, %v446, 0
      %v2227 = vsel %vm2222, %v447, 0
      %v2228 = vsel %vm2223, %v2163, 0
      %v2229 = vsel %vm2224, %v1404, 0
      %2230 = vst [vmem:[#allocation2 + $0xc8] sm:$0x3] %v2225
      %2231 = vst [vmem:[#allocation2 + $0xd0] sm:$0x3] %v2226
      %2232 = vst [vmem:[#allocation2 + $0xd8] sm:$0x3] %v2227
      %2233 = vst [vmem:[#allocation2 + $0xe0] sm:$0x3] %v2228
      %2234 = vst.msk [vmem:[#allocation2 + $0xe8] sm:$0x3] %vm315, %v2229
      %v2235 = vsel %vm557, %v556, %v1492
      %s2237 = scalar_lea.vmem %s3, 105
      %v2238 = vld [vmem:[%s2237] sm:$0x1f]
      %vm2239 = vcmp.gt.f32.partialorder %v2238, 0.5
      %v2240 = vsel %vm2239, 1, 0
      %v2241 = vlaneseq
      %v2242 = vshrl.u32 %v2241, 7
      %v2243 = vsub.s32 0, %v2242
      %v2244 = vrot.slane %v2240, %v2243
      %v2245 = vlaneseq
      %v2246 = vshrl.u32 %v2245, 7
      %v2247 = vsub.s32 1, %v2246
      %v2248 = vrot.slane %v2240, %v2247
      %v2249 = vlaneseq
      %v2250 = vshrl.u32 %v2249, 7
      %v2251 = vsub.s32 2, %v2250
      %v2252 = vrot.slane %v2240, %v2251
      %v2253 = vlaneseq
      %v2254 = vshrl.u32 %v2253, 7
      %v2255 = vsub.s32 3, %v2254
      %v2256 = vrot.slane %v2240, %v2255
      %v2257 = vlaneseq
      %v2258 = vshrl.u32 %v2257, 7
      %v2259 = vsub.s32 4, %v2258
      %v2260 = vrot.slane %v2240, %v2259
      %vm2261 = vcmp.eq.s32.totalorder %v2244, 1
      %vm2262 = vcmp.eq.s32.totalorder %v2248, 1
      %vm2263 = vcmp.eq.s32.totalorder %v2252, 1
      %vm2264 = vcmp.eq.s32.totalorder %v2256, 1
      %vm2265 = vcmp.eq.s32.totalorder %v2260, 1
      %vm2266 = vmpackc.low %vm2262, %vm2261
      %vm2267 = vmpackc.low %vm2264, %vm2263
      %vm2268 = vmpackc.low %vm2265, %vm2265
      %v2269 = vsel %vm2266, 65537, 0
      %v2270 = vsel %vm2267, 65537, 0
      %v2271 = vsel %vm2268, 65537, 0
      %v2272 = vlaneseq
      %v2273 = vshrl.u32 %v2272, 7
      %v2274 = vsub.s32 0, %v2273
      %v2275 = vrot.slane %v2269, %v2274
      %v2276 = vlaneseq
      %v2277 = vshrl.u32 %v2276, 7
      %v2278 = vsub.s32 4, %v2277
      %v2279 = vrot.slane %v2269, %v2278
      %v2280 = vlaneseq
      %v2281 = vshrl.u32 %v2280, 7
      %v2282 = vsub.s32 0, %v2281
      %v2283 = vrot.slane %v2270, %v2282
      %v2284 = vlaneseq
      %v2285 = vshrl.u32 %v2284, 7
      %v2286 = vsub.s32 4, %v2285
      %v2287 = vrot.slane %v2270, %v2286
      %v2288 = vlaneseq
      %v2289 = vshrl.u32 %v2288, 7
      %v2290 = vsub.s32 0, %v2289
      %v2291 = vrot.slane %v2271, %v2290
      %vm2292 = vcmp.ne.s16.totalorder %v2275, 0
      %vm2293 = vcmp.ne.s16.totalorder %v2279, 0
      %vm2294 = vcmp.ne.s16.totalorder %v2283, 0
      %vm2295 = vcmp.ne.s16.totalorder %v2287, 0
      %vm2296 = vcmp.ne.s16.totalorder %v2291, 0
      %v2297 = vsel %vm2292, %v558, 0
      %v2298 = vsel %vm2293, %v559, 0
      %v2299 = vsel %vm2294, %v560, 0
      %v2300 = vsel %vm2295, %v2235, 0
      %v2301 = vsel %vm2296, %v1509, 0
      %v2307 = vrot.slane %v2297, 6
      %v2308 = vrot.slane %v2298, 6
      %v2309 = vrot.slane %v2299, 6
      %v2310 = vrot.slane %v2300, 6
      %v2311 = vrot.slane %v2301, 6
      %2317 = vst [vmem:[#allocation2 + $0xc8] sm:$0xc] %v2307
      %2318 = vst [vmem:[#allocation2 + $0xd0] sm:$0xc] %v2308
      %2319 = vst [vmem:[#allocation2 + $0xd8] sm:$0xc] %v2309
      %2320 = vst [vmem:[#allocation2 + $0xe0] sm:$0xc] %v2310
      %2321 = vst.msk [vmem:[#allocation2 + $0xe8] sm:$0xc] %vm428, %v2311
      %2322 = vrot.lane.b32.xlu0 %v214, 64
      %v2323 = vpop.permute.xlu0 %2322
      %v2324 = vsel %vm664, %v663, %v2323
      %s2326 = scalar_lea.vmem %s3, 110
      %v2327 = vld [vmem:[%s2326] sm:$0x1f]
      %vm2328 = vcmp.gt.f32.partialorder %v2327, 0.5
      %v2329 = vsel %vm2328, 1, 0
      %v2330 = vlaneseq
      %v2331 = vshrl.u32 %v2330, 7
      %v2332 = vsub.s32 0, %v2331
      %v2333 = vrot.slane %v2329, %v2332
      %v2334 = vlaneseq
      %v2335 = vshrl.u32 %v2334, 7
      %v2336 = vsub.s32 1, %v2335
      %v2337 = vrot.slane %v2329, %v2336
      %v2338 = vlaneseq
      %v2339 = vshrl.u32 %v2338, 7
      %v2340 = vsub.s32 2, %v2339
      %v2341 = vrot.slane %v2329, %v2340
      %v2342 = vlaneseq
      %v2343 = vshrl.u32 %v2342, 7
      %v2344 = vsub.s32 3, %v2343
      %v2345 = vrot.slane %v2329, %v2344
      %v2346 = vlaneseq
      %v2347 = vshrl.u32 %v2346, 7
      %v2348 = vsub.s32 4, %v2347
      %v2349 = vrot.slane %v2329, %v2348
      %vm2350 = vcmp.eq.s32.totalorder %v2333, 1
      %vm2351 = vcmp.eq.s32.totalorder %v2337, 1
      %vm2352 = vcmp.eq.s32.totalorder %v2341, 1
      %vm2353 = vcmp.eq.s32.totalorder %v2345, 1
      %vm2354 = vcmp.eq.s32.totalorder %v2349, 1
      %vm2355 = vmpackc.low %vm2351, %vm2350
      %vm2356 = vmpackc.low %vm2353, %vm2352
      %vm2357 = vmpackc.low %vm2354, %vm2354
      %v2358 = vsel %vm2355, 65537, 0
      %v2359 = vsel %vm2356, 65537, 0
      %v2360 = vsel %vm2357, 65537, 0
      %v2361 = vlaneseq
      %v2362 = vshrl.u32 %v2361, 7
      %v2363 = vsub.s32 0, %v2362
      %v2364 = vrot.slane %v2358, %v2363
      %v2365 = vlaneseq
      %v2366 = vshrl.u32 %v2365, 7
      %v2367 = vsub.s32 4, %v2366
      %v2368 = vrot.slane %v2358, %v2367
      %v2369 = vlaneseq
      %v2370 = vshrl.u32 %v2369, 7
      %v2371 = vsub.s32 0, %v2370
      %v2372 = vrot.slane %v2359, %v2371
      %v2373 = vlaneseq
      %v2374 = vshrl.u32 %v2373, 7
      %v2375 = vsub.s32 4, %v2374
      %v2376 = vrot.slane %v2359, %v2375
      %v2377 = vlaneseq
      %v2378 = vshrl.u32 %v2377, 7
      %v2379 = vsub.s32 0, %v2378
      %v2380 = vrot.slane %v2360, %v2379
      %vm2381 = vcmp.ne.s16.totalorder %v2364, 0
      %vm2382 = vcmp.ne.s16.totalorder %v2368, 0
      %vm2383 = vcmp.ne.s16.totalorder %v2372, 0
      %vm2384 = vcmp.ne.s16.totalorder %v2376, 0
      %vm2385 = vcmp.ne.s16.totalorder %v2380, 0
      %v2386 = vsel %vm2381, %v665, 0
      %v2387 = vsel %vm2382, %v666, 0
      %v2388 = vsel %vm2383, %v667, 0
      %v2389 = vsel %vm2384, %v2324, 0
      %v2390 = vsel %vm2385, %v210, 0
      %v2396 = vrot.slane %v2386, 4
      %v2397 = vrot.slane %v2387, 4
      %v2398 = vrot.slane %v2388, 4
      %v2399 = vrot.slane %v2389, 4
      %v2400 = vrot.slane %v2390, 4
      %2406 = vst [vmem:[#allocation2 + $0xc8] sm:$0x30] %v2396
      %2407 = vst [vmem:[#allocation2 + $0xd0] sm:$0x30] %v2397
      %2408 = vst [vmem:[#allocation2 + $0xd8] sm:$0x30] %v2398
      %2409 = vst [vmem:[#allocation2 + $0xe0] sm:$0x30] %v2399
      %2410 = vst.msk [vmem:[#allocation2 + $0xe8] sm:$0x30] %vm541, %v2400
      %vm2412 = vcmask 1039360
      %v2415 = vsel %vm2412, %v763, %v1597
      %s2417 = scalar_lea.vmem %s3, 115
      %v2418 = vld [vmem:[%s2417] sm:$0x1f]
      %vm2419 = vcmp.gt.f32.partialorder %v2418, 0.5
      %v2420 = vsel %vm2419, 1, 0
      %v2421 = vlaneseq
      %v2422 = vshrl.u32 %v2421, 7
      %v2423 = vsub.s32 0, %v2422
      %v2424 = vrot.slane %v2420, %v2423
      %v2425 = vlaneseq
      %v2426 = vshrl.u32 %v2425, 7
      %v2427 = vsub.s32 1, %v2426
      %v2428 = vrot.slane %v2420, %v2427
      %v2429 = vlaneseq
      %v2430 = vshrl.u32 %v2429, 7
      %v2431 = vsub.s32 2, %v2430
      %v2432 = vrot.slane %v2420, %v2431
      %v2433 = vlaneseq
      %v2434 = vshrl.u32 %v2433, 7
      %v2435 = vsub.s32 3, %v2434
      %v2436 = vrot.slane %v2420, %v2435
      %v2437 = vlaneseq
      %v2438 = vshrl.u32 %v2437, 7
      %v2439 = vsub.s32 4, %v2438
      %v2440 = vrot.slane %v2420, %v2439
      %vm2441 = vcmp.eq.s32.totalorder %v2424, 1
      %vm2442 = vcmp.eq.s32.totalorder %v2428, 1
      %vm2443 = vcmp.eq.s32.totalorder %v2432, 1
      %vm2444 = vcmp.eq.s32.totalorder %v2436, 1
      %vm2445 = vcmp.eq.s32.totalorder %v2440, 1
      %vm2446 = vmpackc.low %vm2442, %vm2441
      %vm2447 = vmpackc.low %vm2444, %vm2443
      %vm2448 = vmpackc.low %vm2445, %vm2445
      %v2449 = vsel %vm2446, 65537, 0
      %v2450 = vsel %vm2447, 65537, 0
      %v2451 = vsel %vm2448, 65537, 0
      %v2452 = vlaneseq
      %v2453 = vshrl.u32 %v2452, 7
      %v2454 = vsub.s32 0, %v2453
      %v2455 = vrot.slane %v2449, %v2454
      %v2456 = vlaneseq
      %v2457 = vshrl.u32 %v2456, 7
      %v2458 = vsub.s32 4, %v2457
      %v2459 = vrot.slane %v2449, %v2458
      %v2460 = vlaneseq
      %v2461 = vshrl.u32 %v2460, 7
      %v2462 = vsub.s32 0, %v2461
      %v2463 = vrot.slane %v2450, %v2462
      %v2464 = vlaneseq
      %v2465 = vshrl.u32 %v2464, 7
      %v2466 = vsub.s32 4, %v2465
      %v2467 = vrot.slane %v2450, %v2466
      %v2468 = vlaneseq
      %v2469 = vshrl.u32 %v2468, 7
      %v2470 = vsub.s32 0, %v2469
      %v2471 = vrot.slane %v2451, %v2470
      %vm2472 = vcmp.ne.s16.totalorder %v2455, 0
      %vm2473 = vcmp.ne.s16.totalorder %v2459, 0
      %vm2474 = vcmp.ne.s16.totalorder %v2463, 0
      %vm2475 = vcmp.ne.s16.totalorder %v2467, 0
      %vm2476 = vcmp.ne.s16.totalorder %v2471, 0
      %v2477 = vsel %vm2472, %v760, 0
      %v2478 = vsel %vm2473, %v761, 0
      %v2479 = vsel %vm2474, %v762, 0
      %v2480 = vsel %vm2475, %v2415, 0
      %v2481 = vsel %vm2476, %v1597, 0
      %v2487 = vrot.slane %v2477, 2
      %v2488 = vrot.slane %v2478, 2
      %v2489 = vrot.slane %v2479, 2
      %v2490 = vrot.slane %v2480, 2
      %v2491 = vrot.slane %v2481, 2
      %2497 = vst [vmem:[#allocation2 + $0xc8] sm:$0xc0] %v2487
      %2498 = vst [vmem:[#allocation2 + $0xd0] sm:$0xc0] %v2488
      %2499 = vst [vmem:[#allocation2 + $0xd8] sm:$0xc0] %v2489
      %2500 = vst [vmem:[#allocation2 + $0xe0] sm:$0xc0] %v2490
      %2501 = vst.msk [vmem:[#allocation2 + $0xe8] sm:$0xc0] %vm654, %v2491
      %vm2503 = vcmask 990208
      %v2506 = vsel %vm2503, %v874, %v1699
      %s2508 = scalar_lea.vmem %s3, 120
      %v2509 = vld [vmem:[%s2508] sm:$0x1f]
      %vm2510 = vcmp.gt.f32.partialorder %v2509, 0.5
      %v2511 = vsel %vm2510, 1, 0
      %v2512 = vlaneseq
      %v2513 = vshrl.u32 %v2512, 7
      %v2514 = vsub.s32 0, %v2513
      %v2515 = vrot.slane %v2511, %v2514
      %v2516 = vlaneseq
      %v2517 = vshrl.u32 %v2516, 7
      %v2518 = vsub.s32 1, %v2517
      %v2519 = vrot.slane %v2511, %v2518
      %v2520 = vlaneseq
      %v2521 = vshrl.u32 %v2520, 7
      %v2522 = vsub.s32 2, %v2521
      %v2523 = vrot.slane %v2511, %v2522
      %v2524 = vlaneseq
      %v2525 = vshrl.u32 %v2524, 7
      %v2526 = vsub.s32 3, %v2525
      %v2527 = vrot.slane %v2511, %v2526
      %v2528 = vlaneseq
      %v2529 = vshrl.u32 %v2528, 7
      %v2530 = vsub.s32 4, %v2529
      %v2531 = vrot.slane %v2511, %v2530
      %vm2532 = vcmp.eq.s32.totalorder %v2515, 1
      %vm2533 = vcmp.eq.s32.totalorder %v2519, 1
      %vm2534 = vcmp.eq.s32.totalorder %v2523, 1
      %vm2535 = vcmp.eq.s32.totalorder %v2527, 1
      %vm2536 = vcmp.eq.s32.totalorder %v2531, 1
      %vm2537 = vmpackc.low %vm2533, %vm2532
      %vm2538 = vmpackc.low %vm2535, %vm2534
      %vm2539 = vmpackc.low %vm2536, %vm2536
      %v2540 = vsel %vm2537, 65537, 0
      %v2541 = vsel %vm2538, 65537, 0
      %v2542 = vsel %vm2539, 65537, 0
      %v2543 = vlaneseq
      %v2544 = vshrl.u32 %v2543, 7
      %v2545 = vsub.s32 0, %v2544
      %v2546 = vrot.slane %v2540, %v2545
      %v2547 = vlaneseq
      %v2548 = vshrl.u32 %v2547, 7
      %v2549 = vsub.s32 4, %v2548
      %v2550 = vrot.slane %v2540, %v2549
      %v2551 = vlaneseq
      %v2552 = vshrl.u32 %v2551, 7
      %v2553 = vsub.s32 0, %v2552
      %v2554 = vrot.slane %v2541, %v2553
      %v2555 = vlaneseq
      %v2556 = vshrl.u32 %v2555, 7
      %v2557 = vsub.s32 4, %v2556
      %v2558 = vrot.slane %v2541, %v2557
      %v2559 = vlaneseq
      %v2560 = vshrl.u32 %v2559, 7
      %v2561 = vsub.s32 0, %v2560
      %v2562 = vrot.slane %v2542, %v2561
      %vm2563 = vcmp.ne.s16.totalorder %v2546, 0
      %vm2564 = vcmp.ne.s16.totalorder %v2550, 0
      %vm2565 = vcmp.ne.s16.totalorder %v2554, 0
      %vm2566 = vcmp.ne.s16.totalorder %v2558, 0
      %vm2567 = vcmp.ne.s16.totalorder %v2562, 0
      %v2568 = vsel %vm2563, %v871, 0
      %v2569 = vsel %vm2564, %v872, 0
      %v2570 = vsel %vm2565, %v873, 0
      %v2571 = vsel %vm2566, %v2506, 0
      %v2572 = vsel %vm2567, %v1699, 0
      %2573 = vst [vmem:[#allocation2 + $0xf0] sm:$0x3] %v2568
      %2574 = vst [vmem:[#allocation2 + $0xf8] sm:$0x3] %v2569
      %2575 = vst [vmem:[#allocation2 + $0x100] sm:$0x3] %v2570
      %2576 = vst [vmem:[#allocation2 + $0x108] sm:$0x3] %v2571
      %2577 = vst.msk [vmem:[#allocation2 + $0x110] sm:$0x3] %vm315, %v2572
      %vm2579 = vcmask 982016
      %v2582 = vsel %vm2579, %v985, %v1801
      %s2584 = scalar_lea.vmem %s3, 125
      %v2585 = vld [vmem:[%s2584] sm:$0x1f]
      %vm2586 = vcmp.gt.f32.partialorder %v2585, 0.5
      %v2587 = vsel %vm2586, 1, 0
      %v2588 = vlaneseq
      %v2589 = vshrl.u32 %v2588, 7
      %v2590 = vsub.s32 0, %v2589
      %v2591 = vrot.slane %v2587, %v2590
      %v2592 = vlaneseq
      %v2593 = vshrl.u32 %v2592, 7
      %v2594 = vsub.s32 1, %v2593
      %v2595 = vrot.slane %v2587, %v2594
      %v2596 = vlaneseq
      %v2597 = vshrl.u32 %v2596, 7
      %v2598 = vsub.s32 2, %v2597
      %v2599 = vrot.slane %v2587, %v2598
      %v2600 = vlaneseq
      %v2601 = vshrl.u32 %v2600, 7
      %v2602 = vsub.s32 3, %v2601
      %v2603 = vrot.slane %v2587, %v2602
      %v2604 = vlaneseq
      %v2605 = vshrl.u32 %v2604, 7
      %v2606 = vsub.s32 4, %v2605
      %v2607 = vrot.slane %v2587, %v2606
      %vm2608 = vcmp.eq.s32.totalorder %v2591, 1
      %vm2609 = vcmp.eq.s32.totalorder %v2595, 1
      %vm2610 = vcmp.eq.s32.totalorder %v2599, 1
      %vm2611 = vcmp.eq.s32.totalorder %v2603, 1
      %vm2612 = vcmp.eq.s32.totalorder %v2607, 1
      %vm2613 = vmpackc.low %vm2609, %vm2608
      %vm2614 = vmpackc.low %vm2611, %vm2610
      %vm2615 = vmpackc.low %vm2612, %vm2612
      %v2616 = vsel %vm2613, 65537, 0
      %v2617 = vsel %vm2614, 65537, 0
      %v2618 = vsel %vm2615, 65537, 0
      %v2619 = vlaneseq
      %v2620 = vshrl.u32 %v2619, 7
      %v2621 = vsub.s32 0, %v2620
      %v2622 = vrot.slane %v2616, %v2621
      %v2623 = vlaneseq
      %v2624 = vshrl.u32 %v2623, 7
      %v2625 = vsub.s32 4, %v2624
      %v2626 = vrot.slane %v2616, %v2625
      %v2627 = vlaneseq
      %v2628 = vshrl.u32 %v2627, 7
      %v2629 = vsub.s32 0, %v2628
      %v2630 = vrot.slane %v2617, %v2629
      %v2631 = vlaneseq
      %v2632 = vshrl.u32 %v2631, 7
      %v2633 = vsub.s32 4, %v2632
      %v2634 = vrot.slane %v2617, %v2633
      %v2635 = vlaneseq
      %v2636 = vshrl.u32 %v2635, 7
      %v2637 = vsub.s32 0, %v2636
      %v2638 = vrot.slane %v2618, %v2637
      %vm2639 = vcmp.ne.s16.totalorder %v2622, 0
      %vm2640 = vcmp.ne.s16.totalorder %v2626, 0
      %vm2641 = vcmp.ne.s16.totalorder %v2630, 0
      %vm2642 = vcmp.ne.s16.totalorder %v2634, 0
      %vm2643 = vcmp.ne.s16.totalorder %v2638, 0
      %v2644 = vsel %vm2639, %v982, 0
      %v2645 = vsel %vm2640, %v983, 0
      %v2646 = vsel %vm2641, %v984, 0
      %v2647 = vsel %vm2642, %v2582, 0
      %v2648 = vsel %vm2643, %v1801, 0
      %v2654 = vrot.slane %v2644, 6
      %v2655 = vrot.slane %v2645, 6
      %v2656 = vrot.slane %v2646, 6
      %v2657 = vrot.slane %v2647, 6
      %v2658 = vrot.slane %v2648, 6
      %2664 = vst [vmem:[#allocation2 + $0xf0] sm:$0xc] %v2654
      %2665 = vst [vmem:[#allocation2 + $0xf8] sm:$0xc] %v2655
      %2666 = vst [vmem:[#allocation2 + $0x100] sm:$0xc] %v2656
      %2667 = vst [vmem:[#allocation2 + $0x108] sm:$0xc] %v2657
      %2668 = vst.msk [vmem:[#allocation2 + $0x110] sm:$0xc] %vm428, %v2658
      %vm2670 = vcmask 973824
      %v2673 = vsel %vm2670, %v1096, %v1888
      %s2675 = scalar_lea.vmem %s3, 130
      %v2676 = vld [vmem:[%s2675] sm:$0x1f]
      %vm2677 = vcmp.gt.f32.partialorder %v2676, 0.5
      %v2678 = vsel %vm2677, 1, 0
      %v2679 = vlaneseq
      %v2680 = vshrl.u32 %v2679, 7
      %v2681 = vsub.s32 0, %v2680
      %v2682 = vrot.slane %v2678, %v2681
      %v2683 = vlaneseq
      %v2684 = vshrl.u32 %v2683, 7
      %v2685 = vsub.s32 1, %v2684
      %v2686 = vrot.slane %v2678, %v2685
      %v2687 = vlaneseq
      %v2688 = vshrl.u32 %v2687, 7
      %v2689 = vsub.s32 2, %v2688
      %v2690 = vrot.slane %v2678, %v2689
      %v2691 = vlaneseq
      %v2692 = vshrl.u32 %v2691, 7
      %v2693 = vsub.s32 3, %v2692
      %v2694 = vrot.slane %v2678, %v2693
      %v2695 = vlaneseq
      %v2696 = vshrl.u32 %v2695, 7
      %v2697 = vsub.s32 4, %v2696
      %v2698 = vrot.slane %v2678, %v2697
      %vm2699 = vcmp.eq.s32.totalorder %v2682, 1
      %vm2700 = vcmp.eq.s32.totalorder %v2686, 1
      %vm2701 = vcmp.eq.s32.totalorder %v2690, 1
      %vm2702 = vcmp.eq.s32.totalorder %v2694, 1
      %vm2703 = vcmp.eq.s32.totalorder %v2698, 1
      %vm2704 = vmpackc.low %vm2700, %vm2699
      %vm2705 = vmpackc.low %vm2702, %vm2701
      %vm2706 = vmpackc.low %vm2703, %vm2703
      %v2707 = vsel %vm2704, 65537, 0
      %v2708 = vsel %vm2705, 65537, 0
      %v2709 = vsel %vm2706, 65537, 0
      %v2710 = vlaneseq
      %v2711 = vshrl.u32 %v2710, 7
      %v2712 = vsub.s32 0, %v2711
      %v2713 = vrot.slane %v2707, %v2712
      %v2714 = vlaneseq
      %v2715 = vshrl.u32 %v2714, 7
      %v2716 = vsub.s32 4, %v2715
      %v2717 = vrot.slane %v2707, %v2716
      %v2718 = vlaneseq
      %v2719 = vshrl.u32 %v2718, 7
      %v2720 = vsub.s32 0, %v2719
      %v2721 = vrot.slane %v2708, %v2720
      %v2722 = vlaneseq
      %v2723 = vshrl.u32 %v2722, 7
      %v2724 = vsub.s32 4, %v2723
      %v2725 = vrot.slane %v2708, %v2724
      %v2726 = vlaneseq
      %v2727 = vshrl.u32 %v2726, 7
      %v2728 = vsub.s32 0, %v2727
      %v2729 = vrot.slane %v2709, %v2728
      %vm2730 = vcmp.ne.s16.totalorder %v2713, 0
      %vm2731 = vcmp.ne.s16.totalorder %v2717, 0
      %vm2732 = vcmp.ne.s16.totalorder %v2721, 0
      %vm2733 = vcmp.ne.s16.totalorder %v2725, 0
      %vm2734 = vcmp.ne.s16.totalorder %v2729, 0
      %v2735 = vsel %vm2730, %v1093, 0
      %v2736 = vsel %vm2731, %v1094, 0
      %v2737 = vsel %vm2732, %v1095, 0
      %v2738 = vsel %vm2733, %v2673, 0
      %v2739 = vsel %vm2734, %v1888, 0
      %v2745 = vrot.slane %v2735, 4
      %v2746 = vrot.slane %v2736, 4
      %v2747 = vrot.slane %v2737, 4
      %v2748 = vrot.slane %v2738, 4
      %v2749 = vrot.slane %v2739, 4
      %2755 = vst [vmem:[#allocation2 + $0xf0] sm:$0x30] %v2745
      %2756 = vst [vmem:[#allocation2 + $0xf8] sm:$0x30] %v2746
      %2757 = vst [vmem:[#allocation2 + $0x100] sm:$0x30] %v2747
      %2758 = vst [vmem:[#allocation2 + $0x108] sm:$0x30] %v2748
      %2759 = vst.msk [vmem:[#allocation2 + $0x110] sm:$0x30] %vm541, %v2749
      %2760 = vst [vmem:[#allocation2 + $0xf0] sm:$0xc0] 0
      %2761 = vst [vmem:[#allocation2 + $0xf8] sm:$0xc0] 0
      %2762 = vst [vmem:[#allocation2 + $0x100] sm:$0xc0] 0
      %2763 = vst [vmem:[#allocation2 + $0x108] sm:$0xc0] 0
      %2764 = vst.msk [vmem:[#allocation2 + $0x110] sm:$0xc0] %vm654, 0
      %v2765 = vld [vmem:[%s1] sm:$0xf]
      %v2766 = vld [vmem:[%s1 + $0x4] sm:$0xf]
      %v2767 = vld [vmem:[#allocation2] sm:$0xff]
      %v2768 = vld [vmem:[#allocation2 + $0x8] sm:$0xff]
      %v2769 = vld [vmem:[#allocation2 + $0x10] sm:$0xff]
      %v2770 = vld [vmem:[#allocation2 + $0x18] sm:$0xff]
      %v2771 = vld [vmem:[#allocation2 + $0x20] sm:$0xff]
      %v2772 = vld [vmem:[#allocation2 + $0x28] sm:$0xff]
      %v2773 = vld [vmem:[#allocation2 + $0x30] sm:$0xff]
      %v2774 = vld [vmem:[#allocation2 + $0x38] sm:$0xff]
      %v2775 = vld [vmem:[#allocation2 + $0x40] sm:$0xff]
      %v2776 = vld [vmem:[#allocation2 + $0x48] sm:$0xff]
      %v2777 = vld [vmem:[#allocation2 + $0x50] sm:$0xff]
      %v2778 = vld [vmem:[#allocation2 + $0x58] sm:$0xff]
      %v2779 = vld [vmem:[#allocation2 + $0x60] sm:$0xff]
      %v2780 = vld [vmem:[#allocation2 + $0x68] sm:$0xff]
      %v2781 = vld [vmem:[#allocation2 + $0x70] sm:$0xff]
      %v2782 = vld [vmem:[#allocation2 + $0x78] sm:$0xff]
      %v2783 = vld [vmem:[#allocation2 + $0x80] sm:$0xff]
      %v2784 = vld [vmem:[#allocation2 + $0x88] sm:$0xff]
      %v2785 = vld [vmem:[#allocation2 + $0x90] sm:$0xff]
      %v2786 = vld [vmem:[#allocation2 + $0x98] sm:$0xff]
      %v2787 = vld [vmem:[#allocation2 + $0xa0] sm:$0xff]
      %v2788 = vld [vmem:[#allocation2 + $0xa8] sm:$0xff]
      %v2789 = vld [vmem:[#allocation2 + $0xb0] sm:$0xff]
      %v2790 = vld [vmem:[#allocation2 + $0xb8] sm:$0xff]
      %v2791 = vld [vmem:[#allocation2 + $0xc0] sm:$0xff]
      %v2792 = vld [vmem:[#allocation2 + $0xc8] sm:$0xff]
      %v2793 = vld [vmem:[#allocation2 + $0xd0] sm:$0xff]
      %v2794 = vld [vmem:[#allocation2 + $0xd8] sm:$0xff]
      %v2795 = vld [vmem:[#allocation2 + $0xe0] sm:$0xff]
      %v2796 = vld [vmem:[#allocation2 + $0xe8] sm:$0xff]
      %v2797 = vld [vmem:[#allocation2 + $0xf0] sm:$0xff]
      %v2798 = vld [vmem:[#allocation2 + $0xf8] sm:$0xff]
      %v2799 = vld [vmem:[#allocation2 + $0x100] sm:$0xff]
      %v2800 = vld [vmem:[#allocation2 + $0x108] sm:$0xff]
      %v2801 = vld [vmem:[#allocation2 + $0x110] sm:$0xff]
      %v2802 = vld [vmem:[%s2] sm:$0xff]
      %v2803 = vld [vmem:[%s2 + $0x8] sm:$0xff]
      %2805 = vset.pattern.permute.xlu0 0
      %2806 = vperm.xlu0 %2805, %v2802
      %v2807 = vpop.permute.xlu0 %2806
      %2810 = vset.pattern.permute.xlu0 0
      %2811 = vperm.xlu0 %2810, %v2803
      %v2812 = vpop.permute.xlu0 %2811
      %v2816 = vunpack.c.l.b16 %v2765
      %v2817 = vunpack.c.l.b16 %v2766
      %v2818 = vpack.c.b16 %v2817, %v2816
      %vm2819 = vcmask 916480
      %v2821 = vsel %vm2819, %v2818, 0
      %2823 = vmatprep.subr.bf16.mxu0 %v2768
      %2824 = vmatpush1.bf16.msra.mxu0 %v2767
      %2825 = vmatprep.subr.bf16.mxu0 %v2773
      %2826 = vmatpush1.bf16.msra.mxu0 %v2772
      %2827 = vmatprep.subr.bf16.mxu0 %v2778
      %2828 = vmatpush1.bf16.msra.mxu0 %v2777
      %2829 = vmatprep.subr.bf16.mxu0 %v2783
      %2830 = vmatpush1.bf16.msra.mxu0 %v2782
      %2831 = vmatprep.subr.bf16.mxu0 %v2788
      %2832 = vmatpush1.bf16.msra.mxu0 %v2787
      %2833 = vmatprep.subr.bf16.mxu0 %v2793
      %2834 = vmatpush1.bf16.msra.mxu0 %v2792
      %2835 = vmatprep.subr.bf16.mxu0 %v2798
      %2836 = vmatpush1.bf16.msra.mxu0 %v2797
      %2837 = vmatprep.subr.bf16.mxu0 0
      %2838 = vmatpush1.bf16.msra.mxu0 0
      %2839 = vmatprep.subr.bf16.mxu0 0
      %2840 = vmatpush1.bf16.msra.mxu0 0
      %2841 = vmatprep.subr.bf16.mxu0 0
      %2842 = vmatpush1.bf16.msra.mxu0 0
      %2843 = vmatprep.subr.bf16.mxu0 0
      %2844 = vmatpush1.bf16.msra.mxu0 0
      %2845 = vmatprep.subr.bf16.mxu0 0
      %2846 = vmatpush1.bf16.msra.mxu0 0
      %2847 = vmatprep.subr.bf16.mxu0 0
      %2848 = vmatpush1.bf16.msra.mxu0 0
      %2849 = vmatprep.subr.bf16.mxu0 0
      %2850 = vmatpush1.bf16.msra.mxu0 0
      %2851 = vmatprep.subr.bf16.mxu0 0
      %2852 = vmatpush1.bf16.msra.mxu0 0
      %2853 = vmatprep.subr.bf16.mxu0 0
      %2854 = vmatpush1.bf16.msra.mxu0 0
      %2855 = vmatprep.mubr.bf16.mxu0 0
      %2856 = vmatmul.mubr.bf16.gmra.mrb[0].mxu0 %v2821
      %v2857 = vpop.f32.mrb[0].mxu0
      %v2858 = vadd.f32 %v2807, %v2857
      %v2859 = vpop.f32.mrb[0].mxu0
      %v2860 = vadd.f32 %v2807, %v2859
      %v2861 = vpop.f32.mrb[0].mxu0
      %v2862 = vadd.f32 %v2812, %v2861
      %v2863 = vpop.f32.mrb[0].mxu0
      %v2864 = vadd.f32 %v2812, %v2863
      %2865 = vdwg.mxu0
      %2866 = vmatprep.subr.bf16.mxu0 %v2770
      %2867 = vmatpush1.bf16.msra.mxu0 %v2769
      %2868 = vmatprep.subr.bf16.mxu0 %v2775
      %2869 = vmatpush1.bf16.msra.mxu0 %v2774
      %2870 = vmatprep.subr.bf16.mxu0 %v2780
      %2871 = vmatpush1.bf16.msra.mxu0 %v2779
      %2872 = vmatprep.subr.bf16.mxu0 %v2785
      %2873 = vmatpush1.bf16.msra.mxu0 %v2784
      %2874 = vmatprep.subr.bf16.mxu0 %v2790
      %2875 = vmatpush1.bf16.msra.mxu0 %v2789
      %2876 = vmatprep.subr.bf16.mxu0 %v2795
      %2877 = vmatpush1.bf16.msra.mxu0 %v2794
      %2878 = vmatprep.subr.bf16.mxu0 %v2800
      %2879 = vmatpush1.bf16.msra.mxu0 %v2799
      %2880 = vmatprep.subr.bf16.mxu0 0
      %2881 = vmatpush1.bf16.msra.mxu0 0
      %2882 = vmatprep.subr.bf16.mxu0 0
      %2883 = vmatpush1.bf16.msra.mxu0 0
      %2884 = vmatprep.subr.bf16.mxu0 0
      %2885 = vmatpush1.bf16.msra.mxu0 0
      %2886 = vmatprep.subr.bf16.mxu0 0
      %2887 = vmatpush1.bf16.msra.mxu0 0
      %2888 = vmatprep.subr.bf16.mxu0 0
      %2889 = vmatpush1.bf16.msra.mxu0 0
      %2890 = vmatprep.subr.bf16.mxu0 0
      %2891 = vmatpush1.bf16.msra.mxu0 0
      %2892 = vmatprep.subr.bf16.mxu0 0
      %2893 = vmatpush1.bf16.msra.mxu0 0
      %2894 = vmatprep.subr.bf16.mxu0 0
      %2895 = vmatpush1.bf16.msra.mxu0 0
      %2896 = vmatprep.subr.bf16.mxu0 0
      %2897 = vmatpush1.bf16.msra.mxu0 0
      %2898 = vmatprep.mubr.bf16.mxu0 0
      %2899 = vmatmul.mubr.bf16.gmra.mrb[0].mxu0 %v2821
      %v2900 = vpop.f32.mrb[0].mxu0
      %v2901 = vadd.f32 %v2807, %v2900
      %v2902 = vpop.f32.mrb[0].mxu0
      %v2903 = vadd.f32 %v2807, %v2902
      %v2904 = vpop.f32.mrb[0].mxu0
      %v2905 = vadd.f32 %v2812, %v2904
      %v2906 = vpop.f32.mrb[0].mxu0
      %v2907 = vadd.f32 %v2812, %v2906
      %2908 = vdwg.mxu0
      %2909 = vmatprep.subr.bf16.mxu0 0
      %2910 = vmatpush1.bf16.msra.mxu0 %v2771
      %2911 = vmatprep.subr.bf16.mxu0 0
      %2912 = vmatpush1.bf16.msra.mxu0 %v2776
      %2913 = vmatprep.subr.bf16.mxu0 0
      %2914 = vmatpush1.bf16.msra.mxu0 %v2781
      %2915 = vmatprep.subr.bf16.mxu0 0
      %2916 = vmatpush1.bf16.msra.mxu0 %v2786
      %2917 = vmatprep.subr.bf16.mxu0 0
      %2918 = vmatpush1.bf16.msra.mxu0 %v2791
      %2919 = vmatprep.subr.bf16.mxu0 0
      %2920 = vmatpush1.bf16.msra.mxu0 %v2796
      %2921 = vmatprep.subr.bf16.mxu0 0
      %2922 = vmatpush1.bf16.msra.mxu0 %v2801
      %2923 = vmatprep.subr.bf16.mxu0 0
      %2924 = vmatpush1.bf16.msra.mxu0 0
      %2925 = vmatprep.subr.bf16.mxu0 0
      %2926 = vmatpush1.bf16.msra.mxu0 0
      %2927 = vmatprep.subr.bf16.mxu0 0
      %2928 = vmatpush1.bf16.msra.mxu0 0
      %2929 = vmatprep.subr.bf16.mxu0 0
      %2930 = vmatpush1.bf16.msra.mxu0 0
      %2931 = vmatprep.subr.bf16.mxu0 0
      %2932 = vmatpush1.bf16.msra.mxu0 0
      %2933 = vmatprep.subr.bf16.mxu0 0
      %2934 = vmatpush1.bf16.msra.mxu0 0
      %2935 = vmatprep.subr.bf16.mxu0 0
      %2936 = vmatpush1.bf16.msra.mxu0 0
      %2937 = vmatprep.subr.bf16.mxu0 0
      %2938 = vmatpush1.bf16.msra.mxu0 0
      %2939 = vmatprep.subr.bf16.mxu0 0
      %2940 = vmatpush1.bf16.msra.mxu0 0
      %2941 = vmatprep.mubr.bf16.mxu0 0
      %2942 = vmatmul.mubr.bf16.gmra.mrb[0].mxu0 %v2821
      %v2943 = vpop.f32.mrb[0].mxu0
      %v2944 = vadd.f32 %v2807, %v2943
      %v2945 = vpop.f32.mrb[0].mxu0
      %v2946 = vpop.f32.mrb[0].mxu0
      %v2947 = vadd.f32 %v2812, %v2946
      %v2948 = vpop.f32.mrb[0].mxu0
      %2949 = vdwg.mxu0
      %vm2950 = vcmp.ge.f32.partialorder %v2858, 0.0
      %vm2951 = vcmp.ge.f32.partialorder %v2860, 0.0
      %vm2952 = vcmp.ge.f32.partialorder %v2901, 0.0
      %vm2953 = vcmp.ge.f32.partialorder %v2903, 0.0
      %vm2954 = vcmp.ge.f32.partialorder %v2944, 0.0
      %vm2955 = vcmp.ge.f32.partialorder %v2862, 0.0
      %vm2956 = vcmp.ge.f32.partialorder %v2864, 0.0
      %vm2957 = vcmp.ge.f32.partialorder %v2905, 0.0
      %vm2958 = vcmp.ge.f32.partialorder %v2907, 0.0
      %vm2959 = vcmp.ge.f32.partialorder %v2947, 0.0
      %s2960 = scalar_lea.vmem %s2, 16
      %v2961 = vld [vmem:[%s2960] sm:$0xff]
      %v2962 = vld [vmem:[%s2960 + $0x8] sm:$0xff]
      %2964 = vset.pattern.permute.xlu0 0
      %2965 = vperm.xlu0 %2964, %v2961
      %v2966 = vpop.permute.xlu0 %2965
      %2969 = vset.pattern.permute.xlu0 0
      %2970 = vperm.xlu0 %2969, %v2962
      %v2971 = vpop.permute.xlu0 %2970
      %v2973 = vmul.f32 %v2966, %v2858
      %v2974 = vmul.f32 %v2966, %v2860
      %v2975 = vmul.f32 %v2966, %v2901
      %v2976 = vmul.f32 %v2966, %v2903
      %v2977 = vmul.f32 %v2966, %v2944
      %v2978 = vmul.f32 %v2971, %v2862
      %v2979 = vmul.f32 %v2971, %v2864
      %v2980 = vmul.f32 %v2971, %v2905
      %v2981 = vmul.f32 %v2971, %v2907
      %v2982 = vmul.f32 %v2971, %v2947
      %v2983 = vsel %vm2950, %v2858, %v2973
      %v2984 = vsel %vm2951, %v2860, %v2974
      %v2985 = vsel %vm2952, %v2901, %v2975
      %v2986 = vsel %vm2953, %v2903, %v2976
      %v2987 = vsel %vm2954, %v2944, %v2977
      %v2988 = vsel %vm2955, %v2862, %v2978
      %v2989 = vsel %vm2956, %v2864, %v2979
      %v2990 = vsel %vm2957, %v2905, %v2980
      %v2991 = vsel %vm2958, %v2907, %v2981
      %v2992 = vsel %vm2959, %v2947, %v2982
      %2993 = vst [vmem:[%s197] sm:$0xff] %v2983
      %2994 = vst [vmem:[%s197 + $0x8] sm:$0xff] %v2984
      %2995 = vst [vmem:[%s197 + $0x10] sm:$0xff] %v2985
      %2996 = vst [vmem:[%s197 + $0x18] sm:$0xff] %v2986
      %2997 = vst.msk [vmem:[%s197 + $0x20] sm:$0xff] %vm672, %v2987
      %2998 = vst [vmem:[%s197 + $0x28] sm:$0xff] %v2988
      %2999 = vst [vmem:[%s197 + $0x30] sm:$0xff] %v2989
      %3000 = vst [vmem:[%s197 + $0x38] sm:$0xff] %v2990
      %3001 = vst [vmem:[%s197 + $0x40] sm:$0xff] %v2991
      %3002 = vst.msk [vmem:[%s197 + $0x48] sm:$0xff] %vm672, %v2992
      %p3003 = scmp.lt.s32.totalorder %s15, 1
      %s3004 = scalar_select %p3003, %s15, 1
      %s3005 = smul.addr %s3004, 10
      %s3006 = smul.addr %s3005, 8
      %s3007 = scalar_lea.vmem %s4, %s3006
      // Predicated region
      $region37: #{mdfa_forward.3} parent=35 // pred_check
        %p3008 = pneg %p122
      $region38: #{mdfa_forward.3} parent=35 // pred_check_branch
        %3010 = sbr.rel (%p3008) target = $region40
      $region39: #{mdfa_forward.3} parent=35 // pred_region
        _
      $region40: #{mdfa_forward.3} parent=35 // pred_fallthru
        _
    $region36: #{mdfa_forward.3} parent=5 // pred_fallthru
      _
    %p3011 = scmp.le.s32.totalorder 2, %s10
    // Predicated region
    $region41: #{mdfa_forward.3} parent=5 // pred_check
      %p3012 = pneg %p3011
    $region42: #{mdfa_forward.3} parent=5 // pred_check_branch
      %3014 = sbr.rel (%p3012) target = $region44
    $region43: #{mdfa_forward.3} parent=5 // pred_region
      %s3015 = ssub.s32 %s10, 2
      // Predicated region
      $region45: #{mdfa_forward.3} parent=43 // pred_check
        %p3016 = pneg %p128
      $region46: #{mdfa_forward.3} parent=43 // pred_check_branch
        %3018 = sbr.rel (%p3016) target = $region48
      $region47: #{mdfa_forward.3} parent=43 // pred_region
        %p3019 = scmp.lt.s32.totalorder %s16, 1
        %s3020 = scalar_select %p3019, %s16, 1
        %s3021 = smul.addr %s3020, 10
        %s3022 = smul.addr %s3021, 8
        %s3023 = scalar_lea.vmem %s4, %s3022
      $region48: #{mdfa_forward.3} parent=43 // pred_fallthru
        _
    $region44: #{mdfa_forward.3} parent=5 // pred_fallthru
      _
  $region6: #{mdfa_forward.3} parent=0 // loop_footer
    %s14 = sadd.s32 1, %s10
  $region7: #{mdfa_forward.3} parent=0 // loop_footer_branch
    %9 = sbr.rel target = $region3
  $region8: #{mdfa_forward.3} parent=0 // loop_exit
    _

// kernel: mdfa_forward.4
$region0: #{mdfa_forward.4}
  #allocation0 [shape = 'u32[]', space=smem, size = 0x4, offset = 0x4, fixed_abs, tag = 'smem constant byte address 0x4 - core index']
  #allocation1 [shape = 'u32[144,128]{1,0:T(1,128)}', space=vmem, size = 0x12000, scoped, tag = 'internal scratch']
  #allocation2 [shape = 'bf16[144,576]{1,0:T(16,128)(2,1)}', space=vmem, size = 0x2d000, scoped, tag = 'scratch operand']
  %s0 = inlined_call_operand.vmem [shape: f32[2,16,576], index: 0, kind: input, shape index: {}]
  %s1 = inlined_call_operand.vmem [shape: bf16[4,4,144], index: 1, kind: input, shape index: {}]
  %s2 = inlined_call_operand.vmem [shape: f32[4,2,4,1], index: 2, kind: input, shape index: {}]
  %s3 = inlined_call_operand.vmem [shape: f32[4,9,1,576], index: 3, kind: input, shape index: {}]
  %s4 = inlined_call_operand.vmem [shape: f32[2,4,4,576], index: 4, kind: output, shape index: {}]
  %s5 = sld [smem:[#allocation0]]
  $region65: #{mdfa_forward.4} parent=0
    _
  %s7 = ssub.s32 1, %s5
  %s8 = scalar_select 0, %s7, %s5
  loop: start=0, step=1, limit=10
  $region2: #{mdfa_forward.4} parent=0 // loop_pre_header
    _
  $region3: #{mdfa_forward.4} parent=0 // loop_header
    %s10 = sphi 0, %s14
    %p11 = scmp.ge.s32.totalorder %s10, 10
    %s17 = sphi 0, %s29
    %s18 = sphi 0, %s25
    %s19 = sphi 0, %s17
    %s20 = sphi 0, %s18
    %s21 = sphi 0, %s19
    %s22 = sphi 0, %s20
    %s32 = sphi 0, %s34
    %s35 = sphi 0, %s32
    %s36 = sphi 0, %s35
    %s52 = sphi 0, %s36
    %s58 = sphi 0, %s60
    %s61 = sphi 0, %s58
    %s62 = sphi 0, %s61
    %s78 = sphi 0, %s62
    %s84 = sphi 0, %s86
    %s87 = sphi 0, %s84
    %s88 = sphi 0, %s87
    %s104 = sphi 0, %s88
    %s110 = sphi 0, %s112
    %s113 = sphi 0, %s110
    %s114 = sphi 0, %s113
    %s130 = sphi 0, %s114
    %s138 = sphi 0, %s140
    %s141 = sphi 0, %s138
    %s142 = sphi 0, %s141
    %s158 = sphi 0, %s142
  $region4: #{mdfa_forward.4} parent=0 // loop_header_branch
    %13 = sbr.rel (%p11) target = $region8
  $region5: #{mdfa_forward.4} parent=0 // loop_body
    %s15 = ssub.s32 %s10, 1
    %s16 = ssub.s32 %s10, 2
    %s23 = sadd.s32 1, %s18
    %p24 = scmp.ge.s32.totalorder %s23, 4
    %s25 = scalar_select %p24, 0, %s23
    %s26 = sadd.s32 1, %s17
    %s27 = scalar_select %p24, %s26, %s17
    %p28 = scmp.ge.s32.totalorder %s27, 2
    %s29 = scalar_select %p28, 0, %s27
    %s30 = ssub.s32 %s17, %s29
    %p31 = scmp.eq.s32.totalorder %s30, 0
    %s33 = sadd.s32 %s32, 1
    %s34 = scalar_select %p31, %s32, %s33
    %p37 = pneg %p31
    %p38 = scmp.eq.s32.totalorder %s10, 7
    %p39 = por %p37, %p38
    %p40 = scmp.ne.s32.totalorder %s32, %s35
    %p41 = scmp.eq.s32.totalorder %s10, 0
    %p42 = por %p40, %p41
    %p43 = scmp.ne.s32.totalorder %s32, %s35
    %p44 = scmp.eq.s32.totalorder %s15, 7
    %p45 = por %p43, %p44
    %p46 = scmp.ne.s32.totalorder %s35, %s36
    %p47 = scmp.eq.s32.totalorder %s15, 0
    %p48 = por %p46, %p47
    %p49 = scmp.ne.s32.totalorder %s35, %s36
    %p50 = scmp.eq.s32.totalorder %s16, 7
    %p51 = por %p49, %p50
    %p53 = scmp.ne.s32.totalorder %s36, %s52
    %p54 = scmp.eq.s32.totalorder %s16, 0
    %p55 = por %p53, %p54
    %s56 = ssub.s32 %s18, %s25
    %p57 = scmp.eq.s32.totalorder %s56, 0
    %s59 = sadd.s32 %s58, 1
    %s60 = scalar_select %p57, %s58, %s59
    %p63 = pneg %p57
    %p64 = scmp.eq.s32.totalorder %s10, 7
    %p65 = por %p63, %p64
    %p66 = scmp.ne.s32.totalorder %s58, %s61
    %p67 = scmp.eq.s32.totalorder %s10, 0
    %p68 = por %p66, %p67
    %p69 = scmp.ne.s32.totalorder %s58, %s61
    %p70 = scmp.eq.s32.totalorder %s15, 7
    %p71 = por %p69, %p70
    %p72 = scmp.ne.s32.totalorder %s61, %s62
    %p73 = scmp.eq.s32.totalorder %s15, 0
    %p74 = por %p72, %p73
    %p75 = scmp.ne.s32.totalorder %s61, %s62
    %p76 = scmp.eq.s32.totalorder %s16, 7
    %p77 = por %p75, %p76
    %p79 = scmp.ne.s32.totalorder %s62, %s78
    %p80 = scmp.eq.s32.totalorder %s16, 0
    %p81 = por %p79, %p80
    %s82 = ssub.s32 %s18, %s25
    %p83 = scmp.eq.s32.totalorder %s82, 0
    %s85 = sadd.s32 %s84, 1
    %s86 = scalar_select %p83, %s84, %s85
    %p89 = pneg %p83
    %p90 = scmp.eq.s32.totalorder %s10, 7
    %p91 = por %p89, %p90
    %p92 = scmp.ne.s32.totalorder %s84, %s87
    %p93 = scmp.eq.s32.totalorder %s10, 0
    %p94 = por %p92, %p93
    %p95 = scmp.ne.s32.totalorder %s84, %s87
    %p96 = scmp.eq.s32.totalorder %s15, 7
    %p97 = por %p95, %p96
    %p98 = scmp.ne.s32.totalorder %s87, %s88
    %p99 = scmp.eq.s32.totalorder %s15, 0
    %p100 = por %p98, %p99
    %p101 = scmp.ne.s32.totalorder %s87, %s88
    %p102 = scmp.eq.s32.totalorder %s16, 7
    %p103 = por %p101, %p102
    %p105 = scmp.ne.s32.totalorder %s88, %s104
    %p106 = scmp.eq.s32.totalorder %s16, 0
    %p107 = por %p105, %p106
    %s108 = ssub.s32 %s18, %s25
    %p109 = scmp.eq.s32.totalorder %s108, 0
    %s111 = sadd.s32 %s110, 1
    %s112 = scalar_select %p109, %s110, %s111
    %p115 = pneg %p109
    %p116 = scmp.eq.s32.totalorder %s10, 7
    %p117 = por %p115, %p116
    %p118 = scmp.ne.s32.totalorder %s110, %s113
    %p119 = scmp.eq.s32.totalorder %s10, 0
    %p120 = por %p118, %p119
    %p121 = scmp.ne.s32.totalorder %s110, %s113
    %p122 = scmp.eq.s32.totalorder %s15, 7
    %p123 = por %p121, %p122
    %p124 = scmp.ne.s32.totalorder %s113, %s114
    %p125 = scmp.eq.s32.totalorder %s15, 0
    %p126 = por %p124, %p125
    %p127 = scmp.ne.s32.totalorder %s113, %s114
    %p128 = scmp.eq.s32.totalorder %s16, 7
    %p129 = por %p127, %p128
    %p131 = scmp.ne.s32.totalorder %s114, %s130
    %p132 = scmp.eq.s32.totalorder %s16, 0
    %p133 = por %p131, %p132
    %s134 = ssub.s32 %s17, %s29
    %s135 = ssub.s32 %s18, %s25
    %s136 = sor.u32 %s134, %s135
    %p137 = scmp.eq.s32.totalorder %s136, 0
    %s139 = sadd.s32 %s138, 1
    %s140 = scalar_select %p137, %s138, %s139
    %p143 = pneg %p137
    %p144 = scmp.eq.s32.totalorder %s10, 7
    %p145 = por %p143, %p144
    %p146 = scmp.ne.s32.totalorder %s138, %s141
    %p147 = scmp.eq.s32.totalorder %s10, 0
    %p148 = por %p146, %p147
    %p149 = scmp.ne.s32.totalorder %s138, %s141
    %p150 = scmp.eq.s32.totalorder %s15, 7
    %p151 = por %p149, %p150
    %p152 = scmp.ne.s32.totalorder %s141, %s142
    %p153 = scmp.eq.s32.totalorder %s15, 0
    %p154 = por %p152, %p153
    %p155 = scmp.ne.s32.totalorder %s141, %s142
    %p156 = scmp.eq.s32.totalorder %s16, 7
    %p157 = por %p155, %p156
    %p159 = scmp.ne.s32.totalorder %s142, %s158
    %p160 = scmp.eq.s32.totalorder %s16, 0
    %p161 = por %p159, %p160
    %p162 = scmp.le.s32.totalorder 1, %s10
    %p163 = scmp.lt.s32.totalorder %s10, 9
    %p164 = pnand %p162, %p163
    %p165 = pneg %p164
    // Predicated region
    $region9: #{mdfa_forward.4} parent=5 // pred_check
      _
    $region10: #{mdfa_forward.4} parent=5 // pred_check_branch
      %167 = sbr.rel (%p164) target = $region12
    $region11: #{mdfa_forward.4} parent=5 // pred_region
      %s168 = ssub.s32 %s10, 1
    $region12: #{mdfa_forward.4} parent=5 // pred_fallthru
      _
    %p169 = scmp.lt.s32.totalorder %s10, 8
    // Predicated region
    $region13: #{mdfa_forward.4} parent=5 // pred_check
      %p170 = pneg %p169
    $region14: #{mdfa_forward.4} parent=5 // pred_check_branch
      %172 = sbr.rel (%p170) target = $region16
    $region15: #{mdfa_forward.4} parent=5 // pred_region
      // Predicated region
      $region17: #{mdfa_forward.4} parent=15 // pred_check
        %p173 = pneg %p42
      $region18: #{mdfa_forward.4} parent=15 // pred_check_branch
        %175 = sbr.rel (%p173) target = $region20
      $region19: #{mdfa_forward.4} parent=15 // pred_region
        %p176 = scmp.lt.s32.totalorder %s17, 1
        %s177 = scalar_select %p176, %s17, 1
        %s178 = smul.addr %s177, 10
        %s179 = smul.addr %s178, 8
        %s180 = scalar_lea.vmem %s0, %s179
      $region20: #{mdfa_forward.4} parent=15 // pred_fallthru
        _
      // Predicated region
      $region21: #{mdfa_forward.4} parent=15 // pred_check
        %p181 = pneg %p68
      $region22: #{mdfa_forward.4} parent=15 // pred_check_branch
        %183 = sbr.rel (%p181) target = $region24
      $region23: #{mdfa_forward.4} parent=15 // pred_region
        %p184 = scmp.lt.s32.totalorder %s18, 3
        %s185 = scalar_select %p184, %s18, 3
        %s186 = smul.addr %s185, 2
        %s187 = smul.addr %s186, 2
        %s188 = scalar_lea.vmem %s1, %s187
      $region24: #{mdfa_forward.4} parent=15 // pred_fallthru
        _
      // Predicated region
      $region25: #{mdfa_forward.4} parent=15 // pred_check
        %p189 = pneg %p94
      $region26: #{mdfa_forward.4} parent=15 // pred_check_branch
        %191 = sbr.rel (%p189) target = $region28
      $region27: #{mdfa_forward.4} parent=15 // pred_region
        %p192 = scmp.lt.s32.totalorder %s18, 3
        %s193 = scalar_select %p192, %s18, 3
        %s194 = smul.addr %s193, 2
        %s195 = smul.addr %s194, 4
        %s196 = scalar_lea.vmem %s2, %s195
      $region28: #{mdfa_forward.4} parent=15 // pred_fallthru
        _
      // Predicated region
      $region29: #{mdfa_forward.4} parent=15 // pred_check
        %p197 = pneg %p120
      $region30: #{mdfa_forward.4} parent=15 // pred_check_branch
        %199 = sbr.rel (%p197) target = $region32
      $region31: #{mdfa_forward.4} parent=15 // pred_region
        %p200 = scmp.lt.s32.totalorder %s18, 3
        %s201 = scalar_select %p200, %s18, 3
        %s202 = smul.addr %s201, 45
        %s203 = scalar_lea.vmem %s3, %s202
      $region32: #{mdfa_forward.4} parent=15 // pred_fallthru
        _
    $region16: #{mdfa_forward.4} parent=5 // pred_fallthru
      _
    %p204 = scmp.le.s32.totalorder 1, %s10
    %p205 = scmp.lt.s32.totalorder %s10, 9
    %p206 = pnand %p204, %p205
    %p207 = pneg %p206
    // Predicated region
    $region33: #{mdfa_forward.4} parent=5 // pred_check
      _
    $region34: #{mdfa_forward.4} parent=5 // pred_check_branch
      %209 = sbr.rel (%p206) target = $region36
    $region35: #{mdfa_forward.4} parent=5 // pred_region
      %s210 = ssub.s32 %s10, 1
      %p211 = scmp.lt.s32.totalorder %s19, 1
      %s212 = scalar_select %p211, %s19, 1
      %s213 = smul.addr %s212, 10
      %s214 = smul.addr %s213, 8
      %s215 = scalar_lea.vmem %s0, %s214
      %p216 = pneg %p48
      %p217 = pneg %p45
      %p218 = scmp.lt.s32.totalorder %s20, 3
      %s219 = scalar_select %p218, %s20, 3
      %s220 = smul.addr %s219, 2
      %s221 = smul.addr %s220, 2
      %s222 = scalar_lea.vmem %s1, %s221
      %p223 = pneg %p74
      %p224 = pneg %p71
      %p225 = scmp.lt.s32.totalorder %s20, 3
      %s226 = scalar_select %p225, %s20, 3
      %s227 = smul.addr %s226, 2
      %s228 = smul.addr %s227, 4
      %s229 = scalar_lea.vmem %s2, %s228
      %p230 = pneg %p100
      %p231 = pneg %p97
      %p232 = scmp.lt.s32.totalorder %s20, 3
      %s233 = scalar_select %p232, %s20, 3
      %s234 = smul.addr %s233, 45
      %s235 = scalar_lea.vmem %s3, %s234
      %p236 = pneg %p126
      %p237 = pneg %p123
      %p238 = pneg %p154
      %p239 = pneg %p151
      %p240 = scmp.lt.s32.totalorder %s19, 1
      %s241 = scalar_select %p240, %s19, 1
      %p242 = scmp.lt.s32.totalorder %s20, 3
      %s243 = scalar_select %p242, %s20, 3
      %s244 = smul.addr %s243, 5
      %s245 = smul.addr %s241, 20
      %s246 = sadd.s32 %s244, %s245
      %s247 = smul.addr %s246, 4
      %s248 = scalar_lea.vmem %s4, %s247
      %p249 = scmp.lt.s32.totalorder %s19, 1
      %s250 = scalar_select %p249, %s19, 1
      %s251 = smul.addr %s250, 10
      %s252 = smul.addr %s251, 8
      %s253 = scalar_lea.vmem %s0, %s252
      %p254 = scmp.lt.s32.totalorder %s20, 3
      %s255 = scalar_select %p254, %s20, 3
      %s256 = smul.addr %s255, 2
      %s257 = smul.addr %s256, 2
      %s258 = scalar_lea.vmem %s1, %s257
      %p259 = scmp.lt.s32.totalorder %s20, 3
      %s260 = scalar_select %p259, %s20, 3
      %s261 = smul.addr %s260, 2
      %s262 = smul.addr %s261, 4
      %s263 = scalar_lea.vmem %s2, %s262
      %p264 = scmp.lt.s32.totalorder %s20, 3
      %s265 = scalar_select %p264, %s20, 3
      %s266 = smul.addr %s265, 45
      %s267 = scalar_lea.vmem %s3, %s266
      %p268 = scmp.lt.s32.totalorder %s19, 1
      %s269 = scalar_select %p268, %s19, 1
      %p270 = scmp.lt.s32.totalorder %s20, 3
      %s271 = scalar_select %p270, %s20, 3
      %s272 = smul.addr %s271, 5
      %s273 = smul.addr %s269, 20
      %s274 = sadd.s32 %s272, %s273
      %s275 = smul.addr %s274, 4
      %s276 = scalar_lea.vmem %s4, %s275
      %v280 = vld [vmem:[%s253] sm:$0xff]
      %v281 = vld [vmem:[%s253 + $0x8] sm:$0xff]
      %v282 = vld [vmem:[%s253 + $0x10] sm:$0xff]
      %v283 = vld [vmem:[%s253 + $0x18] sm:$0xff]
      %v284 = vld [vmem:[%s253 + $0x20] sm:$0xff]
      %v285 = vld [vmem:[%s253 + $0x28] sm:$0xff]
      %v286 = vld [vmem:[%s253 + $0x30] sm:$0xff]
      %v287 = vld [vmem:[%s253 + $0x38] sm:$0xff]
      %v288 = vld [vmem:[%s253 + $0x40] sm:$0xff]
      %v289 = vld [vmem:[%s253 + $0x48] sm:$0xff]
      %v290 = vpack.c.bf16 %v285, %v280
      %v291 = vpack.c.bf16 %v286, %v281
      %v292 = vpack.c.bf16 %v287, %v282
      %v293 = vpack.c.bf16 %v288, %v283
      %v294 = vpack.c.bf16 %v289, %v284
      %p295 = scmp.eq.s32.totalorder %s20, 0
      // Predicated region
      $region37: #{mdfa_forward.4} parent=35 // pred_check
        %p296 = pneg %p295
      $region38: #{mdfa_forward.4} parent=35 // pred_check_branch
        %298 = sbr.rel (%p296) target = $region40
      $region39: #{mdfa_forward.4} parent=35 // pred_region
        %301 = vrot.lane.b32.xlu0 %v293, 1
        %v302 = vpop.permute.xlu0 %301
        %303 = vrot.lane.b32.xlu0 %v294, 1
        %v304 = vpop.permute.xlu0 %303
        %vm305 = vcmask 7168
        %v306 = vsel %vm305, %v302, %v304
        %310 = vrot.lane.b32.xlu0 %v290, 65
        %v311 = vpop.permute.xlu0 %310
        %312 = vrot.lane.b32.xlu0 %v291, 65
        %v313 = vpop.permute.xlu0 %312
        %314 = vrot.lane.b32.xlu0 %v292, 65
        %v315 = vpop.permute.xlu0 %314
        %316 = vrot.lane.b32.xlu0 %v293, 65
        %v317 = vpop.permute.xlu0 %316
        %vm318 = vcmask 531456
        %v319 = vsel %vm318, %v311, %v313
        %v320 = vsel %vm318, %v313, %v315
        %v321 = vsel %vm318, %v315, %v317
        %vm326 = vcmask 531456
        %v329 = vsel %vm326, %v306, %v311
        %v331 = vld [vmem:[%s267] sm:$0x1f]
        %vm332 = vcmp.gt.f32.partialorder %v331, 0.5
        %v333 = vsel %vm332, 1, 0
        %v334 = vlaneseq
        %v335 = vshrl.u32 %v334, 7
        %v336 = vsub.s32 0, %v335
        %v337 = vrot.slane %v333, %v336
        %v338 = vlaneseq
        %v339 = vshrl.u32 %v338, 7
        %v340 = vsub.s32 1, %v339
        %v341 = vrot.slane %v333, %v340
        %v342 = vlaneseq
        %v343 = vshrl.u32 %v342, 7
        %v344 = vsub.s32 2, %v343
        %v345 = vrot.slane %v333, %v344
        %v346 = vlaneseq
        %v347 = vshrl.u32 %v346, 7
        %v348 = vsub.s32 3, %v347
        %v349 = vrot.slane %v333, %v348
        %v350 = vlaneseq
        %v351 = vshrl.u32 %v350, 7
        %v352 = vsub.s32 4, %v351
        %v353 = vrot.slane %v333, %v352
        %vm354 = vcmp.eq.s32.totalorder %v337, 1
        %vm355 = vcmp.eq.s32.totalorder %v341, 1
        %vm356 = vcmp.eq.s32.totalorder %v345, 1
        %vm357 = vcmp.eq.s32.totalorder %v349, 1
        %vm358 = vcmp.eq.s32.totalorder %v353, 1
        %vm359 = vmpackc.low %vm355, %vm354
        %vm360 = vmpackc.low %vm357, %vm356
        %vm361 = vmpackc.low %vm358, %vm358
        %v362 = vsel %vm359, 65537, 0
        %v363 = vsel %vm360, 65537, 0
        %v364 = vsel %vm361, 65537, 0
        %v365 = vlaneseq
        %v366 = vshrl.u32 %v365, 7
        %v367 = vsub.s32 0, %v366
        %v368 = vrot.slane %v362, %v367
        %v369 = vlaneseq
        %v370 = vshrl.u32 %v369, 7
        %v371 = vsub.s32 4, %v370
        %v372 = vrot.slane %v362, %v371
        %v373 = vlaneseq
        %v374 = vshrl.u32 %v373, 7
        %v375 = vsub.s32 0, %v374
        %v376 = vrot.slane %v363, %v375
        %v377 = vlaneseq
        %v378 = vshrl.u32 %v377, 7
        %v379 = vsub.s32 4, %v378
        %v380 = vrot.slane %v363, %v379
        %v381 = vlaneseq
        %v382 = vshrl.u32 %v381, 7
        %v383 = vsub.s32 0, %v382
        %v384 = vrot.slane %v364, %v383
        %vm385 = vcmp.ne.s16.totalorder %v368, 0
        %vm386 = vcmp.ne.s16.totalorder %v372, 0
        %vm387 = vcmp.ne.s16.totalorder %v376, 0
        %vm388 = vcmp.ne.s16.totalorder %v380, 0
        %vm389 = vcmp.ne.s16.totalorder %v384, 0
        %v390 = vsel %vm385, %v329, 0
        %v391 = vsel %vm386, %v319, 0
        %v392 = vsel %vm387, %v320, 0
        %v393 = vsel %vm388, %v321, 0
        %v394 = vsel %vm389, %v317, 0
        %395 = vst [vmem:[#allocation2] sm:$0xff] %v390
        %396 = vst [vmem:[#allocation2 + $0x8] sm:$0xff] %v391
        %397 = vst [vmem:[#allocation2 + $0x10] sm:$0xff] %v392
        %398 = vst [vmem:[#allocation2 + $0x18] sm:$0xff] %v393
        %vm399 = vcmask 523264
        %400 = vst.msk [vmem:[#allocation2 + $0x20] sm:$0xff] %vm399, %v394
        %401 = vrot.lane.b32.xlu0 %v290, 64
        %v402 = vpop.permute.xlu0 %401
        %403 = vrot.lane.b32.xlu0 %v291, 64
        %v404 = vpop.permute.xlu0 %403
        %405 = vrot.lane.b32.xlu0 %v292, 64
        %v406 = vpop.permute.xlu0 %405
        %407 = vrot.lane.b32.xlu0 %v293, 64
        %v408 = vpop.permute.xlu0 %407
        %vm409 = vcmask 523264
        %v410 = vsel %vm409, %v402, %v404
        %v411 = vsel %vm409, %v404, %v406
        %v412 = vsel %vm409, %v406, %v408
        %v419 = vsel %vm399, %v294, %v402
        %s421 = scalar_lea.vmem %s267, 5
        %v422 = vld [vmem:[%s421] sm:$0x1f]
        %vm423 = vcmp.gt.f32.partialorder %v422, 0.5
        %v424 = vsel %vm423, 1, 0
        %v425 = vlaneseq
        %v426 = vshrl.u32 %v425, 7
        %v427 = vsub.s32 0, %v426
        %v428 = vrot.slane %v424, %v427
        %v429 = vlaneseq
        %v430 = vshrl.u32 %v429, 7
        %v431 = vsub.s32 1, %v430
        %v432 = vrot.slane %v424, %v431
        %v433 = vlaneseq
        %v434 = vshrl.u32 %v433, 7
        %v435 = vsub.s32 2, %v434
        %v436 = vrot.slane %v424, %v435
        %v437 = vlaneseq
        %v438 = vshrl.u32 %v437, 7
        %v439 = vsub.s32 3, %v438
        %v440 = vrot.slane %v424, %v439
        %v441 = vlaneseq
        %v442 = vshrl.u32 %v441, 7
        %v443 = vsub.s32 4, %v442
        %v444 = vrot.slane %v424, %v443
        %vm445 = vcmp.eq.s32.totalorder %v428, 1
        %vm446 = vcmp.eq.s32.totalorder %v432, 1
        %vm447 = vcmp.eq.s32.totalorder %v436, 1
        %vm448 = vcmp.eq.s32.totalorder %v440, 1
        %vm449 = vcmp.eq.s32.totalorder %v444, 1
        %vm450 = vmpackc.low %vm446, %vm445
        %vm451 = vmpackc.low %vm448, %vm447
        %vm452 = vmpackc.low %vm449, %vm449
        %v453 = vsel %vm450, 65537, 0
        %v454 = vsel %vm451, 65537, 0
        %v455 = vsel %vm452, 65537, 0
        %v456 = vlaneseq
        %v457 = vshrl.u32 %v456, 7
        %v458 = vsub.s32 0, %v457
        %v459 = vrot.slane %v453, %v458
        %v460 = vlaneseq
        %v461 = vshrl.u32 %v460, 7
        %v462 = vsub.s32 4, %v461
        %v463 = vrot.slane %v453, %v462
        %v464 = vlaneseq
        %v465 = vshrl.u32 %v464, 7
        %v466 = vsub.s32 0, %v465
        %v467 = vrot.slane %v454, %v466
        %v468 = vlaneseq
        %v469 = vshrl.u32 %v468, 7
        %v470 = vsub.s32 4, %v469
        %v471 = vrot.slane %v454, %v470
        %v472 = vlaneseq
        %v473 = vshrl.u32 %v472, 7
        %v474 = vsub.s32 0, %v473
        %v475 = vrot.slane %v455, %v474
        %vm476 = vcmp.ne.s16.totalorder %v459, 0
        %vm477 = vcmp.ne.s16.totalorder %v463, 0
        %vm478 = vcmp.ne.s16.totalorder %v467, 0
        %vm479 = vcmp.ne.s16.totalorder %v471, 0
        %vm480 = vcmp.ne.s16.totalorder %v475, 0
        %v481 = vsel %vm476, %v419, 0
        %v482 = vsel %vm477, %v410, 0
        %v483 = vsel %vm478, %v411, 0
        %v484 = vsel %vm479, %v412, 0
        %v485 = vsel %vm480, %v408, 0
        %486 = vst [vmem:[#allocation2 + $0x28] sm:$0xff] %v481
        %487 = vst [vmem:[#allocation2 + $0x30] sm:$0xff] %v482
        %488 = vst [vmem:[#allocation2 + $0x38] sm:$0xff] %v483
        %489 = vst [vmem:[#allocation2 + $0x40] sm:$0xff] %v484
        %490 = vst.msk [vmem:[#allocation2 + $0x48] sm:$0xff] %vm399, %v485
        %491 = vrot.lane.b32.xlu0 %v294, 127
        %v492 = vpop.permute.xlu0 %491
        %493 = vrot.lane.b32.xlu0 %v290, 63
        %v494 = vpop.permute.xlu0 %493
        %495 = vrot.lane.b32.xlu0 %v291, 63
        %v496 = vpop.permute.xlu0 %495
        %497 = vrot.lane.b32.xlu0 %v292, 63
        %v498 = vpop.permute.xlu0 %497
        %499 = vrot.lane.b32.xlu0 %v293, 63
        %v500 = vpop.permute.xlu0 %499
        %501 = vrot.lane.b32.xlu0 %v294, 63
        %v502 = vpop.permute.xlu0 %501
        %vm503 = vcmask 515072
        %v504 = vsel %vm503, %v494, %v496
        %v505 = vsel %vm503, %v496, %v498
        %v506 = vsel %vm503, %v498, %v500
        %v507 = vsel %vm503, %v500, %v502
        %vm512 = vcmask 515072
        %v515 = vsel %vm512, %v492, %v494
        %s517 = scalar_lea.vmem %s267, 10
        %v518 = vld [vmem:[%s517] sm:$0x1f]
        %vm519 = vcmp.gt.f32.partialorder %v518, 0.5
        %v520 = vsel %vm519, 1, 0
        %v521 = vlaneseq
        %v522 = vshrl.u32 %v521, 7
        %v523 = vsub.s32 0, %v522
        %v524 = vrot.slane %v520, %v523
        %v525 = vlaneseq
        %v526 = vshrl.u32 %v525, 7
        %v527 = vsub.s32 1, %v526
        %v528 = vrot.slane %v520, %v527
        %v529 = vlaneseq
        %v530 = vshrl.u32 %v529, 7
        %v531 = vsub.s32 2, %v530
        %v532 = vrot.slane %v520, %v531
        %v533 = vlaneseq
        %v534 = vshrl.u32 %v533, 7
        %v535 = vsub.s32 3, %v534
        %v536 = vrot.slane %v520, %v535
        %v537 = vlaneseq
        %v538 = vshrl.u32 %v537, 7
        %v539 = vsub.s32 4, %v538
        %v540 = vrot.slane %v520, %v539
        %vm541 = vcmp.eq.s32.totalorder %v524, 1
        %vm542 = vcmp.eq.s32.totalorder %v528, 1
        %vm543 = vcmp.eq.s32.totalorder %v532, 1
        %vm544 = vcmp.eq.s32.totalorder %v536, 1
        %vm545 = vcmp.eq.s32.totalorder %v540, 1
        %vm546 = vmpackc.low %vm542, %vm541
        %vm547 = vmpackc.low %vm544, %vm543
        %vm548 = vmpackc.low %vm545, %vm545
        %v549 = vsel %vm546, 65537, 0
        %v550 = vsel %vm547, 65537, 0
        %v551 = vsel %vm548, 65537, 0
        %v552 = vlaneseq
        %v553 = vshrl.u32 %v552, 7
        %v554 = vsub.s32 0, %v553
        %v555 = vrot.slane %v549, %v554
        %v556 = vlaneseq
        %v557 = vshrl.u32 %v556, 7
        %v558 = vsub.s32 4, %v557
        %v559 = vrot.slane %v549, %v558
        %v560 = vlaneseq
        %v561 = vshrl.u32 %v560, 7
        %v562 = vsub.s32 0, %v561
        %v563 = vrot.slane %v550, %v562
        %v564 = vlaneseq
        %v565 = vshrl.u32 %v564, 7
        %v566 = vsub.s32 4, %v565
        %v567 = vrot.slane %v550, %v566
        %v568 = vlaneseq
        %v569 = vshrl.u32 %v568, 7
        %v570 = vsub.s32 0, %v569
        %v571 = vrot.slane %v551, %v570
        %vm572 = vcmp.ne.s16.totalorder %v555, 0
        %vm573 = vcmp.ne.s16.totalorder %v559, 0
        %vm574 = vcmp.ne.s16.totalorder %v563, 0
        %vm575 = vcmp.ne.s16.totalorder %v567, 0
        %vm576 = vcmp.ne.s16.totalorder %v571, 0
        %v577 = vsel %vm572, %v515, 0
        %v578 = vsel %vm573, %v504, 0
        %v579 = vsel %vm574, %v505, 0
        %v580 = vsel %vm575, %v506, 0
        %v581 = vsel %vm576, %v507, 0
        %582 = vst [vmem:[#allocation2 + $0x50] sm:$0xff] %v577
        %583 = vst [vmem:[#allocation2 + $0x58] sm:$0xff] %v578
        %584 = vst [vmem:[#allocation2 + $0x60] sm:$0xff] %v579
        %585 = vst [vmem:[#allocation2 + $0x68] sm:$0xff] %v580
        %586 = vst.msk [vmem:[#allocation2 + $0x70] sm:$0xff] %vm399, %v581
        %587 = vrot.lane.b32.xlu0 %v294, 65
        %v588 = vpop.permute.xlu0 %587
        %589 = vrot.lane.b32.xlu0 %v290, 1
        %v590 = vpop.permute.xlu0 %589
        %591 = vrot.lane.b32.xlu0 %v291, 1
        %v592 = vpop.permute.xlu0 %591
        %593 = vrot.lane.b32.xlu0 %v292, 1
        %v594 = vpop.permute.xlu0 %593
        %v595 = vsel %vm305, %v590, %v592
        %v596 = vsel %vm305, %v592, %v594
        %v597 = vsel %vm305, %v594, %v302
        %vm602 = vcmask 7168
        %v605 = vsel %vm602, %v588, %v590
        %s607 = scalar_lea.vmem %s267, 15
        %v608 = vld [vmem:[%s607] sm:$0x1f]
        %vm609 = vcmp.gt.f32.partialorder %v608, 0.5
        %v610 = vsel %vm609, 1, 0
        %v611 = vlaneseq
        %v612 = vshrl.u32 %v611, 7
        %v613 = vsub.s32 0, %v612
        %v614 = vrot.slane %v610, %v613
        %v615 = vlaneseq
        %v616 = vshrl.u32 %v615, 7
        %v617 = vsub.s32 1, %v616
        %v618 = vrot.slane %v610, %v617
        %v619 = vlaneseq
        %v620 = vshrl.u32 %v619, 7
        %v621 = vsub.s32 2, %v620
        %v622 = vrot.slane %v610, %v621
        %v623 = vlaneseq
        %v624 = vshrl.u32 %v623, 7
        %v625 = vsub.s32 3, %v624
        %v626 = vrot.slane %v610, %v625
        %v627 = vlaneseq
        %v628 = vshrl.u32 %v627, 7
        %v629 = vsub.s32 4, %v628
        %v630 = vrot.slane %v610, %v629
        %vm631 = vcmp.eq.s32.totalorder %v614, 1
        %vm632 = vcmp.eq.s32.totalorder %v618, 1
        %vm633 = vcmp.eq.s32.totalorder %v622, 1
        %vm634 = vcmp.eq.s32.totalorder %v626, 1
        %vm635 = vcmp.eq.s32.totalorder %v630, 1
        %vm636 = vmpackc.low %vm632, %vm631
        %vm637 = vmpackc.low %vm634, %vm633
        %vm638 = vmpackc.low %vm635, %vm635
        %v639 = vsel %vm636, 65537, 0
        %v640 = vsel %vm637, 65537, 0
        %v641 = vsel %vm638, 65537, 0
        %v642 = vlaneseq
        %v643 = vshrl.u32 %v642, 7
        %v644 = vsub.s32 0, %v643
        %v645 = vrot.slane %v639, %v644
        %v646 = vlaneseq
        %v647 = vshrl.u32 %v646, 7
        %v648 = vsub.s32 4, %v647
        %v649 = vrot.slane %v639, %v648
        %v650 = vlaneseq
        %v651 = vshrl.u32 %v650, 7
        %v652 = vsub.s32 0, %v651
        %v653 = vrot.slane %v640, %v652
        %v654 = vlaneseq
        %v655 = vshrl.u32 %v654, 7
        %v656 = vsub.s32 4, %v655
        %v657 = vrot.slane %v640, %v656
        %v658 = vlaneseq
        %v659 = vshrl.u32 %v658, 7
        %v660 = vsub.s32 0, %v659
        %v661 = vrot.slane %v641, %v660
        %vm662 = vcmp.ne.s16.totalorder %v645, 0
        %vm663 = vcmp.ne.s16.totalorder %v649, 0
        %vm664 = vcmp.ne.s16.totalorder %v653, 0
        %vm665 = vcmp.ne.s16.totalorder %v657, 0
        %vm666 = vcmp.ne.s16.totalorder %v661, 0
        %v667 = vsel %vm662, %v605, 0
        %v668 = vsel %vm663, %v595, 0
        %v669 = vsel %vm664, %v596, 0
        %v670 = vsel %vm665, %v597, 0
        %v671 = vsel %vm666, %v306, 0
        %672 = vst [vmem:[#allocation2 + $0x78] sm:$0xff] %v667
        %673 = vst [vmem:[#allocation2 + $0x80] sm:$0xff] %v668
        %674 = vst [vmem:[#allocation2 + $0x88] sm:$0xff] %v669
        %675 = vst [vmem:[#allocation2 + $0x90] sm:$0xff] %v670
        %676 = vst.msk [vmem:[#allocation2 + $0x98] sm:$0xff] %vm399, %v671
        %677 = vst [vmem:[#allocation2 + $0xa0] sm:$0xff] %v290
        %678 = vst [vmem:[#allocation2 + $0xa8] sm:$0xff] %v291
        %679 = vst [vmem:[#allocation2 + $0xb0] sm:$0xff] %v292
        %680 = vst [vmem:[#allocation2 + $0xb8] sm:$0xff] %v293
        %681 = vst.msk [vmem:[#allocation2 + $0xc0] sm:$0xff] %vm399, %v294
        %682 = vrot.lane.b32.xlu0 %v290, 127
        %v683 = vpop.permute.xlu0 %682
        %684 = vrot.lane.b32.xlu0 %v291, 127
        %v685 = vpop.permute.xlu0 %684
        %686 = vrot.lane.b32.xlu0 %v292, 127
        %v687 = vpop.permute.xlu0 %686
        %688 = vrot.lane.b32.xlu0 %v293, 127
        %v689 = vpop.permute.xlu0 %688
        %vm690 = vcmask 1039360
        %v691 = vsel %vm690, %v683, %v685
        %v692 = vsel %vm690, %v685, %v687
        %v693 = vsel %vm690, %v687, %v689
        %v694 = vsel %vm690, %v689, %v492
        %s699 = scalar_lea.vmem %s267, 25
        %v700 = vld [vmem:[%s699] sm:$0x1f]
        %vm701 = vcmp.gt.f32.partialorder %v700, 0.5
        %v702 = vsel %vm701, 1, 0
        %v703 = vlaneseq
        %v704 = vshrl.u32 %v703, 7
        %v705 = vsub.s32 0, %v704
        %v706 = vrot.slane %v702, %v705
        %v707 = vlaneseq
        %v708 = vshrl.u32 %v707, 7
        %v709 = vsub.s32 1, %v708
        %v710 = vrot.slane %v702, %v709
        %v711 = vlaneseq
        %v712 = vshrl.u32 %v711, 7
        %v713 = vsub.s32 2, %v712
        %v714 = vrot.slane %v702, %v713
        %v715 = vlaneseq
        %v716 = vshrl.u32 %v715, 7
        %v717 = vsub.s32 3, %v716
        %v718 = vrot.slane %v702, %v717
        %v719 = vlaneseq
        %v720 = vshrl.u32 %v719, 7
        %v721 = vsub.s32 4, %v720
        %v722 = vrot.slane %v702, %v721
        %vm723 = vcmp.eq.s32.totalorder %v706, 1
        %vm724 = vcmp.eq.s32.totalorder %v710, 1
        %vm725 = vcmp.eq.s32.totalorder %v714, 1
        %vm726 = vcmp.eq.s32.totalorder %v718, 1
        %vm727 = vcmp.eq.s32.totalorder %v722, 1
        %vm728 = vmpackc.low %vm724, %vm723
        %vm729 = vmpackc.low %vm726, %vm725
        %vm730 = vmpackc.low %vm727, %vm727
        %v731 = vsel %vm728, 65537, 0
        %v732 = vsel %vm729, 65537, 0
        %v733 = vsel %vm730, 65537, 0
        %v734 = vlaneseq
        %v735 = vshrl.u32 %v734, 7
        %v736 = vsub.s32 0, %v735
        %v737 = vrot.slane %v731, %v736
        %v738 = vlaneseq
        %v739 = vshrl.u32 %v738, 7
        %v740 = vsub.s32 4, %v739
        %v741 = vrot.slane %v731, %v740
        %v742 = vlaneseq
        %v743 = vshrl.u32 %v742, 7
        %v744 = vsub.s32 0, %v743
        %v745 = vrot.slane %v732, %v744
        %v746 = vlaneseq
        %v747 = vshrl.u32 %v746, 7
        %v748 = vsub.s32 4, %v747
        %v749 = vrot.slane %v732, %v748
        %v750 = vlaneseq
        %v751 = vshrl.u32 %v750, 7
        %v752 = vsub.s32 0, %v751
        %v753 = vrot.slane %v733, %v752
        %vm754 = vcmp.ne.s16.totalorder %v737, 0
        %vm755 = vcmp.ne.s16.totalorder %v741, 0
        %vm756 = vcmp.ne.s16.totalorder %v745, 0
        %vm757 = vcmp.ne.s16.totalorder %v749, 0
        %vm758 = vcmp.ne.s16.totalorder %v753, 0
        %v759 = vsel %vm754, %v691, 0
        %v760 = vsel %vm755, %v692, 0
        %v761 = vsel %vm756, %v693, 0
        %v762 = vsel %vm757, %v694, 0
        %v763 = vsel %vm758, %v515, 0
        %764 = vst [vmem:[#allocation2 + $0xc8] sm:$0xff] %v759
        %765 = vst [vmem:[#allocation2 + $0xd0] sm:$0xff] %v760
        %766 = vst [vmem:[#allocation2 + $0xd8] sm:$0xff] %v761
        %767 = vst [vmem:[#allocation2 + $0xe0] sm:$0xff] %v762
        %768 = vst.msk [vmem:[#allocation2 + $0xe8] sm:$0xff] %vm399, %v763
        %v769 = vsel %vm318, %v317, %v588
        %s771 = scalar_lea.vmem %s267, 30
        %v772 = vld [vmem:[%s771] sm:$0x1f]
        %vm773 = vcmp.gt.f32.partialorder %v772, 0.5
        %v774 = vsel %vm773, 1, 0
        %v775 = vlaneseq
        %v776 = vshrl.u32 %v775, 7
        %v777 = vsub.s32 0, %v776
        %v778 = vrot.slane %v774, %v777
        %v779 = vlaneseq
        %v780 = vshrl.u32 %v779, 7
        %v781 = vsub.s32 1, %v780
        %v782 = vrot.slane %v774, %v781
        %v783 = vlaneseq
        %v784 = vshrl.u32 %v783, 7
        %v785 = vsub.s32 2, %v784
        %v786 = vrot.slane %v774, %v785
        %v787 = vlaneseq
        %v788 = vshrl.u32 %v787, 7
        %v789 = vsub.s32 3, %v788
        %v790 = vrot.slane %v774, %v789
        %v791 = vlaneseq
        %v792 = vshrl.u32 %v791, 7
        %v793 = vsub.s32 4, %v792
        %v794 = vrot.slane %v774, %v793
        %vm795 = vcmp.eq.s32.totalorder %v778, 1
        %vm796 = vcmp.eq.s32.totalorder %v782, 1
        %vm797 = vcmp.eq.s32.totalorder %v786, 1
        %vm798 = vcmp.eq.s32.totalorder %v790, 1
        %vm799 = vcmp.eq.s32.totalorder %v794, 1
        %vm800 = vmpackc.low %vm796, %vm795
        %vm801 = vmpackc.low %vm798, %vm797
        %vm802 = vmpackc.low %vm799, %vm799
        %v803 = vsel %vm800, 65537, 0
        %v804 = vsel %vm801, 65537, 0
        %v805 = vsel %vm802, 65537, 0
        %v806 = vlaneseq
        %v807 = vshrl.u32 %v806, 7
        %v808 = vsub.s32 0, %v807
        %v809 = vrot.slane %v803, %v808
        %v810 = vlaneseq
        %v811 = vshrl.u32 %v810, 7
        %v812 = vsub.s32 4, %v811
        %v813 = vrot.slane %v803, %v812
        %v814 = vlaneseq
        %v815 = vshrl.u32 %v814, 7
        %v816 = vsub.s32 0, %v815
        %v817 = vrot.slane %v804, %v816
        %v818 = vlaneseq
        %v819 = vshrl.u32 %v818, 7
        %v820 = vsub.s32 4, %v819
        %v821 = vrot.slane %v804, %v820
        %v822 = vlaneseq
        %v823 = vshrl.u32 %v822, 7
        %v824 = vsub.s32 0, %v823
        %v825 = vrot.slane %v805, %v824
        %vm826 = vcmp.ne.s16.totalorder %v809, 0
        %vm827 = vcmp.ne.s16.totalorder %v813, 0
        %vm828 = vcmp.ne.s16.totalorder %v817, 0
        %vm829 = vcmp.ne.s16.totalorder %v821, 0
        %vm830 = vcmp.ne.s16.totalorder %v825, 0
        %v831 = vsel %vm826, %v319, 0
        %v832 = vsel %vm827, %v320, 0
        %v833 = vsel %vm828, %v321, 0
        %v834 = vsel %vm829, %v769, 0
        %v835 = vsel %vm830, %v605, 0
        %836 = vst [vmem:[#allocation2 + $0xf0] sm:$0xff] %v831
        %837 = vst [vmem:[#allocation2 + $0xf8] sm:$0xff] %v832
        %838 = vst [vmem:[#allocation2 + $0x100] sm:$0xff] %v833
        %839 = vst [vmem:[#allocation2 + $0x108] sm:$0xff] %v834
        %840 = vst.msk [vmem:[#allocation2 + $0x110] sm:$0xff] %vm399, %v835
        %841 = vrot.lane.b32.xlu0 %v294, 64
        %v842 = vpop.permute.xlu0 %841
        %v843 = vsel %vm409, %v408, %v842
        %s845 = scalar_lea.vmem %s267, 35
        %v846 = vld [vmem:[%s845] sm:$0x1f]
        %vm847 = vcmp.gt.f32.partialorder %v846, 0.5
        %v848 = vsel %vm847, 1, 0
        %v849 = vlaneseq
        %v850 = vshrl.u32 %v849, 7
        %v851 = vsub.s32 0, %v850
        %v852 = vrot.slane %v848, %v851
        %v853 = vlaneseq
        %v854 = vshrl.u32 %v853, 7
        %v855 = vsub.s32 1, %v854
        %v856 = vrot.slane %v848, %v855
        %v857 = vlaneseq
        %v858 = vshrl.u32 %v857, 7
        %v859 = vsub.s32 2, %v858
        %v860 = vrot.slane %v848, %v859
        %v861 = vlaneseq
        %v862 = vshrl.u32 %v861, 7
        %v863 = vsub.s32 3, %v862
        %v864 = vrot.slane %v848, %v863
        %v865 = vlaneseq
        %v866 = vshrl.u32 %v865, 7
        %v867 = vsub.s32 4, %v866
        %v868 = vrot.slane %v848, %v867
        %vm869 = vcmp.eq.s32.totalorder %v852, 1
        %vm870 = vcmp.eq.s32.totalorder %v856, 1
        %vm871 = vcmp.eq.s32.totalorder %v860, 1
        %vm872 = vcmp.eq.s32.totalorder %v864, 1
        %vm873 = vcmp.eq.s32.totalorder %v868, 1
        %vm874 = vmpackc.low %vm870, %vm869
        %vm875 = vmpackc.low %vm872, %vm871
        %vm876 = vmpackc.low %vm873, %vm873
        %v877 = vsel %vm874, 65537, 0
        %v878 = vsel %vm875, 65537, 0
        %v879 = vsel %vm876, 65537, 0
        %v880 = vlaneseq
        %v881 = vshrl.u32 %v880, 7
        %v882 = vsub.s32 0, %v881
        %v883 = vrot.slane %v877, %v882
        %v884 = vlaneseq
        %v885 = vshrl.u32 %v884, 7
        %v886 = vsub.s32 4, %v885
        %v887 = vrot.slane %v877, %v886
        %v888 = vlaneseq
        %v889 = vshrl.u32 %v888, 7
        %v890 = vsub.s32 0, %v889
        %v891 = vrot.slane %v878, %v890
        %v892 = vlaneseq
        %v893 = vshrl.u32 %v892, 7
        %v894 = vsub.s32 4, %v893
        %v895 = vrot.slane %v878, %v894
        %v896 = vlaneseq
        %v897 = vshrl.u32 %v896, 7
        %v898 = vsub.s32 0, %v897
        %v899 = vrot.slane %v879, %v898
        %vm900 = vcmp.ne.s16.totalorder %v883, 0
        %vm901 = vcmp.ne.s16.totalorder %v887, 0
        %vm902 = vcmp.ne.s16.totalorder %v891, 0
        %vm903 = vcmp.ne.s16.totalorder %v895, 0
        %vm904 = vcmp.ne.s16.totalorder %v899, 0
        %v905 = vsel %vm900, %v410, 0
        %v906 = vsel %vm901, %v411, 0
        %v907 = vsel %vm902, %v412, 0
        %v908 = vsel %vm903, %v843, 0
        %v909 = vsel %vm904, %v290, 0
        %910 = vst [vmem:[#allocation2 + $0x118] sm:$0xff] %v905
        %911 = vst [vmem:[#allocation2 + $0x120] sm:$0xff] %v906
        %912 = vst [vmem:[#allocation2 + $0x128] sm:$0xff] %v907
        %913 = vst [vmem:[#allocation2 + $0x130] sm:$0xff] %v908
        %914 = vst.msk [vmem:[#allocation2 + $0x138] sm:$0xff] %vm399, %v909
        %vm916 = vcmask 1039360
        %v919 = vsel %vm916, %v507, %v683
        %s921 = scalar_lea.vmem %s267, 40
        %v922 = vld [vmem:[%s921] sm:$0x1f]
        %vm923 = vcmp.gt.f32.partialorder %v922, 0.5
        %v924 = vsel %vm923, 1, 0
        %v925 = vlaneseq
        %v926 = vshrl.u32 %v925, 7
        %v927 = vsub.s32 0, %v926
        %v928 = vrot.slane %v924, %v927
        %v929 = vlaneseq
        %v930 = vshrl.u32 %v929, 7
        %v931 = vsub.s32 1, %v930
        %v932 = vrot.slane %v924, %v931
        %v933 = vlaneseq
        %v934 = vshrl.u32 %v933, 7
        %v935 = vsub.s32 2, %v934
        %v936 = vrot.slane %v924, %v935
        %v937 = vlaneseq
        %v938 = vshrl.u32 %v937, 7
        %v939 = vsub.s32 3, %v938
        %v940 = vrot.slane %v924, %v939
        %v941 = vlaneseq
        %v942 = vshrl.u32 %v941, 7
        %v943 = vsub.s32 4, %v942
        %v944 = vrot.slane %v924, %v943
        %vm945 = vcmp.eq.s32.totalorder %v928, 1
        %vm946 = vcmp.eq.s32.totalorder %v932, 1
        %vm947 = vcmp.eq.s32.totalorder %v936, 1
        %vm948 = vcmp.eq.s32.totalorder %v940, 1
        %vm949 = vcmp.eq.s32.totalorder %v944, 1
        %vm950 = vmpackc.low %vm946, %vm945
        %vm951 = vmpackc.low %vm948, %vm947
        %vm952 = vmpackc.low %vm949, %vm949
        %v953 = vsel %vm950, 65537, 0
        %v954 = vsel %vm951, 65537, 0
        %v955 = vsel %vm952, 65537, 0
        %v956 = vlaneseq
        %v957 = vshrl.u32 %v956, 7
        %v958 = vsub.s32 0, %v957
        %v959 = vrot.slane %v953, %v958
        %v960 = vlaneseq
        %v961 = vshrl.u32 %v960, 7
        %v962 = vsub.s32 4, %v961
        %v963 = vrot.slane %v953, %v962
        %v964 = vlaneseq
        %v965 = vshrl.u32 %v964, 7
        %v966 = vsub.s32 0, %v965
        %v967 = vrot.slane %v954, %v966
        %v968 = vlaneseq
        %v969 = vshrl.u32 %v968, 7
        %v970 = vsub.s32 4, %v969
        %v971 = vrot.slane %v954, %v970
        %v972 = vlaneseq
        %v973 = vshrl.u32 %v972, 7
        %v974 = vsub.s32 0, %v973
        %v975 = vrot.slane %v955, %v974
        %vm976 = vcmp.ne.s16.totalorder %v959, 0
        %vm977 = vcmp.ne.s16.totalorder %v963, 0
        %vm978 = vcmp.ne.s16.totalorder %v967, 0
        %vm979 = vcmp.ne.s16.totalorder %v971, 0
        %vm980 = vcmp.ne.s16.totalorder %v975, 0
        %v981 = vsel %vm976, %v504, 0
        %v982 = vsel %vm977, %v505, 0
        %v983 = vsel %vm978, %v506, 0
        %v984 = vsel %vm979, %v919, 0
        %v985 = vsel %vm980, %v683, 0
        %986 = vst [vmem:[#allocation2 + $0x140] sm:$0xff] %v981
        %987 = vst [vmem:[#allocation2 + $0x148] sm:$0xff] %v982
        %988 = vst [vmem:[#allocation2 + $0x150] sm:$0xff] %v983
        %989 = vst [vmem:[#allocation2 + $0x158] sm:$0xff] %v984
        %990 = vst.msk [vmem:[#allocation2 + $0x160] sm:$0xff] %vm399, %v985
        %v991 = vld [vmem:[%s258] sm:$0xf]
        %v992 = vld [vmem:[#allocation2] sm:$0xff]
        %v993 = vld [vmem:[#allocation2 + $0x8] sm:$0xff]
        %v994 = vld [vmem:[#allocation2 + $0x10] sm:$0xff]
        %v995 = vld [vmem:[#allocation2 + $0x18] sm:$0xff]
        %v996 = vld [vmem:[#allocation2 + $0x20] sm:$0xff]
        %v997 = vld [vmem:[#allocation2 + $0x28] sm:$0xff]
        %v998 = vld [vmem:[#allocation2 + $0x30] sm:$0xff]
        %v999 = vld [vmem:[#allocation2 + $0x38] sm:$0xff]
        %v1000 = vld [vmem:[#allocation2 + $0x40] sm:$0xff]
        %v1001 = vld [vmem:[#allocation2 + $0x48] sm:$0xff]
        %v1002 = vld [vmem:[#allocation2 + $0x50] sm:$0xff]
        %v1003 = vld [vmem:[#allocation2 + $0x58] sm:$0xff]
        %v1004 = vld [vmem:[#allocation2 + $0x60] sm:$0xff]
        %v1005 = vld [vmem:[#allocation2 + $0x68] sm:$0xff]
        %v1006 = vld [vmem:[#allocation2 + $0x70] sm:$0xff]
        %v1007 = vld [vmem:[#allocation2 + $0x78] sm:$0xff]
        %v1008 = vld [vmem:[#allocation2 + $0x80] sm:$0xff]
        %v1009 = vld [vmem:[#allocation2 + $0x88] sm:$0xff]
        %v1010 = vld [vmem:[#allocation2 + $0x90] sm:$0xff]
        %v1011 = vld [vmem:[#allocation2 + $0x98] sm:$0xff]
        %v1012 = vld [vmem:[#allocation2 + $0xa0] sm:$0xff]
        %v1013 = vld [vmem:[#allocation2 + $0xa8] sm:$0xff]
        %v1014 = vld [vmem:[#allocation2 + $0xb0] sm:$0xff]
        %v1015 = vld [vmem:[#allocation2 + $0xb8] sm:$0xff]
        %v1016 = vld [vmem:[#allocation2 + $0xc0] sm:$0xff]
        %v1017 = vld [vmem:[#allocation2 + $0xc8] sm:$0xff]
        %v1018 = vld [vmem:[#allocation2 + $0xd0] sm:$0xff]
        %v1019 = vld [vmem:[#allocation2 + $0xd8] sm:$0xff]
        %v1020 = vld [vmem:[#allocation2 + $0xe0] sm:$0xff]
        %v1021 = vld [vmem:[#allocation2 + $0xe8] sm:$0xff]
        %v1022 = vld [vmem:[#allocation2 + $0xf0] sm:$0xff]
        %v1023 = vld [vmem:[#allocation2 + $0xf8] sm:$0xff]
        %v1024 = vld [vmem:[#allocation2 + $0x100] sm:$0xff]
        %v1025 = vld [vmem:[#allocation2 + $0x108] sm:$0xff]
        %v1026 = vld [vmem:[#allocation2 + $0x110] sm:$0xff]
        %v1027 = vld [vmem:[#allocation2 + $0x118] sm:$0xff]
        %v1028 = vld [vmem:[#allocation2 + $0x120] sm:$0xff]
        %v1029 = vld [vmem:[#allocation2 + $0x128] sm:$0xff]
        %v1030 = vld [vmem:[#allocation2 + $0x130] sm:$0xff]
        %v1031 = vld [vmem:[#allocation2 + $0x138] sm:$0xff]
        %v1032 = vld [vmem:[#allocation2 + $0x140] sm:$0xff]
        %v1033 = vld [vmem:[#allocation2 + $0x148] sm:$0xff]
        %v1034 = vld [vmem:[#allocation2 + $0x150] sm:$0xff]
        %v1035 = vld [vmem:[#allocation2 + $0x158] sm:$0xff]
        %v1036 = vld [vmem:[#allocation2 + $0x160] sm:$0xff]
        %v1037 = vld [vmem:[%s263] sm:$0xf]
        %1039 = vset.pattern.permute.xlu0 0
        %1040 = vperm.xlu0 %1039, %v1037
        %v1041 = vpop.permute.xlu0 %1040
        %v1045 = vunpack.c.l.s4 1983009808
        %v1046 = vunpack.c.0.s8 %v1045
        %v1047 = vlaneseq
        %v1048 = vshrl.u32 %v1047, 7
        %v1049 = vsub.s32 %v1046, %v1048
        %v1050 = vrot.slane %v991, %v1049
        %v1051 = vcombine.high %v1050, %v1050
        %vm1053 = vcmask 130048
        %v1055 = vsel %vm1053, %v1051, 0
        %1057 = vmatprep.subr.bf16.mxu0 %v993
        %1058 = vmatpush1.bf16.msra.mxu0 %v992
        %1059 = vmatprep.subr.bf16.mxu0 %v998
        %1060 = vmatpush1.bf16.msra.mxu0 %v997
        %1061 = vmatprep.subr.bf16.mxu0 %v1003
        %1062 = vmatpush1.bf16.msra.mxu0 %v1002
        %1063 = vmatprep.subr.bf16.mxu0 %v1008
        %1064 = vmatpush1.bf16.msra.mxu0 %v1007
        %1065 = vmatprep.subr.bf16.mxu0 %v1013
        %1066 = vmatpush1.bf16.msra.mxu0 %v1012
        %1067 = vmatprep.subr.bf16.mxu0 %v1018
        %1068 = vmatpush1.bf16.msra.mxu0 %v1017
        %1069 = vmatprep.subr.bf16.mxu0 %v1023
        %1070 = vmatpush1.bf16.msra.mxu0 %v1022
        %1071 = vmatprep.subr.bf16.mxu0 %v1028
        %1072 = vmatpush1.bf16.msra.mxu0 %v1027
        %1073 = vmatprep.subr.bf16.mxu0 %v1033
        %1074 = vmatpush1.bf16.msra.mxu0 %v1032
        %1075 = vmatprep.subr.bf16.mxu0 0
        %1076 = vmatpush1.bf16.msra.mxu0 0
        %1077 = vmatprep.subr.bf16.mxu0 0
        %1078 = vmatpush1.bf16.msra.mxu0 0
        %1079 = vmatprep.subr.bf16.mxu0 0
        %1080 = vmatpush1.bf16.msra.mxu0 0
        %1081 = vmatprep.subr.bf16.mxu0 0
        %1082 = vmatpush1.bf16.msra.mxu0 0
        %1083 = vmatprep.subr.bf16.mxu0 0
        %1084 = vmatpush1.bf16.msra.mxu0 0
        %1085 = vmatprep.subr.bf16.mxu0 0
        %1086 = vmatpush1.bf16.msra.mxu0 0
        %1087 = vmatprep.subr.bf16.mxu0 0
        %1088 = vmatpush1.bf16.msra.mxu0 0
        %1089 = vmatprep.mubr.bf16.mxu0 %v1055
        %1090 = vmatmul.mubr.bf16.gmra.mrb[0].mxu0 %v1050
        %v1091 = vpop.f32.mrb[0].mxu0
        %v1092 = vadd.f32 %v1041, %v1091
        %v1093 = vpop.f32.mrb[0].mxu0
        %v1094 = vadd.f32 %v1041, %v1093
        %v1095 = vpop.f32.mrb[0].mxu0
        %v1096 = vpop.f32.mrb[0].mxu0
        %1097 = vdwg.mxu0
        %1098 = vmatprep.subr.bf16.mxu0 %v995
        %1099 = vmatpush1.bf16.msra.mxu0 %v994
        %1100 = vmatprep.subr.bf16.mxu0 %v1000
        %1101 = vmatpush1.bf16.msra.mxu0 %v999
        %1102 = vmatprep.subr.bf16.mxu0 %v1005
        %1103 = vmatpush1.bf16.msra.mxu0 %v1004
        %1104 = vmatprep.subr.bf16.mxu0 %v1010
        %1105 = vmatpush1.bf16.msra.mxu0 %v1009
        %1106 = vmatprep.subr.bf16.mxu0 %v1015
        %1107 = vmatpush1.bf16.msra.mxu0 %v1014
        %1108 = vmatprep.subr.bf16.mxu0 %v1020
        %1109 = vmatpush1.bf16.msra.mxu0 %v1019
        %1110 = vmatprep.subr.bf16.mxu0 %v1025
        %1111 = vmatpush1.bf16.msra.mxu0 %v1024
        %1112 = vmatprep.subr.bf16.mxu0 %v1030
        %1113 = vmatpush1.bf16.msra.mxu0 %v1029
        %1114 = vmatprep.subr.bf16.mxu0 %v1035
        %1115 = vmatpush1.bf16.msra.mxu0 %v1034
        %1116 = vmatprep.subr.bf16.mxu0 0
        %1117 = vmatpush1.bf16.msra.mxu0 0
        %1118 = vmatprep.subr.bf16.mxu0 0
        %1119 = vmatpush1.bf16.msra.mxu0 0
        %1120 = vmatprep.subr.bf16.mxu0 0
        %1121 = vmatpush1.bf16.msra.mxu0 0
        %1122 = vmatprep.subr.bf16.mxu0 0
        %1123 = vmatpush1.bf16.msra.mxu0 0
        %1124 = vmatprep.subr.bf16.mxu0 0
        %1125 = vmatpush1.bf16.msra.mxu0 0
        %1126 = vmatprep.subr.bf16.mxu0 0
        %1127 = vmatpush1.bf16.msra.mxu0 0
        %1128 = vmatprep.subr.bf16.mxu0 0
        %1129 = vmatpush1.bf16.msra.mxu0 0
        %1130 = vmatprep.mubr.bf16.mxu0 %v1055
        %1131 = vmatmul.mubr.bf16.gmra.mrb[0].mxu0 %v1050
        %v1132 = vpop.f32.mrb[0].mxu0
        %v1133 = vadd.f32 %v1041, %v1132
        %v1134 = vpop.f32.mrb[0].mxu0
        %v1135 = vadd.f32 %v1041, %v1134
        %v1136 = vpop.f32.mrb[0].mxu0
        %v1137 = vpop.f32.mrb[0].mxu0
        %1138 = vdwg.mxu0
        %1139 = vmatprep.subr.bf16.mxu0 0
        %1140 = vmatpush1.bf16.msra.mxu0 %v996
        %1141 = vmatprep.subr.bf16.mxu0 0
        %1142 = vmatpush1.bf16.msra.mxu0 %v1001
        %1143 = vmatprep.subr.bf16.mxu0 0
        %1144 = vmatpush1.bf16.msra.mxu0 %v1006
        %1145 = vmatprep.subr.bf16.mxu0 0
        %1146 = vmatpush1.bf16.msra.mxu0 %v1011
        %1147 = vmatprep.subr.bf16.mxu0 0
        %1148 = vmatpush1.bf16.msra.mxu0 %v1016
        %1149 = vmatprep.subr.bf16.mxu0 0
        %1150 = vmatpush1.bf16.msra.mxu0 %v1021
        %1151 = vmatprep.subr.bf16.mxu0 0
        %1152 = vmatpush1.bf16.msra.mxu0 %v1026
        %1153 = vmatprep.subr.bf16.mxu0 0
        %1154 = vmatpush1.bf16.msra.mxu0 %v1031
        %1155 = vmatprep.subr.bf16.mxu0 0
        %1156 = vmatpush1.bf16.msra.mxu0 %v1036
        %1157 = vmatprep.subr.bf16.mxu0 0
        %1158 = vmatpush1.bf16.msra.mxu0 0
        %1159 = vmatprep.subr.bf16.mxu0 0
        %1160 = vmatpush1.bf16.msra.mxu0 0
        %1161 = vmatprep.subr.bf16.mxu0 0
        %1162 = vmatpush1.bf16.msra.mxu0 0
        %1163 = vmatprep.subr.bf16.mxu0 0
        %1164 = vmatpush1.bf16.msra.mxu0 0
        %1165 = vmatprep.subr.bf16.mxu0 0
        %1166 = vmatpush1.bf16.msra.mxu0 0
        %1167 = vmatprep.subr.bf16.mxu0 0
        %1168 = vmatpush1.bf16.msra.mxu0 0
        %1169 = vmatprep.subr.bf16.mxu0 0
        %1170 = vmatpush1.bf16.msra.mxu0 0
        %1171 = vmatprep.mubr.bf16.mxu0 %v1055
        %1172 = vmatmul.mubr.bf16.gmra.mrb[0].mxu0 %v1050
        %v1173 = vpop.f32.mrb[0].mxu0
        %v1174 = vadd.f32 %v1041, %v1173
        %v1175 = vpop.f32.mrb[0].mxu0
        %v1176 = vpop.f32.mrb[0].mxu0
        %v1177 = vpop.f32.mrb[0].mxu0
        %1178 = vdwg.mxu0
        %vm1179 = vcmp.ge.f32.partialorder %v1092, 0.0
        %vm1180 = vcmp.ge.f32.partialorder %v1094, 0.0
        %vm1181 = vcmp.ge.f32.partialorder %v1133, 0.0
        %vm1182 = vcmp.ge.f32.partialorder %v1135, 0.0
        %vm1183 = vcmp.ge.f32.partialorder %v1174, 0.0
        %s1184 = scalar_lea.vmem %s263, 4
        %v1185 = vld [vmem:[%s1184] sm:$0xf]
        %1187 = vset.pattern.permute.xlu0 0
        %1188 = vperm.xlu0 %1187, %v1185
        %v1189 = vpop.permute.xlu0 %1188
        %v1191 = vmul.f32 %v1189, %v1092
        %v1192 = vmul.f32 %v1189, %v1094
        %v1193 = vmul.f32 %v1189, %v1133
        %v1194 = vmul.f32 %v1189, %v1135
        %v1195 = vmul.f32 %v1189, %v1174
        %v1196 = vsel %vm1179, %v1092, %v1191
        %v1197 = vsel %vm1180, %v1094, %v1192
        %v1198 = vsel %vm1181, %v1133, %v1193
        %v1199 = vsel %vm1182, %v1135, %v1194
        %v1200 = vsel %vm1183, %v1174, %v1195
        %v1205 = vcombine.low %v1196, %v1197
        %v1206 = vcombine.low %v1198, %v1199
        %1209 = vst [vmem:[%s276] sm:$0xff] %v1205
        %1210 = vst [vmem:[%s276 + $0x8] sm:$0xff] %v1206
        %vm1211 = vcmask 519168
        %1212 = vst.msk [vmem:[%s276 + $0x10] sm:$0xf] %vm1211, %v1200
      $region40: #{mdfa_forward.4} parent=35 // pred_fallthru
        _
      %p1213 = scmp.eq.s32.totalorder %s20, 1
      // Predicated region
      $region41: #{mdfa_forward.4} parent=35 // pred_check
        %p1214 = pneg %p1213
      $region42: #{mdfa_forward.4} parent=35 // pred_check_branch
        %1216 = sbr.rel (%p1214) target = $region44
      $region43: #{mdfa_forward.4} parent=35 // pred_region
        %1220 = vrot.lane.b32.xlu0 %v292, 8
        %v1221 = vpop.permute.xlu0 %1220
        %1222 = vrot.lane.b32.xlu0 %v293, 8
        %v1223 = vpop.permute.xlu0 %1222
        %1224 = vrot.lane.b32.xlu0 %v294, 8
        %v1225 = vpop.permute.xlu0 %1224
        %vm1226 = vcmask 64512
        %v1227 = vsel %vm1226, %v1221, %v1223
        %v1228 = vsel %vm1226, %v1223, %v1225
        %1232 = vrot.lane.b32.xlu0 %v290, 72
        %v1233 = vpop.permute.xlu0 %1232
        %1234 = vrot.lane.b32.xlu0 %v291, 72
        %v1235 = vpop.permute.xlu0 %1234
        %1236 = vrot.lane.b32.xlu0 %v292, 72
        %v1237 = vpop.permute.xlu0 %1236
        %vm1238 = vcmask 588800
        %v1239 = vsel %vm1238, %v1233, %v1235
        %v1240 = vsel %vm1238, %v1235, %v1237
        %vm1244 = vcmask 588800
        %v1247 = vsel %vm1244, %v1228, %v1233
        %v1249 = vld [vmem:[%s267] sm:$0x1f]
        %vm1250 = vcmp.gt.f32.partialorder %v1249, 0.5
        %v1251 = vsel %vm1250, 1, 0
        %v1252 = vlaneseq
        %v1253 = vshrl.u32 %v1252, 7
        %v1254 = vsub.s32 0, %v1253
        %v1255 = vrot.slane %v1251, %v1254
        %v1256 = vlaneseq
        %v1257 = vshrl.u32 %v1256, 7
        %v1258 = vsub.s32 1, %v1257
        %v1259 = vrot.slane %v1251, %v1258
        %v1260 = vlaneseq
        %v1261 = vshrl.u32 %v1260, 7
        %v1262 = vsub.s32 2, %v1261
        %v1263 = vrot.slane %v1251, %v1262
        %v1264 = vlaneseq
        %v1265 = vshrl.u32 %v1264, 7
        %v1266 = vsub.s32 3, %v1265
        %v1267 = vrot.slane %v1251, %v1266
        %v1268 = vlaneseq
        %v1269 = vshrl.u32 %v1268, 7
        %v1270 = vsub.s32 4, %v1269
        %v1271 = vrot.slane %v1251, %v1270
        %vm1272 = vcmp.eq.s32.totalorder %v1255, 1
        %vm1273 = vcmp.eq.s32.totalorder %v1259, 1
        %vm1274 = vcmp.eq.s32.totalorder %v1263, 1
        %vm1275 = vcmp.eq.s32.totalorder %v1267, 1
        %vm1276 = vcmp.eq.s32.totalorder %v1271, 1
        %vm1277 = vmpackc.low %vm1273, %vm1272
        %vm1278 = vmpackc.low %vm1275, %vm1274
        %vm1279 = vmpackc.low %vm1276, %vm1276
        %v1280 = vsel %vm1277, 65537, 0
        %v1281 = vsel %vm1278, 65537, 0
        %v1282 = vsel %vm1279, 65537, 0
        %v1283 = vlaneseq
        %v1284 = vshrl.u32 %v1283, 7
        %v1285 = vsub.s32 0, %v1284
        %v1286 = vrot.slane %v1280, %v1285
        %v1287 = vlaneseq
        %v1288 = vshrl.u32 %v1287, 7
        %v1289 = vsub.s32 4, %v1288
        %v1290 = vrot.slane %v1280, %v1289
        %v1291 = vlaneseq
        %v1292 = vshrl.u32 %v1291, 7
        %v1293 = vsub.s32 0, %v1292
        %v1294 = vrot.slane %v1281, %v1293
        %v1295 = vlaneseq
        %v1296 = vshrl.u32 %v1295, 7
        %v1297 = vsub.s32 4, %v1296
        %v1298 = vrot.slane %v1281, %v1297
        %v1299 = vlaneseq
        %v1300 = vshrl.u32 %v1299, 7
        %v1301 = vsub.s32 0, %v1300
        %v1302 = vrot.slane %v1282, %v1301
        %vm1303 = vcmp.ne.s16.totalorder %v1286, 0
        %vm1304 = vcmp.ne.s16.totalorder %v1290, 0
        %vm1305 = vcmp.ne.s16.totalorder %v1294, 0
        %vm1306 = vcmp.ne.s16.totalorder %v1298, 0
        %vm1307 = vcmp.ne.s16.totalorder %v1302, 0
        %v1308 = vsel %vm1303, %v1227, 0
        %v1309 = vsel %vm1304, %v1247, 0
        %v1310 = vsel %vm1305, %v1239, 0
        %v1311 = vsel %vm1306, %v1240, 0
        %v1312 = vsel %vm1307, %v1237, 0
        %1313 = vst [vmem:[#allocation2] sm:$0xff] %v1308
        %1314 = vst [vmem:[#allocation2 + $0x8] sm:$0xff] %v1309
        %1315 = vst [vmem:[#allocation2 + $0x10] sm:$0xff] %v1310
        %1316 = vst [vmem:[#allocation2 + $0x18] sm:$0xff] %v1311
        %vm1317 = vcmask 523264
        %1318 = vst.msk [vmem:[#allocation2 + $0x20] sm:$0xff] %vm1317, %v1312
        %1319 = vrot.lane.b32.xlu0 %v290, 64
        %v1320 = vpop.permute.xlu0 %1319
        %1321 = vrot.lane.b32.xlu0 %v291, 64
        %v1322 = vpop.permute.xlu0 %1321
        %1323 = vrot.lane.b32.xlu0 %v292, 64
        %v1324 = vpop.permute.xlu0 %1323
        %vm1325 = vcmask 523264
        %v1326 = vsel %vm1325, %v1320, %v1322
        %v1327 = vsel %vm1325, %v1322, %v1324
        %v1333 = vsel %vm1317, %v294, %v1320
        %s1335 = scalar_lea.vmem %s267, 5
        %v1336 = vld [vmem:[%s1335] sm:$0x1f]
        %vm1337 = vcmp.gt.f32.partialorder %v1336, 0.5
        %v1338 = vsel %vm1337, 1, 0
        %v1339 = vlaneseq
        %v1340 = vshrl.u32 %v1339, 7
        %v1341 = vsub.s32 0, %v1340
        %v1342 = vrot.slane %v1338, %v1341
        %v1343 = vlaneseq
        %v1344 = vshrl.u32 %v1343, 7
        %v1345 = vsub.s32 1, %v1344
        %v1346 = vrot.slane %v1338, %v1345
        %v1347 = vlaneseq
        %v1348 = vshrl.u32 %v1347, 7
        %v1349 = vsub.s32 2, %v1348
        %v1350 = vrot.slane %v1338, %v1349
        %v1351 = vlaneseq
        %v1352 = vshrl.u32 %v1351, 7
        %v1353 = vsub.s32 3, %v1352
        %v1354 = vrot.slane %v1338, %v1353
        %v1355 = vlaneseq
        %v1356 = vshrl.u32 %v1355, 7
        %v1357 = vsub.s32 4, %v1356
        %v1358 = vrot.slane %v1338, %v1357
        %vm1359 = vcmp.eq.s32.totalorder %v1342, 1
        %vm1360 = vcmp.eq.s32.totalorder %v1346, 1
        %vm1361 = vcmp.eq.s32.totalorder %v1350, 1
        %vm1362 = vcmp.eq.s32.totalorder %v1354, 1
        %vm1363 = vcmp.eq.s32.totalorder %v1358, 1
        %vm1364 = vmpackc.low %vm1360, %vm1359
        %vm1365 = vmpackc.low %vm1362, %vm1361
        %vm1366 = vmpackc.low %vm1363, %vm1363
        %v1367 = vsel %vm1364, 65537, 0
        %v1368 = vsel %vm1365, 65537, 0
        %v1369 = vsel %vm1366, 65537, 0
        %v1370 = vlaneseq
        %v1371 = vshrl.u32 %v1370, 7
        %v1372 = vsub.s32 0, %v1371
        %v1373 = vrot.slane %v1367, %v1372
        %v1374 = vlaneseq
        %v1375 = vshrl.u32 %v1374, 7
        %v1376 = vsub.s32 4, %v1375
        %v1377 = vrot.slane %v1367, %v1376
        %v1378 = vlaneseq
        %v1379 = vshrl.u32 %v1378, 7
        %v1380 = vsub.s32 0, %v1379
        %v1381 = vrot.slane %v1368, %v1380
        %v1382 = vlaneseq
        %v1383 = vshrl.u32 %v1382, 7
        %v1384 = vsub.s32 4, %v1383
        %v1385 = vrot.slane %v1368, %v1384
        %v1386 = vlaneseq
        %v1387 = vshrl.u32 %v1386, 7
        %v1388 = vsub.s32 0, %v1387
        %v1389 = vrot.slane %v1369, %v1388
        %vm1390 = vcmp.ne.s16.totalorder %v1373, 0
        %vm1391 = vcmp.ne.s16.totalorder %v1377, 0
        %vm1392 = vcmp.ne.s16.totalorder %v1381, 0
        %vm1393 = vcmp.ne.s16.totalorder %v1385, 0
        %vm1394 = vcmp.ne.s16.totalorder %v1389, 0
        %v1395 = vsel %vm1390, %v293, 0
        %v1396 = vsel %vm1391, %v1333, 0
        %v1397 = vsel %vm1392, %v1326, 0
        %v1398 = vsel %vm1393, %v1327, 0
        %v1399 = vsel %vm1394, %v1324, 0
        %1400 = vst [vmem:[#allocation2 + $0x28] sm:$0xff] %v1395
        %1401 = vst [vmem:[#allocation2 + $0x30] sm:$0xff] %v1396
        %1402 = vst [vmem:[#allocation2 + $0x38] sm:$0xff] %v1397
        %1403 = vst [vmem:[#allocation2 + $0x40] sm:$0xff] %v1398
        %1404 = vst.msk [vmem:[#allocation2 + $0x48] sm:$0xff] %vm1317, %v1399
        %1405 = vrot.lane.b32.xlu0 %v293, 120
        %v1406 = vpop.permute.xlu0 %1405
        %1407 = vrot.lane.b32.xlu0 %v294, 120
        %v1408 = vpop.permute.xlu0 %1407
        %vm1409 = vcmask 982016
        %v1410 = vsel %vm1409, %v1406, %v1408
        %1412 = vrot.lane.b32.xlu0 %v290, 56
        %v1413 = vpop.permute.xlu0 %1412
        %1414 = vrot.lane.b32.xlu0 %v291, 56
        %v1415 = vpop.permute.xlu0 %1414
        %1416 = vrot.lane.b32.xlu0 %v292, 56
        %v1417 = vpop.permute.xlu0 %1416
        %1418 = vrot.lane.b32.xlu0 %v293, 56
        %v1419 = vpop.permute.xlu0 %1418
        %vm1420 = vcmask 457728
        %v1421 = vsel %vm1420, %v1413, %v1415
        %v1422 = vsel %vm1420, %v1415, %v1417
        %v1423 = vsel %vm1420, %v1417, %v1419
        %vm1427 = vcmask 457728
        %v1430 = vsel %vm1427, %v1408, %v1413
        %s1432 = scalar_lea.vmem %s267, 10
        %v1433 = vld [vmem:[%s1432] sm:$0x1f]
        %vm1434 = vcmp.gt.f32.partialorder %v1433, 0.5
        %v1435 = vsel %vm1434, 1, 0
        %v1436 = vlaneseq
        %v1437 = vshrl.u32 %v1436, 7
        %v1438 = vsub.s32 0, %v1437
        %v1439 = vrot.slane %v1435, %v1438
        %v1440 = vlaneseq
        %v1441 = vshrl.u32 %v1440, 7
        %v1442 = vsub.s32 1, %v1441
        %v1443 = vrot.slane %v1435, %v1442
        %v1444 = vlaneseq
        %v1445 = vshrl.u32 %v1444, 7
        %v1446 = vsub.s32 2, %v1445
        %v1447 = vrot.slane %v1435, %v1446
        %v1448 = vlaneseq
        %v1449 = vshrl.u32 %v1448, 7
        %v1450 = vsub.s32 3, %v1449
        %v1451 = vrot.slane %v1435, %v1450
        %v1452 = vlaneseq
        %v1453 = vshrl.u32 %v1452, 7
        %v1454 = vsub.s32 4, %v1453
        %v1455 = vrot.slane %v1435, %v1454
        %vm1456 = vcmp.eq.s32.totalorder %v1439, 1
        %vm1457 = vcmp.eq.s32.totalorder %v1443, 1
        %vm1458 = vcmp.eq.s32.totalorder %v1447, 1
        %vm1459 = vcmp.eq.s32.totalorder %v1451, 1
        %vm1460 = vcmp.eq.s32.totalorder %v1455, 1
        %vm1461 = vmpackc.low %vm1457, %vm1456
        %vm1462 = vmpackc.low %vm1459, %vm1458
        %vm1463 = vmpackc.low %vm1460, %vm1460
        %v1464 = vsel %vm1461, 65537, 0
        %v1465 = vsel %vm1462, 65537, 0
        %v1466 = vsel %vm1463, 65537, 0
        %v1467 = vlaneseq
        %v1468 = vshrl.u32 %v1467, 7
        %v1469 = vsub.s32 0, %v1468
        %v1470 = vrot.slane %v1464, %v1469
        %v1471 = vlaneseq
        %v1472 = vshrl.u32 %v1471, 7
        %v1473 = vsub.s32 4, %v1472
        %v1474 = vrot.slane %v1464, %v1473
        %v1475 = vlaneseq
        %v1476 = vshrl.u32 %v1475, 7
        %v1477 = vsub.s32 0, %v1476
        %v1478 = vrot.slane %v1465, %v1477
        %v1479 = vlaneseq
        %v1480 = vshrl.u32 %v1479, 7
        %v1481 = vsub.s32 4, %v1480
        %v1482 = vrot.slane %v1465, %v1481
        %v1483 = vlaneseq
        %v1484 = vshrl.u32 %v1483, 7
        %v1485 = vsub.s32 0, %v1484
        %v1486 = vrot.slane %v1466, %v1485
        %vm1487 = vcmp.ne.s16.totalorder %v1470, 0
        %vm1488 = vcmp.ne.s16.totalorder %v1474, 0
        %vm1489 = vcmp.ne.s16.totalorder %v1478, 0
        %vm1490 = vcmp.ne.s16.totalorder %v1482, 0
        %vm1491 = vcmp.ne.s16.totalorder %v1486, 0
        %v1492 = vsel %vm1487, %v1410, 0
        %v1493 = vsel %vm1488, %v1430, 0
        %v1494 = vsel %vm1489, %v1421, 0
        %v1495 = vsel %vm1490, %v1422, 0
        %v1496 = vsel %vm1491, %v1423, 0
        %1497 = vst [vmem:[#allocation2 + $0x50] sm:$0xff] %v1492
        %1498 = vst [vmem:[#allocation2 + $0x58] sm:$0xff] %v1493
        %1499 = vst [vmem:[#allocation2 + $0x60] sm:$0xff] %v1494
        %1500 = vst [vmem:[#allocation2 + $0x68] sm:$0xff] %v1495
        %1501 = vst.msk [vmem:[#allocation2 + $0x70] sm:$0xff] %vm1317, %v1496
        %1502 = vrot.lane.b32.xlu0 %v294, 72
        %v1503 = vpop.permute.xlu0 %1502
        %1504 = vrot.lane.b32.xlu0 %v290, 8
        %v1505 = vpop.permute.xlu0 %1504
        %1506 = vrot.lane.b32.xlu0 %v291, 8
        %v1507 = vpop.permute.xlu0 %1506
        %v1508 = vsel %vm1226, %v1505, %v1507
        %v1509 = vsel %vm1226, %v1507, %v1221
        %vm1513 = vcmask 64512
        %v1516 = vsel %vm1513, %v1503, %v1505
        %s1518 = scalar_lea.vmem %s267, 15
        %v1519 = vld [vmem:[%s1518] sm:$0x1f]
        %vm1520 = vcmp.gt.f32.partialorder %v1519, 0.5
        %v1521 = vsel %vm1520, 1, 0
        %v1522 = vlaneseq
        %v1523 = vshrl.u32 %v1522, 7
        %v1524 = vsub.s32 0, %v1523
        %v1525 = vrot.slane %v1521, %v1524
        %v1526 = vlaneseq
        %v1527 = vshrl.u32 %v1526, 7
        %v1528 = vsub.s32 1, %v1527
        %v1529 = vrot.slane %v1521, %v1528
        %v1530 = vlaneseq
        %v1531 = vshrl.u32 %v1530, 7
        %v1532 = vsub.s32 2, %v1531
        %v1533 = vrot.slane %v1521, %v1532
        %v1534 = vlaneseq
        %v1535 = vshrl.u32 %v1534, 7
        %v1536 = vsub.s32 3, %v1535
        %v1537 = vrot.slane %v1521, %v1536
        %v1538 = vlaneseq
        %v1539 = vshrl.u32 %v1538, 7
        %v1540 = vsub.s32 4, %v1539
        %v1541 = vrot.slane %v1521, %v1540
        %vm1542 = vcmp.eq.s32.totalorder %v1525, 1
        %vm1543 = vcmp.eq.s32.totalorder %v1529, 1
        %vm1544 = vcmp.eq.s32.totalorder %v1533, 1
        %vm1545 = vcmp.eq.s32.totalorder %v1537, 1
        %vm1546 = vcmp.eq.s32.totalorder %v1541, 1
        %vm1547 = vmpackc.low %vm1543, %vm1542
        %vm1548 = vmpackc.low %vm1545, %vm1544
        %vm1549 = vmpackc.low %vm1546, %vm1546
        %v1550 = vsel %vm1547, 65537, 0
        %v1551 = vsel %vm1548, 65537, 0
        %v1552 = vsel %vm1549, 65537, 0
        %v1553 = vlaneseq
        %v1554 = vshrl.u32 %v1553, 7
        %v1555 = vsub.s32 0, %v1554
        %v1556 = vrot.slane %v1550, %v1555
        %v1557 = vlaneseq
        %v1558 = vshrl.u32 %v1557, 7
        %v1559 = vsub.s32 4, %v1558
        %v1560 = vrot.slane %v1550, %v1559
        %v1561 = vlaneseq
        %v1562 = vshrl.u32 %v1561, 7
        %v1563 = vsub.s32 0, %v1562
        %v1564 = vrot.slane %v1551, %v1563
        %v1565 = vlaneseq
        %v1566 = vshrl.u32 %v1565, 7
        %v1567 = vsub.s32 4, %v1566
        %v1568 = vrot.slane %v1551, %v1567
        %v1569 = vlaneseq
        %v1570 = vshrl.u32 %v1569, 7
        %v1571 = vsub.s32 0, %v1570
        %v1572 = vrot.slane %v1552, %v1571
        %vm1573 = vcmp.ne.s16.totalorder %v1556, 0
        %vm1574 = vcmp.ne.s16.totalorder %v1560, 0
        %vm1575 = vcmp.ne.s16.totalorder %v1564, 0
        %vm1576 = vcmp.ne.s16.totalorder %v1568, 0
        %vm1577 = vcmp.ne.s16.totalorder %v1572, 0
        %v1578 = vsel %vm1573, %v1516, 0
        %v1579 = vsel %vm1574, %v1508, 0
        %v1580 = vsel %vm1575, %v1509, 0
        %v1581 = vsel %vm1576, %v1227, 0
        %v1582 = vsel %vm1577, %v1228, 0
        %1583 = vst [vmem:[#allocation2 + $0x78] sm:$0xff] %v1578
        %1584 = vst [vmem:[#allocation2 + $0x80] sm:$0xff] %v1579
        %1585 = vst [vmem:[#allocation2 + $0x88] sm:$0xff] %v1580
        %1586 = vst [vmem:[#allocation2 + $0x90] sm:$0xff] %v1581
        %1587 = vst.msk [vmem:[#allocation2 + $0x98] sm:$0xff] %vm1317, %v1582
        %1588 = vst [vmem:[#allocation2 + $0xa0] sm:$0xff] %v290
        %1589 = vst [vmem:[#allocation2 + $0xa8] sm:$0xff] %v291
        %1590 = vst [vmem:[#allocation2 + $0xb0] sm:$0xff] %v292
        %1591 = vst [vmem:[#allocation2 + $0xb8] sm:$0xff] %v293
        %1592 = vst.msk [vmem:[#allocation2 + $0xc0] sm:$0xff] %vm1317, %v294
        %1593 = vrot.lane.b32.xlu0 %v290, 120
        %v1594 = vpop.permute.xlu0 %1593
        %1595 = vrot.lane.b32.xlu0 %v291, 120
        %v1596 = vpop.permute.xlu0 %1595
        %1597 = vrot.lane.b32.xlu0 %v292, 120
        %v1598 = vpop.permute.xlu0 %1597
        %v1599 = vsel %vm1409, %v1594, %v1596
        %v1600 = vsel %vm1409, %v1596, %v1598
        %v1601 = vsel %vm1409, %v1598, %v1406
        %s1605 = scalar_lea.vmem %s267, 25
        %v1606 = vld [vmem:[%s1605] sm:$0x1f]
        %vm1607 = vcmp.gt.f32.partialorder %v1606, 0.5
        %v1608 = vsel %vm1607, 1, 0
        %v1609 = vlaneseq
        %v1610 = vshrl.u32 %v1609, 7
        %v1611 = vsub.s32 0, %v1610
        %v1612 = vrot.slane %v1608, %v1611
        %v1613 = vlaneseq
        %v1614 = vshrl.u32 %v1613, 7
        %v1615 = vsub.s32 1, %v1614
        %v1616 = vrot.slane %v1608, %v1615
        %v1617 = vlaneseq
        %v1618 = vshrl.u32 %v1617, 7
        %v1619 = vsub.s32 2, %v1618
        %v1620 = vrot.slane %v1608, %v1619
        %v1621 = vlaneseq
        %v1622 = vshrl.u32 %v1621, 7
        %v1623 = vsub.s32 3, %v1622
        %v1624 = vrot.slane %v1608, %v1623
        %v1625 = vlaneseq
        %v1626 = vshrl.u32 %v1625, 7
        %v1627 = vsub.s32 4, %v1626
        %v1628 = vrot.slane %v1608, %v1627
        %vm1629 = vcmp.eq.s32.totalorder %v1612, 1
        %vm1630 = vcmp.eq.s32.totalorder %v1616, 1
        %vm1631 = vcmp.eq.s32.totalorder %v1620, 1
        %vm1632 = vcmp.eq.s32.totalorder %v1624, 1
        %vm1633 = vcmp.eq.s32.totalorder %v1628, 1
        %vm1634 = vmpackc.low %vm1630, %vm1629
        %vm1635 = vmpackc.low %vm1632, %vm1631
        %vm1636 = vmpackc.low %vm1633, %vm1633
        %v1637 = vsel %vm1634, 65537, 0
        %v1638 = vsel %vm1635, 65537, 0
        %v1639 = vsel %vm1636, 65537, 0
        %v1640 = vlaneseq
        %v1641 = vshrl.u32 %v1640, 7
        %v1642 = vsub.s32 0, %v1641
        %v1643 = vrot.slane %v1637, %v1642
        %v1644 = vlaneseq
        %v1645 = vshrl.u32 %v1644, 7
        %v1646 = vsub.s32 4, %v1645
        %v1647 = vrot.slane %v1637, %v1646
        %v1648 = vlaneseq
        %v1649 = vshrl.u32 %v1648, 7
        %v1650 = vsub.s32 0, %v1649
        %v1651 = vrot.slane %v1638, %v1650
        %v1652 = vlaneseq
        %v1653 = vshrl.u32 %v1652, 7
        %v1654 = vsub.s32 4, %v1653
        %v1655 = vrot.slane %v1638, %v1654
        %v1656 = vlaneseq
        %v1657 = vshrl.u32 %v1656, 7
        %v1658 = vsub.s32 0, %v1657
        %v1659 = vrot.slane %v1639, %v1658
        %vm1660 = vcmp.ne.s16.totalorder %v1643, 0
        %vm1661 = vcmp.ne.s16.totalorder %v1647, 0
        %vm1662 = vcmp.ne.s16.totalorder %v1651, 0
        %vm1663 = vcmp.ne.s16.totalorder %v1655, 0
        %vm1664 = vcmp.ne.s16.totalorder %v1659, 0
        %v1665 = vsel %vm1660, %v1599, 0
        %v1666 = vsel %vm1661, %v1600, 0
        %v1667 = vsel %vm1662, %v1601, 0
        %v1668 = vsel %vm1663, %v1410, 0
        %v1669 = vsel %vm1664, %v1430, 0
        %1670 = vst [vmem:[#allocation2 + $0xc8] sm:$0xff] %v1665
        %1671 = vst [vmem:[#allocation2 + $0xd0] sm:$0xff] %v1666
        %1672 = vst [vmem:[#allocation2 + $0xd8] sm:$0xff] %v1667
        %1673 = vst [vmem:[#allocation2 + $0xe0] sm:$0xff] %v1668
        %1674 = vst.msk [vmem:[#allocation2 + $0xe8] sm:$0xff] %vm1317, %v1669
        %1675 = vrot.lane.b32.xlu0 %v293, 72
        %v1676 = vpop.permute.xlu0 %1675
        %v1677 = vsel %vm1238, %v1237, %v1676
        %v1678 = vsel %vm1238, %v1676, %v1503
        %s1681 = scalar_lea.vmem %s267, 30
        %v1682 = vld [vmem:[%s1681] sm:$0x1f]
        %vm1683 = vcmp.gt.f32.partialorder %v1682, 0.5
        %v1684 = vsel %vm1683, 1, 0
        %v1685 = vlaneseq
        %v1686 = vshrl.u32 %v1685, 7
        %v1687 = vsub.s32 0, %v1686
        %v1688 = vrot.slane %v1684, %v1687
        %v1689 = vlaneseq
        %v1690 = vshrl.u32 %v1689, 7
        %v1691 = vsub.s32 1, %v1690
        %v1692 = vrot.slane %v1684, %v1691
        %v1693 = vlaneseq
        %v1694 = vshrl.u32 %v1693, 7
        %v1695 = vsub.s32 2, %v1694
        %v1696 = vrot.slane %v1684, %v1695
        %v1697 = vlaneseq
        %v1698 = vshrl.u32 %v1697, 7
        %v1699 = vsub.s32 3, %v1698
        %v1700 = vrot.slane %v1684, %v1699
        %v1701 = vlaneseq
        %v1702 = vshrl.u32 %v1701, 7
        %v1703 = vsub.s32 4, %v1702
        %v1704 = vrot.slane %v1684, %v1703
        %vm1705 = vcmp.eq.s32.totalorder %v1688, 1
        %vm1706 = vcmp.eq.s32.totalorder %v1692, 1
        %vm1707 = vcmp.eq.s32.totalorder %v1696, 1
        %vm1708 = vcmp.eq.s32.totalorder %v1700, 1
        %vm1709 = vcmp.eq.s32.totalorder %v1704, 1
        %vm1710 = vmpackc.low %vm1706, %vm1705
        %vm1711 = vmpackc.low %vm1708, %vm1707
        %vm1712 = vmpackc.low %vm1709, %vm1709
        %v1713 = vsel %vm1710, 65537, 0
        %v1714 = vsel %vm1711, 65537, 0
        %v1715 = vsel %vm1712, 65537, 0
        %v1716 = vlaneseq
        %v1717 = vshrl.u32 %v1716, 7
        %v1718 = vsub.s32 0, %v1717
        %v1719 = vrot.slane %v1713, %v1718
        %v1720 = vlaneseq
        %v1721 = vshrl.u32 %v1720, 7
        %v1722 = vsub.s32 4, %v1721
        %v1723 = vrot.slane %v1713, %v1722
        %v1724 = vlaneseq
        %v1725 = vshrl.u32 %v1724, 7
        %v1726 = vsub.s32 0, %v1725
        %v1727 = vrot.slane %v1714, %v1726
        %v1728 = vlaneseq
        %v1729 = vshrl.u32 %v1728, 7
        %v1730 = vsub.s32 4, %v1729
        %v1731 = vrot.slane %v1714, %v1730
        %v1732 = vlaneseq
        %v1733 = vshrl.u32 %v1732, 7
        %v1734 = vsub.s32 0, %v1733
        %v1735 = vrot.slane %v1715, %v1734
        %vm1736 = vcmp.ne.s16.totalorder %v1719, 0
        %vm1737 = vcmp.ne.s16.totalorder %v1723, 0
        %vm1738 = vcmp.ne.s16.totalorder %v1727, 0
        %vm1739 = vcmp.ne.s16.totalorder %v1731, 0
        %vm1740 = vcmp.ne.s16.totalorder %v1735, 0
        %v1741 = vsel %vm1736, %v1240, 0
        %v1742 = vsel %vm1737, %v1677, 0
        %v1743 = vsel %vm1738, %v1678, 0
        %v1744 = vsel %vm1739, %v1516, 0
        %v1745 = vsel %vm1740, %v1508, 0
        %1746 = vst [vmem:[#allocation2 + $0xf0] sm:$0xff] %v1741
        %1747 = vst [vmem:[#allocation2 + $0xf8] sm:$0xff] %v1742
        %1748 = vst [vmem:[#allocation2 + $0x100] sm:$0xff] %v1743
        %1749 = vst [vmem:[#allocation2 + $0x108] sm:$0xff] %v1744
        %1750 = vst.msk [vmem:[#allocation2 + $0x110] sm:$0xff] %vm1317, %v1745
        %1751 = vrot.lane.b32.xlu0 %v293, 64
        %v1752 = vpop.permute.xlu0 %1751
        %1753 = vrot.lane.b32.xlu0 %v294, 64
        %v1754 = vpop.permute.xlu0 %1753
        %v1755 = vsel %vm1325, %v1324, %v1752
        %v1756 = vsel %vm1325, %v1752, %v1754
        %s1759 = scalar_lea.vmem %s267, 35
        %v1760 = vld [vmem:[%s1759] sm:$0x1f]
        %vm1761 = vcmp.gt.f32.partialorder %v1760, 0.5
        %v1762 = vsel %vm1761, 1, 0
        %v1763 = vlaneseq
        %v1764 = vshrl.u32 %v1763, 7
        %v1765 = vsub.s32 0, %v1764
        %v1766 = vrot.slane %v1762, %v1765
        %v1767 = vlaneseq
        %v1768 = vshrl.u32 %v1767, 7
        %v1769 = vsub.s32 1, %v1768
        %v1770 = vrot.slane %v1762, %v1769
        %v1771 = vlaneseq
        %v1772 = vshrl.u32 %v1771, 7
        %v1773 = vsub.s32 2, %v1772
        %v1774 = vrot.slane %v1762, %v1773
        %v1775 = vlaneseq
        %v1776 = vshrl.u32 %v1775, 7
        %v1777 = vsub.s32 3, %v1776
        %v1778 = vrot.slane %v1762, %v1777
        %v1779 = vlaneseq
        %v1780 = vshrl.u32 %v1779, 7
        %v1781 = vsub.s32 4, %v1780
        %v1782 = vrot.slane %v1762, %v1781
        %vm1783 = vcmp.eq.s32.totalorder %v1766, 1
        %vm1784 = vcmp.eq.s32.totalorder %v1770, 1
        %vm1785 = vcmp.eq.s32.totalorder %v1774, 1
        %vm1786 = vcmp.eq.s32.totalorder %v1778, 1
        %vm1787 = vcmp.eq.s32.totalorder %v1782, 1
        %vm1788 = vmpackc.low %vm1784, %vm1783
        %vm1789 = vmpackc.low %vm1786, %vm1785
        %vm1790 = vmpackc.low %vm1787, %vm1787
        %v1791 = vsel %vm1788, 65537, 0
        %v1792 = vsel %vm1789, 65537, 0
        %v1793 = vsel %vm1790, 65537, 0
        %v1794 = vlaneseq
        %v1795 = vshrl.u32 %v1794, 7
        %v1796 = vsub.s32 0, %v1795
        %v1797 = vrot.slane %v1791, %v1796
        %v1798 = vlaneseq
        %v1799 = vshrl.u32 %v1798, 7
        %v1800 = vsub.s32 4, %v1799
        %v1801 = vrot.slane %v1791, %v1800
        %v1802 = vlaneseq
        %v1803 = vshrl.u32 %v1802, 7
        %v1804 = vsub.s32 0, %v1803
        %v1805 = vrot.slane %v1792, %v1804
        %v1806 = vlaneseq
        %v1807 = vshrl.u32 %v1806, 7
        %v1808 = vsub.s32 4, %v1807
        %v1809 = vrot.slane %v1792, %v1808
        %v1810 = vlaneseq
        %v1811 = vshrl.u32 %v1810, 7
        %v1812 = vsub.s32 0, %v1811
        %v1813 = vrot.slane %v1793, %v1812
        %vm1814 = vcmp.ne.s16.totalorder %v1797, 0
        %vm1815 = vcmp.ne.s16.totalorder %v1801, 0
        %vm1816 = vcmp.ne.s16.totalorder %v1805, 0
        %vm1817 = vcmp.ne.s16.totalorder %v1809, 0
        %vm1818 = vcmp.ne.s16.totalorder %v1813, 0
        %v1819 = vsel %vm1814, %v1327, 0
        %v1820 = vsel %vm1815, %v1755, 0
        %v1821 = vsel %vm1816, %v1756, 0
        %v1822 = vsel %vm1817, %v290, 0
        %v1823 = vsel %vm1818, %v291, 0
        %1824 = vst [vmem:[#allocation2 + $0x118] sm:$0xff] %v1819
        %1825 = vst [vmem:[#allocation2 + $0x120] sm:$0xff] %v1820
        %1826 = vst [vmem:[#allocation2 + $0x128] sm:$0xff] %v1821
        %1827 = vst [vmem:[#allocation2 + $0x130] sm:$0xff] %v1822
        %1828 = vst.msk [vmem:[#allocation2 + $0x138] sm:$0xff] %vm1317, %v1823
        %1829 = vrot.lane.b32.xlu0 %v294, 56
        %v1830 = vpop.permute.xlu0 %1829
        %v1831 = vsel %vm1420, %v1419, %v1830
        %vm1833 = vcmask 982016
        %v1836 = vsel %vm1833, %v1831, %v1594
        %s1838 = scalar_lea.vmem %s267, 40
        %v1839 = vld [vmem:[%s1838] sm:$0x1f]
        %vm1840 = vcmp.gt.f32.partialorder %v1839, 0.5
        %v1841 = vsel %vm1840, 1, 0
        %v1842 = vlaneseq
        %v1843 = vshrl.u32 %v1842, 7
        %v1844 = vsub.s32 0, %v1843
        %v1845 = vrot.slane %v1841, %v1844
        %v1846 = vlaneseq
        %v1847 = vshrl.u32 %v1846, 7
        %v1848 = vsub.s32 1, %v1847
        %v1849 = vrot.slane %v1841, %v1848
        %v1850 = vlaneseq
        %v1851 = vshrl.u32 %v1850, 7
        %v1852 = vsub.s32 2, %v1851
        %v1853 = vrot.slane %v1841, %v1852
        %v1854 = vlaneseq
        %v1855 = vshrl.u32 %v1854, 7
        %v1856 = vsub.s32 3, %v1855
        %v1857 = vrot.slane %v1841, %v1856
        %v1858 = vlaneseq
        %v1859 = vshrl.u32 %v1858, 7
        %v1860 = vsub.s32 4, %v1859
        %v1861 = vrot.slane %v1841, %v1860
        %vm1862 = vcmp.eq.s32.totalorder %v1845, 1
        %vm1863 = vcmp.eq.s32.totalorder %v1849, 1
        %vm1864 = vcmp.eq.s32.totalorder %v1853, 1
        %vm1865 = vcmp.eq.s32.totalorder %v1857, 1
        %vm1866 = vcmp.eq.s32.totalorder %v1861, 1
        %vm1867 = vmpackc.low %vm1863, %vm1862
        %vm1868 = vmpackc.low %vm1865, %vm1864
        %vm1869 = vmpackc.low %vm1866, %vm1866
        %v1870 = vsel %vm1867, 65537, 0
        %v1871 = vsel %vm1868, 65537, 0
        %v1872 = vsel %vm1869, 65537, 0
        %v1873 = vlaneseq
        %v1874 = vshrl.u32 %v1873, 7
        %v1875 = vsub.s32 0, %v1874
        %v1876 = vrot.slane %v1870, %v1875
        %v1877 = vlaneseq
        %v1878 = vshrl.u32 %v1877, 7
        %v1879 = vsub.s32 4, %v1878
        %v1880 = vrot.slane %v1870, %v1879
        %v1881 = vlaneseq
        %v1882 = vshrl.u32 %v1881, 7
        %v1883 = vsub.s32 0, %v1882
        %v1884 = vrot.slane %v1871, %v1883
        %v1885 = vlaneseq
        %v1886 = vshrl.u32 %v1885, 7
        %v1887 = vsub.s32 4, %v1886
        %v1888 = vrot.slane %v1871, %v1887
        %v1889 = vlaneseq
        %v1890 = vshrl.u32 %v1889, 7
        %v1891 = vsub.s32 0, %v1890
        %v1892 = vrot.slane %v1872, %v1891
        %vm1893 = vcmp.ne.s16.totalorder %v1876, 0
        %vm1894 = vcmp.ne.s16.totalorder %v1880, 0
        %vm1895 = vcmp.ne.s16.totalorder %v1884, 0
        %vm1896 = vcmp.ne.s16.totalorder %v1888, 0
        %vm1897 = vcmp.ne.s16.totalorder %v1892, 0
        %v1898 = vsel %vm1893, %v1422, 0
        %v1899 = vsel %vm1894, %v1423, 0
        %v1900 = vsel %vm1895, %v1836, 0
        %v1901 = vsel %vm1896, %v1599, 0
        %v1902 = vsel %vm1897, %v1596, 0
        %1903 = vst [vmem:[#allocation2 + $0x140] sm:$0xff] %v1898
        %1904 = vst [vmem:[#allocation2 + $0x148] sm:$0xff] %v1899
        %1905 = vst [vmem:[#allocation2 + $0x150] sm:$0xff] %v1900
        %1906 = vst [vmem:[#allocation2 + $0x158] sm:$0xff] %v1901
        %1907 = vst.msk [vmem:[#allocation2 + $0x160] sm:$0xff] %vm1317, %v1902
        %v1908 = vld [vmem:[%s258] sm:$0xf]
        %v1909 = vld [vmem:[#allocation2] sm:$0xff]
        %v1910 = vld [vmem:[#allocation2 + $0x8] sm:$0xff]
        %v1911 = vld [vmem:[#allocation2 + $0x10] sm:$0xff]
        %v1912 = vld [vmem:[#allocation2 + $0x18] sm:$0xff]
        %v1913 = vld [vmem:[#allocation2 + $0x20] sm:$0xff]
        %v1914 = vld [vmem:[#allocation2 + $0x28] sm:$0xff]
        %v1915 = vld [vmem:[#allocation2 + $0x30] sm:$0xff]
        %v1916 = vld [vmem:[#allocation2 + $0x38] sm:$0xff]
        %v1917 = vld [vmem:[#allocation2 + $0x40] sm:$0xff]
        %v1918 = vld [vmem:[#allocation2 + $0x48] sm:$0xff]
        %v1919 = vld [vmem:[#allocation2 + $0x50] sm:$0xff]
        %v1920 = vld [vmem:[#allocation2 + $0x58] sm:$0xff]
        %v1921 = vld [vmem:[#allocation2 + $0x60] sm:$0xff]
        %v1922 = vld [vmem:[#allocation2 + $0x68] sm:$0xff]
        %v1923 = vld [vmem:[#allocation2 + $0x70] sm:$0xff]
        %v1924 = vld [vmem:[#allocation2 + $0x78] sm:$0xff]
        %v1925 = vld [vmem:[#allocation2 + $0x80] sm:$0xff]
        %v1926 = vld [vmem:[#allocation2 + $0x88] sm:$0xff]
        %v1927 = vld [vmem:[#allocation2 + $0x90] sm:$0xff]
        %v1928 = vld [vmem:[#allocation2 + $0x98] sm:$0xff]
        %v1929 = vld [vmem:[#allocation2 + $0xa0] sm:$0xff]
        %v1930 = vld [vmem:[#allocation2 + $0xa8] sm:$0xff]
        %v1931 = vld [vmem:[#allocation2 + $0xb0] sm:$0xff]
        %v1932 = vld [vmem:[#allocation2 + $0xb8] sm:$0xff]
        %v1933 = vld [vmem:[#allocation2 + $0xc0] sm:$0xff]
        %v1934 = vld [vmem:[#allocation2 + $0xc8] sm:$0xff]
        %v1935 = vld [vmem:[#allocation2 + $0xd0] sm:$0xff]
        %v1936 = vld [vmem:[#allocation2 + $0xd8] sm:$0xff]
        %v1937 = vld [vmem:[#allocation2 + $0xe0] sm:$0xff]
        %v1938 = vld [vmem:[#allocation2 + $0xe8] sm:$0xff]
        %v1939 = vld [vmem:[#allocation2 + $0xf0] sm:$0xff]
        %v1940 = vld [vmem:[#allocation2 + $0xf8] sm:$0xff]
        %v1941 = vld [vmem:[#allocation2 + $0x100] sm:$0xff]
        %v1942 = vld [vmem:[#allocation2 + $0x108] sm:$0xff]
        %v1943 = vld [vmem:[#allocation2 + $0x110] sm:$0xff]
        %v1944 = vld [vmem:[#allocation2 + $0x118] sm:$0xff]
        %v1945 = vld [vmem:[#allocation2 + $0x120] sm:$0xff]
        %v1946 = vld [vmem:[#allocation2 + $0x128] sm:$0xff]
        %v1947 = vld [vmem:[#allocation2 + $0x130] sm:$0xff]
        %v1948 = vld [vmem:[#allocation2 + $0x138] sm:$0xff]
        %v1949 = vld [vmem:[#allocation2 + $0x140] sm:$0xff]
        %v1950 = vld [vmem:[#allocation2 + $0x148] sm:$0xff]
        %v1951 = vld [vmem:[#allocation2 + $0x150] sm:$0xff]
        %v1952 = vld [vmem:[#allocation2 + $0x158] sm:$0xff]
        %v1953 = vld [vmem:[#allocation2 + $0x160] sm:$0xff]
        %v1954 = vld [vmem:[%s263] sm:$0xf]
        %1956 = vset.pattern.permute.xlu0 0
        %1957 = vperm.xlu0 %1956, %v1954
        %v1958 = vpop.permute.xlu0 %1957
        %v1962 = vunpack.c.l.s4 1983009808
        %v1963 = vunpack.c.0.s8 %v1962
        %v1964 = vlaneseq
        %v1965 = vshrl.u32 %v1964, 7
        %v1966 = vsub.s32 %v1963, %v1965
        %v1967 = vrot.slane %v1908, %v1966
        %v1968 = vcombine.high %v1967, %v1967
        %vm1970 = vcmask 130048
        %v1972 = vsel %vm1970, %v1968, 0
        %1974 = vmatprep.subr.bf16.mxu0 %v1910
        %1975 = vmatpush1.bf16.msra.mxu0 %v1909
        %1976 = vmatprep.subr.bf16.mxu0 %v1915
        %1977 = vmatpush1.bf16.msra.mxu0 %v1914
        %1978 = vmatprep.subr.bf16.mxu0 %v1920
        %1979 = vmatpush1.bf16.msra.mxu0 %v1919
        %1980 = vmatprep.subr.bf16.mxu0 %v1925
        %1981 = vmatpush1.bf16.msra.mxu0 %v1924
        %1982 = vmatprep.subr.bf16.mxu0 %v1930
        %1983 = vmatpush1.bf16.msra.mxu0 %v1929
        %1984 = vmatprep.subr.bf16.mxu0 %v1935
        %1985 = vmatpush1.bf16.msra.mxu0 %v1934
        %1986 = vmatprep.subr.bf16.mxu0 %v1940
        %1987 = vmatpush1.bf16.msra.mxu0 %v1939
        %1988 = vmatprep.subr.bf16.mxu0 %v1945
        %1989 = vmatpush1.bf16.msra.mxu0 %v1944
        %1990 = vmatprep.subr.bf16.mxu0 %v1950
        %1991 = vmatpush1.bf16.msra.mxu0 %v1949
        %1992 = vmatprep.subr.bf16.mxu0 0
        %1993 = vmatpush1.bf16.msra.mxu0 0
        %1994 = vmatprep.subr.bf16.mxu0 0
        %1995 = vmatpush1.bf16.msra.mxu0 0
        %1996 = vmatprep.subr.bf16.mxu0 0
        %1997 = vmatpush1.bf16.msra.mxu0 0
        %1998 = vmatprep.subr.bf16.mxu0 0
        %1999 = vmatpush1.bf16.msra.mxu0 0
        %2000 = vmatprep.subr.bf16.mxu0 0
        %2001 = vmatpush1.bf16.msra.mxu0 0
        %2002 = vmatprep.subr.bf16.mxu0 0
        %2003 = vmatpush1.bf16.msra.mxu0 0
        %2004 = vmatprep.subr.bf16.mxu0 0
        %2005 = vmatpush1.bf16.msra.mxu0 0
        %2006 = vmatprep.mubr.bf16.mxu0 %v1972
        %2007 = vmatmul.mubr.bf16.gmra.mrb[0].mxu0 %v1967
        %v2008 = vpop.f32.mrb[0].mxu0
        %v2009 = vadd.f32 %v1958, %v2008
        %v2010 = vpop.f32.mrb[0].mxu0
        %v2011 = vadd.f32 %v1958, %v2010
        %v2012 = vpop.f32.mrb[0].mxu0
        %v2013 = vpop.f32.mrb[0].mxu0
        %2014 = vdwg.mxu0
        %2015 = vmatprep.subr.bf16.mxu0 %v1912
        %2016 = vmatpush1.bf16.msra.mxu0 %v1911
        %2017 = vmatprep.subr.bf16.mxu0 %v1917
        %2018 = vmatpush1.bf16.msra.mxu0 %v1916
        %2019 = vmatprep.subr.bf16.mxu0 %v1922
        %2020 = vmatpush1.bf16.msra.mxu0 %v1921
        %2021 = vmatprep.subr.bf16.mxu0 %v1927
        %2022 = vmatpush1.bf16.msra.mxu0 %v1926
        %2023 = vmatprep.subr.bf16.mxu0 %v1932
        %2024 = vmatpush1.bf16.msra.mxu0 %v1931
        %2025 = vmatprep.subr.bf16.mxu0 %v1937
        %2026 = vmatpush1.bf16.msra.mxu0 %v1936
        %2027 = vmatprep.subr.bf16.mxu0 %v1942
        %2028 = vmatpush1.bf16.msra.mxu0 %v1941
        %2029 = vmatprep.subr.bf16.mxu0 %v1947
        %2030 = vmatpush1.bf16.msra.mxu0 %v1946
        %2031 = vmatprep.subr.bf16.mxu0 %v1952
        %2032 = vmatpush1.bf16.msra.mxu0 %v1951
        %2033 = vmatprep.subr.bf16.mxu0 0
        %2034 = vmatpush1.bf16.msra.mxu0 0
        %2035 = vmatprep.subr.bf16.mxu0 0
        %2036 = vmatpush1.bf16.msra.mxu0 0
        %2037 = vmatprep.subr.bf16.mxu0 0
        %2038 = vmatpush1.bf16.msra.mxu0 0
        %2039 = vmatprep.subr.bf16.mxu0 0
        %2040 = vmatpush1.bf16.msra.mxu0 0
        %2041 = vmatprep.subr.bf16.mxu0 0
        %2042 = vmatpush1.bf16.msra.mxu0 0
        %2043 = vmatprep.subr.bf16.mxu0 0
        %2044 = vmatpush1.bf16.msra.mxu0 0
        %2045 = vmatprep.subr.bf16.mxu0 0
        %2046 = vmatpush1.bf16.msra.mxu0 0
        %2047 = vmatprep.mubr.bf16.mxu0 %v1972
        %2048 = vmatmul.mubr.bf16.gmra.mrb[0].mxu0 %v1967
        %v2049 = vpop.f32.mrb[0].mxu0
        %v2050 = vadd.f32 %v1958, %v2049
        %v2051 = vpop.f32.mrb[0].mxu0
        %v2052 = vadd.f32 %v1958, %v2051
        %v2053 = vpop.f32.mrb[0].mxu0
        %v2054 = vpop.f32.mrb[0].mxu0
        %2055 = vdwg.mxu0
        %2056 = vmatprep.subr.bf16.mxu0 0
        %2057 = vmatpush1.bf16.msra.mxu0 %v1913
        %2058 = vmatprep.subr.bf16.mxu0 0
        %2059 = vmatpush1.bf16.msra.mxu0 %v1918
        %2060 = vmatprep.subr.bf16.mxu0 0
        %2061 = vmatpush1.bf16.msra.mxu0 %v1923
        %2062 = vmatprep.subr.bf16.mxu0 0
        %2063 = vmatpush1.bf16.msra.mxu0 %v1928
        %2064 = vmatprep.subr.bf16.mxu0 0
        %2065 = vmatpush1.bf16.msra.mxu0 %v1933
        %2066 = vmatprep.subr.bf16.mxu0 0
        %2067 = vmatpush1.bf16.msra.mxu0 %v1938
        %2068 = vmatprep.subr.bf16.mxu0 0
        %2069 = vmatpush1.bf16.msra.mxu0 %v1943
        %2070 = vmatprep.subr.bf16.mxu0 0
        %2071 = vmatpush1.bf16.msra.mxu0 %v1948
        %2072 = vmatprep.subr.bf16.mxu0 0
        %2073 = vmatpush1.bf16.msra.mxu0 %v1953
        %2074 = vmatprep.subr.bf16.mxu0 0
        %2075 = vmatpush1.bf16.msra.mxu0 0
        %2076 = vmatprep.subr.bf16.mxu0 0
        %2077 = vmatpush1.bf16.msra.mxu0 0
        %2078 = vmatprep.subr.bf16.mxu0 0
        %2079 = vmatpush1.bf16.msra.mxu0 0
        %2080 = vmatprep.subr.bf16.mxu0 0
        %2081 = vmatpush1.bf16.msra.mxu0 0
        %2082 = vmatprep.subr.bf16.mxu0 0
        %2083 = vmatpush1.bf16.msra.mxu0 0
        %2084 = vmatprep.subr.bf16.mxu0 0
        %2085 = vmatpush1.bf16.msra.mxu0 0
        %2086 = vmatprep.subr.bf16.mxu0 0
        %2087 = vmatpush1.bf16.msra.mxu0 0
        %2088 = vmatprep.mubr.bf16.mxu0 %v1972
        %2089 = vmatmul.mubr.bf16.gmra.mrb[0].mxu0 %v1967
        %v2090 = vpop.f32.mrb[0].mxu0
        %v2091 = vadd.f32 %v1958, %v2090
        %v2092 = vpop.f32.mrb[0].mxu0
        %v2093 = vpop.f32.mrb[0].mxu0
        %v2094 = vpop.f32.mrb[0].mxu0
        %2095 = vdwg.mxu0
        %vm2096 = vcmp.ge.f32.partialorder %v2009, 0.0
        %vm2097 = vcmp.ge.f32.partialorder %v2011, 0.0
        %vm2098 = vcmp.ge.f32.partialorder %v2050, 0.0
        %vm2099 = vcmp.ge.f32.partialorder %v2052, 0.0
        %vm2100 = vcmp.ge.f32.partialorder %v2091, 0.0
        %s2101 = scalar_lea.vmem %s263, 4
        %v2102 = vld [vmem:[%s2101] sm:$0xf]
        %2104 = vset.pattern.permute.xlu0 0
        %2105 = vperm.xlu0 %2104, %v2102
        %v2106 = vpop.permute.xlu0 %2105
        %v2108 = vmul.f32 %v2106, %v2009
        %v2109 = vmul.f32 %v2106, %v2011
        %v2110 = vmul.f32 %v2106, %v2050
        %v2111 = vmul.f32 %v2106, %v2052
        %v2112 = vmul.f32 %v2106, %v2091
        %v2113 = vsel %vm2096, %v2009, %v2108
        %v2114 = vsel %vm2097, %v2011, %v2109
        %v2115 = vsel %vm2098, %v2050, %v2110
        %v2116 = vsel %vm2099, %v2052, %v2111
        %v2117 = vsel %vm2100, %v2091, %v2112
        %v2122 = vcombine.low %v2113, %v2114
        %v2123 = vcombine.low %v2115, %v2116
        %2126 = vst [vmem:[%s276] sm:$0xff] %v2122
        %2127 = vst [vmem:[%s276 + $0x8] sm:$0xff] %v2123
        %vm2128 = vcmask 519168
        %2129 = vst.msk [vmem:[%s276 + $0x10] sm:$0xf] %vm2128, %v2117
      $region44: #{mdfa_forward.4} parent=35 // pred_fallthru
        _
      %p2130 = scmp.eq.s32.totalorder %s20, 2
      // Predicated region
      $region45: #{mdfa_forward.4} parent=35 // pred_check
        %p2131 = pneg %p2130
      $region46: #{mdfa_forward.4} parent=35 // pred_check_branch
        %2133 = sbr.rel (%p2131) target = $region48
      $region47: #{mdfa_forward.4} parent=35 // pred_region
        %2135 = vrot.lane.b32.xlu0 %v294, 73
        %v2136 = vpop.permute.xlu0 %2135
        %2141 = vrot.lane.b32.xlu0 %v290, 9
        %v2142 = vpop.permute.xlu0 %2141
        %2143 = vrot.lane.b32.xlu0 %v291, 9
        %v2144 = vpop.permute.xlu0 %2143
        %2145 = vrot.lane.b32.xlu0 %v292, 9
        %v2146 = vpop.permute.xlu0 %2145
        %2147 = vrot.lane.b32.xlu0 %v293, 9
        %v2148 = vpop.permute.xlu0 %2147
        %2149 = vrot.lane.b32.xlu0 %v294, 9
        %v2150 = vpop.permute.xlu0 %2149
        %vm2151 = vcmask 72704
        %v2152 = vsel %vm2151, %v2142, %v2144
        %v2153 = vsel %vm2151, %v2144, %v2146
        %v2154 = vsel %vm2151, %v2146, %v2148
        %v2155 = vsel %vm2151, %v2148, %v2150
        %vm2160 = vcmask 72704
        %v2163 = vsel %vm2160, %v2136, %v2142
        %v2165 = vld [vmem:[%s267] sm:$0x1f]
        %vm2166 = vcmp.gt.f32.partialorder %v2165, 0.5
        %v2167 = vsel %vm2166, 1, 0
        %v2168 = vlaneseq
        %v2169 = vshrl.u32 %v2168, 7
        %v2170 = vsub.s32 0, %v2169
        %v2171 = vrot.slane %v2167, %v2170
        %v2172 = vlaneseq
        %v2173 = vshrl.u32 %v2172, 7
        %v2174 = vsub.s32 1, %v2173
        %v2175 = vrot.slane %v2167, %v2174
        %v2176 = vlaneseq
        %v2177 = vshrl.u32 %v2176, 7
        %v2178 = vsub.s32 2, %v2177
        %v2179 = vrot.slane %v2167, %v2178
        %v2180 = vlaneseq
        %v2181 = vshrl.u32 %v2180, 7
        %v2182 = vsub.s32 3, %v2181
        %v2183 = vrot.slane %v2167, %v2182
        %v2184 = vlaneseq
        %v2185 = vshrl.u32 %v2184, 7
        %v2186 = vsub.s32 4, %v2185
        %v2187 = vrot.slane %v2167, %v2186
        %vm2188 = vcmp.eq.s32.totalorder %v2171, 1
        %vm2189 = vcmp.eq.s32.totalorder %v2175, 1
        %vm2190 = vcmp.eq.s32.totalorder %v2179, 1
        %vm2191 = vcmp.eq.s32.totalorder %v2183, 1
        %vm2192 = vcmp.eq.s32.totalorder %v2187, 1
        %vm2193 = vmpackc.low %vm2189, %vm2188
        %vm2194 = vmpackc.low %vm2191, %vm2190
        %vm2195 = vmpackc.low %vm2192, %vm2192
        %v2196 = vsel %vm2193, 65537, 0
        %v2197 = vsel %vm2194, 65537, 0
        %v2198 = vsel %vm2195, 65537, 0
        %v2199 = vlaneseq
        %v2200 = vshrl.u32 %v2199, 7
        %v2201 = vsub.s32 0, %v2200
        %v2202 = vrot.slane %v2196, %v2201
        %v2203 = vlaneseq
        %v2204 = vshrl.u32 %v2203, 7
        %v2205 = vsub.s32 4, %v2204
        %v2206 = vrot.slane %v2196, %v2205
        %v2207 = vlaneseq
        %v2208 = vshrl.u32 %v2207, 7
        %v2209 = vsub.s32 0, %v2208
        %v2210 = vrot.slane %v2197, %v2209
        %v2211 = vlaneseq
        %v2212 = vshrl.u32 %v2211, 7
        %v2213 = vsub.s32 4, %v2212
        %v2214 = vrot.slane %v2197, %v2213
        %v2215 = vlaneseq
        %v2216 = vshrl.u32 %v2215, 7
        %v2217 = vsub.s32 0, %v2216
        %v2218 = vrot.slane %v2198, %v2217
        %vm2219 = vcmp.ne.s16.totalorder %v2202, 0
        %vm2220 = vcmp.ne.s16.totalorder %v2206, 0
        %vm2221 = vcmp.ne.s16.totalorder %v2210, 0
        %vm2222 = vcmp.ne.s16.totalorder %v2214, 0
        %vm2223 = vcmp.ne.s16.totalorder %v2218, 0
        %v2224 = vsel %vm2219, %v2163, 0
        %v2225 = vsel %vm2220, %v2152, 0
        %v2226 = vsel %vm2221, %v2153, 0
        %v2227 = vsel %vm2222, %v2154, 0
        %v2228 = vsel %vm2223, %v2155, 0
        %2229 = vst [vmem:[#allocation2] sm:$0xff] %v2224
        %2230 = vst [vmem:[#allocation2 + $0x8] sm:$0xff] %v2225
        %2231 = vst [vmem:[#allocation2 + $0x10] sm:$0xff] %v2226
        %2232 = vst [vmem:[#allocation2 + $0x18] sm:$0xff] %v2227
        %vm2233 = vcmask 523264
        %2234 = vst.msk [vmem:[#allocation2 + $0x20] sm:$0xff] %vm2233, %v2228
        %2235 = vrot.lane.b32.xlu0 %v294, 72
        %v2236 = vpop.permute.xlu0 %2235
        %2237 = vrot.lane.b32.xlu0 %v290, 8
        %v2238 = vpop.permute.xlu0 %2237
        %2239 = vrot.lane.b32.xlu0 %v291, 8
        %v2240 = vpop.permute.xlu0 %2239
        %2241 = vrot.lane.b32.xlu0 %v292, 8
        %v2242 = vpop.permute.xlu0 %2241
        %2243 = vrot.lane.b32.xlu0 %v293, 8
        %v2244 = vpop.permute.xlu0 %2243
        %2245 = vrot.lane.b32.xlu0 %v294, 8
        %v2246 = vpop.permute.xlu0 %2245
        %vm2247 = vcmask 64512
        %v2248 = vsel %vm2247, %v2238, %v2240
        %v2249 = vsel %vm2247, %v2240, %v2242
        %v2250 = vsel %vm2247, %v2242, %v2244
        %v2251 = vsel %vm2247, %v2244, %v2246
        %vm2256 = vcmask 64512
        %v2259 = vsel %vm2256, %v2236, %v2238
        %s2261 = scalar_lea.vmem %s267, 5
        %v2262 = vld [vmem:[%s2261] sm:$0x1f]
        %vm2263 = vcmp.gt.f32.partialorder %v2262, 0.5
        %v2264 = vsel %vm2263, 1, 0
        %v2265 = vlaneseq
        %v2266 = vshrl.u32 %v2265, 7
        %v2267 = vsub.s32 0, %v2266
        %v2268 = vrot.slane %v2264, %v2267
        %v2269 = vlaneseq
        %v2270 = vshrl.u32 %v2269, 7
        %v2271 = vsub.s32 1, %v2270
        %v2272 = vrot.slane %v2264, %v2271
        %v2273 = vlaneseq
        %v2274 = vshrl.u32 %v2273, 7
        %v2275 = vsub.s32 2, %v2274
        %v2276 = vrot.slane %v2264, %v2275
        %v2277 = vlaneseq
        %v2278 = vshrl.u32 %v2277, 7
        %v2279 = vsub.s32 3, %v2278
        %v2280 = vrot.slane %v2264, %v2279
        %v2281 = vlaneseq
        %v2282 = vshrl.u32 %v2281, 7
        %v2283 = vsub.s32 4, %v2282
        %v2284 = vrot.slane %v2264, %v2283
        %vm2285 = vcmp.eq.s32.totalorder %v2268, 1
        %vm2286 = vcmp.eq.s32.totalorder %v2272, 1
        %vm2287 = vcmp.eq.s32.totalorder %v2276, 1
        %vm2288 = vcmp.eq.s32.totalorder %v2280, 1
        %vm2289 = vcmp.eq.s32.totalorder %v2284, 1
        %vm2290 = vmpackc.low %vm2286, %vm2285
        %vm2291 = vmpackc.low %vm2288, %vm2287
        %vm2292 = vmpackc.low %vm2289, %vm2289
        %v2293 = vsel %vm2290, 65537, 0
        %v2294 = vsel %vm2291, 65537, 0
        %v2295 = vsel %vm2292, 65537, 0
        %v2296 = vlaneseq
        %v2297 = vshrl.u32 %v2296, 7
        %v2298 = vsub.s32 0, %v2297
        %v2299 = vrot.slane %v2293, %v2298
        %v2300 = vlaneseq
        %v2301 = vshrl.u32 %v2300, 7
        %v2302 = vsub.s32 4, %v2301
        %v2303 = vrot.slane %v2293, %v2302
        %v2304 = vlaneseq
        %v2305 = vshrl.u32 %v2304, 7
        %v2306 = vsub.s32 0, %v2305
        %v2307 = vrot.slane %v2294, %v2306
        %v2308 = vlaneseq
        %v2309 = vshrl.u32 %v2308, 7
        %v2310 = vsub.s32 4, %v2309
        %v2311 = vrot.slane %v2294, %v2310
        %v2312 = vlaneseq
        %v2313 = vshrl.u32 %v2312, 7
        %v2314 = vsub.s32 0, %v2313
        %v2315 = vrot.slane %v2295, %v2314
        %vm2316 = vcmp.ne.s16.totalorder %v2299, 0
        %vm2317 = vcmp.ne.s16.totalorder %v2303, 0
        %vm2318 = vcmp.ne.s16.totalorder %v2307, 0
        %vm2319 = vcmp.ne.s16.totalorder %v2311, 0
        %vm2320 = vcmp.ne.s16.totalorder %v2315, 0
        %v2321 = vsel %vm2316, %v2259, 0
        %v2322 = vsel %vm2317, %v2248, 0
        %v2323 = vsel %vm2318, %v2249, 0
        %v2324 = vsel %vm2319, %v2250, 0
        %v2325 = vsel %vm2320, %v2251, 0
        %2326 = vst [vmem:[#allocation2 + $0x28] sm:$0xff] %v2321
        %2327 = vst [vmem:[#allocation2 + $0x30] sm:$0xff] %v2322
        %2328 = vst [vmem:[#allocation2 + $0x38] sm:$0xff] %v2323
        %2329 = vst [vmem:[#allocation2 + $0x40] sm:$0xff] %v2324
        %2330 = vst.msk [vmem:[#allocation2 + $0x48] sm:$0xff] %vm2233, %v2325
        %2331 = vrot.lane.b32.xlu0 %v294, 71
        %v2332 = vpop.permute.xlu0 %2331
        %2333 = vrot.lane.b32.xlu0 %v290, 7
        %v2334 = vpop.permute.xlu0 %2333
        %2335 = vrot.lane.b32.xlu0 %v291, 7
        %v2336 = vpop.permute.xlu0 %2335
        %2337 = vrot.lane.b32.xlu0 %v292, 7
        %v2338 = vpop.permute.xlu0 %2337
        %2339 = vrot.lane.b32.xlu0 %v293, 7
        %v2340 = vpop.permute.xlu0 %2339
        %2341 = vrot.lane.b32.xlu0 %v294, 7
        %v2342 = vpop.permute.xlu0 %2341
        %vm2343 = vcmask 56320
        %v2344 = vsel %vm2343, %v2334, %v2336
        %v2345 = vsel %vm2343, %v2336, %v2338
        %v2346 = vsel %vm2343, %v2338, %v2340
        %v2347 = vsel %vm2343, %v2340, %v2342
        %vm2352 = vcmask 56320
        %v2355 = vsel %vm2352, %v2332, %v2334
        %s2357 = scalar_lea.vmem %s267, 10
        %v2358 = vld [vmem:[%s2357] sm:$0x1f]
        %vm2359 = vcmp.gt.f32.partialorder %v2358, 0.5
        %v2360 = vsel %vm2359, 1, 0
        %v2361 = vlaneseq
        %v2362 = vshrl.u32 %v2361, 7
        %v2363 = vsub.s32 0, %v2362
        %v2364 = vrot.slane %v2360, %v2363
        %v2365 = vlaneseq
        %v2366 = vshrl.u32 %v2365, 7
        %v2367 = vsub.s32 1, %v2366
        %v2368 = vrot.slane %v2360, %v2367
        %v2369 = vlaneseq
        %v2370 = vshrl.u32 %v2369, 7
        %v2371 = vsub.s32 2, %v2370
        %v2372 = vrot.slane %v2360, %v2371
        %v2373 = vlaneseq
        %v2374 = vshrl.u32 %v2373, 7
        %v2375 = vsub.s32 3, %v2374
        %v2376 = vrot.slane %v2360, %v2375
        %v2377 = vlaneseq
        %v2378 = vshrl.u32 %v2377, 7
        %v2379 = vsub.s32 4, %v2378
        %v2380 = vrot.slane %v2360, %v2379
        %vm2381 = vcmp.eq.s32.totalorder %v2364, 1
        %vm2382 = vcmp.eq.s32.totalorder %v2368, 1
        %vm2383 = vcmp.eq.s32.totalorder %v2372, 1
        %vm2384 = vcmp.eq.s32.totalorder %v2376, 1
        %vm2385 = vcmp.eq.s32.totalorder %v2380, 1
        %vm2386 = vmpackc.low %vm2382, %vm2381
        %vm2387 = vmpackc.low %vm2384, %vm2383
        %vm2388 = vmpackc.low %vm2385, %vm2385
        %v2389 = vsel %vm2386, 65537, 0
        %v2390 = vsel %vm2387, 65537, 0
        %v2391 = vsel %vm2388, 65537, 0
        %v2392 = vlaneseq
        %v2393 = vshrl.u32 %v2392, 7
        %v2394 = vsub.s32 0, %v2393
        %v2395 = vrot.slane %v2389, %v2394
        %v2396 = vlaneseq
        %v2397 = vshrl.u32 %v2396, 7
        %v2398 = vsub.s32 4, %v2397
        %v2399 = vrot.slane %v2389, %v2398
        %v2400 = vlaneseq
        %v2401 = vshrl.u32 %v2400, 7
        %v2402 = vsub.s32 0, %v2401
        %v2403 = vrot.slane %v2390, %v2402
        %v2404 = vlaneseq
        %v2405 = vshrl.u32 %v2404, 7
        %v2406 = vsub.s32 4, %v2405
        %v2407 = vrot.slane %v2390, %v2406
        %v2408 = vlaneseq
        %v2409 = vshrl.u32 %v2408, 7
        %v2410 = vsub.s32 0, %v2409
        %v2411 = vrot.slane %v2391, %v2410
        %vm2412 = vcmp.ne.s16.totalorder %v2395, 0
        %vm2413 = vcmp.ne.s16.totalorder %v2399, 0
        %vm2414 = vcmp.ne.s16.totalorder %v2403, 0
        %vm2415 = vcmp.ne.s16.totalorder %v2407, 0
        %vm2416 = vcmp.ne.s16.totalorder %v2411, 0
        %v2417 = vsel %vm2412, %v2355, 0
        %v2418 = vsel %vm2413, %v2344, 0
        %v2419 = vsel %vm2414, %v2345, 0
        %v2420 = vsel %vm2415, %v2346, 0
        %v2421 = vsel %vm2416, %v2347, 0
        %2422 = vst [vmem:[#allocation2 + $0x50] sm:$0xff] %v2417
        %2423 = vst [vmem:[#allocation2 + $0x58] sm:$0xff] %v2418
        %2424 = vst [vmem:[#allocation2 + $0x60] sm:$0xff] %v2419
        %2425 = vst [vmem:[#allocation2 + $0x68] sm:$0xff] %v2420
        %2426 = vst.msk [vmem:[#allocation2 + $0x70] sm:$0xff] %vm2233, %v2421
        %2427 = vrot.lane.b32.xlu0 %v294, 65
        %v2428 = vpop.permute.xlu0 %2427
        %2429 = vrot.lane.b32.xlu0 %v290, 1
        %v2430 = vpop.permute.xlu0 %2429
        %2431 = vrot.lane.b32.xlu0 %v291, 1
        %v2432 = vpop.permute.xlu0 %2431
        %2433 = vrot.lane.b32.xlu0 %v292, 1
        %v2434 = vpop.permute.xlu0 %2433
        %2435 = vrot.lane.b32.xlu0 %v293, 1
        %v2436 = vpop.permute.xlu0 %2435
        %2437 = vrot.lane.b32.xlu0 %v294, 1
        %v2438 = vpop.permute.xlu0 %2437
        %vm2439 = vcmask 7168
        %v2440 = vsel %vm2439, %v2430, %v2432
        %v2441 = vsel %vm2439, %v2432, %v2434
        %v2442 = vsel %vm2439, %v2434, %v2436
        %v2443 = vsel %vm2439, %v2436, %v2438
        %vm2448 = vcmask 7168
        %v2451 = vsel %vm2448, %v2428, %v2430
        %s2453 = scalar_lea.vmem %s267, 15
        %v2454 = vld [vmem:[%s2453] sm:$0x1f]
        %vm2455 = vcmp.gt.f32.partialorder %v2454, 0.5
        %v2456 = vsel %vm2455, 1, 0
        %v2457 = vlaneseq
        %v2458 = vshrl.u32 %v2457, 7
        %v2459 = vsub.s32 0, %v2458
        %v2460 = vrot.slane %v2456, %v2459
        %v2461 = vlaneseq
        %v2462 = vshrl.u32 %v2461, 7
        %v2463 = vsub.s32 1, %v2462
        %v2464 = vrot.slane %v2456, %v2463
        %v2465 = vlaneseq
        %v2466 = vshrl.u32 %v2465, 7
        %v2467 = vsub.s32 2, %v2466
        %v2468 = vrot.slane %v2456, %v2467
        %v2469 = vlaneseq
        %v2470 = vshrl.u32 %v2469, 7
        %v2471 = vsub.s32 3, %v2470
        %v2472 = vrot.slane %v2456, %v2471
        %v2473 = vlaneseq
        %v2474 = vshrl.u32 %v2473, 7
        %v2475 = vsub.s32 4, %v2474
        %v2476 = vrot.slane %v2456, %v2475
        %vm2477 = vcmp.eq.s32.totalorder %v2460, 1
        %vm2478 = vcmp.eq.s32.totalorder %v2464, 1
        %vm2479 = vcmp.eq.s32.totalorder %v2468, 1
        %vm2480 = vcmp.eq.s32.totalorder %v2472, 1
        %vm2481 = vcmp.eq.s32.totalorder %v2476, 1
        %vm2482 = vmpackc.low %vm2478, %vm2477
        %vm2483 = vmpackc.low %vm2480, %vm2479
        %vm2484 = vmpackc.low %vm2481, %vm2481
        %v2485 = vsel %vm2482, 65537, 0
        %v2486 = vsel %vm2483, 65537, 0
        %v2487 = vsel %vm2484, 65537, 0
        %v2488 = vlaneseq
        %v2489 = vshrl.u32 %v2488, 7
        %v2490 = vsub.s32 0, %v2489
        %v2491 = vrot.slane %v2485, %v2490
        %v2492 = vlaneseq
        %v2493 = vshrl.u32 %v2492, 7
        %v2494 = vsub.s32 4, %v2493
        %v2495 = vrot.slane %v2485, %v2494
        %v2496 = vlaneseq
        %v2497 = vshrl.u32 %v2496, 7
        %v2498 = vsub.s32 0, %v2497
        %v2499 = vrot.slane %v2486, %v2498
        %v2500 = vlaneseq
        %v2501 = vshrl.u32 %v2500, 7
        %v2502 = vsub.s32 4, %v2501
        %v2503 = vrot.slane %v2486, %v2502
        %v2504 = vlaneseq
        %v2505 = vshrl.u32 %v2504, 7
        %v2506 = vsub.s32 0, %v2505
        %v2507 = vrot.slane %v2487, %v2506
        %vm2508 = vcmp.ne.s16.totalorder %v2491, 0
        %vm2509 = vcmp.ne.s16.totalorder %v2495, 0
        %vm2510 = vcmp.ne.s16.totalorder %v2499, 0
        %vm2511 = vcmp.ne.s16.totalorder %v2503, 0
        %vm2512 = vcmp.ne.s16.totalorder %v2507, 0
        %v2513 = vsel %vm2508, %v2451, 0
        %v2514 = vsel %vm2509, %v2440, 0
        %v2515 = vsel %vm2510, %v2441, 0
        %v2516 = vsel %vm2511, %v2442, 0
        %v2517 = vsel %vm2512, %v2443, 0
        %2518 = vst [vmem:[#allocation2 + $0x78] sm:$0xff] %v2513
        %2519 = vst [vmem:[#allocation2 + $0x80] sm:$0xff] %v2514
        %2520 = vst [vmem:[#allocation2 + $0x88] sm:$0xff] %v2515
        %2521 = vst [vmem:[#allocation2 + $0x90] sm:$0xff] %v2516
        %2522 = vst.msk [vmem:[#allocation2 + $0x98] sm:$0xff] %vm2233, %v2517
        %2523 = vst [vmem:[#allocation2 + $0xa0] sm:$0xff] %v290
        %2524 = vst [vmem:[#allocation2 + $0xa8] sm:$0xff] %v291
        %2525 = vst [vmem:[#allocation2 + $0xb0] sm:$0xff] %v292
        %2526 = vst [vmem:[#allocation2 + $0xb8] sm:$0xff] %v293
        %2527 = vst.msk [vmem:[#allocation2 + $0xc0] sm:$0xff] %vm2233, %v294
        %2528 = vrot.lane.b32.xlu0 %v290, 127
        %v2529 = vpop.permute.xlu0 %2528
        %2530 = vrot.lane.b32.xlu0 %v291, 127
        %v2531 = vpop.permute.xlu0 %2530
        %2532 = vrot.lane.b32.xlu0 %v292, 127
        %v2533 = vpop.permute.xlu0 %2532
        %2534 = vrot.lane.b32.xlu0 %v293, 127
        %v2535 = vpop.permute.xlu0 %2534
        %2536 = vrot.lane.b32.xlu0 %v294, 127
        %v2537 = vpop.permute.xlu0 %2536
        %vm2538 = vcmask 1039360
        %v2539 = vsel %vm2538, %v2529, %v2531
        %v2540 = vsel %vm2538, %v2531, %v2533
        %v2541 = vsel %vm2538, %v2533, %v2535
        %v2542 = vsel %vm2538, %v2535, %v2537
        %2547 = vrot.lane.b32.xlu0 %v290, 63
        %v2548 = vpop.permute.xlu0 %2547
        %vm2549 = vcmask 515072
        %v2552 = vsel %vm2549, %v2537, %v2548
        %s2554 = scalar_lea.vmem %s267, 25
        %v2555 = vld [vmem:[%s2554] sm:$0x1f]
        %vm2556 = vcmp.gt.f32.partialorder %v2555, 0.5
        %v2557 = vsel %vm2556, 1, 0
        %v2558 = vlaneseq
        %v2559 = vshrl.u32 %v2558, 7
        %v2560 = vsub.s32 0, %v2559
        %v2561 = vrot.slane %v2557, %v2560
        %v2562 = vlaneseq
        %v2563 = vshrl.u32 %v2562, 7
        %v2564 = vsub.s32 1, %v2563
        %v2565 = vrot.slane %v2557, %v2564
        %v2566 = vlaneseq
        %v2567 = vshrl.u32 %v2566, 7
        %v2568 = vsub.s32 2, %v2567
        %v2569 = vrot.slane %v2557, %v2568
        %v2570 = vlaneseq
        %v2571 = vshrl.u32 %v2570, 7
        %v2572 = vsub.s32 3, %v2571
        %v2573 = vrot.slane %v2557, %v2572
        %v2574 = vlaneseq
        %v2575 = vshrl.u32 %v2574, 7
        %v2576 = vsub.s32 4, %v2575
        %v2577 = vrot.slane %v2557, %v2576
        %vm2578 = vcmp.eq.s32.totalorder %v2561, 1
        %vm2579 = vcmp.eq.s32.totalorder %v2565, 1
        %vm2580 = vcmp.eq.s32.totalorder %v2569, 1
        %vm2581 = vcmp.eq.s32.totalorder %v2573, 1
        %vm2582 = vcmp.eq.s32.totalorder %v2577, 1
        %vm2583 = vmpackc.low %vm2579, %vm2578
        %vm2584 = vmpackc.low %vm2581, %vm2580
        %vm2585 = vmpackc.low %vm2582, %vm2582
        %v2586 = vsel %vm2583, 65537, 0
        %v2587 = vsel %vm2584, 65537, 0
        %v2588 = vsel %vm2585, 65537, 0
        %v2589 = vlaneseq
        %v2590 = vshrl.u32 %v2589, 7
        %v2591 = vsub.s32 0, %v2590
        %v2592 = vrot.slane %v2586, %v2591
        %v2593 = vlaneseq
        %v2594 = vshrl.u32 %v2593, 7
        %v2595 = vsub.s32 4, %v2594
        %v2596 = vrot.slane %v2586, %v2595
        %v2597 = vlaneseq
        %v2598 = vshrl.u32 %v2597, 7
        %v2599 = vsub.s32 0, %v2598
        %v2600 = vrot.slane %v2587, %v2599
        %v2601 = vlaneseq
        %v2602 = vshrl.u32 %v2601, 7
        %v2603 = vsub.s32 4, %v2602
        %v2604 = vrot.slane %v2587, %v2603
        %v2605 = vlaneseq
        %v2606 = vshrl.u32 %v2605, 7
        %v2607 = vsub.s32 0, %v2606
        %v2608 = vrot.slane %v2588, %v2607
        %vm2609 = vcmp.ne.s16.totalorder %v2592, 0
        %vm2610 = vcmp.ne.s16.totalorder %v2596, 0
        %vm2611 = vcmp.ne.s16.totalorder %v2600, 0
        %vm2612 = vcmp.ne.s16.totalorder %v2604, 0
        %vm2613 = vcmp.ne.s16.totalorder %v2608, 0
        %v2614 = vsel %vm2609, %v2539, 0
        %v2615 = vsel %vm2610, %v2540, 0
        %v2616 = vsel %vm2611, %v2541, 0
        %v2617 = vsel %vm2612, %v2542, 0
        %v2618 = vsel %vm2613, %v2552, 0
        %2619 = vst [vmem:[#allocation2 + $0xc8] sm:$0xff] %v2614
        %2620 = vst [vmem:[#allocation2 + $0xd0] sm:$0xff] %v2615
        %2621 = vst [vmem:[#allocation2 + $0xd8] sm:$0xff] %v2616
        %2622 = vst [vmem:[#allocation2 + $0xe0] sm:$0xff] %v2617
        %2623 = vst.msk [vmem:[#allocation2 + $0xe8] sm:$0xff] %vm2233, %v2618
        %2624 = vrot.lane.b32.xlu0 %v290, 121
        %v2625 = vpop.permute.xlu0 %2624
        %2626 = vrot.lane.b32.xlu0 %v291, 121
        %v2627 = vpop.permute.xlu0 %2626
        %2628 = vrot.lane.b32.xlu0 %v292, 121
        %v2629 = vpop.permute.xlu0 %2628
        %2630 = vrot.lane.b32.xlu0 %v293, 121
        %v2631 = vpop.permute.xlu0 %2630
        %2632 = vrot.lane.b32.xlu0 %v294, 121
        %v2633 = vpop.permute.xlu0 %2632
        %vm2634 = vcmask 990208
        %v2635 = vsel %vm2634, %v2625, %v2627
        %v2636 = vsel %vm2634, %v2627, %v2629
        %v2637 = vsel %vm2634, %v2629, %v2631
        %v2638 = vsel %vm2634, %v2631, %v2633
        %2643 = vrot.lane.b32.xlu0 %v290, 57
        %v2644 = vpop.permute.xlu0 %2643
        %vm2645 = vcmask 465920
        %v2648 = vsel %vm2645, %v2633, %v2644
        %s2650 = scalar_lea.vmem %s267, 30
        %v2651 = vld [vmem:[%s2650] sm:$0x1f]
        %vm2652 = vcmp.gt.f32.partialorder %v2651, 0.5
        %v2653 = vsel %vm2652, 1, 0
        %v2654 = vlaneseq
        %v2655 = vshrl.u32 %v2654, 7
        %v2656 = vsub.s32 0, %v2655
        %v2657 = vrot.slane %v2653, %v2656
        %v2658 = vlaneseq
        %v2659 = vshrl.u32 %v2658, 7
        %v2660 = vsub.s32 1, %v2659
        %v2661 = vrot.slane %v2653, %v2660
        %v2662 = vlaneseq
        %v2663 = vshrl.u32 %v2662, 7
        %v2664 = vsub.s32 2, %v2663
        %v2665 = vrot.slane %v2653, %v2664
        %v2666 = vlaneseq
        %v2667 = vshrl.u32 %v2666, 7
        %v2668 = vsub.s32 3, %v2667
        %v2669 = vrot.slane %v2653, %v2668
        %v2670 = vlaneseq
        %v2671 = vshrl.u32 %v2670, 7
        %v2672 = vsub.s32 4, %v2671
        %v2673 = vrot.slane %v2653, %v2672
        %vm2674 = vcmp.eq.s32.totalorder %v2657, 1
        %vm2675 = vcmp.eq.s32.totalorder %v2661, 1
        %vm2676 = vcmp.eq.s32.totalorder %v2665, 1
        %vm2677 = vcmp.eq.s32.totalorder %v2669, 1
        %vm2678 = vcmp.eq.s32.totalorder %v2673, 1
        %vm2679 = vmpackc.low %vm2675, %vm2674
        %vm2680 = vmpackc.low %vm2677, %vm2676
        %vm2681 = vmpackc.low %vm2678, %vm2678
        %v2682 = vsel %vm2679, 65537, 0
        %v2683 = vsel %vm2680, 65537, 0
        %v2684 = vsel %vm2681, 65537, 0
        %v2685 = vlaneseq
        %v2686 = vshrl.u32 %v2685, 7
        %v2687 = vsub.s32 0, %v2686
        %v2688 = vrot.slane %v2682, %v2687
        %v2689 = vlaneseq
        %v2690 = vshrl.u32 %v2689, 7
        %v2691 = vsub.s32 4, %v2690
        %v2692 = vrot.slane %v2682, %v2691
        %v2693 = vlaneseq
        %v2694 = vshrl.u32 %v2693, 7
        %v2695 = vsub.s32 0, %v2694
        %v2696 = vrot.slane %v2683, %v2695
        %v2697 = vlaneseq
        %v2698 = vshrl.u32 %v2697, 7
        %v2699 = vsub.s32 4, %v2698
        %v2700 = vrot.slane %v2683, %v2699
        %v2701 = vlaneseq
        %v2702 = vshrl.u32 %v2701, 7
        %v2703 = vsub.s32 0, %v2702
        %v2704 = vrot.slane %v2684, %v2703
        %vm2705 = vcmp.ne.s16.totalorder %v2688, 0
        %vm2706 = vcmp.ne.s16.totalorder %v2692, 0
        %vm2707 = vcmp.ne.s16.totalorder %v2696, 0
        %vm2708 = vcmp.ne.s16.totalorder %v2700, 0
        %vm2709 = vcmp.ne.s16.totalorder %v2704, 0
        %v2710 = vsel %vm2705, %v2635, 0
        %v2711 = vsel %vm2706, %v2636, 0
        %v2712 = vsel %vm2707, %v2637, 0
        %v2713 = vsel %vm2708, %v2638, 0
        %v2714 = vsel %vm2709, %v2648, 0
        %2715 = vst [vmem:[#allocation2 + $0xf0] sm:$0xff] %v2710
        %2716 = vst [vmem:[#allocation2 + $0xf8] sm:$0xff] %v2711
        %2717 = vst [vmem:[#allocation2 + $0x100] sm:$0xff] %v2712
        %2718 = vst [vmem:[#allocation2 + $0x108] sm:$0xff] %v2713
        %2719 = vst.msk [vmem:[#allocation2 + $0x110] sm:$0xff] %vm2233, %v2714
        %2720 = vrot.lane.b32.xlu0 %v290, 120
        %v2721 = vpop.permute.xlu0 %2720
        %2722 = vrot.lane.b32.xlu0 %v291, 120
        %v2723 = vpop.permute.xlu0 %2722
        %2724 = vrot.lane.b32.xlu0 %v292, 120
        %v2725 = vpop.permute.xlu0 %2724
        %2726 = vrot.lane.b32.xlu0 %v293, 120
        %v2727 = vpop.permute.xlu0 %2726
        %2728 = vrot.lane.b32.xlu0 %v294, 120
        %v2729 = vpop.permute.xlu0 %2728
        %vm2730 = vcmask 982016
        %v2731 = vsel %vm2730, %v2721, %v2723
        %v2732 = vsel %vm2730, %v2723, %v2725
        %v2733 = vsel %vm2730, %v2725, %v2727
        %v2734 = vsel %vm2730, %v2727, %v2729
        %2739 = vrot.lane.b32.xlu0 %v290, 56
        %v2740 = vpop.permute.xlu0 %2739
        %vm2741 = vcmask 457728
        %v2744 = vsel %vm2741, %v2729, %v2740
        %s2746 = scalar_lea.vmem %s267, 35
        %v2747 = vld [vmem:[%s2746] sm:$0x1f]
        %vm2748 = vcmp.gt.f32.partialorder %v2747, 0.5
        %v2749 = vsel %vm2748, 1, 0
        %v2750 = vlaneseq
        %v2751 = vshrl.u32 %v2750, 7
        %v2752 = vsub.s32 0, %v2751
        %v2753 = vrot.slane %v2749, %v2752
        %v2754 = vlaneseq
        %v2755 = vshrl.u32 %v2754, 7
        %v2756 = vsub.s32 1, %v2755
        %v2757 = vrot.slane %v2749, %v2756
        %v2758 = vlaneseq
        %v2759 = vshrl.u32 %v2758, 7
        %v2760 = vsub.s32 2, %v2759
        %v2761 = vrot.slane %v2749, %v2760
        %v2762 = vlaneseq
        %v2763 = vshrl.u32 %v2762, 7
        %v2764 = vsub.s32 3, %v2763
        %v2765 = vrot.slane %v2749, %v2764
        %v2766 = vlaneseq
        %v2767 = vshrl.u32 %v2766, 7
        %v2768 = vsub.s32 4, %v2767
        %v2769 = vrot.slane %v2749, %v2768
        %vm2770 = vcmp.eq.s32.totalorder %v2753, 1
        %vm2771 = vcmp.eq.s32.totalorder %v2757, 1
        %vm2772 = vcmp.eq.s32.totalorder %v2761, 1
        %vm2773 = vcmp.eq.s32.totalorder %v2765, 1
        %vm2774 = vcmp.eq.s32.totalorder %v2769, 1
        %vm2775 = vmpackc.low %vm2771, %vm2770
        %vm2776 = vmpackc.low %vm2773, %vm2772
        %vm2777 = vmpackc.low %vm2774, %vm2774
        %v2778 = vsel %vm2775, 65537, 0
        %v2779 = vsel %vm2776, 65537, 0
        %v2780 = vsel %vm2777, 65537, 0
        %v2781 = vlaneseq
        %v2782 = vshrl.u32 %v2781, 7
        %v2783 = vsub.s32 0, %v2782
        %v2784 = vrot.slane %v2778, %v2783
        %v2785 = vlaneseq
        %v2786 = vshrl.u32 %v2785, 7
        %v2787 = vsub.s32 4, %v2786
        %v2788 = vrot.slane %v2778, %v2787
        %v2789 = vlaneseq
        %v2790 = vshrl.u32 %v2789, 7
        %v2791 = vsub.s32 0, %v2790
        %v2792 = vrot.slane %v2779, %v2791
        %v2793 = vlaneseq
        %v2794 = vshrl.u32 %v2793, 7
        %v2795 = vsub.s32 4, %v2794
        %v2796 = vrot.slane %v2779, %v2795
        %v2797 = vlaneseq
        %v2798 = vshrl.u32 %v2797, 7
        %v2799 = vsub.s32 0, %v2798
        %v2800 = vrot.slane %v2780, %v2799
        %vm2801 = vcmp.ne.s16.totalorder %v2784, 0
        %vm2802 = vcmp.ne.s16.totalorder %v2788, 0
        %vm2803 = vcmp.ne.s16.totalorder %v2792, 0
        %vm2804 = vcmp.ne.s16.totalorder %v2796, 0
        %vm2805 = vcmp.ne.s16.totalorder %v2800, 0
        %v2806 = vsel %vm2801, %v2731, 0
        %v2807 = vsel %vm2802, %v2732, 0
        %v2808 = vsel %vm2803, %v2733, 0
        %v2809 = vsel %vm2804, %v2734, 0
        %v2810 = vsel %vm2805, %v2744, 0
        %2811 = vst [vmem:[#allocation2 + $0x118] sm:$0xff] %v2806
        %2812 = vst [vmem:[#allocation2 + $0x120] sm:$0xff] %v2807
        %2813 = vst [vmem:[#allocation2 + $0x128] sm:$0xff] %v2808
        %2814 = vst [vmem:[#allocation2 + $0x130] sm:$0xff] %v2809
        %2815 = vst.msk [vmem:[#allocation2 + $0x138] sm:$0xff] %vm2233, %v2810
        %2816 = vrot.lane.b32.xlu0 %v290, 119
        %v2817 = vpop.permute.xlu0 %2816
        %2818 = vrot.lane.b32.xlu0 %v291, 119
        %v2819 = vpop.permute.xlu0 %2818
        %2820 = vrot.lane.b32.xlu0 %v292, 119
        %v2821 = vpop.permute.xlu0 %2820
        %2822 = vrot.lane.b32.xlu0 %v293, 119
        %v2823 = vpop.permute.xlu0 %2822
        %2824 = vrot.lane.b32.xlu0 %v294, 119
        %v2825 = vpop.permute.xlu0 %2824
        %vm2826 = vcmask 973824
        %v2827 = vsel %vm2826, %v2817, %v2819
        %v2828 = vsel %vm2826, %v2819, %v2821
        %v2829 = vsel %vm2826, %v2821, %v2823
        %v2830 = vsel %vm2826, %v2823, %v2825
        %2835 = vrot.lane.b32.xlu0 %v290, 55
        %v2836 = vpop.permute.xlu0 %2835
        %vm2837 = vcmask 449536
        %v2840 = vsel %vm2837, %v2825, %v2836
        %s2842 = scalar_lea.vmem %s267, 40
        %v2843 = vld [vmem:[%s2842] sm:$0x1f]
        %vm2844 = vcmp.gt.f32.partialorder %v2843, 0.5
        %v2845 = vsel %vm2844, 1, 0
        %v2846 = vlaneseq
        %v2847 = vshrl.u32 %v2846, 7
        %v2848 = vsub.s32 0, %v2847
        %v2849 = vrot.slane %v2845, %v2848
        %v2850 = vlaneseq
        %v2851 = vshrl.u32 %v2850, 7
        %v2852 = vsub.s32 1, %v2851
        %v2853 = vrot.slane %v2845, %v2852
        %v2854 = vlaneseq
        %v2855 = vshrl.u32 %v2854, 7
        %v2856 = vsub.s32 2, %v2855
        %v2857 = vrot.slane %v2845, %v2856
        %v2858 = vlaneseq
        %v2859 = vshrl.u32 %v2858, 7
        %v2860 = vsub.s32 3, %v2859
        %v2861 = vrot.slane %v2845, %v2860
        %v2862 = vlaneseq
        %v2863 = vshrl.u32 %v2862, 7
        %v2864 = vsub.s32 4, %v2863
        %v2865 = vrot.slane %v2845, %v2864
        %vm2866 = vcmp.eq.s32.totalorder %v2849, 1
        %vm2867 = vcmp.eq.s32.totalorder %v2853, 1
        %vm2868 = vcmp.eq.s32.totalorder %v2857, 1
        %vm2869 = vcmp.eq.s32.totalorder %v2861, 1
        %vm2870 = vcmp.eq.s32.totalorder %v2865, 1
        %vm2871 = vmpackc.low %vm2867, %vm2866
        %vm2872 = vmpackc.low %vm2869, %vm2868
        %vm2873 = vmpackc.low %vm2870, %vm2870
        %v2874 = vsel %vm2871, 65537, 0
        %v2875 = vsel %vm2872, 65537, 0
        %v2876 = vsel %vm2873, 65537, 0
        %v2877 = vlaneseq
        %v2878 = vshrl.u32 %v2877, 7
        %v2879 = vsub.s32 0, %v2878
        %v2880 = vrot.slane %v2874, %v2879
        %v2881 = vlaneseq
        %v2882 = vshrl.u32 %v2881, 7
        %v2883 = vsub.s32 4, %v2882
        %v2884 = vrot.slane %v2874, %v2883
        %v2885 = vlaneseq
        %v2886 = vshrl.u32 %v2885, 7
        %v2887 = vsub.s32 0, %v2886
        %v2888 = vrot.slane %v2875, %v2887
        %v2889 = vlaneseq
        %v2890 = vshrl.u32 %v2889, 7
        %v2891 = vsub.s32 4, %v2890
        %v2892 = vrot.slane %v2875, %v2891
        %v2893 = vlaneseq
        %v2894 = vshrl.u32 %v2893, 7
        %v2895 = vsub.s32 0, %v2894
        %v2896 = vrot.slane %v2876, %v2895
        %vm2897 = vcmp.ne.s16.totalorder %v2880, 0
        %vm2898 = vcmp.ne.s16.totalorder %v2884, 0
        %vm2899 = vcmp.ne.s16.totalorder %v2888, 0
        %vm2900 = vcmp.ne.s16.totalorder %v2892, 0
        %vm2901 = vcmp.ne.s16.totalorder %v2896, 0
        %v2902 = vsel %vm2897, %v2827, 0
        %v2903 = vsel %vm2898, %v2828, 0
        %v2904 = vsel %vm2899, %v2829, 0
        %v2905 = vsel %vm2900, %v2830, 0
        %v2906 = vsel %vm2901, %v2840, 0
        %2907 = vst [vmem:[#allocation2 + $0x140] sm:$0xff] %v2902
        %2908 = vst [vmem:[#allocation2 + $0x148] sm:$0xff] %v2903
        %2909 = vst [vmem:[#allocation2 + $0x150] sm:$0xff] %v2904
        %2910 = vst [vmem:[#allocation2 + $0x158] sm:$0xff] %v2905
        %2911 = vst.msk [vmem:[#allocation2 + $0x160] sm:$0xff] %vm2233, %v2906
        %v2912 = vld [vmem:[%s258] sm:$0xf]
        %v2913 = vld [vmem:[#allocation2] sm:$0xff]
        %v2914 = vld [vmem:[#allocation2 + $0x8] sm:$0xff]
        %v2915 = vld [vmem:[#allocation2 + $0x10] sm:$0xff]
        %v2916 = vld [vmem:[#allocation2 + $0x18] sm:$0xff]
        %v2917 = vld [vmem:[#allocation2 + $0x20] sm:$0xff]
        %v2918 = vld [vmem:[#allocation2 + $0x28] sm:$0xff]
        %v2919 = vld [vmem:[#allocation2 + $0x30] sm:$0xff]
        %v2920 = vld [vmem:[#allocation2 + $0x38] sm:$0xff]
        %v2921 = vld [vmem:[#allocation2 + $0x40] sm:$0xff]
        %v2922 = vld [vmem:[#allocation2 + $0x48] sm:$0xff]
        %v2923 = vld [vmem:[#allocation2 + $0x50] sm:$0xff]
        %v2924 = vld [vmem:[#allocation2 + $0x58] sm:$0xff]
        %v2925 = vld [vmem:[#allocation2 + $0x60] sm:$0xff]
        %v2926 = vld [vmem:[#allocation2 + $0x68] sm:$0xff]
        %v2927 = vld [vmem:[#allocation2 + $0x70] sm:$0xff]
        %v2928 = vld [vmem:[#allocation2 + $0x78] sm:$0xff]
        %v2929 = vld [vmem:[#allocation2 + $0x80] sm:$0xff]
        %v2930 = vld [vmem:[#allocation2 + $0x88] sm:$0xff]
        %v2931 = vld [vmem:[#allocation2 + $0x90] sm:$0xff]
        %v2932 = vld [vmem:[#allocation2 + $0x98] sm:$0xff]
        %v2933 = vld [vmem:[#allocation2 + $0xa0] sm:$0xff]
        %v2934 = vld [vmem:[#allocation2 + $0xa8] sm:$0xff]
        %v2935 = vld [vmem:[#allocation2 + $0xb0] sm:$0xff]
        %v2936 = vld [vmem:[#allocation2 + $0xb8] sm:$0xff]
        %v2937 = vld [vmem:[#allocation2 + $0xc0] sm:$0xff]
        %v2938 = vld [vmem:[#allocation2 + $0xc8] sm:$0xff]
        %v2939 = vld [vmem:[#allocation2 + $0xd0] sm:$0xff]
        %v2940 = vld [vmem:[#allocation2 + $0xd8] sm:$0xff]
        %v2941 = vld [vmem:[#allocation2 + $0xe0] sm:$0xff]
        %v2942 = vld [vmem:[#allocation2 + $0xe8] sm:$0xff]
        %v2943 = vld [vmem:[#allocation2 + $0xf0] sm:$0xff]
        %v2944 = vld [vmem:[#allocation2 + $0xf8] sm:$0xff]
        %v2945 = vld [vmem:[#allocation2 + $0x100] sm:$0xff]
        %v2946 = vld [vmem:[#allocation2 + $0x108] sm:$0xff]
        %v2947 = vld [vmem:[#allocation2 + $0x110] sm:$0xff]
        %v2948 = vld [vmem:[#allocation2 + $0x118] sm:$0xff]
        %v2949 = vld [vmem:[#allocation2 + $0x120] sm:$0xff]
        %v2950 = vld [vmem:[#allocation2 + $0x128] sm:$0xff]
        %v2951 = vld [vmem:[#allocation2 + $0x130] sm:$0xff]
        %v2952 = vld [vmem:[#allocation2 + $0x138] sm:$0xff]
        %v2953 = vld [vmem:[#allocation2 + $0x140] sm:$0xff]
        %v2954 = vld [vmem:[#allocation2 + $0x148] sm:$0xff]
        %v2955 = vld [vmem:[#allocation2 + $0x150] sm:$0xff]
        %v2956 = vld [vmem:[#allocation2 + $0x158] sm:$0xff]
        %v2957 = vld [vmem:[#allocation2 + $0x160] sm:$0xff]
        %v2958 = vld [vmem:[%s263] sm:$0xf]
        %2960 = vset.pattern.permute.xlu0 0
        %2961 = vperm.xlu0 %2960, %v2958
        %v2962 = vpop.permute.xlu0 %2961
        %v2966 = vunpack.c.l.s4 1983009808
        %v2967 = vunpack.c.0.s8 %v2966
        %v2968 = vlaneseq
        %v2969 = vshrl.u32 %v2968, 7
        %v2970 = vsub.s32 %v2967, %v2969
        %v2971 = vrot.slane %v2912, %v2970
        %v2972 = vcombine.high %v2971, %v2971
        %vm2974 = vcmask 130048
        %v2976 = vsel %vm2974, %v2972, 0
        %2978 = vmatprep.subr.bf16.mxu0 %v2914
        %2979 = vmatpush1.bf16.msra.mxu0 %v2913
        %2980 = vmatprep.subr.bf16.mxu0 %v2919
        %2981 = vmatpush1.bf16.msra.mxu0 %v2918
        %2982 = vmatprep.subr.bf16.mxu0 %v2924
        %2983 = vmatpush1.bf16.msra.mxu0 %v2923
        %2984 = vmatprep.subr.bf16.mxu0 %v2929
        %2985 = vmatpush1.bf16.msra.mxu0 %v2928
        %2986 = vmatprep.subr.bf16.mxu0 %v2934
        %2987 = vmatpush1.bf16.msra.mxu0 %v2933
        %2988 = vmatprep.subr.bf16.mxu0 %v2939
        %2989 = vmatpush1.bf16.msra.mxu0 %v2938
        %2990 = vmatprep.subr.bf16.mxu0 %v2944
        %2991 = vmatpush1.bf16.msra.mxu0 %v2943
        %2992 = vmatprep.subr.bf16.mxu0 %v2949
        %2993 = vmatpush1.bf16.msra.mxu0 %v2948
        %2994 = vmatprep.subr.bf16.mxu0 %v2954
        %2995 = vmatpush1.bf16.msra.mxu0 %v2953
        %2996 = vmatprep.subr.bf16.mxu0 0
        %2997 = vmatpush1.bf16.msra.mxu0 0
        %2998 = vmatprep.subr.bf16.mxu0 0
        %2999 = vmatpush1.bf16.msra.mxu0 0
        %3000 = vmatprep.subr.bf16.mxu0 0
        %3001 = vmatpush1.bf16.msra.mxu0 0
        %3002 = vmatprep.subr.bf16.mxu0 0
        %3003 = vmatpush1.bf16.msra.mxu0 0
        %3004 = vmatprep.subr.bf16.mxu0 0
        %3005 = vmatpush1.bf16.msra.mxu0 0
        %3006 = vmatprep.subr.bf16.mxu0 0
        %3007 = vmatpush1.bf16.msra.mxu0 0
        %3008 = vmatprep.subr.bf16.mxu0 0
        %3009 = vmatpush1.bf16.msra.mxu0 0
        %3010 = vmatprep.mubr.bf16.mxu0 %v2976
        %3011 = vmatmul.mubr.bf16.gmra.mrb[0].mxu0 %v2971
        %v3012 = vpop.f32.mrb[0].mxu0
        %v3013 = vadd.f32 %v2962, %v3012
        %v3014 = vpop.f32.mrb[0].mxu0
        %v3015 = vadd.f32 %v2962, %v3014
        %v3016 = vpop.f32.mrb[0].mxu0
        %v3017 = vpop.f32.mrb[0].mxu0
        %3018 = vdwg.mxu0
        %3019 = vmatprep.subr.bf16.mxu0 %v2916
        %3020 = vmatpush1.bf16.msra.mxu0 %v2915
        %3021 = vmatprep.subr.bf16.mxu0 %v2921
        %3022 = vmatpush1.bf16.msra.mxu0 %v2920
        %3023 = vmatprep.subr.bf16.mxu0 %v2926
        %3024 = vmatpush1.bf16.msra.mxu0 %v2925
        %3025 = vmatprep.subr.bf16.mxu0 %v2931
        %3026 = vmatpush1.bf16.msra.mxu0 %v2930
        %3027 = vmatprep.subr.bf16.mxu0 %v2936
        %3028 = vmatpush1.bf16.msra.mxu0 %v2935
        %3029 = vmatprep.subr.bf16.mxu0 %v2941
        %3030 = vmatpush1.bf16.msra.mxu0 %v2940
        %3031 = vmatprep.subr.bf16.mxu0 %v2946
        %3032 = vmatpush1.bf16.msra.mxu0 %v2945
        %3033 = vmatprep.subr.bf16.mxu0 %v2951
        %3034 = vmatpush1.bf16.msra.mxu0 %v2950
        %3035 = vmatprep.subr.bf16.mxu0 %v2956
        %3036 = vmatpush1.bf16.msra.mxu0 %v2955
        %3037 = vmatprep.subr.bf16.mxu0 0
        %3038 = vmatpush1.bf16.msra.mxu0 0
        %3039 = vmatprep.subr.bf16.mxu0 0
        %3040 = vmatpush1.bf16.msra.mxu0 0
        %3041 = vmatprep.subr.bf16.mxu0 0
        %3042 = vmatpush1.bf16.msra.mxu0 0
        %3043 = vmatprep.subr.bf16.mxu0 0
        %3044 = vmatpush1.bf16.msra.mxu0 0
        %3045 = vmatprep.subr.bf16.mxu0 0
        %3046 = vmatpush1.bf16.msra.mxu0 0
        %3047 = vmatprep.subr.bf16.mxu0 0
        %3048 = vmatpush1.bf16.msra.mxu0 0
        %3049 = vmatprep.subr.bf16.mxu0 0
        %3050 = vmatpush1.bf16.msra.mxu0 0
        %3051 = vmatprep.mubr.bf16.mxu0 %v2976
        %3052 = vmatmul.mubr.bf16.gmra.mrb[0].mxu0 %v2971
        %v3053 = vpop.f32.mrb[0].mxu0
        %v3054 = vadd.f32 %v2962, %v3053
        %v3055 = vpop.f32.mrb[0].mxu0
        %v3056 = vadd.f32 %v2962, %v3055
        %v3057 = vpop.f32.mrb[0].mxu0
        %v3058 = vpop.f32.mrb[0].mxu0
        %3059 = vdwg.mxu0
        %3060 = vmatprep.subr.bf16.mxu0 0
        %3061 = vmatpush1.bf16.msra.mxu0 %v2917
        %3062 = vmatprep.subr.bf16.mxu0 0
        %3063 = vmatpush1.bf16.msra.mxu0 %v2922
        %3064 = vmatprep.subr.bf16.mxu0 0
        %3065 = vmatpush1.bf16.msra.mxu0 %v2927
        %3066 = vmatprep.subr.bf16.mxu0 0
        %3067 = vmatpush1.bf16.msra.mxu0 %v2932
        %3068 = vmatprep.subr.bf16.mxu0 0
        %3069 = vmatpush1.bf16.msra.mxu0 %v2937
        %3070 = vmatprep.subr.bf16.mxu0 0
        %3071 = vmatpush1.bf16.msra.mxu0 %v2942
        %3072 = vmatprep.subr.bf16.mxu0 0
        %3073 = vmatpush1.bf16.msra.mxu0 %v2947
        %3074 = vmatprep.subr.bf16.mxu0 0
        %3075 = vmatpush1.bf16.msra.mxu0 %v2952
        %3076 = vmatprep.subr.bf16.mxu0 0
        %3077 = vmatpush1.bf16.msra.mxu0 %v2957
        %3078 = vmatprep.subr.bf16.mxu0 0
        %3079 = vmatpush1.bf16.msra.mxu0 0
        %3080 = vmatprep.subr.bf16.mxu0 0
        %3081 = vmatpush1.bf16.msra.mxu0 0
        %3082 = vmatprep.subr.bf16.mxu0 0
        %3083 = vmatpush1.bf16.msra.mxu0 0
        %3084 = vmatprep.subr.bf16.mxu0 0
        %3085 = vmatpush1.bf16.msra.mxu0 0
        %3086 = vmatprep.subr.bf16.mxu0 0
        %3087 = vmatpush1.bf16.msra.mxu0 0
        %3088 = vmatprep.subr.bf16.mxu0 0
        %3089 = vmatpush1.bf16.msra.mxu0 0
        %3090 = vmatprep.subr.bf16.mxu0 0
        %3091 = vmatpush1.bf16.msra.mxu0 0
        %3092 = vmatprep.mubr.bf16.mxu0 %v2976
        %3093 = vmatmul.mubr.bf16.gmra.mrb[0].mxu0 %v2971
        %v3094 = vpop.f32.mrb[0].mxu0
        %v3095 = vadd.f32 %v2962, %v3094
        %v3096 = vpop.f32.mrb[0].mxu0
        %v3097 = vpop.f32.mrb[0].mxu0
        %v3098 = vpop.f32.mrb[0].mxu0
        %3099 = vdwg.mxu0
        %vm3100 = vcmp.ge.f32.partialorder %v3013, 0.0
        %vm3101 = vcmp.ge.f32.partialorder %v3015, 0.0
        %vm3102 = vcmp.ge.f32.partialorder %v3054, 0.0
        %vm3103 = vcmp.ge.f32.partialorder %v3056, 0.0
        %vm3104 = vcmp.ge.f32.partialorder %v3095, 0.0
        %s3105 = scalar_lea.vmem %s263, 4
        %v3106 = vld [vmem:[%s3105] sm:$0xf]
        %3108 = vset.pattern.permute.xlu0 0
        %3109 = vperm.xlu0 %3108, %v3106
        %v3110 = vpop.permute.xlu0 %3109
        %v3112 = vmul.f32 %v3110, %v3013
        %v3113 = vmul.f32 %v3110, %v3015
        %v3114 = vmul.f32 %v3110, %v3054
        %v3115 = vmul.f32 %v3110, %v3056
        %v3116 = vmul.f32 %v3110, %v3095
        %v3117 = vsel %vm3100, %v3013, %v3112
        %v3118 = vsel %vm3101, %v3015, %v3113
        %v3119 = vsel %vm3102, %v3054, %v3114
        %v3120 = vsel %vm3103, %v3056, %v3115
        %v3121 = vsel %vm3104, %v3095, %v3116
        %v3126 = vcombine.low %v3117, %v3118
        %v3127 = vcombine.low %v3119, %v3120
        %3130 = vst [vmem:[%s276] sm:$0xff] %v3126
        %3131 = vst [vmem:[%s276 + $0x8] sm:$0xff] %v3127
        %vm3132 = vcmask 519168
        %3133 = vst.msk [vmem:[%s276 + $0x10] sm:$0xf] %vm3132, %v3121
      $region48: #{mdfa_forward.4} parent=35 // pred_fallthru
        _
      %p3134 = scmp.eq.s32.totalorder %s20, 3
      // Predicated region
      $region49: #{mdfa_forward.4} parent=35 // pred_check
        %p3135 = pneg %p3134
      $region50: #{mdfa_forward.4} parent=35 // pred_check_branch
        %3137 = sbr.rel (%p3135) target = $region52
      $region51: #{mdfa_forward.4} parent=35 // pred_region
        %3141 = vrot.lane.b32.xlu0 %v292, 64
        %v3142 = vpop.permute.xlu0 %3141
        %3143 = vrot.lane.b32.xlu0 %v293, 64
        %v3144 = vpop.permute.xlu0 %3143
        %3145 = vrot.lane.b32.xlu0 %v294, 64
        %v3146 = vpop.permute.xlu0 %3145
        %vm3147 = vcmask 523264
        %v3148 = vsel %vm3147, %v3142, %v3144
        %v3149 = vsel %vm3147, %v3144, %v3146
        %v3152 = vld [vmem:[%s267] sm:$0x1f]
        %vm3153 = vcmp.gt.f32.partialorder %v3152, 0.5
        %v3154 = vsel %vm3153, 1, 0
        %v3155 = vlaneseq
        %v3156 = vshrl.u32 %v3155, 7
        %v3157 = vsub.s32 0, %v3156
        %v3158 = vrot.slane %v3154, %v3157
        %v3159 = vlaneseq
        %v3160 = vshrl.u32 %v3159, 7
        %v3161 = vsub.s32 1, %v3160
        %v3162 = vrot.slane %v3154, %v3161
        %v3163 = vlaneseq
        %v3164 = vshrl.u32 %v3163, 7
        %v3165 = vsub.s32 2, %v3164
        %v3166 = vrot.slane %v3154, %v3165
        %v3167 = vlaneseq
        %v3168 = vshrl.u32 %v3167, 7
        %v3169 = vsub.s32 3, %v3168
        %v3170 = vrot.slane %v3154, %v3169
        %v3171 = vlaneseq
        %v3172 = vshrl.u32 %v3171, 7
        %v3173 = vsub.s32 4, %v3172
        %v3174 = vrot.slane %v3154, %v3173
        %vm3175 = vcmp.eq.s32.totalorder %v3158, 1
        %vm3176 = vcmp.eq.s32.totalorder %v3162, 1
        %vm3177 = vcmp.eq.s32.totalorder %v3166, 1
        %vm3178 = vcmp.eq.s32.totalorder %v3170, 1
        %vm3179 = vcmp.eq.s32.totalorder %v3174, 1
        %vm3180 = vmpackc.low %vm3176, %vm3175
        %vm3181 = vmpackc.low %vm3178, %vm3177
        %vm3182 = vmpackc.low %vm3179, %vm3179
        %v3183 = vsel %vm3180, 65537, 0
        %v3184 = vsel %vm3181, 65537, 0
        %v3185 = vsel %vm3182, 65537, 0
        %v3186 = vlaneseq
        %v3187 = vshrl.u32 %v3186, 7
        %v3188 = vsub.s32 0, %v3187
        %v3189 = vrot.slane %v3183, %v3188
        %v3190 = vlaneseq
        %v3191 = vshrl.u32 %v3190, 7
        %v3192 = vsub.s32 4, %v3191
        %v3193 = vrot.slane %v3183, %v3192
        %v3194 = vlaneseq
        %v3195 = vshrl.u32 %v3194, 7
        %v3196 = vsub.s32 0, %v3195
        %v3197 = vrot.slane %v3184, %v3196
        %v3198 = vlaneseq
        %v3199 = vshrl.u32 %v3198, 7
        %v3200 = vsub.s32 4, %v3199
        %v3201 = vrot.slane %v3184, %v3200
        %v3202 = vlaneseq
        %v3203 = vshrl.u32 %v3202, 7
        %v3204 = vsub.s32 0, %v3203
        %v3205 = vrot.slane %v3185, %v3204
        %vm3206 = vcmp.ne.s16.totalorder %v3189, 0
        %vm3207 = vcmp.ne.s16.totalorder %v3193, 0
        %vm3208 = vcmp.ne.s16.totalorder %v3197, 0
        %vm3209 = vcmp.ne.s16.totalorder %v3201, 0
        %vm3210 = vcmp.ne.s16.totalorder %v3205, 0
        %v3211 = vsel %vm3206, %v3148, 0
        %v3212 = vsel %vm3207, %v3149, 0
        %v3213 = vsel %vm3208, %v290, 0
        %v3214 = vsel %vm3209, %v291, 0
        %v3215 = vsel %vm3210, %v292, 0
        %3216 = vst [vmem:[#allocation2] sm:$0xff] %v3211
        %3217 = vst [vmem:[#allocation2 + $0x8] sm:$0xff] %v3212
        %3218 = vst [vmem:[#allocation2 + $0x10] sm:$0xff] %v3213
        %3219 = vst [vmem:[#allocation2 + $0x18] sm:$0xff] %v3214
        %vm3220 = vcmask 523264
        %3221 = vst.msk [vmem:[#allocation2 + $0x20] sm:$0xff] %vm3220, %v3215
        %3224 = vrot.lane.b32.xlu0 %v290, 64
        %v3225 = vpop.permute.xlu0 %3224
        %3226 = vrot.lane.b32.xlu0 %v291, 64
        %v3227 = vpop.permute.xlu0 %3226
        %v3228 = vsel %vm3147, %v3225, %v3227
        %v3229 = vsel %vm3147, %v3227, %v3142
        %v3235 = vsel %vm3220, %v294, %v3225
        %s3237 = scalar_lea.vmem %s267, 5
        %v3238 = vld [vmem:[%s3237] sm:$0x1f]
        %vm3239 = vcmp.gt.f32.partialorder %v3238, 0.5
        %v3240 = vsel %vm3239, 1, 0
        %v3241 = vlaneseq
        %v3242 = vshrl.u32 %v3241, 7
        %v3243 = vsub.s32 0, %v3242
        %v3244 = vrot.slane %v3240, %v3243
        %v3245 = vlaneseq
        %v3246 = vshrl.u32 %v3245, 7
        %v3247 = vsub.s32 1, %v3246
        %v3248 = vrot.slane %v3240, %v3247
        %v3249 = vlaneseq
        %v3250 = vshrl.u32 %v3249, 7
        %v3251 = vsub.s32 2, %v3250
        %v3252 = vrot.slane %v3240, %v3251
        %v3253 = vlaneseq
        %v3254 = vshrl.u32 %v3253, 7
        %v3255 = vsub.s32 3, %v3254
        %v3256 = vrot.slane %v3240, %v3255
        %v3257 = vlaneseq
        %v3258 = vshrl.u32 %v3257, 7
        %v3259 = vsub.s32 4, %v3258
        %v3260 = vrot.slane %v3240, %v3259
        %vm3261 = vcmp.eq.s32.totalorder %v3244, 1
        %vm3262 = vcmp.eq.s32.totalorder %v3248, 1
        %vm3263 = vcmp.eq.s32.totalorder %v3252, 1
        %vm3264 = vcmp.eq.s32.totalorder %v3256, 1
        %vm3265 = vcmp.eq.s32.totalorder %v3260, 1
        %vm3266 = vmpackc.low %vm3262, %vm3261
        %vm3267 = vmpackc.low %vm3264, %vm3263
        %vm3268 = vmpackc.low %vm3265, %vm3265
        %v3269 = vsel %vm3266, 65537, 0
        %v3270 = vsel %vm3267, 65537, 0
        %v3271 = vsel %vm3268, 65537, 0
        %v3272 = vlaneseq
        %v3273 = vshrl.u32 %v3272, 7
        %v3274 = vsub.s32 0, %v3273
        %v3275 = vrot.slane %v3269, %v3274
        %v3276 = vlaneseq
        %v3277 = vshrl.u32 %v3276, 7
        %v3278 = vsub.s32 4, %v3277
        %v3279 = vrot.slane %v3269, %v3278
        %v3280 = vlaneseq
        %v3281 = vshrl.u32 %v3280, 7
        %v3282 = vsub.s32 0, %v3281
        %v3283 = vrot.slane %v3270, %v3282
        %v3284 = vlaneseq
        %v3285 = vshrl.u32 %v3284, 7
        %v3286 = vsub.s32 4, %v3285
        %v3287 = vrot.slane %v3270, %v3286
        %v3288 = vlaneseq
        %v3289 = vshrl.u32 %v3288, 7
        %v3290 = vsub.s32 0, %v3289
        %v3291 = vrot.slane %v3271, %v3290
        %vm3292 = vcmp.ne.s16.totalorder %v3275, 0
        %vm3293 = vcmp.ne.s16.totalorder %v3279, 0
        %vm3294 = vcmp.ne.s16.totalorder %v3283, 0
        %vm3295 = vcmp.ne.s16.totalorder %v3287, 0
        %vm3296 = vcmp.ne.s16.totalorder %v3291, 0
        %v3297 = vsel %vm3292, %v293, 0
        %v3298 = vsel %vm3293, %v3235, 0
        %v3299 = vsel %vm3294, %v3228, 0
        %v3300 = vsel %vm3295, %v3229, 0
        %v3301 = vsel %vm3296, %v3142, 0
        %3302 = vst [vmem:[#allocation2 + $0x28] sm:$0xff] %v3297
        %3303 = vst [vmem:[#allocation2 + $0x30] sm:$0xff] %v3298
        %3304 = vst [vmem:[#allocation2 + $0x38] sm:$0xff] %v3299
        %3305 = vst [vmem:[#allocation2 + $0x40] sm:$0xff] %v3300
        %3306 = vst.msk [vmem:[#allocation2 + $0x48] sm:$0xff] %vm3220, %v3301
        %s3307 = scalar_lea.vmem %s267, 10
        %v3308 = vld [vmem:[%s3307] sm:$0x1f]
        %vm3309 = vcmp.gt.f32.partialorder %v3308, 0.5
        %v3310 = vsel %vm3309, 1, 0
        %v3311 = vlaneseq
        %v3312 = vshrl.u32 %v3311, 7
        %v3313 = vsub.s32 0, %v3312
        %v3314 = vrot.slane %v3310, %v3313
        %v3315 = vlaneseq
        %v3316 = vshrl.u32 %v3315, 7
        %v3317 = vsub.s32 1, %v3316
        %v3318 = vrot.slane %v3310, %v3317
        %v3319 = vlaneseq
        %v3320 = vshrl.u32 %v3319, 7
        %v3321 = vsub.s32 2, %v3320
        %v3322 = vrot.slane %v3310, %v3321
        %v3323 = vlaneseq
        %v3324 = vshrl.u32 %v3323, 7
        %v3325 = vsub.s32 3, %v3324
        %v3326 = vrot.slane %v3310, %v3325
        %v3327 = vlaneseq
        %v3328 = vshrl.u32 %v3327, 7
        %v3329 = vsub.s32 4, %v3328
        %v3330 = vrot.slane %v3310, %v3329
        %vm3331 = vcmp.eq.s32.totalorder %v3314, 1
        %vm3332 = vcmp.eq.s32.totalorder %v3318, 1
        %vm3333 = vcmp.eq.s32.totalorder %v3322, 1
        %vm3334 = vcmp.eq.s32.totalorder %v3326, 1
        %vm3335 = vcmp.eq.s32.totalorder %v3330, 1
        %vm3336 = vmpackc.low %vm3332, %vm3331
        %vm3337 = vmpackc.low %vm3334, %vm3333
        %vm3338 = vmpackc.low %vm3335, %vm3335
        %v3339 = vsel %vm3336, 65537, 0
        %v3340 = vsel %vm3337, 65537, 0
        %v3341 = vsel %vm3338, 65537, 0
        %v3342 = vlaneseq
        %v3343 = vshrl.u32 %v3342, 7
        %v3344 = vsub.s32 0, %v3343
        %v3345 = vrot.slane %v3339, %v3344
        %v3346 = vlaneseq
        %v3347 = vshrl.u32 %v3346, 7
        %v3348 = vsub.s32 4, %v3347
        %v3349 = vrot.slane %v3339, %v3348
        %v3350 = vlaneseq
        %v3351 = vshrl.u32 %v3350, 7
        %v3352 = vsub.s32 0, %v3351
        %v3353 = vrot.slane %v3340, %v3352
        %v3354 = vlaneseq
        %v3355 = vshrl.u32 %v3354, 7
        %v3356 = vsub.s32 4, %v3355
        %v3357 = vrot.slane %v3340, %v3356
        %v3358 = vlaneseq
        %v3359 = vshrl.u32 %v3358, 7
        %v3360 = vsub.s32 0, %v3359
        %v3361 = vrot.slane %v3341, %v3360
        %vm3362 = vcmp.ne.s16.totalorder %v3345, 0
        %vm3363 = vcmp.ne.s16.totalorder %v3349, 0
        %vm3364 = vcmp.ne.s16.totalorder %v3353, 0
        %vm3365 = vcmp.ne.s16.totalorder %v3357, 0
        %vm3366 = vcmp.ne.s16.totalorder %v3361, 0
        %v3367 = vsel %vm3362, %v3149, 0
        %v3368 = vsel %vm3363, %v290, 0
        %v3369 = vsel %vm3364, %v291, 0
        %v3370 = vsel %vm3365, %v292, 0
        %v3371 = vsel %vm3366, %v293, 0
        %3372 = vst [vmem:[#allocation2 + $0x50] sm:$0xff] %v3367
        %3373 = vst [vmem:[#allocation2 + $0x58] sm:$0xff] %v3368
        %3374 = vst [vmem:[#allocation2 + $0x60] sm:$0xff] %v3369
        %3375 = vst [vmem:[#allocation2 + $0x68] sm:$0xff] %v3370
        %3376 = vst.msk [vmem:[#allocation2 + $0x70] sm:$0xff] %vm3220, %v3371
        %s3378 = scalar_lea.vmem %s267, 15
        %v3379 = vld [vmem:[%s3378] sm:$0x1f]
        %vm3380 = vcmp.gt.f32.partialorder %v3379, 0.5
        %v3381 = vsel %vm3380, 1, 0
        %v3382 = vlaneseq
        %v3383 = vshrl.u32 %v3382, 7
        %v3384 = vsub.s32 0, %v3383
        %v3385 = vrot.slane %v3381, %v3384
        %v3386 = vlaneseq
        %v3387 = vshrl.u32 %v3386, 7
        %v3388 = vsub.s32 1, %v3387
        %v3389 = vrot.slane %v3381, %v3388
        %v3390 = vlaneseq
        %v3391 = vshrl.u32 %v3390, 7
        %v3392 = vsub.s32 2, %v3391
        %v3393 = vrot.slane %v3381, %v3392
        %v3394 = vlaneseq
        %v3395 = vshrl.u32 %v3394, 7
        %v3396 = vsub.s32 3, %v3395
        %v3397 = vrot.slane %v3381, %v3396
        %v3398 = vlaneseq
        %v3399 = vshrl.u32 %v3398, 7
        %v3400 = vsub.s32 4, %v3399
        %v3401 = vrot.slane %v3381, %v3400
        %vm3402 = vcmp.eq.s32.totalorder %v3385, 1
        %vm3403 = vcmp.eq.s32.totalorder %v3389, 1
        %vm3404 = vcmp.eq.s32.totalorder %v3393, 1
        %vm3405 = vcmp.eq.s32.totalorder %v3397, 1
        %vm3406 = vcmp.eq.s32.totalorder %v3401, 1
        %vm3407 = vmpackc.low %vm3403, %vm3402
        %vm3408 = vmpackc.low %vm3405, %vm3404
        %vm3409 = vmpackc.low %vm3406, %vm3406
        %v3410 = vsel %vm3407, 65537, 0
        %v3411 = vsel %vm3408, 65537, 0
        %v3412 = vsel %vm3409, 65537, 0
        %v3413 = vlaneseq
        %v3414 = vshrl.u32 %v3413, 7
        %v3415 = vsub.s32 0, %v3414
        %v3416 = vrot.slane %v3410, %v3415
        %v3417 = vlaneseq
        %v3418 = vshrl.u32 %v3417, 7
        %v3419 = vsub.s32 4, %v3418
        %v3420 = vrot.slane %v3410, %v3419
        %v3421 = vlaneseq
        %v3422 = vshrl.u32 %v3421, 7
        %v3423 = vsub.s32 0, %v3422
        %v3424 = vrot.slane %v3411, %v3423
        %v3425 = vlaneseq
        %v3426 = vshrl.u32 %v3425, 7
        %v3427 = vsub.s32 4, %v3426
        %v3428 = vrot.slane %v3411, %v3427
        %v3429 = vlaneseq
        %v3430 = vshrl.u32 %v3429, 7
        %v3431 = vsub.s32 0, %v3430
        %v3432 = vrot.slane %v3412, %v3431
        %vm3433 = vcmp.ne.s16.totalorder %v3416, 0
        %vm3434 = vcmp.ne.s16.totalorder %v3420, 0
        %vm3435 = vcmp.ne.s16.totalorder %v3424, 0
        %vm3436 = vcmp.ne.s16.totalorder %v3428, 0
        %vm3437 = vcmp.ne.s16.totalorder %v3432, 0
        %v3438 = vsel %vm3433, %v3235, 0
        %v3439 = vsel %vm3434, %v3228, 0
        %v3440 = vsel %vm3435, %v3229, 0
        %v3441 = vsel %vm3436, %v3148, 0
        %v3442 = vsel %vm3437, %v3144, 0
        %3443 = vst [vmem:[#allocation2 + $0x78] sm:$0xff] %v3438
        %3444 = vst [vmem:[#allocation2 + $0x80] sm:$0xff] %v3439
        %3445 = vst [vmem:[#allocation2 + $0x88] sm:$0xff] %v3440
        %3446 = vst [vmem:[#allocation2 + $0x90] sm:$0xff] %v3441
        %3447 = vst.msk [vmem:[#allocation2 + $0x98] sm:$0xff] %vm3220, %v3442
        %3448 = vst [vmem:[#allocation2 + $0xa0] sm:$0xff] %v290
        %3449 = vst [vmem:[#allocation2 + $0xa8] sm:$0xff] %v291
        %3450 = vst [vmem:[#allocation2 + $0xb0] sm:$0xff] %v292
        %3451 = vst [vmem:[#allocation2 + $0xb8] sm:$0xff] %v293
        %3452 = vst.msk [vmem:[#allocation2 + $0xc0] sm:$0xff] %vm3220, %v294
        %s3453 = scalar_lea.vmem %s267, 25
        %v3454 = vld [vmem:[%s3453] sm:$0x1f]
        %vm3455 = vcmp.gt.f32.partialorder %v3454, 0.5
        %v3456 = vsel %vm3455, 1, 0
        %v3457 = vlaneseq
        %v3458 = vshrl.u32 %v3457, 7
        %v3459 = vsub.s32 0, %v3458
        %v3460 = vrot.slane %v3456, %v3459
        %v3461 = vlaneseq
        %v3462 = vshrl.u32 %v3461, 7
        %v3463 = vsub.s32 1, %v3462
        %v3464 = vrot.slane %v3456, %v3463
        %v3465 = vlaneseq
        %v3466 = vshrl.u32 %v3465, 7
        %v3467 = vsub.s32 2, %v3466
        %v3468 = vrot.slane %v3456, %v3467
        %v3469 = vlaneseq
        %v3470 = vshrl.u32 %v3469, 7
        %v3471 = vsub.s32 3, %v3470
        %v3472 = vrot.slane %v3456, %v3471
        %v3473 = vlaneseq
        %v3474 = vshrl.u32 %v3473, 7
        %v3475 = vsub.s32 4, %v3474
        %v3476 = vrot.slane %v3456, %v3475
        %vm3477 = vcmp.eq.s32.totalorder %v3460, 1
        %vm3478 = vcmp.eq.s32.totalorder %v3464, 1
        %vm3479 = vcmp.eq.s32.totalorder %v3468, 1
        %vm3480 = vcmp.eq.s32.totalorder %v3472, 1
        %vm3481 = vcmp.eq.s32.totalorder %v3476, 1
        %vm3482 = vmpackc.low %vm3478, %vm3477
        %vm3483 = vmpackc.low %vm3480, %vm3479
        %vm3484 = vmpackc.low %vm3481, %vm3481
        %v3485 = vsel %vm3482, 65537, 0
        %v3486 = vsel %vm3483, 65537, 0
        %v3487 = vsel %vm3484, 65537, 0
        %v3488 = vlaneseq
        %v3489 = vshrl.u32 %v3488, 7
        %v3490 = vsub.s32 0, %v3489
        %v3491 = vrot.slane %v3485, %v3490
        %v3492 = vlaneseq
        %v3493 = vshrl.u32 %v3492, 7
        %v3494 = vsub.s32 4, %v3493
        %v3495 = vrot.slane %v3485, %v3494
        %v3496 = vlaneseq
        %v3497 = vshrl.u32 %v3496, 7
        %v3498 = vsub.s32 0, %v3497
        %v3499 = vrot.slane %v3486, %v3498
        %v3500 = vlaneseq
        %v3501 = vshrl.u32 %v3500, 7
        %v3502 = vsub.s32 4, %v3501
        %v3503 = vrot.slane %v3486, %v3502
        %v3504 = vlaneseq
        %v3505 = vshrl.u32 %v3504, 7
        %v3506 = vsub.s32 0, %v3505
        %v3507 = vrot.slane %v3487, %v3506
        %vm3508 = vcmp.ne.s16.totalorder %v3491, 0
        %vm3509 = vcmp.ne.s16.totalorder %v3495, 0
        %vm3510 = vcmp.ne.s16.totalorder %v3499, 0
        %vm3511 = vcmp.ne.s16.totalorder %v3503, 0
        %vm3512 = vcmp.ne.s16.totalorder %v3507, 0
        %v3513 = vsel %vm3508, %v3228, 0
        %v3514 = vsel %vm3509, %v3229, 0
        %v3515 = vsel %vm3510, %v3148, 0
        %v3516 = vsel %vm3511, %v3149, 0
        %v3517 = vsel %vm3512, %v290, 0
        %3518 = vst [vmem:[#allocation2 + $0xc8] sm:$0xff] %v3513
        %3519 = vst [vmem:[#allocation2 + $0xd0] sm:$0xff] %v3514
        %3520 = vst [vmem:[#allocation2 + $0xd8] sm:$0xff] %v3515
        %3521 = vst [vmem:[#allocation2 + $0xe0] sm:$0xff] %v3516
        %3522 = vst.msk [vmem:[#allocation2 + $0xe8] sm:$0xff] %vm3220, %v3517
        %s3524 = scalar_lea.vmem %s267, 30
        %v3525 = vld [vmem:[%s3524] sm:$0x1f]
        %vm3526 = vcmp.gt.f32.partialorder %v3525, 0.5
        %v3527 = vsel %vm3526, 1, 0
        %v3528 = vlaneseq
        %v3529 = vshrl.u32 %v3528, 7
        %v3530 = vsub.s32 0, %v3529
        %v3531 = vrot.slane %v3527, %v3530
        %v3532 = vlaneseq
        %v3533 = vshrl.u32 %v3532, 7
        %v3534 = vsub.s32 1, %v3533
        %v3535 = vrot.slane %v3527, %v3534
        %v3536 = vlaneseq
        %v3537 = vshrl.u32 %v3536, 7
        %v3538 = vsub.s32 2, %v3537
        %v3539 = vrot.slane %v3527, %v3538
        %v3540 = vlaneseq
        %v3541 = vshrl.u32 %v3540, 7
        %v3542 = vsub.s32 3, %v3541
        %v3543 = vrot.slane %v3527, %v3542
        %v3544 = vlaneseq
        %v3545 = vshrl.u32 %v3544, 7
        %v3546 = vsub.s32 4, %v3545
        %v3547 = vrot.slane %v3527, %v3546
        %vm3548 = vcmp.eq.s32.totalorder %v3531, 1
        %vm3549 = vcmp.eq.s32.totalorder %v3535, 1
        %vm3550 = vcmp.eq.s32.totalorder %v3539, 1
        %vm3551 = vcmp.eq.s32.totalorder %v3543, 1
        %vm3552 = vcmp.eq.s32.totalorder %v3547, 1
        %vm3553 = vmpackc.low %vm3549, %vm3548
        %vm3554 = vmpackc.low %vm3551, %vm3550
        %vm3555 = vmpackc.low %vm3552, %vm3552
        %v3556 = vsel %vm3553, 65537, 0
        %v3557 = vsel %vm3554, 65537, 0
        %v3558 = vsel %vm3555, 65537, 0
        %v3559 = vlaneseq
        %v3560 = vshrl.u32 %v3559, 7
        %v3561 = vsub.s32 0, %v3560
        %v3562 = vrot.slane %v3556, %v3561
        %v3563 = vlaneseq
        %v3564 = vshrl.u32 %v3563, 7
        %v3565 = vsub.s32 4, %v3564
        %v3566 = vrot.slane %v3556, %v3565
        %v3567 = vlaneseq
        %v3568 = vshrl.u32 %v3567, 7
        %v3569 = vsub.s32 0, %v3568
        %v3570 = vrot.slane %v3557, %v3569
        %v3571 = vlaneseq
        %v3572 = vshrl.u32 %v3571, 7
        %v3573 = vsub.s32 4, %v3572
        %v3574 = vrot.slane %v3557, %v3573
        %v3575 = vlaneseq
        %v3576 = vshrl.u32 %v3575, 7
        %v3577 = vsub.s32 0, %v3576
        %v3578 = vrot.slane %v3558, %v3577
        %vm3579 = vcmp.ne.s16.totalorder %v3562, 0
        %vm3580 = vcmp.ne.s16.totalorder %v3566, 0
        %vm3581 = vcmp.ne.s16.totalorder %v3570, 0
        %vm3582 = vcmp.ne.s16.totalorder %v3574, 0
        %vm3583 = vcmp.ne.s16.totalorder %v3578, 0
        %v3584 = vsel %vm3579, %v291, 0
        %v3585 = vsel %vm3580, %v292, 0
        %v3586 = vsel %vm3581, %v293, 0
        %v3587 = vsel %vm3582, %v3235, 0
        %v3588 = vsel %vm3583, %v3225, 0
        %3589 = vst [vmem:[#allocation2 + $0xf0] sm:$0xff] %v3584
        %3590 = vst [vmem:[#allocation2 + $0xf8] sm:$0xff] %v3585
        %3591 = vst [vmem:[#allocation2 + $0x100] sm:$0xff] %v3586
        %3592 = vst [vmem:[#allocation2 + $0x108] sm:$0xff] %v3587
        %3593 = vst.msk [vmem:[#allocation2 + $0x110] sm:$0xff] %vm3220, %v3588
        %s3594 = scalar_lea.vmem %s267, 35
        %v3595 = vld [vmem:[%s3594] sm:$0x1f]
        %vm3596 = vcmp.gt.f32.partialorder %v3595, 0.5
        %v3597 = vsel %vm3596, 1, 0
        %v3598 = vlaneseq
        %v3599 = vshrl.u32 %v3598, 7
        %v3600 = vsub.s32 0, %v3599
        %v3601 = vrot.slane %v3597, %v3600
        %v3602 = vlaneseq
        %v3603 = vshrl.u32 %v3602, 7
        %v3604 = vsub.s32 1, %v3603
        %v3605 = vrot.slane %v3597, %v3604
        %v3606 = vlaneseq
        %v3607 = vshrl.u32 %v3606, 7
        %v3608 = vsub.s32 2, %v3607
        %v3609 = vrot.slane %v3597, %v3608
        %v3610 = vlaneseq
        %v3611 = vshrl.u32 %v3610, 7
        %v3612 = vsub.s32 3, %v3611
        %v3613 = vrot.slane %v3597, %v3612
        %v3614 = vlaneseq
        %v3615 = vshrl.u32 %v3614, 7
        %v3616 = vsub.s32 4, %v3615
        %v3617 = vrot.slane %v3597, %v3616
        %vm3618 = vcmp.eq.s32.totalorder %v3601, 1
        %vm3619 = vcmp.eq.s32.totalorder %v3605, 1
        %vm3620 = vcmp.eq.s32.totalorder %v3609, 1
        %vm3621 = vcmp.eq.s32.totalorder %v3613, 1
        %vm3622 = vcmp.eq.s32.totalorder %v3617, 1
        %vm3623 = vmpackc.low %vm3619, %vm3618
        %vm3624 = vmpackc.low %vm3621, %vm3620
        %vm3625 = vmpackc.low %vm3622, %vm3622
        %v3626 = vsel %vm3623, 65537, 0
        %v3627 = vsel %vm3624, 65537, 0
        %v3628 = vsel %vm3625, 65537, 0
        %v3629 = vlaneseq
        %v3630 = vshrl.u32 %v3629, 7
        %v3631 = vsub.s32 0, %v3630
        %v3632 = vrot.slane %v3626, %v3631
        %v3633 = vlaneseq
        %v3634 = vshrl.u32 %v3633, 7
        %v3635 = vsub.s32 4, %v3634
        %v3636 = vrot.slane %v3626, %v3635
        %v3637 = vlaneseq
        %v3638 = vshrl.u32 %v3637, 7
        %v3639 = vsub.s32 0, %v3638
        %v3640 = vrot.slane %v3627, %v3639
        %v3641 = vlaneseq
        %v3642 = vshrl.u32 %v3641, 7
        %v3643 = vsub.s32 4, %v3642
        %v3644 = vrot.slane %v3627, %v3643
        %v3645 = vlaneseq
        %v3646 = vshrl.u32 %v3645, 7
        %v3647 = vsub.s32 0, %v3646
        %v3648 = vrot.slane %v3628, %v3647
        %vm3649 = vcmp.ne.s16.totalorder %v3632, 0
        %vm3650 = vcmp.ne.s16.totalorder %v3636, 0
        %vm3651 = vcmp.ne.s16.totalorder %v3640, 0
        %vm3652 = vcmp.ne.s16.totalorder %v3644, 0
        %vm3653 = vcmp.ne.s16.totalorder %v3648, 0
        %v3654 = vsel %vm3649, %v3229, 0
        %v3655 = vsel %vm3650, %v3148, 0
        %v3656 = vsel %vm3651, %v3149, 0
        %v3657 = vsel %vm3652, %v290, 0
        %v3658 = vsel %vm3653, %v291, 0
        %3659 = vst [vmem:[#allocation2 + $0x118] sm:$0xff] %v3654
        %3660 = vst [vmem:[#allocation2 + $0x120] sm:$0xff] %v3655
        %3661 = vst [vmem:[#allocation2 + $0x128] sm:$0xff] %v3656
        %3662 = vst [vmem:[#allocation2 + $0x130] sm:$0xff] %v3657
        %3663 = vst.msk [vmem:[#allocation2 + $0x138] sm:$0xff] %vm3220, %v3658
        %s3665 = scalar_lea.vmem %s267, 40
        %v3666 = vld [vmem:[%s3665] sm:$0x1f]
        %vm3667 = vcmp.gt.f32.partialorder %v3666, 0.5
        %v3668 = vsel %vm3667, 1, 0
        %v3669 = vlaneseq
        %v3670 = vshrl.u32 %v3669, 7
        %v3671 = vsub.s32 0, %v3670
        %v3672 = vrot.slane %v3668, %v3671
        %v3673 = vlaneseq
        %v3674 = vshrl.u32 %v3673, 7
        %v3675 = vsub.s32 1, %v3674
        %v3676 = vrot.slane %v3668, %v3675
        %v3677 = vlaneseq
        %v3678 = vshrl.u32 %v3677, 7
        %v3679 = vsub.s32 2, %v3678
        %v3680 = vrot.slane %v3668, %v3679
        %v3681 = vlaneseq
        %v3682 = vshrl.u32 %v3681, 7
        %v3683 = vsub.s32 3, %v3682
        %v3684 = vrot.slane %v3668, %v3683
        %v3685 = vlaneseq
        %v3686 = vshrl.u32 %v3685, 7
        %v3687 = vsub.s32 4, %v3686
        %v3688 = vrot.slane %v3668, %v3687
        %vm3689 = vcmp.eq.s32.totalorder %v3672, 1
        %vm3690 = vcmp.eq.s32.totalorder %v3676, 1
        %vm3691 = vcmp.eq.s32.totalorder %v3680, 1
        %vm3692 = vcmp.eq.s32.totalorder %v3684, 1
        %vm3693 = vcmp.eq.s32.totalorder %v3688, 1
        %vm3694 = vmpackc.low %vm3690, %vm3689
        %vm3695 = vmpackc.low %vm3692, %vm3691
        %vm3696 = vmpackc.low %vm3693, %vm3693
        %v3697 = vsel %vm3694, 65537, 0
        %v3698 = vsel %vm3695, 65537, 0
        %v3699 = vsel %vm3696, 65537, 0
        %v3700 = vlaneseq
        %v3701 = vshrl.u32 %v3700, 7
        %v3702 = vsub.s32 0, %v3701
        %v3703 = vrot.slane %v3697, %v3702
        %v3704 = vlaneseq
        %v3705 = vshrl.u32 %v3704, 7
        %v3706 = vsub.s32 4, %v3705
        %v3707 = vrot.slane %v3697, %v3706
        %v3708 = vlaneseq
        %v3709 = vshrl.u32 %v3708, 7
        %v3710 = vsub.s32 0, %v3709
        %v3711 = vrot.slane %v3698, %v3710
        %v3712 = vlaneseq
        %v3713 = vshrl.u32 %v3712, 7
        %v3714 = vsub.s32 4, %v3713
        %v3715 = vrot.slane %v3698, %v3714
        %v3716 = vlaneseq
        %v3717 = vshrl.u32 %v3716, 7
        %v3718 = vsub.s32 0, %v3717
        %v3719 = vrot.slane %v3699, %v3718
        %vm3720 = vcmp.ne.s16.totalorder %v3703, 0
        %vm3721 = vcmp.ne.s16.totalorder %v3707, 0
        %vm3722 = vcmp.ne.s16.totalorder %v3711, 0
        %vm3723 = vcmp.ne.s16.totalorder %v3715, 0
        %vm3724 = vcmp.ne.s16.totalorder %v3719, 0
        %v3725 = vsel %vm3720, %v292, 0
        %v3726 = vsel %vm3721, %v293, 0
        %v3727 = vsel %vm3722, %v3235, 0
        %v3728 = vsel %vm3723, %v3228, 0
        %v3729 = vsel %vm3724, %v3227, 0
        %3730 = vst [vmem:[#allocation2 + $0x140] sm:$0xff] %v3725
        %3731 = vst [vmem:[#allocation2 + $0x148] sm:$0xff] %v3726
        %3732 = vst [vmem:[#allocation2 + $0x150] sm:$0xff] %v3727
        %3733 = vst [vmem:[#allocation2 + $0x158] sm:$0xff] %v3728
        %3734 = vst.msk [vmem:[#allocation2 + $0x160] sm:$0xff] %vm3220, %v3729
        %v3735 = vld [vmem:[%s258] sm:$0xf]
        %v3736 = vld [vmem:[#allocation2] sm:$0xff]
        %v3737 = vld [vmem:[#allocation2 + $0x8] sm:$0xff]
        %v3738 = vld [vmem:[#allocation2 + $0x10] sm:$0xff]
        %v3739 = vld [vmem:[#allocation2 + $0x18] sm:$0xff]
        %v3740 = vld [vmem:[#allocation2 + $0x20] sm:$0xff]
        %v3741 = vld [vmem:[#allocation2 + $0x28] sm:$0xff]
        %v3742 = vld [vmem:[#allocation2 + $0x30] sm:$0xff]
        %v3743 = vld [vmem:[#allocation2 + $0x38] sm:$0xff]
        %v3744 = vld [vmem:[#allocation2 + $0x40] sm:$0xff]
        %v3745 = vld [vmem:[#allocation2 + $0x48] sm:$0xff]
        %v3746 = vld [vmem:[#allocation2 + $0x50] sm:$0xff]
        %v3747 = vld [vmem:[#allocation2 + $0x58] sm:$0xff]
        %v3748 = vld [vmem:[#allocation2 + $0x60] sm:$0xff]
        %v3749 = vld [vmem:[#allocation2 + $0x68] sm:$0xff]
        %v3750 = vld [vmem:[#allocation2 + $0x70] sm:$0xff]
        %v3751 = vld [vmem:[#allocation2 + $0x78] sm:$0xff]
        %v3752 = vld [vmem:[#allocation2 + $0x80] sm:$0xff]
        %v3753 = vld [vmem:[#allocation2 + $0x88] sm:$0xff]
        %v3754 = vld [vmem:[#allocation2 + $0x90] sm:$0xff]
        %v3755 = vld [vmem:[#allocation2 + $0x98] sm:$0xff]
        %v3756 = vld [vmem:[#allocation2 + $0xa0] sm:$0xff]
        %v3757 = vld [vmem:[#allocation2 + $0xa8] sm:$0xff]
        %v3758 = vld [vmem:[#allocation2 + $0xb0] sm:$0xff]
        %v3759 = vld [vmem:[#allocation2 + $0xb8] sm:$0xff]
        %v3760 = vld [vmem:[#allocation2 + $0xc0] sm:$0xff]
        %v3761 = vld [vmem:[#allocation2 + $0xc8] sm:$0xff]
        %v3762 = vld [vmem:[#allocation2 + $0xd0] sm:$0xff]
        %v3763 = vld [vmem:[#allocation2 + $0xd8] sm:$0xff]
        %v3764 = vld [vmem:[#allocation2 + $0xe0] sm:$0xff]
        %v3765 = vld [vmem:[#allocation2 + $0xe8] sm:$0xff]
        %v3766 = vld [vmem:[#allocation2 + $0xf0] sm:$0xff]
        %v3767 = vld [vmem:[#allocation2 + $0xf8] sm:$0xff]
        %v3768 = vld [vmem:[#allocation2 + $0x100] sm:$0xff]
        %v3769 = vld [vmem:[#allocation2 + $0x108] sm:$0xff]
        %v3770 = vld [vmem:[#allocation2 + $0x110] sm:$0xff]
        %v3771 = vld [vmem:[#allocation2 + $0x118] sm:$0xff]
        %v3772 = vld [vmem:[#allocation2 + $0x120] sm:$0xff]
        %v3773 = vld [vmem:[#allocation2 + $0x128] sm:$0xff]
        %v3774 = vld [vmem:[#allocation2 + $0x130] sm:$0xff]
        %v3775 = vld [vmem:[#allocation2 + $0x138] sm:$0xff]
        %v3776 = vld [vmem:[#allocation2 + $0x140] sm:$0xff]
        %v3777 = vld [vmem:[#allocation2 + $0x148] sm:$0xff]
        %v3778 = vld [vmem:[#allocation2 + $0x150] sm:$0xff]
        %v3779 = vld [vmem:[#allocation2 + $0x158] sm:$0xff]
        %v3780 = vld [vmem:[#allocation2 + $0x160] sm:$0xff]
        %v3781 = vld [vmem:[%s263] sm:$0xf]
        %3783 = vset.pattern.permute.xlu0 0
        %3784 = vperm.xlu0 %3783, %v3781
        %v3785 = vpop.permute.xlu0 %3784
        %v3789 = vunpack.c.l.s4 1983009808
        %v3790 = vunpack.c.0.s8 %v3789
        %v3791 = vlaneseq
        %v3792 = vshrl.u32 %v3791, 7
        %v3793 = vsub.s32 %v3790, %v3792
        %v3794 = vrot.slane %v3735, %v3793
        %v3795 = vcombine.high %v3794, %v3794
        %vm3797 = vcmask 130048
        %v3799 = vsel %vm3797, %v3795, 0
        %3801 = vmatprep.subr.bf16.mxu0 %v3737
        %3802 = vmatpush1.bf16.msra.mxu0 %v3736
        %3803 = vmatprep.subr.bf16.mxu0 %v3742
        %3804 = vmatpush1.bf16.msra.mxu0 %v3741
        %3805 = vmatprep.subr.bf16.mxu0 %v3747
        %3806 = vmatpush1.bf16.msra.mxu0 %v3746
        %3807 = vmatprep.subr.bf16.mxu0 %v3752
        %3808 = vmatpush1.bf16.msra.mxu0 %v3751
        %3809 = vmatprep.subr.bf16.mxu0 %v3757
        %3810 = vmatpush1.bf16.msra.mxu0 %v3756
        %3811 = vmatprep.subr.bf16.mxu0 %v3762
        %3812 = vmatpush1.bf16.msra.mxu0 %v3761
        %3813 = vmatprep.subr.bf16.mxu0 %v3767
        %3814 = vmatpush1.bf16.msra.mxu0 %v3766
        %3815 = vmatprep.subr.bf16.mxu0 %v3772
        %3816 = vmatpush1.bf16.msra.mxu0 %v3771
        %3817 = vmatprep.subr.bf16.mxu0 %v3777
        %3818 = vmatpush1.bf16.msra.mxu0 %v3776
        %3819 = vmatprep.subr.bf16.mxu0 0
        %3820 = vmatpush1.bf16.msra.mxu0 0
        %3821 = vmatprep.subr.bf16.mxu0 0
        %3822 = vmatpush1.bf16.msra.mxu0 0
        %3823 = vmatprep.subr.bf16.mxu0 0
        %3824 = vmatpush1.bf16.msra.mxu0 0
        %3825 = vmatprep.subr.bf16.mxu0 0
        %3826 = vmatpush1.bf16.msra.mxu0 0
        %3827 = vmatprep.subr.bf16.mxu0 0
        %3828 = vmatpush1.bf16.msra.mxu0 0
        %3829 = vmatprep.subr.bf16.mxu0 0
        %3830 = vmatpush1.bf16.msra.mxu0 0
        %3831 = vmatprep.subr.bf16.mxu0 0
        %3832 = vmatpush1.bf16.msra.mxu0 0
        %3833 = vmatprep.mubr.bf16.mxu0 %v3799
        %3834 = vmatmul.mubr.bf16.gmra.mrb[0].mxu0 %v3794
        %v3835 = vpop.f32.mrb[0].mxu0
        %v3836 = vadd.f32 %v3785, %v3835
        %v3837 = vpop.f32.mrb[0].mxu0
        %v3838 = vadd.f32 %v3785, %v3837
        %v3839 = vpop.f32.mrb[0].mxu0
        %v3840 = vpop.f32.mrb[0].mxu0
        %3841 = vdwg.mxu0
        %3842 = vmatprep.subr.bf16.mxu0 %v3739
        %3843 = vmatpush1.bf16.msra.mxu0 %v3738
        %3844 = vmatprep.subr.bf16.mxu0 %v3744
        %3845 = vmatpush1.bf16.msra.mxu0 %v3743
        %3846 = vmatprep.subr.bf16.mxu0 %v3749
        %3847 = vmatpush1.bf16.msra.mxu0 %v3748
        %3848 = vmatprep.subr.bf16.mxu0 %v3754
        %3849 = vmatpush1.bf16.msra.mxu0 %v3753
        %3850 = vmatprep.subr.bf16.mxu0 %v3759
        %3851 = vmatpush1.bf16.msra.mxu0 %v3758
        %3852 = vmatprep.subr.bf16.mxu0 %v3764
        %3853 = vmatpush1.bf16.msra.mxu0 %v3763
        %3854 = vmatprep.subr.bf16.mxu0 %v3769
        %3855 = vmatpush1.bf16.msra.mxu0 %v3768
        %3856 = vmatprep.subr.bf16.mxu0 %v3774
        %3857 = vmatpush1.bf16.msra.mxu0 %v3773
        %3858 = vmatprep.subr.bf16.mxu0 %v3779
        %3859 = vmatpush1.bf16.msra.mxu0 %v3778
        %3860 = vmatprep.subr.bf16.mxu0 0
        %3861 = vmatpush1.bf16.msra.mxu0 0
        %3862 = vmatprep.subr.bf16.mxu0 0
        %3863 = vmatpush1.bf16.msra.mxu0 0
        %3864 = vmatprep.subr.bf16.mxu0 0
        %3865 = vmatpush1.bf16.msra.mxu0 0
        %3866 = vmatprep.subr.bf16.mxu0 0
        %3867 = vmatpush1.bf16.msra.mxu0 0
        %3868 = vmatprep.subr.bf16.mxu0 0
        %3869 = vmatpush1.bf16.msra.mxu0 0
        %3870 = vmatprep.subr.bf16.mxu0 0
        %3871 = vmatpush1.bf16.msra.mxu0 0
        %3872 = vmatprep.subr.bf16.mxu0 0
        %3873 = vmatpush1.bf16.msra.mxu0 0
        %3874 = vmatprep.mubr.bf16.mxu0 %v3799
        %3875 = vmatmul.mubr.bf16.gmra.mrb[0].mxu0 %v3794
        %v3876 = vpop.f32.mrb[0].mxu0
        %v3877 = vadd.f32 %v3785, %v3876
        %v3878 = vpop.f32.mrb[0].mxu0
        %v3879 = vadd.f32 %v3785, %v3878
        %v3880 = vpop.f32.mrb[0].mxu0
        %v3881 = vpop.f32.mrb[0].mxu0
        %3882 = vdwg.mxu0
        %3883 = vmatprep.subr.bf16.mxu0 0
        %3884 = vmatpush1.bf16.msra.mxu0 %v3740
        %3885 = vmatprep.subr.bf16.mxu0 0
        %3886 = vmatpush1.bf16.msra.mxu0 %v3745
        %3887 = vmatprep.subr.bf16.mxu0 0
        %3888 = vmatpush1.bf16.msra.mxu0 %v3750
        %3889 = vmatprep.subr.bf16.mxu0 0
        %3890 = vmatpush1.bf16.msra.mxu0 %v3755
        %3891 = vmatprep.subr.bf16.mxu0 0
        %3892 = vmatpush1.bf16.msra.mxu0 %v3760
        %3893 = vmatprep.subr.bf16.mxu0 0
        %3894 = vmatpush1.bf16.msra.mxu0 %v3765
        %3895 = vmatprep.subr.bf16.mxu0 0
        %3896 = vmatpush1.bf16.msra.mxu0 %v3770
        %3897 = vmatprep.subr.bf16.mxu0 0
        %3898 = vmatpush1.bf16.msra.mxu0 %v3775
        %3899 = vmatprep.subr.bf16.mxu0 0
        %3900 = vmatpush1.bf16.msra.mxu0 %v3780
        %3901 = vmatprep.subr.bf16.mxu0 0
        %3902 = vmatpush1.bf16.msra.mxu0 0
        %3903 = vmatprep.subr.bf16.mxu0 0
        %3904 = vmatpush1.bf16.msra.mxu0 0
        %3905 = vmatprep.subr.bf16.mxu0 0
        %3906 = vmatpush1.bf16.msra.mxu0 0
        %3907 = vmatprep.subr.bf16.mxu0 0
        %3908 = vmatpush1.bf16.msra.mxu0 0
        %3909 = vmatprep.subr.bf16.mxu0 0
        %3910 = vmatpush1.bf16.msra.mxu0 0
        %3911 = vmatprep.subr.bf16.mxu0 0
        %3912 = vmatpush1.bf16.msra.mxu0 0
        %3913 = vmatprep.subr.bf16.mxu0 0
        %3914 = vmatpush1.bf16.msra.mxu0 0
        %3915 = vmatprep.mubr.bf16.mxu0 %v3799
        %3916 = vmatmul.mubr.bf16.gmra.mrb[0].mxu0 %v3794
        %v3917 = vpop.f32.mrb[0].mxu0
        %v3918 = vadd.f32 %v3785, %v3917
        %v3919 = vpop.f32.mrb[0].mxu0
        %v3920 = vpop.f32.mrb[0].mxu0
        %v3921 = vpop.f32.mrb[0].mxu0
        %3922 = vdwg.mxu0
        %vm3923 = vcmp.ge.f32.partialorder %v3836, 0.0
        %vm3924 = vcmp.ge.f32.partialorder %v3838, 0.0
        %vm3925 = vcmp.ge.f32.partialorder %v3877, 0.0
        %vm3926 = vcmp.ge.f32.partialorder %v3879, 0.0
        %vm3927 = vcmp.ge.f32.partialorder %v3918, 0.0
        %s3928 = scalar_lea.vmem %s263, 4
        %v3929 = vld [vmem:[%s3928] sm:$0xf]
        %3931 = vset.pattern.permute.xlu0 0
        %3932 = vperm.xlu0 %3931, %v3929
        %v3933 = vpop.permute.xlu0 %3932
        %v3935 = vmul.f32 %v3933, %v3836
        %v3936 = vmul.f32 %v3933, %v3838
        %v3937 = vmul.f32 %v3933, %v3877
        %v3938 = vmul.f32 %v3933, %v3879
        %v3939 = vmul.f32 %v3933, %v3918
        %v3940 = vsel %vm3923, %v3836, %v3935
        %v3941 = vsel %vm3924, %v3838, %v3936
        %v3942 = vsel %vm3925, %v3877, %v3937
        %v3943 = vsel %vm3926, %v3879, %v3938
        %v3944 = vsel %vm3927, %v3918, %v3939
        %v3949 = vcombine.low %v3940, %v3941
        %v3950 = vcombine.low %v3942, %v3943
        %3953 = vst [vmem:[%s276] sm:$0xff] %v3949
        %3954 = vst [vmem:[%s276 + $0x8] sm:$0xff] %v3950
        %vm3955 = vcmask 519168
        %3956 = vst.msk [vmem:[%s276 + $0x10] sm:$0xf] %vm3955, %v3944
      $region52: #{mdfa_forward.4} parent=35 // pred_fallthru
        _
      %p3957 = scmp.lt.s32.totalorder %s19, 1
      %s3958 = scalar_select %p3957, %s19, 1
      %p3959 = scmp.lt.s32.totalorder %s20, 3
      %s3960 = scalar_select %p3959, %s20, 3
      %s3961 = smul.addr %s3960, 5
      %s3962 = smul.addr %s3958, 20
      %s3963 = sadd.s32 %s3961, %s3962
      %s3964 = smul.addr %s3963, 4
      %s3965 = scalar_lea.vmem %s4, %s3964
      // Predicated region
      $region53: #{mdfa_forward.4} parent=35 // pred_check
        %p3966 = pneg %p151
      $region54: #{mdfa_forward.4} parent=35 // pred_check_branch
        %3968 = sbr.rel (%p3966) target = $region56
      $region55: #{mdfa_forward.4} parent=35 // pred_region
        _
      $region56: #{mdfa_forward.4} parent=35 // pred_fallthru
        _
    $region36: #{mdfa_forward.4} parent=5 // pred_fallthru
      _
    %p3969 = scmp.le.s32.totalorder 2, %s10
    // Predicated region
    $region57: #{mdfa_forward.4} parent=5 // pred_check
      %p3970 = pneg %p3969
    $region58: #{mdfa_forward.4} parent=5 // pred_check_branch
      %3972 = sbr.rel (%p3970) target = $region60
    $region59: #{mdfa_forward.4} parent=5 // pred_region
      %s3973 = ssub.s32 %s10, 2
      // Predicated region
      $region61: #{mdfa_forward.4} parent=59 // pred_check
        %p3974 = pneg %p157
      $region62: #{mdfa_forward.4} parent=59 // pred_check_branch
        %3976 = sbr.rel (%p3974) target = $region64
      $region63: #{mdfa_forward.4} parent=59 // pred_region
        %p3977 = scmp.lt.s32.totalorder %s21, 1
        %s3978 = scalar_select %p3977, %s21, 1
        %p3979 = scmp.lt.s32.totalorder %s22, 3
        %s3980 = scalar_select %p3979, %s22, 3
        %s3981 = smul.addr %s3980, 5
        %s3982 = smul.addr %s3978, 20
        %s3983 = sadd.s32 %s3981, %s3982
        %s3984 = smul.addr %s3983, 4
        %s3985 = scalar_lea.vmem %s4, %s3984
      $region64: #{mdfa_forward.4} parent=59 // pred_fallthru
        _
    $region60: #{mdfa_forward.4} parent=5 // pred_fallthru
      _
  $region6: #{mdfa_forward.4} parent=0 // loop_footer
    %s14 = sadd.s32 1, %s10
  $region7: #{mdfa_forward.4} parent=0 // loop_footer_branch
    %9 = sbr.rel target = $region3
  $region8: #{mdfa_forward.4} parent=0 // loop_exit
    _

</llo_original>
